<compile_context>
chip_gen: v7x
topology: tpu7x:2x2x1
jax: 0.10.0
libtpu: 0.0.40
codegen_flags: <defaults>
</compile_context>

<pallas_src>
import functools

import jax
import jax.numpy as jnp
from jax import lax
from jax.experimental import pallas as pl
from jax.experimental.pallas import tpu as pltpu

NEG_SLOPE = 0.01   # nn.LeakyReLU() default
BN_EPS = 1e-5      # nn.BatchNorm2d default
K = 3              # ResidualBlock default kernel_size


def _leaky(x):
    return jnp.where(x > 0, x, NEG_SLOPE * x)


def _vmem_limit_bytes():
    """Generation-aware scoped-VMEM cap: ~3/4 of physical, capped at 100 MiB."""
    cap = 64 * 1024 * 1024
    try:
        cap = int(pltpu.get_tpu_info().vmem_capacity_bytes)
    except Exception:
        pass
    return min(max(cap - cap // 4, 32 * 1024 * 1024), 100 * 1024 * 1024)


_VMEM_LIMIT = _vmem_limit_bytes()


def _cparams():
    return pltpu.CompilerParams(
        dimension_semantics=("parallel",),
        vmem_limit_bytes=_VMEM_LIMIT)


# ---------------------------------------------------------------------------
# stage 1 & 2 kernel:  [BN-affine + LeakyReLU] -> 3x3 conv (pad=1) -> +bias
#                      + one-pass partial BN statistics for this block.
#
#   x_ref       (1, H*W, Cin)     input rows (NHWC, flat per image), bf16
#   scale/shift (1, Cin) f32      folded BN affine of the previous BN
#                                 (unused in stage 1)
#   w_ref       (9, Cin, Cout)    tap-major weights, bf16
#   b_ref       (1, Cout) f32
#   y_ref       (1, H*W, Cout)    pre-BN conv output, bf16 (inter-stage HBM)
#   stats_ref   (1, 2, Cout) f32  per-image [sum, sum_of_squares] over rows
#   pad_ref     (H+2, W+2, Cin)   VMEM scratch: zero border + interior once
# ---------------------------------------------------------------------------
def _conv3x3_bn_stats_kernel(x_ref, scale_ref, shift_ref, w_ref, b_ref,
                             y_ref, stats_ref, pad_ref, *, H, W, pre_bn_act):
    Cin = x_ref.shape[-1]
    Cout = y_ref.shape[-1]
    HW = H * W
    Hp, Wp = H + 2, W + 2
    f32 = jnp.float32
    bf16 = jnp.bfloat16

    h = x_ref[0].astype(f32)
    if pre_bn_act:
        # previous-layer BN (folded scale/shift) + LeakyReLU, in f32
        h = _leaky(h * scale_ref[...] + shift_ref[...])

    # in-kernel zero padding: zero only the 1-pixel border, write interior once
    pad_ref[0:1, :, :] = jnp.zeros((1, Wp, Cin), f32)
    pad_ref[Hp - 1:Hp, :, :] = jnp.zeros((1, Wp, Cin), f32)
    pad_ref[:, 0:1, :] = jnp.zeros((Hp, 1, Cin), f32)
    pad_ref[:, Wp - 1:Wp, :] = jnp.zeros((Hp, 1, Cin), f32)
    pad_ref[1:Hp - 1, 1:Wp - 1, :] = h.reshape(H, W, Cin)

    # 9 per-tap MXU dots (bf16 operands, f32 accumulation), taps sliced
    # straight from the padded scratch -- no materialized im2col matrix.
    acc = jnp.zeros((HW, Cout), f32)
    for t in range(K * K):
        dy, dx = divmod(t, K)
        tap = pad_ref[dy:dy + H, dx:dx + W, :].reshape(HW, Cin).astype(bf16)
        acc = acc + jnp.dot(tap, w_ref[t], preferred_element_type=f32)
    acc = acc + b_ref[...]

    # one-pass partial BN statistics (reduced globally outside the kernel)
    stats_ref[0, 0:1, :] = jnp.sum(acc, axis=0, keepdims=True)
    stats_ref[0, 1:2, :] = jnp.sum(acc * acc, axis=0, keepdims=True)

    y_ref[0] = acc.astype(y_ref.dtype)


# ---------------------------------------------------------------------------
# stage 3 kernel:  out = LeakyReLU( scale2*y2 + shift2  +  x @ ws + bs )
# ---------------------------------------------------------------------------
def _finalize_kernel(y2_ref, x_ref, scale_ref, shift_ref, ws_ref, bs_ref,
                     out_ref):
    main = y2_ref[...].astype(jnp.float32) * scale_ref[...] + shift_ref[...]
    short = jnp.dot(x_ref[...], ws_ref[...],
                    preferred_element_type=jnp.float32) + bs_ref[...]
    out_ref[...] = _leaky(main + short).astype(out_ref.dtype)


def _stats_to_scale_shift(stats, gamma, beta, count):
    """(tiles, 2, C) partial [sum, sumsq] -> folded BN scale / shift (1, C).

    One-pass sum/sumsq in f32; for BN after a conv (near-zero-mean activations
    at these scales) cancellation is benign.  For very large N*H*W a per-tile
    (mean, M2) + Chan combination would be more robust.
    """
    tot = jnp.sum(stats.astype(jnp.float32), axis=0)           # (2, C)
    mean = tot[0] / count
    var = jnp.maximum(tot[1] / count - mean * mean, 0.0)       # biased variance
    scale = gamma.reshape(-1) * lax.rsqrt(var + BN_EPS)
    shift = beta.reshape(-1) - mean * scale
    return scale.reshape(1, -1), shift.reshape(1, -1)


def _row_tile(rows):
    # largest tile that divides rows with >= 2 grid steps; N*H*W is a multiple
    # of small powers of two for all realistic image shapes.
    for t in (4096, 2048, 1024, 512, 256, 128, 64, 32, 16, 8):
        if rows % t == 0 and rows // t >= 2:
            return t
    return rows


def _conv3x3_stage(x_rows, scale, shift, w3d, b, H, W, cout, *, pre_bn_act):
    n, hw, cin = x_rows.shape
    kernel = functools.partial(_conv3x3_bn_stats_kernel,
                               H=H, W=W, pre_bn_act=pre_bn_act)
    return pl.pallas_call(
        kernel,
        grid=(n,),
        in_specs=[
            pl.BlockSpec((1, hw, cin), lambda i: (i, 0, 0)),
            pl.BlockSpec((1, cin), lambda i: (0, 0)),
            pl.BlockSpec((1, cin), lambda i: (0, 0)),
            pl.BlockSpec((K * K, cin, cout), lambda i: (0, 0, 0)),
            pl.BlockSpec((1, cout), lambda i: (0, 0)),
        ],
        out_specs=[
            pl.BlockSpec((1, hw, cout), lambda i: (i, 0, 0)),
            pl.BlockSpec((1, 2, cout), lambda i: (i, 0, 0)),
        ],
        out_shape=[
            jax.ShapeDtypeStruct((n, hw, cout), jnp.bfloat16),  # inter-stage HBM bf16
            jax.ShapeDtypeStruct((n, 2, cout), jnp.float32),    # BN partial stats f32
        ],
        scratch_shapes=[
            pltpu.VMEM((H + 2, W + 2, cin), jnp.float32),
        ],
        compiler_params=_cparams(),
    )(x_rows, scale, shift, w3d, b)


@jax.jit
def residual_block(x_nchw, params):
    """x_nchw: (N, C, H, W) like PyTorch; returns (N, Cout, H, W)."""
    N, Cin, H, W = x_nchw.shape
    Cout = params["ws"].shape[-1]
    HW = H * W
    rows = N * HW
    f32 = jnp.float32
    bf16 = jnp.bfloat16

    # NCHW -> NHWC once, stored bf16 (it is read by both stage 1 and stage 3).
    # TODO(synk): a production pipeline should stay NHWC end-to-end and drop
    # these boundary layout transposes entirely.
    x_rows = jnp.transpose(x_nchw, (0, 2, 3, 1)).astype(bf16).reshape(N, HW, Cin)

    w1 = params["w1"].astype(bf16)                # (9, Cin, Cin)
    w2 = params["w2"].astype(bf16)                # (9, Cin, Cout)
    ws = params["ws"].astype(bf16)                # (Cin, Cout)
    b1 = params["b1"].astype(f32)
    b2 = params["b2"].astype(f32)
    bs = params["bs"].astype(f32)

    one_c = jnp.ones((1, Cin), f32)    # identity affine placeholders (stage 1)
    zero_c = jnp.zeros((1, Cin), f32)

    # -- stage 1: conv1 (Cin -> Cin) + BN1 partial stats ---------------------
    y1, stats1 = _conv3x3_stage(x_rows, one_c, zero_c, w1, b1, H, W, Cin,
                                pre_bn_act=False)
    scale1, shift1 = _stats_to_scale_shift(stats1, params["g1"],
                                           params["be1"], rows)

    # -- stage 2: BN1-apply + LeakyReLU + conv2 (Cin -> Cout) + BN2 stats ----
    y2, stats2 = _conv3x3_stage(y1, scale1, shift1, w2, b2, H, W, Cout,
                                pre_bn_act=True)
    scale2, shift2 = _stats_to_scale_shift(stats2, params["g2"],
                                           params["be2"], rows)

    # -- stage 3: BN2-apply + 1x1 shortcut + residual add + LeakyReLU --------
    tr = _row_tile(rows)
    out_flat = pl.pallas_call(
        _finalize_kernel,
        grid=(rows // tr,),
        in_specs=[
            pl.BlockSpec((tr, Cout), lambda i: (i, 0)),
            pl.BlockSpec((tr, Cin), lambda i: (i, 0)),
            pl.BlockSpec((1, Cout), lambda i: (0, 0)),
            pl.BlockSpec((1, Cout), lambda i: (0, 0)),
            pl.BlockSpec((Cin, Cout), lambda i: (0, 0)),
            pl.BlockSpec((1, Cout), lambda i: (0, 0)),
        ],
        out_specs=pl.BlockSpec((tr, Cout), lambda i: (i, 0)),
        out_shape=jax.ShapeDtypeStruct((rows, Cout), f32),
        compiler_params=_cparams(),
    )(y2.reshape(rows, Cout), x_rows.reshape(rows, Cin),
      scale2, shift2, ws, bs)

    out = out_flat.reshape(N, H, W, Cout)
    return jnp.transpose(out, (0, 3, 1, 2)).astype(x_nchw.dtype)


# ------------------------- deterministic parameter init ---------------------
def init_params(key, cin, cout, k=K):
    ks = jax.random.split(key, 6)

    def kaiming(kk, shape, fan_in, a):
        gain = (2.0 / (1.0 + a * a)) ** 0.5
        std = gain / (fan_in ** 0.5)
        return std * jax.random.normal(kk, shape, jnp.float32)

    def bias(kk, fan_in, n):
        bound = 1.0 / (fan_in ** 0.5)
        return jax.random.uniform(kk, (1, n), jnp.float32, -bound, bound)

    # block conv1: activation LeakyReLU -> kaiming a=NEG_SLOPE
    w1 = kaiming(ks[0], (k * k, cin, cin), cin * k * k, NEG_SLOPE)
    # block conv2: activation None -> kaiming a=0
    w2 = kaiming(ks[1], (k * k, cin, cout), cin * k * k, 0.0)
    # shortcut 1x1: activation None -> kaiming a=0
    ws = kaiming(ks[2], (cin, cout), cin, 0.0)
    b1 = bias(ks[3], cin * k * k, cin)
    b2 = bias(ks[4], cin * k * k, cout)
    bs = bias(ks[5], cin, cout)
    g1 = jnp.ones((1, cin), jnp.float32)
    be1 = jnp.zeros((1, cin), jnp.float32)
    g2 = jnp.ones((1, cout), jnp.float32)
    be2 = jnp.zeros((1, cout), jnp.float32)
    return dict(w1=w1, b1=b1, g1=g1, be1=be1,
                w2=w2, b2=b2, g2=g2, be2=be2,
                ws=ws, bs=bs)


# ----------------------------- pure-JAX reference ---------------------------
def _ref_forward(x_nchw, params):
    """Reference mirroring the kernel's precision choices (bf16 MXU operands,
    bf16 inter-stage tensors, f32 accumulation and f32 BN math)."""
    f32 = jnp.float32
    bf16 = jnp.bfloat16
    x = jnp.transpose(x_nchw, (0, 2, 3, 1)).astype(bf16).astype(f32)

    def conv(inp, w_tap, b, k):
        w = w_tap.reshape(k, k, w_tap.shape[-2], w_tap.shape[-1]).astype(bf16)
        pad = (k - 1) // 2
        out = lax.conv_general_dilated(
            inp.astype(bf16), w, (1, 1), [(pad, pad), (pad, pad)],
            dimension_numbers=("NHWC", "HWIO", "NHWC"),
            preferred_element_type=f32)
        return out + b.reshape(1, 1, 1, -1).astype(f32)

    def bn_fold(v, g, be):
        mean = jnp.mean(v, axis=(0, 1, 2))
        var = jnp.mean(jnp.square(v - mean), axis=(0, 1, 2))
        scale = g.reshape(-1) * lax.rsqrt(var + BN_EPS)
        shift = be.reshape(-1) - mean * scale
        return scale.reshape(1, 1, 1, -1), shift.reshape(1, 1, 1, -1)

    y1 = conv(x, params["w1"], params["b1"], K)
    s1, t1 = bn_fold(y1, params["g1"], params["be1"])
    h = _leaky(y1.astype(bf16).astype(f32) * s1 + t1)     # bf16 stage boundary
    y2 = conv(h, params["w2"], params["b2"], K)
    s2, t2 = bn_fold(y2, params["g2"], params["be2"])
    main = y2.astype(bf16).astype(f32) * s2 + t2           # bf16 stage boundary
    sc = conv(x, params["ws"][None], params["bs"], 1)
    y = _leaky(main + sc)
    return jnp.transpose(y, (0, 3, 1, 2))


if __name__ == "__main__":
    key = jax.random.PRNGKey(0)
    kx, kp = jax.random.split(key)
    N, C, H, W = 2, 4, 16, 16          # small NCHW input, Cout == Cin (stride=1)
    x = jax.random.normal(kx, (N, C, H, W), jnp.float32)
    params = init_params(kp, C, C)

    y = residual_block(x, params)
    jax.block_until_ready(y)

    y_ref = _ref_forward(x, params)
    assert y.shape == (N, C, H, W)
    err = float(jnp.max(jnp.abs(y - y_ref)))
    assert jnp.allclose(y, y_ref, rtol=2e-3, atol=2e-3), f"max abs err {err}"

    print("KERNEL_OK")
</pallas_src>

<mosaic_0001>
module attributes {stable_mosaic.version = 11 : i64} {
  func.func @_conv3x3_bn_stats_kernel(%arg0: i32, %arg1: memref<1x256x4xbf16, #tpu.memory_space<vmem>>, %arg2: memref<1x4xf32, #tpu.memory_space<vmem>>, %arg3: memref<1x4xf32, #tpu.memory_space<vmem>>, %arg4: memref<9x4x4xbf16, #tpu.memory_space<vmem>>, %arg5: memref<1x4xf32, #tpu.memory_space<vmem>>, %arg6: memref<1x256x4xbf16, #tpu.memory_space<vmem>>, %arg7: memref<1x2x4xf32, #tpu.memory_space<vmem>>, %arg8: memref<18x18x4xf32, #tpu.memory_space<vmem>>) attributes {dimension_semantics = [#tpu.dimension_semantics<parallel>], iteration_bounds = array<i64: 2>, scalar_prefetch = 0 : i64, scratch_operands = 1 : i64, tpu.core_type = #tpu.core_type<tc>, window_params = [{transform_indices = @transform_0, window_bounds = array<i64: 1, 256, 4>}, {pipeline_mode = #tpu.pipeline_mode<synchronous>, transform_indices = @transform_1, window_bounds = array<i64: 1, 4>}, {pipeline_mode = #tpu.pipeline_mode<synchronous>, transform_indices = @transform_2, window_bounds = array<i64: 1, 4>}, {pipeline_mode = #tpu.pipeline_mode<synchronous>, transform_indices = @transform_3, window_bounds = array<i64: 9, 4, 4>}, {pipeline_mode = #tpu.pipeline_mode<synchronous>, transform_indices = @transform_4, window_bounds = array<i64: 1, 4>}, {transform_indices = @transform_5, window_bounds = array<i64: 1, 256, 4>}, {transform_indices = @transform_6, window_bounds = array<i64: 1, 2, 4>}]} {
    %c0 = arith.constant 0 : index
    %c0_0 = arith.constant 0 : index
    %c0_1 = arith.constant 0 : index
    %0 = vector.load %arg1[%c0, %c0_0, %c0_1] : memref<1x256x4xbf16, #tpu.memory_space<vmem>>, vector<1x256x4xbf16>
    %1 = vector.shape_cast %0 : vector<1x256x4xbf16> to vector<256x4xbf16>
    %2 = arith.extf %1 : vector<256x4xbf16> to vector<256x4xf32>
    %cst = arith.constant 0.000000e+00 : f32
    %3 = vector.broadcast %cst : f32 to vector<1x18x4xf32>
    %c0_2 = arith.constant 0 : index
    %c0_3 = arith.constant 0 : index
    %c0_4 = arith.constant 0 : index
    %4 = vector.load %arg8[%c0_2, %c0_3, %c0_4] : memref<18x18x4xf32, #tpu.memory_space<vmem>>, vector<1x18x4xf32>
    tpu.vector_store %arg8[%c0_2, %c0_3, %c0_4], %3 {strides = array<i32>} : memref<18x18x4xf32, #tpu.memory_space<vmem>>, vector<1x18x4xf32>,
    %cst_5 = arith.constant 0.000000e+00 : f32
    %5 = vector.broadcast %cst_5 : f32 to vector<1x18x4xf32>
    %c17 = arith.constant 17 : index
    %c0_6 = arith.constant 0 : index
    %c0_7 = arith.constant 0 : index
    %6 = vector.load %arg8[%c17, %c0_6, %c0_7] : memref<18x18x4xf32, #tpu.memory_space<vmem>>, vector<1x18x4xf32>
    tpu.vector_store %arg8[%c17, %c0_6, %c0_7], %5 {strides = array<i32>} : memref<18x18x4xf32, #tpu.memory_space<vmem>>, vector<1x18x4xf32>,
    %cst_8 = arith.constant 0.000000e+00 : f32
    %7 = vector.broadcast %cst_8 : f32 to vector<18x1x4xf32>
    %c0_9 = arith.constant 0 : index
    %c0_10 = arith.constant 0 : index
    %c0_11 = arith.constant 0 : index
    %8 = vector.load %arg8[%c0_9, %c0_10, %c0_11] : memref<18x18x4xf32, #tpu.memory_space<vmem>>, vector<18x1x4xf32>
    tpu.vector_store %arg8[%c0_9, %c0_10, %c0_11], %7 {strides = array<i32>} : memref<18x18x4xf32, #tpu.memory_space<vmem>>, vector<18x1x4xf32>,
    %cst_12 = arith.constant 0.000000e+00 : f32
    %9 = vector.broadcast %cst_12 : f32 to vector<18x1x4xf32>
    %c0_13 = arith.constant 0 : index
    %c17_14 = arith.constant 17 : index
    %c0_15 = arith.constant 0 : index
    %10 = vector.load %arg8[%c0_13, %c17_14, %c0_15] : memref<18x18x4xf32, #tpu.memory_space<vmem>>, vector<18x1x4xf32>
    tpu.vector_store %arg8[%c0_13, %c17_14, %c0_15], %9 {strides = array<i32>} : memref<18x18x4xf32, #tpu.memory_space<vmem>>, vector<18x1x4xf32>,
    %11 = vector.shape_cast %2 : vector<256x4xf32> to vector<16x16x4xf32>
    %c1 = arith.constant 1 : index
    %c1_16 = arith.constant 1 : index
    %c0_17 = arith.constant 0 : index
    %12 = vector.load %arg8[%c1, %c1_16, %c0_17] : memref<18x18x4xf32, #tpu.memory_space<vmem>>, vector<16x16x4xf32>
    tpu.vector_store %arg8[%c1, %c1_16, %c0_17], %11 {strides = array<i32>} : memref<18x18x4xf32, #tpu.memory_space<vmem>>, vector<16x16x4xf32>,
    %cst_18 = arith.constant 0.000000e+00 : f32
    %13 = vector.broadcast %cst_18 : f32 to vector<256x4xf32>
    %c0_19 = arith.constant 0 : index
    %c0_20 = arith.constant 0 : index
    %c0_21 = arith.constant 0 : index
    %14 = vector.load %arg8[%c0_19, %c0_20, %c0_21] : memref<18x18x4xf32, #tpu.memory_space<vmem>>, vector<16x16x4xf32>
    %15 = vector.shape_cast %14 : vector<16x16x4xf32> to vector<256x4xf32>
    %16 = arith.truncf %15 : vector<256x4xf32> to vector<256x4xbf16>
    %c0_22 = arith.constant 0 : index
    %c0_23 = arith.constant 0 : index
    %c0_24 = arith.constant 0 : index
    %17 = vector.load %arg4[%c0_22, %c0_23, %c0_24] : memref<9x4x4xbf16, #tpu.memory_space<vmem>>, vector<1x4x4xbf16>
    %18 = vector.shape_cast %17 : vector<1x4x4xbf16> to vector<4x4xbf16>
    %cst_25 = arith.constant dense<0.000000e+00> : vector<256x4xf32>
    %19 = tpu.matmul %16, %18, %cst_25 {dimension_numbers = #tpu.dot_dimension_numbers<[1], [0], [0], [1], [0, 0, 1, 1], [], []>} : vector<256x4xbf16>, vector<4x4xbf16>, vector<256x4xf32> -> vector<256x4xf32>
    %20 = arith.addf %13, %19 : vector<256x4xf32>
    %c0_26 = arith.constant 0 : index
    %c1_27 = arith.constant 1 : index
    %c0_28 = arith.constant 0 : index
    %21 = vector.load %arg8[%c0_26, %c1_27, %c0_28] : memref<18x18x4xf32, #tpu.memory_space<vmem>>, vector<16x16x4xf32>
    %22 = vector.shape_cast %21 : vector<16x16x4xf32> to vector<256x4xf32>
    %23 = arith.truncf %22 : vector<256x4xf32> to vector<256x4xbf16>
    %c1_29 = arith.constant 1 : index
    %c0_30 = arith.constant 0 : index
    %c0_31 = arith.constant 0 : index
    %24 = vector.load %arg4[%c1_29, %c0_30, %c0_31] : memref<9x4x4xbf16, #tpu.memory_space<vmem>>, vector<1x4x4xbf16>
    %25 = vector.shape_cast %24 : vector<1x4x4xbf16> to vector<4x4xbf16>
    %cst_32 = arith.constant dense<0.000000e+00> : vector<256x4xf32>
    %26 = tpu.matmul %23, %25, %cst_32 {dimension_numbers = #tpu.dot_dimension_numbers<[1], [0], [0], [1], [0, 0, 1, 1], [], []>} : vector<256x4xbf16>, vector<4x4xbf16>, vector<256x4xf32> -> vector<256x4xf32>
    %27 = arith.addf %20, %26 : vector<256x4xf32>
    %c0_33 = arith.constant 0 : index
    %c2 = arith.constant 2 : index
    %c0_34 = arith.constant 0 : index
    %28 = vector.load %arg8[%c0_33, %c2, %c0_34] : memref<18x18x4xf32, #tpu.memory_space<vmem>>, vector<16x16x4xf32>
    %29 = vector.shape_cast %28 : vector<16x16x4xf32> to vector<256x4xf32>
    %30 = arith.truncf %29 : vector<256x4xf32> to vector<256x4xbf16>
    %c2_35 = arith.constant 2 : index
    %c0_36 = arith.constant 0 : index
    %c0_37 = arith.constant 0 : index
    %31 = vector.load %arg4[%c2_35, %c0_36, %c0_37] : memref<9x4x4xbf16, #tpu.memory_space<vmem>>, vector<1x4x4xbf16>
    %32 = vector.shape_cast %31 : vector<1x4x4xbf16> to vector<4x4xbf16>
    %cst_38 = arith.constant dense<0.000000e+00> : vector<256x4xf32>
    %33 = tpu.matmul %30, %32, %cst_38 {dimension_numbers = #tpu.dot_dimension_numbers<[1], [0], [0], [1], [0, 0, 1, 1], [], []>} : vector<256x4xbf16>, vector<4x4xbf16>, vector<256x4xf32> -> vector<256x4xf32>
    %34 = arith.addf %27, %33 : vector<256x4xf32>
    %c1_39 = arith.constant 1 : index
    %c0_40 = arith.constant 0 : index
    %c0_41 = arith.constant 0 : index
    %35 = vector.load %arg8[%c1_39, %c0_40, %c0_41] : memref<18x18x4xf32, #tpu.memory_space<vmem>>, vector<16x16x4xf32>
    %36 = vector.shape_cast %35 : vector<16x16x4xf32> to vector<256x4xf32>
    %37 = arith.truncf %36 : vector<256x4xf32> to vector<256x4xbf16>
    %c3 = arith.constant 3 : index
    %c0_42 = arith.constant 0 : index
    %c0_43 = arith.constant 0 : index
    %38 = vector.load %arg4[%c3, %c0_42, %c0_43] : memref<9x4x4xbf16, #tpu.memory_space<vmem>>, vector<1x4x4xbf16>
    %39 = vector.shape_cast %38 : vector<1x4x4xbf16> to vector<4x4xbf16>
    %cst_44 = arith.constant dense<0.000000e+00> : vector<256x4xf32>
    %40 = tpu.matmul %37, %39, %cst_44 {dimension_numbers = #tpu.dot_dimension_numbers<[1], [0], [0], [1], [0, 0, 1, 1], [], []>} : vector<256x4xbf16>, vector<4x4xbf16>, vector<256x4xf32> -> vector<256x4xf32>
    %41 = arith.addf %34, %40 : vector<256x4xf32>
    %c1_45 = arith.constant 1 : index
    %c1_46 = arith.constant 1 : index
    %c0_47 = arith.constant 0 : index
    %42 = vector.load %arg8[%c1_45, %c1_46, %c0_47] : memref<18x18x4xf32, #tpu.memory_space<vmem>>, vector<16x16x4xf32>
    %43 = vector.shape_cast %42 : vector<16x16x4xf32> to vector<256x4xf32>
    %44 = arith.truncf %43 : vector<256x4xf32> to vector<256x4xbf16>
    %c4 = arith.constant 4 : index
    %c0_48 = arith.constant 0 : index
    %c0_49 = arith.constant 0 : index
    %45 = vector.load %arg4[%c4, %c0_48, %c0_49] : memref<9x4x4xbf16, #tpu.memory_space<vmem>>, vector<1x4x4xbf16>
    %46 = vector.shape_cast %45 : vector<1x4x4xbf16> to vector<4x4xbf16>
    %cst_50 = arith.constant dense<0.000000e+00> : vector<256x4xf32>
    %47 = tpu.matmul %44, %46, %cst_50 {dimension_numbers = #tpu.dot_dimension_numbers<[1], [0], [0], [1], [0, 0, 1, 1], [], []>} : vector<256x4xbf16>, vector<4x4xbf16>, vector<256x4xf32> -> vector<256x4xf32>
    %48 = arith.addf %41, %47 : vector<256x4xf32>
    %c1_51 = arith.constant 1 : index
    %c2_52 = arith.constant 2 : index
    %c0_53 = arith.constant 0 : index
    %49 = vector.load %arg8[%c1_51, %c2_52, %c0_53] : memref<18x18x4xf32, #tpu.memory_space<vmem>>, vector<16x16x4xf32>
    %50 = vector.shape_cast %49 : vector<16x16x4xf32> to vector<256x4xf32>
    %51 = arith.truncf %50 : vector<256x4xf32> to vector<256x4xbf16>
    %c5 = arith.constant 5 : index
    %c0_54 = arith.constant 0 : index
    %c0_55 = arith.constant 0 : index
    %52 = vector.load %arg4[%c5, %c0_54, %c0_55] : memref<9x4x4xbf16, #tpu.memory_space<vmem>>, vector<1x4x4xbf16>
    %53 = vector.shape_cast %52 : vector<1x4x4xbf16> to vector<4x4xbf16>
    %cst_56 = arith.constant dense<0.000000e+00> : vector<256x4xf32>
    %54 = tpu.matmul %51, %53, %cst_56 {dimension_numbers = #tpu.dot_dimension_numbers<[1], [0], [0], [1], [0, 0, 1, 1], [], []>} : vector<256x4xbf16>, vector<4x4xbf16>, vector<256x4xf32> -> vector<256x4xf32>
    %55 = arith.addf %48, %54 : vector<256x4xf32>
    %c2_57 = arith.constant 2 : index
    %c0_58 = arith.constant 0 : index
    %c0_59 = arith.constant 0 : index
    %56 = vector.load %arg8[%c2_57, %c0_58, %c0_59] : memref<18x18x4xf32, #tpu.memory_space<vmem>>, vector<16x16x4xf32>
    %57 = vector.shape_cast %56 : vector<16x16x4xf32> to vector<256x4xf32>
    %58 = arith.truncf %57 : vector<256x4xf32> to vector<256x4xbf16>
    %c6 = arith.constant 6 : index
    %c0_60 = arith.constant 0 : index
    %c0_61 = arith.constant 0 : index
    %59 = vector.load %arg4[%c6, %c0_60, %c0_61] : memref<9x4x4xbf16, #tpu.memory_space<vmem>>, vector<1x4x4xbf16>
    %60 = vector.shape_cast %59 : vector<1x4x4xbf16> to vector<4x4xbf16>
    %cst_62 = arith.constant dense<0.000000e+00> : vector<256x4xf32>
    %61 = tpu.matmul %58, %60, %cst_62 {dimension_numbers = #tpu.dot_dimension_numbers<[1], [0], [0], [1], [0, 0, 1, 1], [], []>} : vector<256x4xbf16>, vector<4x4xbf16>, vector<256x4xf32> -> vector<256x4xf32>
    %62 = arith.addf %55, %61 : vector<256x4xf32>
    %c2_63 = arith.constant 2 : index
    %c1_64 = arith.constant 1 : index
    %c0_65 = arith.constant 0 : index
    %63 = vector.load %arg8[%c2_63, %c1_64, %c0_65] : memref<18x18x4xf32, #tpu.memory_space<vmem>>, vector<16x16x4xf32>
    %64 = vector.shape_cast %63 : vector<16x16x4xf32> to vector<256x4xf32>
    %65 = arith.truncf %64 : vector<256x4xf32> to vector<256x4xbf16>
    %c7 = arith.constant 7 : index
    %c0_66 = arith.constant 0 : index
    %c0_67 = arith.constant 0 : index
    %66 = vector.load %arg4[%c7, %c0_66, %c0_67] : memref<9x4x4xbf16, #tpu.memory_space<vmem>>, vector<1x4x4xbf16>
    %67 = vector.shape_cast %66 : vector<1x4x4xbf16> to vector<4x4xbf16>
    %cst_68 = arith.constant dense<0.000000e+00> : vector<256x4xf32>
    %68 = tpu.matmul %65, %67, %cst_68 {dimension_numbers = #tpu.dot_dimension_numbers<[1], [0], [0], [1], [0, 0, 1, 1], [], []>} : vector<256x4xbf16>, vector<4x4xbf16>, vector<256x4xf32> -> vector<256x4xf32>
    %69 = arith.addf %62, %68 : vector<256x4xf32>
    %c2_69 = arith.constant 2 : index
    %c2_70 = arith.constant 2 : index
    %c0_71 = arith.constant 0 : index
    %70 = vector.load %arg8[%c2_69, %c2_70, %c0_71] : memref<18x18x4xf32, #tpu.memory_space<vmem>>, vector<16x16x4xf32>
    %71 = vector.shape_cast %70 : vector<16x16x4xf32> to vector<256x4xf32>
    %72 = arith.truncf %71 : vector<256x4xf32> to vector<256x4xbf16>
    %c8 = arith.constant 8 : index
    %c0_72 = arith.constant 0 : index
    %c0_73 = arith.constant 0 : index
    %73 = vector.load %arg4[%c8, %c0_72, %c0_73] : memref<9x4x4xbf16, #tpu.memory_space<vmem>>, vector<1x4x4xbf16>
    %74 = vector.shape_cast %73 : vector<1x4x4xbf16> to vector<4x4xbf16>
    %cst_74 = arith.constant dense<0.000000e+00> : vector<256x4xf32>
    %75 = tpu.matmul %72, %74, %cst_74 {dimension_numbers = #tpu.dot_dimension_numbers<[1], [0], [0], [1], [0, 0, 1, 1], [], []>} : vector<256x4xbf16>, vector<4x4xbf16>, vector<256x4xf32> -> vector<256x4xf32>
    %76 = arith.addf %69, %75 : vector<256x4xf32>
    %c0_75 = arith.constant 0 : index
    %c0_76 = arith.constant 0 : index
    %77 = vector.load %arg5[%c0_75, %c0_76] : memref<1x4xf32, #tpu.memory_space<vmem>>, vector<1x4xf32>
    %78 = vector.broadcast %77 : vector<1x4xf32> to vector<256x4xf32>
    %79 = arith.addf %76, %78 : vector<256x4xf32>
    %cst_77 = arith.constant dense<0.000000e+00> : vector<4xf32>
    %80 = vector.multi_reduction <add>, %79, %cst_77 [0] : vector<256x4xf32> to vector<4xf32>
    %81 = vector.shape_cast %80 : vector<4xf32> to vector<1x4xf32>
    %c0_78 = arith.constant 0 : index
    %c0_79 = arith.constant 0 : index
    %c0_80 = arith.constant 0 : index
    %82 = vector.load %arg7[%c0_78, %c0_79, %c0_80] : memref<1x2x4xf32, #tpu.memory_space<vmem>>, vector<1x1x4xf32>
    %83 = vector.shape_cast %82 : vector<1x1x4xf32> to vector<1x4xf32>
    %84 = vector.shape_cast %81 : vector<1x4xf32> to vector<1x1x4xf32>
    tpu.vector_store %arg7[%c0_78, %c0_79, %c0_80], %84 {strides = array<i32>} : memref<1x2x4xf32, #tpu.memory_space<vmem>>, vector<1x1x4xf32>,
    %85 = arith.mulf %79, %79 : vector<256x4xf32>
    %cst_81 = arith.constant dense<0.000000e+00> : vector<4xf32>
    %86 = vector.multi_reduction <add>, %85, %cst_81 [0] : vector<256x4xf32> to vector<4xf32>
    %87 = vector.shape_cast %86 : vector<4xf32> to vector<1x4xf32>
    %c0_82 = arith.constant 0 : index
    %c1_83 = arith.constant 1 : index
    %c0_84 = arith.constant 0 : index
    %88 = vector.load %arg7[%c0_82, %c1_83, %c0_84] : memref<1x2x4xf32, #tpu.memory_space<vmem>>, vector<1x1x4xf32>
    %89 = vector.shape_cast %88 : vector<1x1x4xf32> to vector<1x4xf32>
    %90 = vector.shape_cast %87 : vector<1x4xf32> to vector<1x1x4xf32>
    tpu.vector_store %arg7[%c0_82, %c1_83, %c0_84], %90 {strides = array<i32>} : memref<1x2x4xf32, #tpu.memory_space<vmem>>, vector<1x1x4xf32>,
    %91 = arith.truncf %79 : vector<256x4xf32> to vector<256x4xbf16>
    %c0_85 = arith.constant 0 : index
    %c0_86 = arith.constant 0 : index
    %c0_87 = arith.constant 0 : index
    %92 = vector.load %arg6[%c0_85, %c0_86, %c0_87] : memref<1x256x4xbf16, #tpu.memory_space<vmem>>, vector<1x256x4xbf16>
    %93 = vector.shape_cast %92 : vector<1x256x4xbf16> to vector<256x4xbf16>
    %94 = vector.shape_cast %91 : vector<256x4xbf16> to vector<1x256x4xbf16>
    tpu.vector_store %arg6[%c0_85, %c0_86, %c0_87], %94 {strides = array<i32>} : memref<1x256x4xbf16, #tpu.memory_space<vmem>>, vector<1x256x4xbf16>,
    return
  }
  func.func @transform_0(%arg0: i32) -> (i32, i32, i32) {
    %c0_i32 = arith.constant 0 : i32
    %c0_i32_0 = arith.constant 0 : i32
    %c0_i32_1 = arith.constant 0 : i32
    return %arg0, %c0_i32, %c0_i32_0 : i32, i32, i32
  }
  func.func @transform_1(%arg0: i32) -> (i32, i32) {
    %c0_i32 = arith.constant 0 : i32
    %c0_i32_0 = arith.constant 0 : i32
    %c0_i32_1 = arith.constant 0 : i32
    return %c0_i32, %c0_i32_0 : i32, i32
  }
  func.func @transform_2(%arg0: i32) -> (i32, i32) {
    %c0_i32 = arith.constant 0 : i32
    %c0_i32_0 = arith.constant 0 : i32
    %c0_i32_1 = arith.constant 0 : i32
    return %c0_i32, %c0_i32_0 : i32, i32
  }
  func.func @transform_3(%arg0: i32) -> (i32, i32, i32) {
    %c0_i32 = arith.constant 0 : i32
    %c0_i32_0 = arith.constant 0 : i32
    %c0_i32_1 = arith.constant 0 : i32
    %c0_i32_2 = arith.constant 0 : i32
    return %c0_i32, %c0_i32_0, %c0_i32_1 : i32, i32, i32
  }
  func.func @transform_4(%arg0: i32) -> (i32, i32) {
    %c0_i32 = arith.constant 0 : i32
    %c0_i32_0 = arith.constant 0 : i32
    %c0_i32_1 = arith.constant 0 : i32
    return %c0_i32, %c0_i32_0 : i32, i32
  }
  func.func @transform_5(%arg0: i32) -> (i32, i32, i32) {
    %c0_i32 = arith.constant 0 : i32
    %c0_i32_0 = arith.constant 0 : i32
    %c0_i32_1 = arith.constant 0 : i32
    return %arg0, %c0_i32, %c0_i32_0 : i32, i32, i32
  }
  func.func @transform_6(%arg0: i32) -> (i32, i32, i32) {
    %c0_i32 = arith.constant 0 : i32
    %c0_i32_0 = arith.constant 0 : i32
    %c0_i32_1 = arith.constant 0 : i32
    return %arg0, %c0_i32, %c0_i32_0 : i32, i32, i32
  }
}

module attributes {stable_mosaic.version = 11 : i64} {
  func.func @_finalize_kernel(%arg0: i32, %arg1: memref<256x4xbf16, #tpu.memory_space<vmem>>, %arg2: memref<256x4xbf16, #tpu.memory_space<vmem>>, %arg3: memref<1x4xf32, #tpu.memory_space<vmem>>, %arg4: memref<1x4xf32, #tpu.memory_space<vmem>>, %arg5: memref<4x4xbf16, #tpu.memory_space<vmem>>, %arg6: memref<1x4xf32, #tpu.memory_space<vmem>>, %arg7: memref<256x4xf32, #tpu.memory_space<vmem>>) attributes {dimension_semantics = [#tpu.dimension_semantics<parallel>], iteration_bounds = array<i64: 2>, scalar_prefetch = 0 : i64, scratch_operands = 0 : i64, tpu.core_type = #tpu.core_type<tc>, window_params = [{transform_indices = @transform_0, window_bounds = array<i64: 256, 4>}, {transform_indices = @transform_1, window_bounds = array<i64: 256, 4>}, {pipeline_mode = #tpu.pipeline_mode<synchronous>, transform_indices = @transform_2, window_bounds = array<i64: 1, 4>}, {pipeline_mode = #tpu.pipeline_mode<synchronous>, transform_indices = @transform_3, window_bounds = array<i64: 1, 4>}, {pipeline_mode = #tpu.pipeline_mode<synchronous>, transform_indices = @transform_4, window_bounds = array<i64: 4, 4>}, {pipeline_mode = #tpu.pipeline_mode<synchronous>, transform_indices = @transform_5, window_bounds = array<i64: 1, 4>}, {transform_indices = @transform_6, window_bounds = array<i64: 256, 4>}]} {
    %c0 = arith.constant 0 : index
    %c0_0 = arith.constant 0 : index
    %0 = vector.load %arg1[%c0, %c0_0] : memref<256x4xbf16, #tpu.memory_space<vmem>>, vector<256x4xbf16>
    %1 = arith.extf %0 : vector<256x4xbf16> to vector<256x4xf32>
    %c0_1 = arith.constant 0 : index
    %c0_2 = arith.constant 0 : index
    %2 = vector.load %arg3[%c0_1, %c0_2] : memref<1x4xf32, #tpu.memory_space<vmem>>, vector<1x4xf32>
    %3 = vector.broadcast %2 : vector<1x4xf32> to vector<256x4xf32>
    %4 = arith.mulf %1, %3 : vector<256x4xf32>
    %c0_3 = arith.constant 0 : index
    %c0_4 = arith.constant 0 : index
    %5 = vector.load %arg4[%c0_3, %c0_4] : memref<1x4xf32, #tpu.memory_space<vmem>>, vector<1x4xf32>
    %6 = vector.broadcast %5 : vector<1x4xf32> to vector<256x4xf32>
    %7 = arith.addf %4, %6 : vector<256x4xf32>
    %c0_5 = arith.constant 0 : index
    %c0_6 = arith.constant 0 : index
    %8 = vector.load %arg2[%c0_5, %c0_6] : memref<256x4xbf16, #tpu.memory_space<vmem>>, vector<256x4xbf16>
    %c0_7 = arith.constant 0 : index
    %c0_8 = arith.constant 0 : index
    %9 = vector.load %arg5[%c0_7, %c0_8] : memref<4x4xbf16, #tpu.memory_space<vmem>>, vector<4x4xbf16>
    %cst = arith.constant dense<0.000000e+00> : vector<256x4xf32>
    %10 = tpu.matmul %8, %9, %cst {dimension_numbers = #tpu.dot_dimension_numbers<[1], [0], [0], [1], [0, 0, 1, 1], [], []>} : vector<256x4xbf16>, vector<4x4xbf16>, vector<256x4xf32> -> vector<256x4xf32>
    %c0_9 = arith.constant 0 : index
    %c0_10 = arith.constant 0 : index
    %11 = vector.load %arg6[%c0_9, %c0_10] : memref<1x4xf32, #tpu.memory_space<vmem>>, vector<1x4xf32>
    %12 = vector.broadcast %11 : vector<1x4xf32> to vector<256x4xf32>
    %13 = arith.addf %10, %12 : vector<256x4xf32>
    %14 = arith.addf %7, %13 : vector<256x4xf32>
    %cst_11 = arith.constant 0.000000e+00 : f32
    %15 = vector.broadcast %cst_11 : f32 to vector<256x4xf32>
    %16 = arith.cmpf ogt, %14, %15 : vector<256x4xf32>
    %cst_12 = arith.constant 0.00999999977 : f32
    %17 = vector.broadcast %cst_12 : f32 to vector<256x4xf32>
    %18 = arith.mulf %17, %14 : vector<256x4xf32>
    %19 = arith.select %16, %14, %18 : vector<256x4xi1>, vector<256x4xf32>
    %c0_13 = arith.constant 0 : index
    %c0_14 = arith.constant 0 : index
    %20 = vector.load %arg7[%c0_13, %c0_14] : memref<256x4xf32, #tpu.memory_space<vmem>>, vector<256x4xf32>
    tpu.vector_store %arg7[%c0_13, %c0_14], %19 {strides = array<i32>} : memref<256x4xf32, #tpu.memory_space<vmem>>, vector<256x4xf32>,
    return
  }
  func.func @transform_0(%arg0: i32) -> (i32, i32) {
    %c0_i32 = arith.constant 0 : i32
    %c0_i32_0 = arith.constant 0 : i32
    return %arg0, %c0_i32 : i32, i32
  }
  func.func @transform_1(%arg0: i32) -> (i32, i32) {
    %c0_i32 = arith.constant 0 : i32
    %c0_i32_0 = arith.constant 0 : i32
    return %arg0, %c0_i32 : i32, i32
  }
  func.func @transform_2(%arg0: i32) -> (i32, i32) {
    %c0_i32 = arith.constant 0 : i32
    %c0_i32_0 = arith.constant 0 : i32
    %c0_i32_1 = arith.constant 0 : i32
    return %c0_i32, %c0_i32_0 : i32, i32
  }
  func.func @transform_3(%arg0: i32) -> (i32, i32) {
    %c0_i32 = arith.constant 0 : i32
    %c0_i32_0 = arith.constant 0 : i32
    %c0_i32_1 = arith.constant 0 : i32
    return %c0_i32, %c0_i32_0 : i32, i32
  }
  func.func @transform_4(%arg0: i32) -> (i32, i32) {
    %c0_i32 = arith.constant 0 : i32
    %c0_i32_0 = arith.constant 0 : i32
    %c0_i32_1 = arith.constant 0 : i32
    return %c0_i32, %c0_i32_0 : i32, i32
  }
  func.func @transform_5(%arg0: i32) -> (i32, i32) {
    %c0_i32 = arith.constant 0 : i32
    %c0_i32_0 = arith.constant 0 : i32
    %c0_i32_1 = arith.constant 0 : i32
    return %c0_i32, %c0_i32_0 : i32, i32
  }
  func.func @transform_6(%arg0: i32) -> (i32, i32) {
    %c0_i32 = arith.constant 0 : i32
    %c0_i32_0 = arith.constant 0 : i32
    return %arg0, %c0_i32 : i32, i32
  }
}

module attributes {stable_mosaic.version = 11 : i64} {
  func.func @_conv3x3_bn_stats_kernel(%arg0: i32, %arg1: memref<1x256x4xbf16, #tpu.memory_space<vmem>>, %arg2: memref<1x4xf32, #tpu.memory_space<vmem>>, %arg3: memref<1x4xf32, #tpu.memory_space<vmem>>, %arg4: memref<9x4x4xbf16, #tpu.memory_space<vmem>>, %arg5: memref<1x4xf32, #tpu.memory_space<vmem>>, %arg6: memref<1x256x4xbf16, #tpu.memory_space<vmem>>, %arg7: memref<1x2x4xf32, #tpu.memory_space<vmem>>, %arg8: memref<18x18x4xf32, #tpu.memory_space<vmem>>) attributes {dimension_semantics = [#tpu.dimension_semantics<parallel>], iteration_bounds = array<i64: 2>, scalar_prefetch = 0 : i64, scratch_operands = 1 : i64, tpu.core_type = #tpu.core_type<tc>, window_params = [{transform_indices = @transform_0, window_bounds = array<i64: 1, 256, 4>}, {pipeline_mode = #tpu.pipeline_mode<synchronous>, transform_indices = @transform_1, window_bounds = array<i64: 1, 4>}, {pipeline_mode = #tpu.pipeline_mode<synchronous>, transform_indices = @transform_2, window_bounds = array<i64: 1, 4>}, {pipeline_mode = #tpu.pipeline_mode<synchronous>, transform_indices = @transform_3, window_bounds = array<i64: 9, 4, 4>}, {pipeline_mode = #tpu.pipeline_mode<synchronous>, transform_indices = @transform_4, window_bounds = array<i64: 1, 4>}, {transform_indices = @transform_5, window_bounds = array<i64: 1, 256, 4>}, {transform_indices = @transform_6, window_bounds = array<i64: 1, 2, 4>}]} {
    %c0 = arith.constant 0 : index
    %c0_0 = arith.constant 0 : index
    %c0_1 = arith.constant 0 : index
    %0 = vector.load %arg1[%c0, %c0_0, %c0_1] : memref<1x256x4xbf16, #tpu.memory_space<vmem>>, vector<1x256x4xbf16>
    %1 = vector.shape_cast %0 : vector<1x256x4xbf16> to vector<256x4xbf16>
    %2 = arith.extf %1 : vector<256x4xbf16> to vector<256x4xf32>
    %c0_2 = arith.constant 0 : index
    %c0_3 = arith.constant 0 : index
    %3 = vector.load %arg2[%c0_2, %c0_3] : memref<1x4xf32, #tpu.memory_space<vmem>>, vector<1x4xf32>
    %4 = vector.broadcast %3 : vector<1x4xf32> to vector<256x4xf32>
    %5 = arith.mulf %2, %4 : vector<256x4xf32>
    %c0_4 = arith.constant 0 : index
    %c0_5 = arith.constant 0 : index
    %6 = vector.load %arg3[%c0_4, %c0_5] : memref<1x4xf32, #tpu.memory_space<vmem>>, vector<1x4xf32>
    %7 = vector.broadcast %6 : vector<1x4xf32> to vector<256x4xf32>
    %8 = arith.addf %5, %7 : vector<256x4xf32>
    %cst = arith.constant 0.000000e+00 : f32
    %9 = vector.broadcast %cst : f32 to vector<256x4xf32>
    %10 = arith.cmpf ogt, %8, %9 : vector<256x4xf32>
    %cst_6 = arith.constant 0.00999999977 : f32
    %11 = vector.broadcast %cst_6 : f32 to vector<256x4xf32>
    %12 = arith.mulf %11, %8 : vector<256x4xf32>
    %13 = arith.select %10, %8, %12 : vector<256x4xi1>, vector<256x4xf32>
    %cst_7 = arith.constant 0.000000e+00 : f32
    %14 = vector.broadcast %cst_7 : f32 to vector<1x18x4xf32>
    %c0_8 = arith.constant 0 : index
    %c0_9 = arith.constant 0 : index
    %c0_10 = arith.constant 0 : index
    %15 = vector.load %arg8[%c0_8, %c0_9, %c0_10] : memref<18x18x4xf32, #tpu.memory_space<vmem>>, vector<1x18x4xf32>
    tpu.vector_store %arg8[%c0_8, %c0_9, %c0_10], %14 {strides = array<i32>} : memref<18x18x4xf32, #tpu.memory_space<vmem>>, vector<1x18x4xf32>,
    %cst_11 = arith.constant 0.000000e+00 : f32
    %16 = vector.broadcast %cst_11 : f32 to vector<1x18x4xf32>
    %c17 = arith.constant 17 : index
    %c0_12 = arith.constant 0 : index
    %c0_13 = arith.constant 0 : index
    %17 = vector.load %arg8[%c17, %c0_12, %c0_13] : memref<18x18x4xf32, #tpu.memory_space<vmem>>, vector<1x18x4xf32>
    tpu.vector_store %arg8[%c17, %c0_12, %c0_13], %16 {strides = array<i32>} : memref<18x18x4xf32, #tpu.memory_space<vmem>>, vector<1x18x4xf32>,
    %cst_14 = arith.constant 0.000000e+00 : f32
    %18 = vector.broadcast %cst_14 : f32 to vector<18x1x4xf32>
    %c0_15 = arith.constant 0 : index
    %c0_16 = arith.constant 0 : index
    %c0_17 = arith.constant 0 : index
    %19 = vector.load %arg8[%c0_15, %c0_16, %c0_17] : memref<18x18x4xf32, #tpu.memory_space<vmem>>, vector<18x1x4xf32>
    tpu.vector_store %arg8[%c0_15, %c0_16, %c0_17], %18 {strides = array<i32>} : memref<18x18x4xf32, #tpu.memory_space<vmem>>, vector<18x1x4xf32>,
    %cst_18 = arith.constant 0.000000e+00 : f32
    %20 = vector.broadcast %cst_18 : f32 to vector<18x1x4xf32>
    %c0_19 = arith.constant 0 : index
    %c17_20 = arith.constant 17 : index
    %c0_21 = arith.constant 0 : index
    %21 = vector.load %arg8[%c0_19, %c17_20, %c0_21] : memref<18x18x4xf32, #tpu.memory_space<vmem>>, vector<18x1x4xf32>
    tpu.vector_store %arg8[%c0_19, %c17_20, %c0_21], %20 {strides = array<i32>} : memref<18x18x4xf32, #tpu.memory_space<vmem>>, vector<18x1x4xf32>,
    %22 = vector.shape_cast %13 : vector<256x4xf32> to vector<16x16x4xf32>
    %c1 = arith.constant 1 : index
    %c1_22 = arith.constant 1 : index
    %c0_23 = arith.constant 0 : index
    %23 = vector.load %arg8[%c1, %c1_22, %c0_23] : memref<18x18x4xf32, #tpu.memory_space<vmem>>, vector<16x16x4xf32>
    tpu.vector_store %arg8[%c1, %c1_22, %c0_23], %22 {strides = array<i32>} : memref<18x18x4xf32, #tpu.memory_space<vmem>>, vector<16x16x4xf32>,
    %cst_24 = arith.constant 0.000000e+00 : f32
    %24 = vector.broadcast %cst_24 : f32 to vector<256x4xf32>
    %c0_25 = arith.constant 0 : index
    %c0_26 = arith.constant 0 : index
    %c0_27 = arith.constant 0 : index
    %25 = vector.load %arg8[%c0_25, %c0_26, %c0_27] : memref<18x18x4xf32, #tpu.memory_space<vmem>>, vector<16x16x4xf32>
    %26 = vector.shape_cast %25 : vector<16x16x4xf32> to vector<256x4xf32>
    %27 = arith.truncf %26 : vector<256x4xf32> to vector<256x4xbf16>
    %c0_28 = arith.constant 0 : index
    %c0_29 = arith.constant 0 : index
    %c0_30 = arith.constant 0 : index
    %28 = vector.load %arg4[%c0_28, %c0_29, %c0_30] : memref<9x4x4xbf16, #tpu.memory_space<vmem>>, vector<1x4x4xbf16>
    %29 = vector.shape_cast %28 : vector<1x4x4xbf16> to vector<4x4xbf16>
    %cst_31 = arith.constant dense<0.000000e+00> : vector<256x4xf32>
    %30 = tpu.matmul %27, %29, %cst_31 {dimension_numbers = #tpu.dot_dimension_numbers<[1], [0], [0], [1], [0, 0, 1, 1], [], []>} : vector<256x4xbf16>, vector<4x4xbf16>, vector<256x4xf32> -> vector<256x4xf32>
    %31 = arith.addf %24, %30 : vector<256x4xf32>
    %c0_32 = arith.constant 0 : index
    %c1_33 = arith.constant 1 : index
    %c0_34 = arith.constant 0 : index
    %32 = vector.load %arg8[%c0_32, %c1_33, %c0_34] : memref<18x18x4xf32, #tpu.memory_space<vmem>>, vector<16x16x4xf32>
    %33 = vector.shape_cast %32 : vector<16x16x4xf32> to vector<256x4xf32>
    %34 = arith.truncf %33 : vector<256x4xf32> to vector<256x4xbf16>
    %c1_35 = arith.constant 1 : index
    %c0_36 = arith.constant 0 : index
    %c0_37 = arith.constant 0 : index
    %35 = vector.load %arg4[%c1_35, %c0_36, %c0_37] : memref<9x4x4xbf16, #tpu.memory_space<vmem>>, vector<1x4x4xbf16>
    %36 = vector.shape_cast %35 : vector<1x4x4xbf16> to vector<4x4xbf16>
    %cst_38 = arith.constant dense<0.000000e+00> : vector<256x4xf32>
    %37 = tpu.matmul %34, %36, %cst_38 {dimension_numbers = #tpu.dot_dimension_numbers<[1], [0], [0], [1], [0, 0, 1, 1], [], []>} : vector<256x4xbf16>, vector<4x4xbf16>, vector<256x4xf32> -> vector<256x4xf32>
    %38 = arith.addf %31, %37 : vector<256x4xf32>
    %c0_39 = arith.constant 0 : index
    %c2 = arith.constant 2 : index
    %c0_40 = arith.constant 0 : index
    %39 = vector.load %arg8[%c0_39, %c2, %c0_40] : memref<18x18x4xf32, #tpu.memory_space<vmem>>, vector<16x16x4xf32>
    %40 = vector.shape_cast %39 : vector<16x16x4xf32> to vector<256x4xf32>
    %41 = arith.truncf %40 : vector<256x4xf32> to vector<256x4xbf16>
    %c2_41 = arith.constant 2 : index
    %c0_42 = arith.constant 0 : index
    %c0_43 = arith.constant 0 : index
    %42 = vector.load %arg4[%c2_41, %c0_42, %c0_43] : memref<9x4x4xbf16, #tpu.memory_space<vmem>>, vector<1x4x4xbf16>
    %43 = vector.shape_cast %42 : vector<1x4x4xbf16> to vector<4x4xbf16>
    %cst_44 = arith.constant dense<0.000000e+00> : vector<256x4xf32>
    %44 = tpu.matmul %41, %43, %cst_44 {dimension_numbers = #tpu.dot_dimension_numbers<[1], [0], [0], [1], [0, 0, 1, 1], [], []>} : vector<256x4xbf16>, vector<4x4xbf16>, vector<256x4xf32> -> vector<256x4xf32>
    %45 = arith.addf %38, %44 : vector<256x4xf32>
    %c1_45 = arith.constant 1 : index
    %c0_46 = arith.constant 0 : index
    %c0_47 = arith.constant 0 : index
    %46 = vector.load %arg8[%c1_45, %c0_46, %c0_47] : memref<18x18x4xf32, #tpu.memory_space<vmem>>, vector<16x16x4xf32>
    %47 = vector.shape_cast %46 : vector<16x16x4xf32> to vector<256x4xf32>
    %48 = arith.truncf %47 : vector<256x4xf32> to vector<256x4xbf16>
    %c3 = arith.constant 3 : index
    %c0_48 = arith.constant 0 : index
    %c0_49 = arith.constant 0 : index
    %49 = vector.load %arg4[%c3, %c0_48, %c0_49] : memref<9x4x4xbf16, #tpu.memory_space<vmem>>, vector<1x4x4xbf16>
    %50 = vector.shape_cast %49 : vector<1x4x4xbf16> to vector<4x4xbf16>
    %cst_50 = arith.constant dense<0.000000e+00> : vector<256x4xf32>
    %51 = tpu.matmul %48, %50, %cst_50 {dimension_numbers = #tpu.dot_dimension_numbers<[1], [0], [0], [1], [0, 0, 1, 1], [], []>} : vector<256x4xbf16>, vector<4x4xbf16>, vector<256x4xf32> -> vector<256x4xf32>
    %52 = arith.addf %45, %51 : vector<256x4xf32>
    %c1_51 = arith.constant 1 : index
    %c1_52 = arith.constant 1 : index
    %c0_53 = arith.constant 0 : index
    %53 = vector.load %arg8[%c1_51, %c1_52, %c0_53] : memref<18x18x4xf32, #tpu.memory_space<vmem>>, vector<16x16x4xf32>
    %54 = vector.shape_cast %53 : vector<16x16x4xf32> to vector<256x4xf32>
    %55 = arith.truncf %54 : vector<256x4xf32> to vector<256x4xbf16>
    %c4 = arith.constant 4 : index
    %c0_54 = arith.constant 0 : index
    %c0_55 = arith.constant 0 : index
    %56 = vector.load %arg4[%c4, %c0_54, %c0_55] : memref<9x4x4xbf16, #tpu.memory_space<vmem>>, vector<1x4x4xbf16>
    %57 = vector.shape_cast %56 : vector<1x4x4xbf16> to vector<4x4xbf16>
    %cst_56 = arith.constant dense<0.000000e+00> : vector<256x4xf32>
    %58 = tpu.matmul %55, %57, %cst_56 {dimension_numbers = #tpu.dot_dimension_numbers<[1], [0], [0], [1], [0, 0, 1, 1], [], []>} : vector<256x4xbf16>, vector<4x4xbf16>, vector<256x4xf32> -> vector<256x4xf32>
    %59 = arith.addf %52, %58 : vector<256x4xf32>
    %c1_57 = arith.constant 1 : index
    %c2_58 = arith.constant 2 : index
    %c0_59 = arith.constant 0 : index
    %60 = vector.load %arg8[%c1_57, %c2_58, %c0_59] : memref<18x18x4xf32, #tpu.memory_space<vmem>>, vector<16x16x4xf32>
    %61 = vector.shape_cast %60 : vector<16x16x4xf32> to vector<256x4xf32>
    %62 = arith.truncf %61 : vector<256x4xf32> to vector<256x4xbf16>
    %c5 = arith.constant 5 : index
    %c0_60 = arith.constant 0 : index
    %c0_61 = arith.constant 0 : index
    %63 = vector.load %arg4[%c5, %c0_60, %c0_61] : memref<9x4x4xbf16, #tpu.memory_space<vmem>>, vector<1x4x4xbf16>
    %64 = vector.shape_cast %63 : vector<1x4x4xbf16> to vector<4x4xbf16>
    %cst_62 = arith.constant dense<0.000000e+00> : vector<256x4xf32>
    %65 = tpu.matmul %62, %64, %cst_62 {dimension_numbers = #tpu.dot_dimension_numbers<[1], [0], [0], [1], [0, 0, 1, 1], [], []>} : vector<256x4xbf16>, vector<4x4xbf16>, vector<256x4xf32> -> vector<256x4xf32>
    %66 = arith.addf %59, %65 : vector<256x4xf32>
    %c2_63 = arith.constant 2 : index
    %c0_64 = arith.constant 0 : index
    %c0_65 = arith.constant 0 : index
    %67 = vector.load %arg8[%c2_63, %c0_64, %c0_65] : memref<18x18x4xf32, #tpu.memory_space<vmem>>, vector<16x16x4xf32>
    %68 = vector.shape_cast %67 : vector<16x16x4xf32> to vector<256x4xf32>
    %69 = arith.truncf %68 : vector<256x4xf32> to vector<256x4xbf16>
    %c6 = arith.constant 6 : index
    %c0_66 = arith.constant 0 : index
    %c0_67 = arith.constant 0 : index
    %70 = vector.load %arg4[%c6, %c0_66, %c0_67] : memref<9x4x4xbf16, #tpu.memory_space<vmem>>, vector<1x4x4xbf16>
    %71 = vector.shape_cast %70 : vector<1x4x4xbf16> to vector<4x4xbf16>
    %cst_68 = arith.constant dense<0.000000e+00> : vector<256x4xf32>
    %72 = tpu.matmul %69, %71, %cst_68 {dimension_numbers = #tpu.dot_dimension_numbers<[1], [0], [0], [1], [0, 0, 1, 1], [], []>} : vector<256x4xbf16>, vector<4x4xbf16>, vector<256x4xf32> -> vector<256x4xf32>
    %73 = arith.addf %66, %72 : vector<256x4xf32>
    %c2_69 = arith.constant 2 : index
    %c1_70 = arith.constant 1 : index
    %c0_71 = arith.constant 0 : index
    %74 = vector.load %arg8[%c2_69, %c1_70, %c0_71] : memref<18x18x4xf32, #tpu.memory_space<vmem>>, vector<16x16x4xf32>
    %75 = vector.shape_cast %74 : vector<16x16x4xf32> to vector<256x4xf32>
    %76 = arith.truncf %75 : vector<256x4xf32> to vector<256x4xbf16>
    %c7 = arith.constant 7 : index
    %c0_72 = arith.constant 0 : index
    %c0_73 = arith.constant 0 : index
    %77 = vector.load %arg4[%c7, %c0_72, %c0_73] : memref<9x4x4xbf16, #tpu.memory_space<vmem>>, vector<1x4x4xbf16>
    %78 = vector.shape_cast %77 : vector<1x4x4xbf16> to vector<4x4xbf16>
    %cst_74 = arith.constant dense<0.000000e+00> : vector<256x4xf32>
    %79 = tpu.matmul %76, %78, %cst_74 {dimension_numbers = #tpu.dot_dimension_numbers<[1], [0], [0], [1], [0, 0, 1, 1], [], []>} : vector<256x4xbf16>, vector<4x4xbf16>, vector<256x4xf32> -> vector<256x4xf32>
    %80 = arith.addf %73, %79 : vector<256x4xf32>
    %c2_75 = arith.constant 2 : index
    %c2_76 = arith.constant 2 : index
    %c0_77 = arith.constant 0 : index
    %81 = vector.load %arg8[%c2_75, %c2_76, %c0_77] : memref<18x18x4xf32, #tpu.memory_space<vmem>>, vector<16x16x4xf32>
    %82 = vector.shape_cast %81 : vector<16x16x4xf32> to vector<256x4xf32>
    %83 = arith.truncf %82 : vector<256x4xf32> to vector<256x4xbf16>
    %c8 = arith.constant 8 : index
    %c0_78 = arith.constant 0 : index
    %c0_79 = arith.constant 0 : index
    %84 = vector.load %arg4[%c8, %c0_78, %c0_79] : memref<9x4x4xbf16, #tpu.memory_space<vmem>>, vector<1x4x4xbf16>
    %85 = vector.shape_cast %84 : vector<1x4x4xbf16> to vector<4x4xbf16>
    %cst_80 = arith.constant dense<0.000000e+00> : vector<256x4xf32>
    %86 = tpu.matmul %83, %85, %cst_80 {dimension_numbers = #tpu.dot_dimension_numbers<[1], [0], [0], [1], [0, 0, 1, 1], [], []>} : vector<256x4xbf16>, vector<4x4xbf16>, vector<256x4xf32> -> vector<256x4xf32>
    %87 = arith.addf %80, %86 : vector<256x4xf32>
    %c0_81 = arith.constant 0 : index
    %c0_82 = arith.constant 0 : index
    %88 = vector.load %arg5[%c0_81, %c0_82] : memref<1x4xf32, #tpu.memory_space<vmem>>, vector<1x4xf32>
    %89 = vector.broadcast %88 : vector<1x4xf32> to vector<256x4xf32>
    %90 = arith.addf %87, %89 : vector<256x4xf32>
    %cst_83 = arith.constant dense<0.000000e+00> : vector<4xf32>
    %91 = vector.multi_reduction <add>, %90, %cst_83 [0] : vector<256x4xf32> to vector<4xf32>
    %92 = vector.shape_cast %91 : vector<4xf32> to vector<1x4xf32>
    %c0_84 = arith.constant 0 : index
    %c0_85 = arith.constant 0 : index
    %c0_86 = arith.constant 0 : index
    %93 = vector.load %arg7[%c0_84, %c0_85, %c0_86] : memref<1x2x4xf32, #tpu.memory_space<vmem>>, vector<1x1x4xf32>
    %94 = vector.shape_cast %93 : vector<1x1x4xf32> to vector<1x4xf32>
    %95 = vector.shape_cast %92 : vector<1x4xf32> to vector<1x1x4xf32>
    tpu.vector_store %arg7[%c0_84, %c0_85, %c0_86], %95 {strides = array<i32>} : memref<1x2x4xf32, #tpu.memory_space<vmem>>, vector<1x1x4xf32>,
    %96 = arith.mulf %90, %90 : vector<256x4xf32>
    %cst_87 = arith.constant dense<0.000000e+00> : vector<4xf32>
    %97 = vector.multi_reduction <add>, %96, %cst_87 [0] : vector<256x4xf32> to vector<4xf32>
    %98 = vector.shape_cast %97 : vector<4xf32> to vector<1x4xf32>
    %c0_88 = arith.constant 0 : index
    %c1_89 = arith.constant 1 : index
    %c0_90 = arith.constant 0 : index
    %99 = vector.load %arg7[%c0_88, %c1_89, %c0_90] : memref<1x2x4xf32, #tpu.memory_space<vmem>>, vector<1x1x4xf32>
    %100 = vector.shape_cast %99 : vector<1x1x4xf32> to vector<1x4xf32>
    %101 = vector.shape_cast %98 : vector<1x4xf32> to vector<1x1x4xf32>
    tpu.vector_store %arg7[%c0_88, %c1_89, %c0_90], %101 {strides = array<i32>} : memref<1x2x4xf32, #tpu.memory_space<vmem>>, vector<1x1x4xf32>,
    %102 = arith.truncf %90 : vector<256x4xf32> to vector<256x4xbf16>
    %c0_91 = arith.constant 0 : index
    %c0_92 = arith.constant 0 : index
    %c0_93 = arith.constant 0 : index
    %103 = vector.load %arg6[%c0_91, %c0_92, %c0_93] : memref<1x256x4xbf16, #tpu.memory_space<vmem>>, vector<1x256x4xbf16>
    %104 = vector.shape_cast %103 : vector<1x256x4xbf16> to vector<256x4xbf16>
    %105 = vector.shape_cast %102 : vector<256x4xbf16> to vector<1x256x4xbf16>
    tpu.vector_store %arg6[%c0_91, %c0_92, %c0_93], %105 {strides = array<i32>} : memref<1x256x4xbf16, #tpu.memory_space<vmem>>, vector<1x256x4xbf16>,
    return
  }
  func.func @transform_0(%arg0: i32) -> (i32, i32, i32) {
    %c0_i32 = arith.constant 0 : i32
    %c0_i32_0 = arith.constant 0 : i32
    %c0_i32_1 = arith.constant 0 : i32
    return %arg0, %c0_i32, %c0_i32_0 : i32, i32, i32
  }
  func.func @transform_1(%arg0: i32) -> (i32, i32) {
    %c0_i32 = arith.constant 0 : i32
    %c0_i32_0 = arith.constant 0 : i32
    %c0_i32_1 = arith.constant 0 : i32
    return %c0_i32, %c0_i32_0 : i32, i32
  }
  func.func @transform_2(%arg0: i32) -> (i32, i32) {
    %c0_i32 = arith.constant 0 : i32
    %c0_i32_0 = arith.constant 0 : i32
    %c0_i32_1 = arith.constant 0 : i32
    return %c0_i32, %c0_i32_0 : i32, i32
  }
  func.func @transform_3(%arg0: i32) -> (i32, i32, i32) {
    %c0_i32 = arith.constant 0 : i32
    %c0_i32_0 = arith.constant 0 : i32
    %c0_i32_1 = arith.constant 0 : i32
    %c0_i32_2 = arith.constant 0 : i32
    return %c0_i32, %c0_i32_0, %c0_i32_1 : i32, i32, i32
  }
  func.func @transform_4(%arg0: i32) -> (i32, i32) {
    %c0_i32 = arith.constant 0 : i32
    %c0_i32_0 = arith.constant 0 : i32
    %c0_i32_1 = arith.constant 0 : i32
    return %c0_i32, %c0_i32_0 : i32, i32
  }
  func.func @transform_5(%arg0: i32) -> (i32, i32, i32) {
    %c0_i32 = arith.constant 0 : i32
    %c0_i32_0 = arith.constant 0 : i32
    %c0_i32_1 = arith.constant 0 : i32
    return %arg0, %c0_i32, %c0_i32_0 : i32, i32, i32
  }
  func.func @transform_6(%arg0: i32) -> (i32, i32, i32) {
    %c0_i32 = arith.constant 0 : i32
    %c0_i32_0 = arith.constant 0 : i32
    %c0_i32_1 = arith.constant 0 : i32
    return %arg0, %c0_i32, %c0_i32_0 : i32, i32, i32
  }
}

</mosaic_0001>

<llo_original>
// kernel: residual_block.5
$region0: #{residual_block.5}
  #allocation0 [shape = 'u32[]', space=smem, size = 0x4, offset = 0x4, fixed_abs, tag = 'smem constant byte address 0x4 - core index']
  #allocation1 [shape = 'u32[144,128]{1,0:T(1,128)}', space=vmem, size = 0x12000, scoped, tag = 'internal scratch']
  %s0 = inlined_call_operand.vmem [shape: bf16[512,4], index: 0, kind: input, shape index: {}]
  %s1 = inlined_call_operand.vmem [shape: bf16[512,4], index: 1, kind: input, shape index: {}]
  %s2 = inlined_call_operand.vmem [shape: f32[1,4], index: 2, kind: input, shape index: {}]
  %s3 = inlined_call_operand.vmem [shape: f32[1,4], index: 3, kind: input, shape index: {}]
  %s4 = inlined_call_operand.vmem [shape: bf16[4,4], index: 4, kind: input, shape index: {}]
  %s5 = inlined_call_operand.vmem [shape: f32[1,4], index: 5, kind: input, shape index: {}]
  %s6 = inlined_call_operand.vmem [shape: f32[512,4], index: 6, kind: output, shape index: {}]
  %s7 = sld [smem:[#allocation0]]
  $region57: #{residual_block.5} parent=0
    _
  %s9 = ssub.s32 1, %s7
  %s10 = scalar_select 0, %s9, %s7
  loop: start=0, step=1, limit=4
  $region2: #{residual_block.5} parent=0 // loop_pre_header
    _
  $region3: #{residual_block.5} parent=0 // loop_header
    %s12 = sphi 0, %s16
    %p13 = scmp.ge.s32.totalorder %s12, 4
    %s22 = sphi 0, %s24
    %s25 = sphi 0, %s22
    %s26 = sphi 0, %s25
    %s42 = sphi 0, %s26
    %s48 = sphi 0, %s50
    %s51 = sphi 0, %s48
    %s52 = sphi 0, %s51
    %s68 = sphi 0, %s52
    %s72 = sphi 0, %s72
    %s74 = sphi 0, %s72
    %s75 = sphi 0, %s74
    %s89 = sphi 0, %s75
    %s93 = sphi 0, %s93
    %s95 = sphi 0, %s93
    %s96 = sphi 0, %s95
    %s110 = sphi 0, %s96
    %s114 = sphi 0, %s114
    %s116 = sphi 0, %s114
    %s117 = sphi 0, %s116
    %s131 = sphi 0, %s117
    %s135 = sphi 0, %s135
    %s137 = sphi 0, %s135
    %s138 = sphi 0, %s137
    %s152 = sphi 0, %s138
    %s158 = sphi 0, %s160
    %s161 = sphi 0, %s158
    %s162 = sphi 0, %s161
    %s178 = sphi 0, %s162
  $region4: #{residual_block.5} parent=0 // loop_header_branch
    %15 = sbr.rel (%p13) target = $region8
  $region5: #{residual_block.5} parent=0 // loop_body
    %s17 = ssub.s32 %s12, 1
    %s18 = ssub.s32 %s12, 2
    %s19 = sadd.s32 %s12, 1
    %s20 = ssub.s32 %s12, %s19
    %p21 = scmp.eq.s32.totalorder %s20, 0
    %s23 = sadd.s32 %s22, 1
    %s24 = scalar_select %p21, %s22, %s23
    %p27 = pneg %p21
    %p28 = scmp.eq.s32.totalorder %s12, 1
    %p29 = por %p27, %p28
    %p30 = scmp.ne.s32.totalorder %s22, %s25
    %p31 = scmp.eq.s32.totalorder %s12, 0
    %p32 = por %p30, %p31
    %p33 = scmp.ne.s32.totalorder %s22, %s25
    %p34 = scmp.eq.s32.totalorder %s17, 1
    %p35 = por %p33, %p34
    %p36 = scmp.ne.s32.totalorder %s25, %s26
    %p37 = scmp.eq.s32.totalorder %s17, 0
    %p38 = por %p36, %p37
    %p39 = scmp.ne.s32.totalorder %s25, %s26
    %p40 = scmp.eq.s32.totalorder %s18, 1
    %p41 = por %p39, %p40
    %p43 = scmp.ne.s32.totalorder %s26, %s42
    %p44 = scmp.eq.s32.totalorder %s18, 0
    %p45 = por %p43, %p44
    %s46 = ssub.s32 %s12, %s19
    %p47 = scmp.eq.s32.totalorder %s46, 0
    %s49 = sadd.s32 %s48, 1
    %s50 = scalar_select %p47, %s48, %s49
    %p53 = pneg %p47
    %p54 = scmp.eq.s32.totalorder %s12, 1
    %p55 = por %p53, %p54
    %p56 = scmp.ne.s32.totalorder %s48, %s51
    %p57 = scmp.eq.s32.totalorder %s12, 0
    %p58 = por %p56, %p57
    %p59 = scmp.ne.s32.totalorder %s48, %s51
    %p60 = scmp.eq.s32.totalorder %s17, 1
    %p61 = por %p59, %p60
    %p62 = scmp.ne.s32.totalorder %s51, %s52
    %p63 = scmp.eq.s32.totalorder %s17, 0
    %p64 = por %p62, %p63
    %p65 = scmp.ne.s32.totalorder %s51, %s52
    %p66 = scmp.eq.s32.totalorder %s18, 1
    %p67 = por %p65, %p66
    %p69 = scmp.ne.s32.totalorder %s52, %s68
    %p70 = scmp.eq.s32.totalorder %s18, 0
    %p71 = por %p69, %p70
    %s73 = sadd.s32 %s72, 1
    %p76 = scmp.eq.s32.totalorder %s12, 1
    %p77 = scmp.ne.s32.totalorder %s72, %s74
    %p78 = scmp.eq.s32.totalorder %s12, 0
    %p79 = por %p77, %p78
    %p80 = scmp.ne.s32.totalorder %s72, %s74
    %p81 = scmp.eq.s32.totalorder %s17, 1
    %p82 = por %p80, %p81
    %p83 = scmp.ne.s32.totalorder %s74, %s75
    %p84 = scmp.eq.s32.totalorder %s17, 0
    %p85 = por %p83, %p84
    %p86 = scmp.ne.s32.totalorder %s74, %s75
    %p87 = scmp.eq.s32.totalorder %s18, 1
    %p88 = por %p86, %p87
    %p90 = scmp.ne.s32.totalorder %s75, %s89
    %p91 = scmp.eq.s32.totalorder %s18, 0
    %p92 = por %p90, %p91
    %s94 = sadd.s32 %s93, 1
    %p97 = scmp.eq.s32.totalorder %s12, 1
    %p98 = scmp.ne.s32.totalorder %s93, %s95
    %p99 = scmp.eq.s32.totalorder %s12, 0
    %p100 = por %p98, %p99
    %p101 = scmp.ne.s32.totalorder %s93, %s95
    %p102 = scmp.eq.s32.totalorder %s17, 1
    %p103 = por %p101, %p102
    %p104 = scmp.ne.s32.totalorder %s95, %s96
    %p105 = scmp.eq.s32.totalorder %s17, 0
    %p106 = por %p104, %p105
    %p107 = scmp.ne.s32.totalorder %s95, %s96
    %p108 = scmp.eq.s32.totalorder %s18, 1
    %p109 = por %p107, %p108
    %p111 = scmp.ne.s32.totalorder %s96, %s110
    %p112 = scmp.eq.s32.totalorder %s18, 0
    %p113 = por %p111, %p112
    %s115 = sadd.s32 %s114, 1
    %p118 = scmp.eq.s32.totalorder %s12, 1
    %p119 = scmp.ne.s32.totalorder %s114, %s116
    %p120 = scmp.eq.s32.totalorder %s12, 0
    %p121 = por %p119, %p120
    %p122 = scmp.ne.s32.totalorder %s114, %s116
    %p123 = scmp.eq.s32.totalorder %s17, 1
    %p124 = por %p122, %p123
    %p125 = scmp.ne.s32.totalorder %s116, %s117
    %p126 = scmp.eq.s32.totalorder %s17, 0
    %p127 = por %p125, %p126
    %p128 = scmp.ne.s32.totalorder %s116, %s117
    %p129 = scmp.eq.s32.totalorder %s18, 1
    %p130 = por %p128, %p129
    %p132 = scmp.ne.s32.totalorder %s117, %s131
    %p133 = scmp.eq.s32.totalorder %s18, 0
    %p134 = por %p132, %p133
    %s136 = sadd.s32 %s135, 1
    %p139 = scmp.eq.s32.totalorder %s12, 1
    %p140 = scmp.ne.s32.totalorder %s135, %s137
    %p141 = scmp.eq.s32.totalorder %s12, 0
    %p142 = por %p140, %p141
    %p143 = scmp.ne.s32.totalorder %s135, %s137
    %p144 = scmp.eq.s32.totalorder %s17, 1
    %p145 = por %p143, %p144
    %p146 = scmp.ne.s32.totalorder %s137, %s138
    %p147 = scmp.eq.s32.totalorder %s17, 0
    %p148 = por %p146, %p147
    %p149 = scmp.ne.s32.totalorder %s137, %s138
    %p150 = scmp.eq.s32.totalorder %s18, 1
    %p151 = por %p149, %p150
    %p153 = scmp.ne.s32.totalorder %s138, %s152
    %p154 = scmp.eq.s32.totalorder %s18, 0
    %p155 = por %p153, %p154
    %s156 = ssub.s32 %s12, %s19
    %p157 = scmp.eq.s32.totalorder %s156, 0
    %s159 = sadd.s32 %s158, 1
    %s160 = scalar_select %p157, %s158, %s159
    %p163 = pneg %p157
    %p164 = scmp.eq.s32.totalorder %s12, 1
    %p165 = por %p163, %p164
    %p166 = scmp.ne.s32.totalorder %s158, %s161
    %p167 = scmp.eq.s32.totalorder %s12, 0
    %p168 = por %p166, %p167
    %p169 = scmp.ne.s32.totalorder %s158, %s161
    %p170 = scmp.eq.s32.totalorder %s17, 1
    %p171 = por %p169, %p170
    %p172 = scmp.ne.s32.totalorder %s161, %s162
    %p173 = scmp.eq.s32.totalorder %s17, 0
    %p174 = por %p172, %p173
    %p175 = scmp.ne.s32.totalorder %s161, %s162
    %p176 = scmp.eq.s32.totalorder %s18, 1
    %p177 = por %p175, %p176
    %p179 = scmp.ne.s32.totalorder %s162, %s178
    %p180 = scmp.eq.s32.totalorder %s18, 0
    %p181 = por %p179, %p180
    %p182 = scmp.le.s32.totalorder 1, %s12
    %p183 = scmp.lt.s32.totalorder %s12, 3
    %p184 = pnand %p182, %p183
    %p185 = pneg %p184
    // Predicated region
    $region9: #{residual_block.5} parent=5 // pred_check
      _
    $region10: #{residual_block.5} parent=5 // pred_check_branch
      %187 = sbr.rel (%p184) target = $region12
    $region11: #{residual_block.5} parent=5 // pred_region
      %s188 = ssub.s32 %s12, 1
      // Predicated region
      $region13: #{residual_block.5} parent=11 // pred_check
        %p189 = pneg %p85
      $region14: #{residual_block.5} parent=11 // pred_check_branch
        %191 = sbr.rel (%p189) target = $region16
      $region15: #{residual_block.5} parent=11 // pred_region
        _
      $region16: #{residual_block.5} parent=11 // pred_fallthru
        _
      // Predicated region
      $region17: #{residual_block.5} parent=11 // pred_check
        %p192 = pneg %p106
      $region18: #{residual_block.5} parent=11 // pred_check_branch
        %194 = sbr.rel (%p192) target = $region20
      $region19: #{residual_block.5} parent=11 // pred_region
        _
      $region20: #{residual_block.5} parent=11 // pred_fallthru
        _
      // Predicated region
      $region21: #{residual_block.5} parent=11 // pred_check
        %p195 = pneg %p127
      $region22: #{residual_block.5} parent=11 // pred_check_branch
        %197 = sbr.rel (%p195) target = $region24
      $region23: #{residual_block.5} parent=11 // pred_region
        _
      $region24: #{residual_block.5} parent=11 // pred_fallthru
        _
      // Predicated region
      $region25: #{residual_block.5} parent=11 // pred_check
        %p198 = pneg %p148
      $region26: #{residual_block.5} parent=11 // pred_check_branch
        %200 = sbr.rel (%p198) target = $region28
      $region27: #{residual_block.5} parent=11 // pred_region
        _
      $region28: #{residual_block.5} parent=11 // pred_fallthru
        _
    $region12: #{residual_block.5} parent=5 // pred_fallthru
      _
    %p201 = scmp.lt.s32.totalorder %s12, 2
    // Predicated region
    $region29: #{residual_block.5} parent=5 // pred_check
      %p202 = pneg %p201
    $region30: #{residual_block.5} parent=5 // pred_check_branch
      %204 = sbr.rel (%p202) target = $region32
    $region31: #{residual_block.5} parent=5 // pred_region
      // Predicated region
      $region33: #{residual_block.5} parent=31 // pred_check
        %p205 = pneg %p32
      $region34: #{residual_block.5} parent=31 // pred_check_branch
        %207 = sbr.rel (%p205) target = $region36
      $region35: #{residual_block.5} parent=31 // pred_region
        %s208 = smul.u32 32, %s12
        %p209 = scmp.lt.s32.totalorder %s208, 63
        %s210 = scalar_select %p209, %s208, 63
        %s211 = smul.addr %s210, 4
        %s212 = scalar_lea.vmem %s0, %s211
        %s213 = smul.u32 32, %s12
      $region36: #{residual_block.5} parent=31 // pred_fallthru
        _
      // Predicated region
      $region37: #{residual_block.5} parent=31 // pred_check
        %p214 = pneg %p58
      $region38: #{residual_block.5} parent=31 // pred_check_branch
        %216 = sbr.rel (%p214) target = $region40
      $region39: #{residual_block.5} parent=31 // pred_region
        %s217 = smul.u32 32, %s12
        %p218 = scmp.lt.s32.totalorder %s217, 63
        %s219 = scalar_select %p218, %s217, 63
        %s220 = smul.addr %s219, 4
        %s221 = scalar_lea.vmem %s1, %s220
        %s222 = smul.u32 32, %s12
      $region40: #{residual_block.5} parent=31 // pred_fallthru
        _
    $region32: #{residual_block.5} parent=5 // pred_fallthru
      _
    %p223 = scmp.le.s32.totalorder 1, %s12
    %p224 = scmp.lt.s32.totalorder %s12, 3
    %p225 = pnand %p223, %p224
    %p226 = pneg %p225
    // Predicated region
    $region41: #{residual_block.5} parent=5 // pred_check
      _
    $region42: #{residual_block.5} parent=5 // pred_check_branch
      %228 = sbr.rel (%p225) target = $region44
    $region43: #{residual_block.5} parent=5 // pred_region
      %s229 = ssub.s32 %s12, 1
      %s230 = smul.u32 32, %s17
      %p231 = scmp.lt.s32.totalorder %s230, 63
      %s232 = scalar_select %p231, %s230, 63
      %s233 = smul.addr %s232, 4
      %s234 = scalar_lea.vmem %s0, %s233
      %p235 = pneg %p38
      %p236 = pneg %p35
      %s237 = smul.u32 32, %s17
      %p238 = scmp.lt.s32.totalorder %s237, 63
      %s239 = scalar_select %p238, %s237, 63
      %s240 = smul.addr %s239, 4
      %s241 = scalar_lea.vmem %s1, %s240
      %p242 = pneg %p64
      %p243 = pneg %p61
      %p244 = pneg %p85
      %p245 = pneg %p82
      %p246 = pneg %p106
      %p247 = pneg %p103
      %p248 = pneg %p127
      %p249 = pneg %p124
      %p250 = pneg %p148
      %p251 = pneg %p145
      %p252 = pneg %p174
      %p253 = pneg %p171
      %s254 = smul.u32 32, %s17
      %p255 = scmp.lt.s32.totalorder %s254, 63
      %s256 = scalar_select %p255, %s254, 63
      %s257 = smul.addr %s256, 8
      %s258 = scalar_lea.vmem %s6, %s257
      %s259 = smul.u32 32, %s17
      %p260 = scmp.lt.s32.totalorder %s259, 63
      %s261 = scalar_select %p260, %s259, 63
      %s262 = smul.addr %s261, 4
      %s263 = scalar_lea.vmem %s0, %s262
      %s264 = smul.u32 32, %s17
      %s265 = smul.u32 32, %s17
      %p266 = scmp.lt.s32.totalorder %s265, 63
      %s267 = scalar_select %p266, %s265, 63
      %s268 = smul.addr %s267, 4
      %s269 = scalar_lea.vmem %s1, %s268
      %s270 = smul.u32 32, %s17
      %s271 = smul.u32 32, %s17
      %p272 = scmp.lt.s32.totalorder %s271, 63
      %s273 = scalar_select %p272, %s271, 63
      %s274 = smul.addr %s273, 8
      %s275 = scalar_lea.vmem %s6, %s274
      %s276 = smul.u32 32, %s17
      %v278 = vld [vmem:[%s263] sm:$0xf]
      %v279 = vld [vmem:[%s263 + $0x4] sm:$0xf]
      %v280 = vld [vmem:[%s263 + $0x8] sm:$0xf]
      %v281 = vld [vmem:[%s263 + $0xc] sm:$0xf]
      %v282 = vld [vmem:[%s263 + $0x10] sm:$0xf]
      %v283 = vld [vmem:[%s263 + $0x14] sm:$0xf]
      %v284 = vld [vmem:[%s263 + $0x18] sm:$0xf]
      %v285 = vld [vmem:[%s263 + $0x1c] sm:$0xf]
      %v286 = vld [vmem:[%s263 + $0x20] sm:$0xf]
      %v287 = vld [vmem:[%s263 + $0x24] sm:$0xf]
      %v288 = vld [vmem:[%s263 + $0x28] sm:$0xf]
      %v289 = vld [vmem:[%s263 + $0x2c] sm:$0xf]
      %v290 = vld [vmem:[%s263 + $0x30] sm:$0xf]
      %v291 = vld [vmem:[%s263 + $0x34] sm:$0xf]
      %v292 = vld [vmem:[%s263 + $0x38] sm:$0xf]
      %v293 = vld [vmem:[%s263 + $0x3c] sm:$0xf]
      %v294 = vld [vmem:[%s263 + $0x40] sm:$0xf]
      %v295 = vld [vmem:[%s263 + $0x44] sm:$0xf]
      %v296 = vld [vmem:[%s263 + $0x48] sm:$0xf]
      %v297 = vld [vmem:[%s263 + $0x4c] sm:$0xf]
      %v298 = vld [vmem:[%s263 + $0x50] sm:$0xf]
      %v299 = vld [vmem:[%s263 + $0x54] sm:$0xf]
      %v300 = vld [vmem:[%s263 + $0x58] sm:$0xf]
      %v301 = vld [vmem:[%s263 + $0x5c] sm:$0xf]
      %v302 = vld [vmem:[%s263 + $0x60] sm:$0xf]
      %v303 = vld [vmem:[%s263 + $0x64] sm:$0xf]
      %v304 = vld [vmem:[%s263 + $0x68] sm:$0xf]
      %v305 = vld [vmem:[%s263 + $0x6c] sm:$0xf]
      %v306 = vld [vmem:[%s263 + $0x70] sm:$0xf]
      %v307 = vld [vmem:[%s263 + $0x74] sm:$0xf]
      %v308 = vld [vmem:[%s263 + $0x78] sm:$0xf]
      %v309 = vld [vmem:[%s263 + $0x7c] sm:$0xf]
      %v310 = vunpack.c.l.bf16 %v278
      %v311 = vunpack.c.l.bf16 %v279
      %v312 = vunpack.c.l.bf16 %v280
      %v313 = vunpack.c.l.bf16 %v281
      %v314 = vunpack.c.l.bf16 %v282
      %v315 = vunpack.c.l.bf16 %v283
      %v316 = vunpack.c.l.bf16 %v284
      %v317 = vunpack.c.l.bf16 %v285
      %v318 = vunpack.c.l.bf16 %v286
      %v319 = vunpack.c.l.bf16 %v287
      %v320 = vunpack.c.l.bf16 %v288
      %v321 = vunpack.c.l.bf16 %v289
      %v322 = vunpack.c.l.bf16 %v290
      %v323 = vunpack.c.l.bf16 %v291
      %v324 = vunpack.c.l.bf16 %v292
      %v325 = vunpack.c.l.bf16 %v293
      %v326 = vunpack.c.l.bf16 %v294
      %v327 = vunpack.c.l.bf16 %v295
      %v328 = vunpack.c.l.bf16 %v296
      %v329 = vunpack.c.l.bf16 %v297
      %v330 = vunpack.c.l.bf16 %v298
      %v331 = vunpack.c.l.bf16 %v299
      %v332 = vunpack.c.l.bf16 %v300
      %v333 = vunpack.c.l.bf16 %v301
      %v334 = vunpack.c.l.bf16 %v302
      %v335 = vunpack.c.l.bf16 %v303
      %v336 = vunpack.c.l.bf16 %v304
      %v337 = vunpack.c.l.bf16 %v305
      %v338 = vunpack.c.l.bf16 %v306
      %v339 = vunpack.c.l.bf16 %v307
      %v340 = vunpack.c.l.bf16 %v308
      %v341 = vunpack.c.l.bf16 %v309
      %v342 = vld [vmem:[%s2] sm:$0x1]
      %v344 = vlaneseq
      %v345 = vshrl.u32 %v344, 7
      %v346 = vsub.s32 0, %v345
      %v347 = vrot.slane %v342, %v346
      %v349 = vmul.f32 %v310, %v347
      %v350 = vmul.f32 %v311, %v347
      %v351 = vmul.f32 %v312, %v347
      %v352 = vmul.f32 %v313, %v347
      %v353 = vmul.f32 %v314, %v347
      %v354 = vmul.f32 %v315, %v347
      %v355 = vmul.f32 %v316, %v347
      %v356 = vmul.f32 %v317, %v347
      %v357 = vmul.f32 %v318, %v347
      %v358 = vmul.f32 %v319, %v347
      %v359 = vmul.f32 %v320, %v347
      %v360 = vmul.f32 %v321, %v347
      %v361 = vmul.f32 %v322, %v347
      %v362 = vmul.f32 %v323, %v347
      %v363 = vmul.f32 %v324, %v347
      %v364 = vmul.f32 %v325, %v347
      %v365 = vmul.f32 %v326, %v347
      %v366 = vmul.f32 %v327, %v347
      %v367 = vmul.f32 %v328, %v347
      %v368 = vmul.f32 %v329, %v347
      %v369 = vmul.f32 %v330, %v347
      %v370 = vmul.f32 %v331, %v347
      %v371 = vmul.f32 %v332, %v347
      %v372 = vmul.f32 %v333, %v347
      %v373 = vmul.f32 %v334, %v347
      %v374 = vmul.f32 %v335, %v347
      %v375 = vmul.f32 %v336, %v347
      %v376 = vmul.f32 %v337, %v347
      %v377 = vmul.f32 %v338, %v347
      %v378 = vmul.f32 %v339, %v347
      %v379 = vmul.f32 %v340, %v347
      %v380 = vmul.f32 %v341, %v347
      %v381 = vld [vmem:[%s3] sm:$0x1]
      %v383 = vlaneseq
      %v384 = vshrl.u32 %v383, 7
      %v385 = vsub.s32 0, %v384
      %v386 = vrot.slane %v381, %v385
      %v388 = vadd.f32 %v349, %v386
      %v389 = vadd.f32 %v350, %v386
      %v390 = vadd.f32 %v351, %v386
      %v391 = vadd.f32 %v352, %v386
      %v392 = vadd.f32 %v353, %v386
      %v393 = vadd.f32 %v354, %v386
      %v394 = vadd.f32 %v355, %v386
      %v395 = vadd.f32 %v356, %v386
      %v396 = vadd.f32 %v357, %v386
      %v397 = vadd.f32 %v358, %v386
      %v398 = vadd.f32 %v359, %v386
      %v399 = vadd.f32 %v360, %v386
      %v400 = vadd.f32 %v361, %v386
      %v401 = vadd.f32 %v362, %v386
      %v402 = vadd.f32 %v363, %v386
      %v403 = vadd.f32 %v364, %v386
      %v404 = vadd.f32 %v365, %v386
      %v405 = vadd.f32 %v366, %v386
      %v406 = vadd.f32 %v367, %v386
      %v407 = vadd.f32 %v368, %v386
      %v408 = vadd.f32 %v369, %v386
      %v409 = vadd.f32 %v370, %v386
      %v410 = vadd.f32 %v371, %v386
      %v411 = vadd.f32 %v372, %v386
      %v412 = vadd.f32 %v373, %v386
      %v413 = vadd.f32 %v374, %v386
      %v414 = vadd.f32 %v375, %v386
      %v415 = vadd.f32 %v376, %v386
      %v416 = vadd.f32 %v377, %v386
      %v417 = vadd.f32 %v378, %v386
      %v418 = vadd.f32 %v379, %v386
      %v419 = vadd.f32 %v380, %v386
      %v420 = vld [vmem:[%s269] sm:$0xf]
      %v421 = vld [vmem:[%s269 + $0x4] sm:$0xf]
      %v422 = vld [vmem:[%s269 + $0x8] sm:$0xf]
      %v423 = vld [vmem:[%s269 + $0xc] sm:$0xf]
      %v424 = vld [vmem:[%s269 + $0x10] sm:$0xf]
      %v425 = vld [vmem:[%s269 + $0x14] sm:$0xf]
      %v426 = vld [vmem:[%s269 + $0x18] sm:$0xf]
      %v427 = vld [vmem:[%s269 + $0x1c] sm:$0xf]
      %v428 = vld [vmem:[%s269 + $0x20] sm:$0xf]
      %v429 = vld [vmem:[%s269 + $0x24] sm:$0xf]
      %v430 = vld [vmem:[%s269 + $0x28] sm:$0xf]
      %v431 = vld [vmem:[%s269 + $0x2c] sm:$0xf]
      %v432 = vld [vmem:[%s269 + $0x30] sm:$0xf]
      %v433 = vld [vmem:[%s269 + $0x34] sm:$0xf]
      %v434 = vld [vmem:[%s269 + $0x38] sm:$0xf]
      %v435 = vld [vmem:[%s269 + $0x3c] sm:$0xf]
      %v436 = vld [vmem:[%s269 + $0x40] sm:$0xf]
      %v437 = vld [vmem:[%s269 + $0x44] sm:$0xf]
      %v438 = vld [vmem:[%s269 + $0x48] sm:$0xf]
      %v439 = vld [vmem:[%s269 + $0x4c] sm:$0xf]
      %v440 = vld [vmem:[%s269 + $0x50] sm:$0xf]
      %v441 = vld [vmem:[%s269 + $0x54] sm:$0xf]
      %v442 = vld [vmem:[%s269 + $0x58] sm:$0xf]
      %v443 = vld [vmem:[%s269 + $0x5c] sm:$0xf]
      %v444 = vld [vmem:[%s269 + $0x60] sm:$0xf]
      %v445 = vld [vmem:[%s269 + $0x64] sm:$0xf]
      %v446 = vld [vmem:[%s269 + $0x68] sm:$0xf]
      %v447 = vld [vmem:[%s269 + $0x6c] sm:$0xf]
      %v448 = vld [vmem:[%s269 + $0x70] sm:$0xf]
      %v449 = vld [vmem:[%s269 + $0x74] sm:$0xf]
      %v450 = vld [vmem:[%s269 + $0x78] sm:$0xf]
      %v451 = vld [vmem:[%s269 + $0x7c] sm:$0xf]
      %v452 = vld [vmem:[%s4] sm:$0x3]
      %v453 = vld [vmem:[%s5] sm:$0x1]
      %v455 = vlaneseq
      %v456 = vshrl.u32 %v455, 7
      %v457 = vsub.s32 0, %v456
      %v458 = vrot.slane %v453, %v457
      %v492 = vunpack.c.l.b16 %v420
      %v493 = vunpack.c.l.b16 %v421
      %v494 = vunpack.c.l.b16 %v422
      %v495 = vunpack.c.l.b16 %v423
      %v496 = vunpack.c.l.b16 %v424
      %v497 = vunpack.c.l.b16 %v425
      %v498 = vunpack.c.l.b16 %v426
      %v499 = vunpack.c.l.b16 %v427
      %v500 = vunpack.c.l.b16 %v428
      %v501 = vunpack.c.l.b16 %v429
      %v502 = vunpack.c.l.b16 %v430
      %v503 = vunpack.c.l.b16 %v431
      %v504 = vunpack.c.l.b16 %v432
      %v505 = vunpack.c.l.b16 %v433
      %v506 = vunpack.c.l.b16 %v434
      %v507 = vunpack.c.l.b16 %v435
      %v508 = vunpack.c.l.b16 %v436
      %v509 = vunpack.c.l.b16 %v437
      %v510 = vunpack.c.l.b16 %v438
      %v511 = vunpack.c.l.b16 %v439
      %v512 = vunpack.c.l.b16 %v440
      %v513 = vunpack.c.l.b16 %v441
      %v514 = vunpack.c.l.b16 %v442
      %v515 = vunpack.c.l.b16 %v443
      %v516 = vunpack.c.l.b16 %v444
      %v517 = vunpack.c.l.b16 %v445
      %v518 = vunpack.c.l.b16 %v446
      %v519 = vunpack.c.l.b16 %v447
      %v520 = vunpack.c.l.b16 %v448
      %v521 = vunpack.c.l.b16 %v449
      %v522 = vunpack.c.l.b16 %v450
      %v523 = vunpack.c.l.b16 %v451
      %v524 = vpack.c.b16 %v493, %v492
      %v525 = vpack.c.b16 %v495, %v494
      %v526 = vpack.c.b16 %v497, %v496
      %v527 = vpack.c.b16 %v499, %v498
      %v528 = vpack.c.b16 %v501, %v500
      %v529 = vpack.c.b16 %v503, %v502
      %v530 = vpack.c.b16 %v505, %v504
      %v531 = vpack.c.b16 %v507, %v506
      %v532 = vpack.c.b16 %v509, %v508
      %v533 = vpack.c.b16 %v511, %v510
      %v534 = vpack.c.b16 %v513, %v512
      %v535 = vpack.c.b16 %v515, %v514
      %v536 = vpack.c.b16 %v517, %v516
      %v537 = vpack.c.b16 %v519, %v518
      %v538 = vpack.c.b16 %v521, %v520
      %v539 = vpack.c.b16 %v523, %v522
      %vm540 = vcmask 31744
      %v542 = vsel %vm540, %v524, 0
      %v545 = vsel %vm540, %v525, 0
      %v548 = vsel %vm540, %v526, 0
      %v551 = vsel %vm540, %v527, 0
      %v554 = vsel %vm540, %v528, 0
      %v557 = vsel %vm540, %v529, 0
      %v560 = vsel %vm540, %v530, 0
      %v563 = vsel %vm540, %v531, 0
      %v566 = vsel %vm540, %v532, 0
      %v569 = vsel %vm540, %v533, 0
      %v572 = vsel %vm540, %v534, 0
      %v575 = vsel %vm540, %v535, 0
      %v578 = vsel %vm540, %v536, 0
      %v581 = vsel %vm540, %v537, 0
      %v584 = vsel %vm540, %v538, 0
      %v587 = vsel %vm540, %v539, 0
      %vm589 = vcmask 1041408
      %v591 = vsel %vm589, %v452, 0
      %593 = vmatprep.subr.bf16.mxu0 0
      %594 = vmatpush1.bf16.msra.mxu0 %v591
      %595 = vmatprep.subr.bf16.mxu0 0
      %596 = vmatpush1.bf16.msra.mxu0 0
      %597 = vmatprep.subr.bf16.mxu0 0
      %598 = vmatpush1.bf16.msra.mxu0 0
      %599 = vmatprep.subr.bf16.mxu0 0
      %600 = vmatpush1.bf16.msra.mxu0 0
      %601 = vmatprep.subr.bf16.mxu0 0
      %602 = vmatpush1.bf16.msra.mxu0 0
      %603 = vmatprep.subr.bf16.mxu0 0
      %604 = vmatpush1.bf16.msra.mxu0 0
      %605 = vmatprep.subr.bf16.mxu0 0
      %606 = vmatpush1.bf16.msra.mxu0 0
      %607 = vmatprep.subr.bf16.mxu0 0
      %608 = vmatpush1.bf16.msra.mxu0 0
      %609 = vmatprep.subr.bf16.mxu0 0
      %610 = vmatpush1.bf16.msra.mxu0 0
      %611 = vmatprep.subr.bf16.mxu0 0
      %612 = vmatpush1.bf16.msra.mxu0 0
      %613 = vmatprep.subr.bf16.mxu0 0
      %614 = vmatpush1.bf16.msra.mxu0 0
      %615 = vmatprep.subr.bf16.mxu0 0
      %616 = vmatpush1.bf16.msra.mxu0 0
      %617 = vmatprep.subr.bf16.mxu0 0
      %618 = vmatpush1.bf16.msra.mxu0 0
      %619 = vmatprep.subr.bf16.mxu0 0
      %620 = vmatpush1.bf16.msra.mxu0 0
      %621 = vmatprep.subr.bf16.mxu0 0
      %622 = vmatpush1.bf16.msra.mxu0 0
      %623 = vmatprep.subr.bf16.mxu0 0
      %624 = vmatpush1.bf16.msra.mxu0 0
      %625 = vmatprep.mubr.bf16.mxu0 0
      %626 = vmatmul.mubr.bf16.gmra.mrb[0].mxu0 %v542
      %v627 = vpop.f32.mrb[0].mxu0
      %v628 = vadd.f32 %v458, %v627
      %v629 = vpop.f32.mrb[0].mxu0
      %v630 = vpop.f32.mrb[0].mxu0
      %v631 = vadd.f32 %v458, %v630
      %v632 = vpop.f32.mrb[0].mxu0
      %633 = vmatprep.mubr.bf16.mxu0 0
      %634 = vmatmul.mubr.bf16.gmra.mrb[0].mxu0 %v545
      %v635 = vpop.f32.mrb[0].mxu0
      %v636 = vadd.f32 %v458, %v635
      %v637 = vpop.f32.mrb[0].mxu0
      %v638 = vpop.f32.mrb[0].mxu0
      %v639 = vadd.f32 %v458, %v638
      %v640 = vpop.f32.mrb[0].mxu0
      %641 = vmatprep.mubr.bf16.mxu0 0
      %642 = vmatmul.mubr.bf16.gmra.mrb[0].mxu0 %v548
      %v643 = vpop.f32.mrb[0].mxu0
      %v644 = vadd.f32 %v458, %v643
      %v645 = vpop.f32.mrb[0].mxu0
      %v646 = vpop.f32.mrb[0].mxu0
      %v647 = vadd.f32 %v458, %v646
      %v648 = vpop.f32.mrb[0].mxu0
      %649 = vmatprep.mubr.bf16.mxu0 0
      %650 = vmatmul.mubr.bf16.gmra.mrb[0].mxu0 %v551
      %v651 = vpop.f32.mrb[0].mxu0
      %v652 = vadd.f32 %v458, %v651
      %v653 = vpop.f32.mrb[0].mxu0
      %v654 = vpop.f32.mrb[0].mxu0
      %v655 = vadd.f32 %v458, %v654
      %v656 = vpop.f32.mrb[0].mxu0
      %657 = vmatprep.mubr.bf16.mxu0 0
      %658 = vmatmul.mubr.bf16.gmra.mrb[0].mxu0 %v554
      %v659 = vpop.f32.mrb[0].mxu0
      %v660 = vadd.f32 %v458, %v659
      %v661 = vpop.f32.mrb[0].mxu0
      %v662 = vpop.f32.mrb[0].mxu0
      %v663 = vadd.f32 %v458, %v662
      %v664 = vpop.f32.mrb[0].mxu0
      %665 = vmatprep.mubr.bf16.mxu0 0
      %666 = vmatmul.mubr.bf16.gmra.mrb[0].mxu0 %v557
      %v667 = vpop.f32.mrb[0].mxu0
      %v668 = vadd.f32 %v458, %v667
      %v669 = vpop.f32.mrb[0].mxu0
      %v670 = vpop.f32.mrb[0].mxu0
      %v671 = vadd.f32 %v458, %v670
      %v672 = vpop.f32.mrb[0].mxu0
      %673 = vmatprep.mubr.bf16.mxu0 0
      %674 = vmatmul.mubr.bf16.gmra.mrb[0].mxu0 %v560
      %v675 = vpop.f32.mrb[0].mxu0
      %v676 = vadd.f32 %v458, %v675
      %v677 = vpop.f32.mrb[0].mxu0
      %v678 = vpop.f32.mrb[0].mxu0
      %v679 = vadd.f32 %v458, %v678
      %v680 = vpop.f32.mrb[0].mxu0
      %681 = vmatprep.mubr.bf16.mxu0 0
      %682 = vmatmul.mubr.bf16.gmra.mrb[0].mxu0 %v563
      %v683 = vpop.f32.mrb[0].mxu0
      %v684 = vadd.f32 %v458, %v683
      %v685 = vpop.f32.mrb[0].mxu0
      %v686 = vpop.f32.mrb[0].mxu0
      %v687 = vadd.f32 %v458, %v686
      %v688 = vpop.f32.mrb[0].mxu0
      %689 = vmatprep.mubr.bf16.mxu0 0
      %690 = vmatmul.mubr.bf16.gmra.mrb[0].mxu0 %v566
      %v691 = vpop.f32.mrb[0].mxu0
      %v692 = vadd.f32 %v458, %v691
      %v693 = vpop.f32.mrb[0].mxu0
      %v694 = vpop.f32.mrb[0].mxu0
      %v695 = vadd.f32 %v458, %v694
      %v696 = vpop.f32.mrb[0].mxu0
      %697 = vmatprep.mubr.bf16.mxu0 0
      %698 = vmatmul.mubr.bf16.gmra.mrb[0].mxu0 %v569
      %v699 = vpop.f32.mrb[0].mxu0
      %v700 = vadd.f32 %v458, %v699
      %v701 = vpop.f32.mrb[0].mxu0
      %v702 = vpop.f32.mrb[0].mxu0
      %v703 = vadd.f32 %v458, %v702
      %v704 = vpop.f32.mrb[0].mxu0
      %705 = vmatprep.mubr.bf16.mxu0 0
      %706 = vmatmul.mubr.bf16.gmra.mrb[0].mxu0 %v572
      %v707 = vpop.f32.mrb[0].mxu0
      %v708 = vadd.f32 %v458, %v707
      %v709 = vpop.f32.mrb[0].mxu0
      %v710 = vpop.f32.mrb[0].mxu0
      %v711 = vadd.f32 %v458, %v710
      %v712 = vpop.f32.mrb[0].mxu0
      %713 = vmatprep.mubr.bf16.mxu0 0
      %714 = vmatmul.mubr.bf16.gmra.mrb[0].mxu0 %v575
      %v715 = vpop.f32.mrb[0].mxu0
      %v716 = vadd.f32 %v458, %v715
      %v717 = vpop.f32.mrb[0].mxu0
      %v718 = vpop.f32.mrb[0].mxu0
      %v719 = vadd.f32 %v458, %v718
      %v720 = vpop.f32.mrb[0].mxu0
      %721 = vmatprep.mubr.bf16.mxu0 0
      %722 = vmatmul.mubr.bf16.gmra.mrb[0].mxu0 %v578
      %v723 = vpop.f32.mrb[0].mxu0
      %v724 = vadd.f32 %v458, %v723
      %v725 = vpop.f32.mrb[0].mxu0
      %v726 = vpop.f32.mrb[0].mxu0
      %v727 = vadd.f32 %v458, %v726
      %v728 = vpop.f32.mrb[0].mxu0
      %729 = vmatprep.mubr.bf16.mxu0 0
      %730 = vmatmul.mubr.bf16.gmra.mrb[0].mxu0 %v581
      %v731 = vpop.f32.mrb[0].mxu0
      %v732 = vadd.f32 %v458, %v731
      %v733 = vpop.f32.mrb[0].mxu0
      %v734 = vpop.f32.mrb[0].mxu0
      %v735 = vadd.f32 %v458, %v734
      %v736 = vpop.f32.mrb[0].mxu0
      %737 = vmatprep.mubr.bf16.mxu0 0
      %738 = vmatmul.mubr.bf16.gmra.mrb[0].mxu0 %v584
      %v739 = vpop.f32.mrb[0].mxu0
      %v740 = vadd.f32 %v458, %v739
      %v741 = vpop.f32.mrb[0].mxu0
      %v742 = vpop.f32.mrb[0].mxu0
      %v743 = vadd.f32 %v458, %v742
      %v744 = vpop.f32.mrb[0].mxu0
      %745 = vmatprep.mubr.bf16.mxu0 0
      %746 = vmatmul.mubr.bf16.gmra.mrb[0].mxu0 %v587
      %v747 = vpop.f32.mrb[0].mxu0
      %v748 = vadd.f32 %v458, %v747
      %v749 = vpop.f32.mrb[0].mxu0
      %v750 = vpop.f32.mrb[0].mxu0
      %v751 = vadd.f32 %v458, %v750
      %v752 = vpop.f32.mrb[0].mxu0
      %753 = vdwg.mxu0
      %v754 = vadd.f32 %v388, %v628
      %v755 = vadd.f32 %v389, %v631
      %v756 = vadd.f32 %v390, %v636
      %v757 = vadd.f32 %v391, %v639
      %v758 = vadd.f32 %v392, %v644
      %v759 = vadd.f32 %v393, %v647
      %v760 = vadd.f32 %v394, %v652
      %v761 = vadd.f32 %v395, %v655
      %v762 = vadd.f32 %v396, %v660
      %v763 = vadd.f32 %v397, %v663
      %v764 = vadd.f32 %v398, %v668
      %v765 = vadd.f32 %v399, %v671
      %v766 = vadd.f32 %v400, %v676
      %v767 = vadd.f32 %v401, %v679
      %v768 = vadd.f32 %v402, %v684
      %v769 = vadd.f32 %v403, %v687
      %v770 = vadd.f32 %v404, %v692
      %v771 = vadd.f32 %v405, %v695
      %v772 = vadd.f32 %v406, %v700
      %v773 = vadd.f32 %v407, %v703
      %v774 = vadd.f32 %v408, %v708
      %v775 = vadd.f32 %v409, %v711
      %v776 = vadd.f32 %v410, %v716
      %v777 = vadd.f32 %v411, %v719
      %v778 = vadd.f32 %v412, %v724
      %v779 = vadd.f32 %v413, %v727
      %v780 = vadd.f32 %v414, %v732
      %v781 = vadd.f32 %v415, %v735
      %v782 = vadd.f32 %v416, %v740
      %v783 = vadd.f32 %v417, %v743
      %v784 = vadd.f32 %v418, %v748
      %v785 = vadd.f32 %v419, %v751
      %vm786 = vcmp.gt.f32.partialorder %v754, 0.0
      %vm787 = vcmp.gt.f32.partialorder %v755, 0.0
      %vm788 = vcmp.gt.f32.partialorder %v756, 0.0
      %vm789 = vcmp.gt.f32.partialorder %v757, 0.0
      %vm790 = vcmp.gt.f32.partialorder %v758, 0.0
      %vm791 = vcmp.gt.f32.partialorder %v759, 0.0
      %vm792 = vcmp.gt.f32.partialorder %v760, 0.0
      %vm793 = vcmp.gt.f32.partialorder %v761, 0.0
      %vm794 = vcmp.gt.f32.partialorder %v762, 0.0
      %vm795 = vcmp.gt.f32.partialorder %v763, 0.0
      %vm796 = vcmp.gt.f32.partialorder %v764, 0.0
      %vm797 = vcmp.gt.f32.partialorder %v765, 0.0
      %vm798 = vcmp.gt.f32.partialorder %v766, 0.0
      %vm799 = vcmp.gt.f32.partialorder %v767, 0.0
      %vm800 = vcmp.gt.f32.partialorder %v768, 0.0
      %vm801 = vcmp.gt.f32.partialorder %v769, 0.0
      %vm802 = vcmp.gt.f32.partialorder %v770, 0.0
      %vm803 = vcmp.gt.f32.partialorder %v771, 0.0
      %vm804 = vcmp.gt.f32.partialorder %v772, 0.0
      %vm805 = vcmp.gt.f32.partialorder %v773, 0.0
      %vm806 = vcmp.gt.f32.partialorder %v774, 0.0
      %vm807 = vcmp.gt.f32.partialorder %v775, 0.0
      %vm808 = vcmp.gt.f32.partialorder %v776, 0.0
      %vm809 = vcmp.gt.f32.partialorder %v777, 0.0
      %vm810 = vcmp.gt.f32.partialorder %v778, 0.0
      %vm811 = vcmp.gt.f32.partialorder %v779, 0.0
      %vm812 = vcmp.gt.f32.partialorder %v780, 0.0
      %vm813 = vcmp.gt.f32.partialorder %v781, 0.0
      %vm814 = vcmp.gt.f32.partialorder %v782, 0.0
      %vm815 = vcmp.gt.f32.partialorder %v783, 0.0
      %vm816 = vcmp.gt.f32.partialorder %v784, 0.0
      %vm817 = vcmp.gt.f32.partialorder %v785, 0.0
      %v818 = vmul.f32 %v754, 0.01
      %v819 = vmul.f32 %v755, 0.01
      %v820 = vmul.f32 %v756, 0.01
      %v821 = vmul.f32 %v757, 0.01
      %v822 = vmul.f32 %v758, 0.01
      %v823 = vmul.f32 %v759, 0.01
      %v824 = vmul.f32 %v760, 0.01
      %v825 = vmul.f32 %v761, 0.01
      %v826 = vmul.f32 %v762, 0.01
      %v827 = vmul.f32 %v763, 0.01
      %v828 = vmul.f32 %v764, 0.01
      %v829 = vmul.f32 %v765, 0.01
      %v830 = vmul.f32 %v766, 0.01
      %v831 = vmul.f32 %v767, 0.01
      %v832 = vmul.f32 %v768, 0.01
      %v833 = vmul.f32 %v769, 0.01
      %v834 = vmul.f32 %v770, 0.01
      %v835 = vmul.f32 %v771, 0.01
      %v836 = vmul.f32 %v772, 0.01
      %v837 = vmul.f32 %v773, 0.01
      %v838 = vmul.f32 %v774, 0.01
      %v839 = vmul.f32 %v775, 0.01
      %v840 = vmul.f32 %v776, 0.01
      %v841 = vmul.f32 %v777, 0.01
      %v842 = vmul.f32 %v778, 0.01
      %v843 = vmul.f32 %v779, 0.01
      %v844 = vmul.f32 %v780, 0.01
      %v845 = vmul.f32 %v781, 0.01
      %v846 = vmul.f32 %v782, 0.01
      %v847 = vmul.f32 %v783, 0.01
      %v848 = vmul.f32 %v784, 0.01
      %v849 = vmul.f32 %v785, 0.01
      %v850 = vsel %vm786, %v754, %v818
      %v851 = vsel %vm787, %v755, %v819
      %v852 = vsel %vm788, %v756, %v820
      %v853 = vsel %vm789, %v757, %v821
      %v854 = vsel %vm790, %v758, %v822
      %v855 = vsel %vm791, %v759, %v823
      %v856 = vsel %vm792, %v760, %v824
      %v857 = vsel %vm793, %v761, %v825
      %v858 = vsel %vm794, %v762, %v826
      %v859 = vsel %vm795, %v763, %v827
      %v860 = vsel %vm796, %v764, %v828
      %v861 = vsel %vm797, %v765, %v829
      %v862 = vsel %vm798, %v766, %v830
      %v863 = vsel %vm799, %v767, %v831
      %v864 = vsel %vm800, %v768, %v832
      %v865 = vsel %vm801, %v769, %v833
      %v866 = vsel %vm802, %v770, %v834
      %v867 = vsel %vm803, %v771, %v835
      %v868 = vsel %vm804, %v772, %v836
      %v869 = vsel %vm805, %v773, %v837
      %v870 = vsel %vm806, %v774, %v838
      %v871 = vsel %vm807, %v775, %v839
      %v872 = vsel %vm808, %v776, %v840
      %v873 = vsel %vm809, %v777, %v841
      %v874 = vsel %vm810, %v778, %v842
      %v875 = vsel %vm811, %v779, %v843
      %v876 = vsel %vm812, %v780, %v844
      %v877 = vsel %vm813, %v781, %v845
      %v878 = vsel %vm814, %v782, %v846
      %v879 = vsel %vm815, %v783, %v847
      %v880 = vsel %vm816, %v784, %v848
      %v881 = vsel %vm817, %v785, %v849
      %882 = vst.msk [vmem:[%s275] sm:$0xff] %vm540, %v850
      %883 = vst.msk [vmem:[%s275 + $0x8] sm:$0xff] %vm540, %v851
      %884 = vst.msk [vmem:[%s275 + $0x10] sm:$0xff] %vm540, %v852
      %885 = vst.msk [vmem:[%s275 + $0x18] sm:$0xff] %vm540, %v853
      %886 = vst.msk [vmem:[%s275 + $0x20] sm:$0xff] %vm540, %v854
      %887 = vst.msk [vmem:[%s275 + $0x28] sm:$0xff] %vm540, %v855
      %888 = vst.msk [vmem:[%s275 + $0x30] sm:$0xff] %vm540, %v856
      %889 = vst.msk [vmem:[%s275 + $0x38] sm:$0xff] %vm540, %v857
      %890 = vst.msk [vmem:[%s275 + $0x40] sm:$0xff] %vm540, %v858
      %891 = vst.msk [vmem:[%s275 + $0x48] sm:$0xff] %vm540, %v859
      %892 = vst.msk [vmem:[%s275 + $0x50] sm:$0xff] %vm540, %v860
      %893 = vst.msk [vmem:[%s275 + $0x58] sm:$0xff] %vm540, %v861
      %894 = vst.msk [vmem:[%s275 + $0x60] sm:$0xff] %vm540, %v862
      %895 = vst.msk [vmem:[%s275 + $0x68] sm:$0xff] %vm540, %v863
      %896 = vst.msk [vmem:[%s275 + $0x70] sm:$0xff] %vm540, %v864
      %897 = vst.msk [vmem:[%s275 + $0x78] sm:$0xff] %vm540, %v865
      %898 = vst.msk [vmem:[%s275 + $0x80] sm:$0xff] %vm540, %v866
      %899 = vst.msk [vmem:[%s275 + $0x88] sm:$0xff] %vm540, %v867
      %900 = vst.msk [vmem:[%s275 + $0x90] sm:$0xff] %vm540, %v868
      %901 = vst.msk [vmem:[%s275 + $0x98] sm:$0xff] %vm540, %v869
      %902 = vst.msk [vmem:[%s275 + $0xa0] sm:$0xff] %vm540, %v870
      %903 = vst.msk [vmem:[%s275 + $0xa8] sm:$0xff] %vm540, %v871
      %904 = vst.msk [vmem:[%s275 + $0xb0] sm:$0xff] %vm540, %v872
      %905 = vst.msk [vmem:[%s275 + $0xb8] sm:$0xff] %vm540, %v873
      %906 = vst.msk [vmem:[%s275 + $0xc0] sm:$0xff] %vm540, %v874
      %907 = vst.msk [vmem:[%s275 + $0xc8] sm:$0xff] %vm540, %v875
      %908 = vst.msk [vmem:[%s275 + $0xd0] sm:$0xff] %vm540, %v876
      %909 = vst.msk [vmem:[%s275 + $0xd8] sm:$0xff] %vm540, %v877
      %910 = vst.msk [vmem:[%s275 + $0xe0] sm:$0xff] %vm540, %v878
      %911 = vst.msk [vmem:[%s275 + $0xe8] sm:$0xff] %vm540, %v879
      %912 = vst.msk [vmem:[%s275 + $0xf0] sm:$0xff] %vm540, %v880
      %913 = vst.msk [vmem:[%s275 + $0xf8] sm:$0xff] %vm540, %v881
      %s914 = smul.u32 32, %s17
      %p915 = scmp.lt.s32.totalorder %s914, 63
      %s916 = scalar_select %p915, %s914, 63
      %s917 = smul.addr %s916, 8
      %s918 = scalar_lea.vmem %s6, %s917
      // Predicated region
      $region45: #{residual_block.5} parent=43 // pred_check
        %p919 = pneg %p171
      $region46: #{residual_block.5} parent=43 // pred_check_branch
        %921 = sbr.rel (%p919) target = $region48
      $region47: #{residual_block.5} parent=43 // pred_region
        %s922 = smul.u32 32, %s17
      $region48: #{residual_block.5} parent=43 // pred_fallthru
        _
    $region44: #{residual_block.5} parent=5 // pred_fallthru
      _
    %p923 = scmp.le.s32.totalorder 2, %s12
    // Predicated region
    $region49: #{residual_block.5} parent=5 // pred_check
      %p924 = pneg %p923
    $region50: #{residual_block.5} parent=5 // pred_check_branch
      %926 = sbr.rel (%p924) target = $region52
    $region51: #{residual_block.5} parent=5 // pred_region
      %s927 = ssub.s32 %s12, 2
      // Predicated region
      $region53: #{residual_block.5} parent=51 // pred_check
        %p928 = pneg %p177
      $region54: #{residual_block.5} parent=51 // pred_check_branch
        %930 = sbr.rel (%p928) target = $region56
      $region55: #{residual_block.5} parent=51 // pred_region
        %s931 = smul.u32 32, %s18
        %p932 = scmp.lt.s32.totalorder %s931, 63
        %s933 = scalar_select %p932, %s931, 63
        %s934 = smul.addr %s933, 8
        %s935 = scalar_lea.vmem %s6, %s934
      $region56: #{residual_block.5} parent=51 // pred_fallthru
        _
    $region52: #{residual_block.5} parent=5 // pred_fallthru
      _
  $region6: #{residual_block.5} parent=0 // loop_footer
    %s16 = sadd.s32 1, %s12
  $region7: #{residual_block.5} parent=0 // loop_footer_branch
    %11 = sbr.rel target = $region3
  $region8: #{residual_block.5} parent=0 // loop_exit
    _

// kernel: residual_block.3
$region0: #{residual_block.3}
  #allocation0 [shape = 'u32[]', space=smem, size = 0x4, offset = 0x4, fixed_abs, tag = 'smem constant byte address 0x4 - core index']
  #allocation1 [shape = 'u32[144,128]{1,0:T(1,128)}', space=vmem, size = 0x12000, scoped, tag = 'internal scratch']
  #allocation2 [shape = 'f32[18,18,4]{2,1,0:T(8,128)}', space=vmem, size = 0x36000, scoped, tag = 'scratch operand']
  %s0 = inlined_call_operand.vmem [shape: bf16[2,256,4], index: 0, kind: input, shape index: {}]
  %s1 = inlined_call_operand.vmem [shape: f32[1,4], index: 1, kind: input, shape index: {}]
  %s2 = inlined_call_operand.vmem [shape: f32[1,4], index: 2, kind: input, shape index: {}]
  %s3 = inlined_call_operand.vmem [shape: bf16[9,4,4], index: 3, kind: input, shape index: {}]
  %s4 = inlined_call_operand.vmem [shape: f32[1,4], index: 4, kind: input, shape index: {}]
  %s5 = inlined_call_operand.vmem [shape: bf16[2,256,4], index: 5, kind: output, shape index: {0}]
  %s6 = inlined_call_operand.vmem [shape: f32[2,2,4], index: 6, kind: output, shape index: {1}]
  %7 = xla_tuple %s5, %s6
  %s8 = sld [smem:[#allocation0]]
  $region61: #{residual_block.3} parent=0
    _
  %s10 = ssub.s32 1, %s8
  %s11 = scalar_select 0, %s10, %s8
  loop: start=0, step=1, limit=4
  $region2: #{residual_block.3} parent=0 // loop_pre_header
    _
  $region3: #{residual_block.3} parent=0 // loop_header
    %s13 = sphi 0, %s17
    %p14 = scmp.ge.s32.totalorder %s13, 4
    %s23 = sphi 0, %s25
    %s26 = sphi 0, %s23
    %s27 = sphi 0, %s26
    %s43 = sphi 0, %s27
    %s47 = sphi 0, %s47
    %s49 = sphi 0, %s47
    %s50 = sphi 0, %s49
    %s64 = sphi 0, %s50
    %s68 = sphi 0, %s68
    %s70 = sphi 0, %s68
    %s71 = sphi 0, %s70
    %s85 = sphi 0, %s71
    %s89 = sphi 0, %s89
    %s91 = sphi 0, %s89
    %s92 = sphi 0, %s91
    %s106 = sphi 0, %s92
    %s110 = sphi 0, %s110
    %s112 = sphi 0, %s110
    %s113 = sphi 0, %s112
    %s127 = sphi 0, %s113
    %s133 = sphi 0, %s135
    %s136 = sphi 0, %s133
    %s137 = sphi 0, %s136
    %s153 = sphi 0, %s137
    %s159 = sphi 0, %s161
    %s162 = sphi 0, %s159
    %s163 = sphi 0, %s162
    %s179 = sphi 0, %s163
  $region4: #{residual_block.3} parent=0 // loop_header_branch
    %16 = sbr.rel (%p14) target = $region8
  $region5: #{residual_block.3} parent=0 // loop_body
    %s18 = ssub.s32 %s13, 1
    %s19 = ssub.s32 %s13, 2
    %s20 = sadd.s32 %s13, 1
    %s21 = ssub.s32 %s13, %s20
    %p22 = scmp.eq.s32.totalorder %s21, 0
    %s24 = sadd.s32 %s23, 1
    %s25 = scalar_select %p22, %s23, %s24
    %p28 = pneg %p22
    %p29 = scmp.eq.s32.totalorder %s13, 1
    %p30 = por %p28, %p29
    %p31 = scmp.ne.s32.totalorder %s23, %s26
    %p32 = scmp.eq.s32.totalorder %s13, 0
    %p33 = por %p31, %p32
    %p34 = scmp.ne.s32.totalorder %s23, %s26
    %p35 = scmp.eq.s32.totalorder %s18, 1
    %p36 = por %p34, %p35
    %p37 = scmp.ne.s32.totalorder %s26, %s27
    %p38 = scmp.eq.s32.totalorder %s18, 0
    %p39 = por %p37, %p38
    %p40 = scmp.ne.s32.totalorder %s26, %s27
    %p41 = scmp.eq.s32.totalorder %s19, 1
    %p42 = por %p40, %p41
    %p44 = scmp.ne.s32.totalorder %s27, %s43
    %p45 = scmp.eq.s32.totalorder %s19, 0
    %p46 = por %p44, %p45
    %s48 = sadd.s32 %s47, 1
    %p51 = scmp.eq.s32.totalorder %s13, 1
    %p52 = scmp.ne.s32.totalorder %s47, %s49
    %p53 = scmp.eq.s32.totalorder %s13, 0
    %p54 = por %p52, %p53
    %p55 = scmp.ne.s32.totalorder %s47, %s49
    %p56 = scmp.eq.s32.totalorder %s18, 1
    %p57 = por %p55, %p56
    %p58 = scmp.ne.s32.totalorder %s49, %s50
    %p59 = scmp.eq.s32.totalorder %s18, 0
    %p60 = por %p58, %p59
    %p61 = scmp.ne.s32.totalorder %s49, %s50
    %p62 = scmp.eq.s32.totalorder %s19, 1
    %p63 = por %p61, %p62
    %p65 = scmp.ne.s32.totalorder %s50, %s64
    %p66 = scmp.eq.s32.totalorder %s19, 0
    %p67 = por %p65, %p66
    %s69 = sadd.s32 %s68, 1
    %p72 = scmp.eq.s32.totalorder %s13, 1
    %p73 = scmp.ne.s32.totalorder %s68, %s70
    %p74 = scmp.eq.s32.totalorder %s13, 0
    %p75 = por %p73, %p74
    %p76 = scmp.ne.s32.totalorder %s68, %s70
    %p77 = scmp.eq.s32.totalorder %s18, 1
    %p78 = por %p76, %p77
    %p79 = scmp.ne.s32.totalorder %s70, %s71
    %p80 = scmp.eq.s32.totalorder %s18, 0
    %p81 = por %p79, %p80
    %p82 = scmp.ne.s32.totalorder %s70, %s71
    %p83 = scmp.eq.s32.totalorder %s19, 1
    %p84 = por %p82, %p83
    %p86 = scmp.ne.s32.totalorder %s71, %s85
    %p87 = scmp.eq.s32.totalorder %s19, 0
    %p88 = por %p86, %p87
    %s90 = sadd.s32 %s89, 1
    %p93 = scmp.eq.s32.totalorder %s13, 1
    %p94 = scmp.ne.s32.totalorder %s89, %s91
    %p95 = scmp.eq.s32.totalorder %s13, 0
    %p96 = por %p94, %p95
    %p97 = scmp.ne.s32.totalorder %s89, %s91
    %p98 = scmp.eq.s32.totalorder %s18, 1
    %p99 = por %p97, %p98
    %p100 = scmp.ne.s32.totalorder %s91, %s92
    %p101 = scmp.eq.s32.totalorder %s18, 0
    %p102 = por %p100, %p101
    %p103 = scmp.ne.s32.totalorder %s91, %s92
    %p104 = scmp.eq.s32.totalorder %s19, 1
    %p105 = por %p103, %p104
    %p107 = scmp.ne.s32.totalorder %s92, %s106
    %p108 = scmp.eq.s32.totalorder %s19, 0
    %p109 = por %p107, %p108
    %s111 = sadd.s32 %s110, 1
    %p114 = scmp.eq.s32.totalorder %s13, 1
    %p115 = scmp.ne.s32.totalorder %s110, %s112
    %p116 = scmp.eq.s32.totalorder %s13, 0
    %p117 = por %p115, %p116
    %p118 = scmp.ne.s32.totalorder %s110, %s112
    %p119 = scmp.eq.s32.totalorder %s18, 1
    %p120 = por %p118, %p119
    %p121 = scmp.ne.s32.totalorder %s112, %s113
    %p122 = scmp.eq.s32.totalorder %s18, 0
    %p123 = por %p121, %p122
    %p124 = scmp.ne.s32.totalorder %s112, %s113
    %p125 = scmp.eq.s32.totalorder %s19, 1
    %p126 = por %p124, %p125
    %p128 = scmp.ne.s32.totalorder %s113, %s127
    %p129 = scmp.eq.s32.totalorder %s19, 0
    %p130 = por %p128, %p129
    %s131 = ssub.s32 %s13, %s20
    %p132 = scmp.eq.s32.totalorder %s131, 0
    %s134 = sadd.s32 %s133, 1
    %s135 = scalar_select %p132, %s133, %s134
    %p138 = pneg %p132
    %p139 = scmp.eq.s32.totalorder %s13, 1
    %p140 = por %p138, %p139
    %p141 = scmp.ne.s32.totalorder %s133, %s136
    %p142 = scmp.eq.s32.totalorder %s13, 0
    %p143 = por %p141, %p142
    %p144 = scmp.ne.s32.totalorder %s133, %s136
    %p145 = scmp.eq.s32.totalorder %s18, 1
    %p146 = por %p144, %p145
    %p147 = scmp.ne.s32.totalorder %s136, %s137
    %p148 = scmp.eq.s32.totalorder %s18, 0
    %p149 = por %p147, %p148
    %p150 = scmp.ne.s32.totalorder %s136, %s137
    %p151 = scmp.eq.s32.totalorder %s19, 1
    %p152 = por %p150, %p151
    %p154 = scmp.ne.s32.totalorder %s137, %s153
    %p155 = scmp.eq.s32.totalorder %s19, 0
    %p156 = por %p154, %p155
    %s157 = ssub.s32 %s13, %s20
    %p158 = scmp.eq.s32.totalorder %s157, 0
    %s160 = sadd.s32 %s159, 1
    %s161 = scalar_select %p158, %s159, %s160
    %p164 = pneg %p158
    %p165 = scmp.eq.s32.totalorder %s13, 1
    %p166 = por %p164, %p165
    %p167 = scmp.ne.s32.totalorder %s159, %s162
    %p168 = scmp.eq.s32.totalorder %s13, 0
    %p169 = por %p167, %p168
    %p170 = scmp.ne.s32.totalorder %s159, %s162
    %p171 = scmp.eq.s32.totalorder %s18, 1
    %p172 = por %p170, %p171
    %p173 = scmp.ne.s32.totalorder %s162, %s163
    %p174 = scmp.eq.s32.totalorder %s18, 0
    %p175 = por %p173, %p174
    %p176 = scmp.ne.s32.totalorder %s162, %s163
    %p177 = scmp.eq.s32.totalorder %s19, 1
    %p178 = por %p176, %p177
    %p180 = scmp.ne.s32.totalorder %s163, %s179
    %p181 = scmp.eq.s32.totalorder %s19, 0
    %p182 = por %p180, %p181
    %p183 = scmp.le.s32.totalorder 1, %s13
    %p184 = scmp.lt.s32.totalorder %s13, 3
    %p185 = pnand %p183, %p184
    %p186 = pneg %p185
    // Predicated region
    $region9: #{residual_block.3} parent=5 // pred_check
      _
    $region10: #{residual_block.3} parent=5 // pred_check_branch
      %188 = sbr.rel (%p185) target = $region12
    $region11: #{residual_block.3} parent=5 // pred_region
      %s189 = ssub.s32 %s13, 1
      // Predicated region
      $region13: #{residual_block.3} parent=11 // pred_check
        %p190 = pneg %p60
      $region14: #{residual_block.3} parent=11 // pred_check_branch
        %192 = sbr.rel (%p190) target = $region16
      $region15: #{residual_block.3} parent=11 // pred_region
        _
      $region16: #{residual_block.3} parent=11 // pred_fallthru
        _
      // Predicated region
      $region17: #{residual_block.3} parent=11 // pred_check
        %p193 = pneg %p81
      $region18: #{residual_block.3} parent=11 // pred_check_branch
        %195 = sbr.rel (%p193) target = $region20
      $region19: #{residual_block.3} parent=11 // pred_region
        _
      $region20: #{residual_block.3} parent=11 // pred_fallthru
        _
      // Predicated region
      $region21: #{residual_block.3} parent=11 // pred_check
        %p196 = pneg %p102
      $region22: #{residual_block.3} parent=11 // pred_check_branch
        %198 = sbr.rel (%p196) target = $region24
      $region23: #{residual_block.3} parent=11 // pred_region
        _
      $region24: #{residual_block.3} parent=11 // pred_fallthru
        _
      // Predicated region
      $region25: #{residual_block.3} parent=11 // pred_check
        %p199 = pneg %p123
      $region26: #{residual_block.3} parent=11 // pred_check_branch
        %201 = sbr.rel (%p199) target = $region28
      $region27: #{residual_block.3} parent=11 // pred_region
        _
      $region28: #{residual_block.3} parent=11 // pred_fallthru
        _
    $region12: #{residual_block.3} parent=5 // pred_fallthru
      _
    %p202 = scmp.lt.s32.totalorder %s13, 2
    // Predicated region
    $region29: #{residual_block.3} parent=5 // pred_check
      %p203 = pneg %p202
    $region30: #{residual_block.3} parent=5 // pred_check_branch
      %205 = sbr.rel (%p203) target = $region32
    $region31: #{residual_block.3} parent=5 // pred_region
      // Predicated region
      $region33: #{residual_block.3} parent=31 // pred_check
        %p206 = pneg %p33
      $region34: #{residual_block.3} parent=31 // pred_check_branch
        %208 = sbr.rel (%p206) target = $region36
      $region35: #{residual_block.3} parent=31 // pred_region
        %p209 = scmp.lt.s32.totalorder %s13, 1
        %s210 = scalar_select %p209, %s13, 1
        %s211 = smul.addr %s210, 32
        %s212 = smul.addr %s211, 4
        %s213 = scalar_lea.vmem %s0, %s212
      $region36: #{residual_block.3} parent=31 // pred_fallthru
        _
    $region32: #{residual_block.3} parent=5 // pred_fallthru
      _
    %p214 = scmp.le.s32.totalorder 1, %s13
    %p215 = scmp.lt.s32.totalorder %s13, 3
    %p216 = pnand %p214, %p215
    %p217 = pneg %p216
    // Predicated region
    $region37: #{residual_block.3} parent=5 // pred_check
      _
    $region38: #{residual_block.3} parent=5 // pred_check_branch
      %219 = sbr.rel (%p216) target = $region40
    $region39: #{residual_block.3} parent=5 // pred_region
      %s220 = ssub.s32 %s13, 1
      %p221 = scmp.lt.s32.totalorder %s18, 1
      %s222 = scalar_select %p221, %s18, 1
      %s223 = smul.addr %s222, 32
      %s224 = smul.addr %s223, 4
      %s225 = scalar_lea.vmem %s0, %s224
      %p226 = pneg %p39
      %p227 = pneg %p36
      %p228 = pneg %p60
      %p229 = pneg %p57
      %p230 = pneg %p81
      %p231 = pneg %p78
      %p232 = pneg %p102
      %p233 = pneg %p99
      %p234 = pneg %p123
      %p235 = pneg %p120
      %p236 = pneg %p149
      %p237 = pneg %p146
      %p238 = scmp.lt.s32.totalorder %s18, 1
      %s239 = scalar_select %p238, %s18, 1
      %s240 = smul.addr %s239, 32
      %s241 = smul.addr %s240, 4
      %s242 = scalar_lea.vmem %s5, %s241
      %p243 = pneg %p175
      %p244 = pneg %p172
      %p245 = scmp.lt.s32.totalorder %s18, 1
      %s246 = scalar_select %p245, %s18, 1
      %s247 = smul.addr %s246, 2
      %s248 = scalar_lea.vmem %s6, %s247
      %p249 = scmp.lt.s32.totalorder %s18, 1
      %s250 = scalar_select %p249, %s18, 1
      %s251 = smul.addr %s250, 32
      %s252 = smul.addr %s251, 4
      %s253 = scalar_lea.vmem %s0, %s252
      %p254 = scmp.lt.s32.totalorder %s18, 1
      %s255 = scalar_select %p254, %s18, 1
      %s256 = smul.addr %s255, 32
      %s257 = smul.addr %s256, 4
      %s258 = scalar_lea.vmem %s5, %s257
      %p259 = scmp.lt.s32.totalorder %s18, 1
      %s260 = scalar_select %p259, %s18, 1
      %s261 = smul.addr %s260, 2
      %s262 = scalar_lea.vmem %s6, %s261
      %v264 = vld [vmem:[%s253] sm:$0xf]
      %v265 = vld [vmem:[%s253 + $0x4] sm:$0xf]
      %v266 = vld [vmem:[%s253 + $0x8] sm:$0xf]
      %v267 = vld [vmem:[%s253 + $0xc] sm:$0xf]
      %v268 = vld [vmem:[%s253 + $0x10] sm:$0xf]
      %v269 = vld [vmem:[%s253 + $0x14] sm:$0xf]
      %v270 = vld [vmem:[%s253 + $0x18] sm:$0xf]
      %v271 = vld [vmem:[%s253 + $0x1c] sm:$0xf]
      %v272 = vld [vmem:[%s253 + $0x20] sm:$0xf]
      %v273 = vld [vmem:[%s253 + $0x24] sm:$0xf]
      %v274 = vld [vmem:[%s253 + $0x28] sm:$0xf]
      %v275 = vld [vmem:[%s253 + $0x2c] sm:$0xf]
      %v276 = vld [vmem:[%s253 + $0x30] sm:$0xf]
      %v277 = vld [vmem:[%s253 + $0x34] sm:$0xf]
      %v278 = vld [vmem:[%s253 + $0x38] sm:$0xf]
      %v279 = vld [vmem:[%s253 + $0x3c] sm:$0xf]
      %v280 = vld [vmem:[%s253 + $0x40] sm:$0xf]
      %v281 = vld [vmem:[%s253 + $0x44] sm:$0xf]
      %v282 = vld [vmem:[%s253 + $0x48] sm:$0xf]
      %v283 = vld [vmem:[%s253 + $0x4c] sm:$0xf]
      %v284 = vld [vmem:[%s253 + $0x50] sm:$0xf]
      %v285 = vld [vmem:[%s253 + $0x54] sm:$0xf]
      %v286 = vld [vmem:[%s253 + $0x58] sm:$0xf]
      %v287 = vld [vmem:[%s253 + $0x5c] sm:$0xf]
      %v288 = vld [vmem:[%s253 + $0x60] sm:$0xf]
      %v289 = vld [vmem:[%s253 + $0x64] sm:$0xf]
      %v290 = vld [vmem:[%s253 + $0x68] sm:$0xf]
      %v291 = vld [vmem:[%s253 + $0x6c] sm:$0xf]
      %v292 = vld [vmem:[%s253 + $0x70] sm:$0xf]
      %v293 = vld [vmem:[%s253 + $0x74] sm:$0xf]
      %v294 = vld [vmem:[%s253 + $0x78] sm:$0xf]
      %v295 = vld [vmem:[%s253 + $0x7c] sm:$0xf]
      %v296 = vunpack.c.l.bf16 %v264
      %v297 = vunpack.c.l.bf16 %v265
      %v298 = vunpack.c.l.bf16 %v266
      %v299 = vunpack.c.l.bf16 %v267
      %v300 = vunpack.c.l.bf16 %v268
      %v301 = vunpack.c.l.bf16 %v269
      %v302 = vunpack.c.l.bf16 %v270
      %v303 = vunpack.c.l.bf16 %v271
      %v304 = vunpack.c.l.bf16 %v272
      %v305 = vunpack.c.l.bf16 %v273
      %v306 = vunpack.c.l.bf16 %v274
      %v307 = vunpack.c.l.bf16 %v275
      %v308 = vunpack.c.l.bf16 %v276
      %v309 = vunpack.c.l.bf16 %v277
      %v310 = vunpack.c.l.bf16 %v278
      %v311 = vunpack.c.l.bf16 %v279
      %v312 = vunpack.c.l.bf16 %v280
      %v313 = vunpack.c.l.bf16 %v281
      %v314 = vunpack.c.l.bf16 %v282
      %v315 = vunpack.c.l.bf16 %v283
      %v316 = vunpack.c.l.bf16 %v284
      %v317 = vunpack.c.l.bf16 %v285
      %v318 = vunpack.c.l.bf16 %v286
      %v319 = vunpack.c.l.bf16 %v287
      %v320 = vunpack.c.l.bf16 %v288
      %v321 = vunpack.c.l.bf16 %v289
      %v322 = vunpack.c.l.bf16 %v290
      %v323 = vunpack.c.l.bf16 %v291
      %v324 = vunpack.c.l.bf16 %v292
      %v325 = vunpack.c.l.bf16 %v293
      %v326 = vunpack.c.l.bf16 %v294
      %v327 = vunpack.c.l.bf16 %v295
      %vm328 = vcmask 31744
      %329 = vst.msk [vmem:[#allocation2] sm:$0xff] %vm328, 0.0
      %330 = vst.msk [vmem:[#allocation2 + $0x8] sm:$0xff] %vm328, 0.0
      %vm331 = vcmask 25600
      %332 = vst.msk [vmem:[#allocation2 + $0x10] sm:$0x3] %vm331, 0.0
      %s333 = scalar_lea.vmem [#allocation2], 408
      %334 = vst.msk [vmem:[%s333] sm:$0xff] %vm328, 0.0
      %335 = vst.msk [vmem:[%s333 + $0x8] sm:$0xff] %vm328, 0.0
      %336 = vst.msk [vmem:[%s333 + $0x10] sm:$0x3] %vm331, 0.0
      %vm337 = vcmask 24576
      %338 = vst.msk [vmem:[#allocation2] sm:$0x1] %vm337, 0.0
      %339 = vst.msk [vmem:[#allocation2 + $0x18] sm:$0x1] %vm337, 0.0
      %340 = vst.msk [vmem:[#allocation2 + $0x30] sm:$0x1] %vm337, 0.0
      %341 = vst.msk [vmem:[#allocation2 + $0x48] sm:$0x1] %vm337, 0.0
      %342 = vst.msk [vmem:[#allocation2 + $0x60] sm:$0x1] %vm337, 0.0
      %343 = vst.msk [vmem:[#allocation2 + $0x78] sm:$0x1] %vm337, 0.0
      %344 = vst.msk [vmem:[#allocation2 + $0x90] sm:$0x1] %vm337, 0.0
      %345 = vst.msk [vmem:[#allocation2 + $0xa8] sm:$0x1] %vm337, 0.0
      %346 = vst.msk [vmem:[#allocation2 + $0xc0] sm:$0x1] %vm337, 0.0
      %347 = vst.msk [vmem:[#allocation2 + $0xd8] sm:$0x1] %vm337, 0.0
      %348 = vst.msk [vmem:[#allocation2 + $0xf0] sm:$0x1] %vm337, 0.0
      %349 = vst.msk [vmem:[#allocation2 + $0x108] sm:$0x1] %vm337, 0.0
      %350 = vst.msk [vmem:[#allocation2 + $0x120] sm:$0x1] %vm337, 0.0
      %351 = vst.msk [vmem:[#allocation2 + $0x138] sm:$0x1] %vm337, 0.0
      %352 = vst.msk [vmem:[#allocation2 + $0x150] sm:$0x1] %vm337, 0.0
      %353 = vst.msk [vmem:[#allocation2 + $0x168] sm:$0x1] %vm337, 0.0
      %354 = vst.msk [vmem:[#allocation2 + $0x180] sm:$0x1] %vm337, 0.0
      %355 = vst.msk [vmem:[#allocation2 + $0x198] sm:$0x1] %vm337, 0.0
      %356 = vst.msk [vmem:[#allocation2 + $0x11] sm:$0x1] %vm337, 0.0
      %357 = vst.msk [vmem:[#allocation2 + $0x29] sm:$0x1] %vm337, 0.0
      %358 = vst.msk [vmem:[#allocation2 + $0x41] sm:$0x1] %vm337, 0.0
      %359 = vst.msk [vmem:[#allocation2 + $0x59] sm:$0x1] %vm337, 0.0
      %360 = vst.msk [vmem:[#allocation2 + $0x71] sm:$0x1] %vm337, 0.0
      %361 = vst.msk [vmem:[#allocation2 + $0x89] sm:$0x1] %vm337, 0.0
      %362 = vst.msk [vmem:[#allocation2 + $0xa1] sm:$0x1] %vm337, 0.0
      %363 = vst.msk [vmem:[#allocation2 + $0xb9] sm:$0x1] %vm337, 0.0
      %364 = vst.msk [vmem:[#allocation2 + $0xd1] sm:$0x1] %vm337, 0.0
      %365 = vst.msk [vmem:[#allocation2 + $0xe9] sm:$0x1] %vm337, 0.0
      %366 = vst.msk [vmem:[#allocation2 + $0x101] sm:$0x1] %vm337, 0.0
      %367 = vst.msk [vmem:[#allocation2 + $0x119] sm:$0x1] %vm337, 0.0
      %368 = vst.msk [vmem:[#allocation2 + $0x131] sm:$0x1] %vm337, 0.0
      %369 = vst.msk [vmem:[#allocation2 + $0x149] sm:$0x1] %vm337, 0.0
      %370 = vst.msk [vmem:[#allocation2 + $0x161] sm:$0x1] %vm337, 0.0
      %371 = vst.msk [vmem:[#allocation2 + $0x179] sm:$0x1] %vm337, 0.0
      %372 = vst.msk [vmem:[#allocation2 + $0x191] sm:$0x1] %vm337, 0.0
      %373 = vst.msk [vmem:[#allocation2 + $0x1a9] sm:$0x1] %vm337, 0.0
      %s374 = scalar_lea.vmem [#allocation2], 24
      %375 = vst.msk [vmem:[%s374 + $0x1] sm:$0xff] %vm328, %v296
      %376 = vst.msk [vmem:[%s374 + $0x9] sm:$0xff] %vm328, %v297
      %377 = vst.msk [vmem:[%s374 + $0x19] sm:$0xff] %vm328, %v298
      %378 = vst.msk [vmem:[%s374 + $0x21] sm:$0xff] %vm328, %v299
      %379 = vst.msk [vmem:[%s374 + $0x31] sm:$0xff] %vm328, %v300
      %380 = vst.msk [vmem:[%s374 + $0x39] sm:$0xff] %vm328, %v301
      %381 = vst.msk [vmem:[%s374 + $0x49] sm:$0xff] %vm328, %v302
      %382 = vst.msk [vmem:[%s374 + $0x51] sm:$0xff] %vm328, %v303
      %383 = vst.msk [vmem:[%s374 + $0x61] sm:$0xff] %vm328, %v304
      %384 = vst.msk [vmem:[%s374 + $0x69] sm:$0xff] %vm328, %v305
      %385 = vst.msk [vmem:[%s374 + $0x79] sm:$0xff] %vm328, %v306
      %386 = vst.msk [vmem:[%s374 + $0x81] sm:$0xff] %vm328, %v307
      %387 = vst.msk [vmem:[%s374 + $0x91] sm:$0xff] %vm328, %v308
      %388 = vst.msk [vmem:[%s374 + $0x99] sm:$0xff] %vm328, %v309
      %389 = vst.msk [vmem:[%s374 + $0xa9] sm:$0xff] %vm328, %v310
      %390 = vst.msk [vmem:[%s374 + $0xb1] sm:$0xff] %vm328, %v311
      %391 = vst.msk [vmem:[%s374 + $0xc1] sm:$0xff] %vm328, %v312
      %392 = vst.msk [vmem:[%s374 + $0xc9] sm:$0xff] %vm328, %v313
      %393 = vst.msk [vmem:[%s374 + $0xd9] sm:$0xff] %vm328, %v314
      %394 = vst.msk [vmem:[%s374 + $0xe1] sm:$0xff] %vm328, %v315
      %395 = vst.msk [vmem:[%s374 + $0xf1] sm:$0xff] %vm328, %v316
      %396 = vst.msk [vmem:[%s374 + $0xf9] sm:$0xff] %vm328, %v317
      %397 = vst.msk [vmem:[%s374 + $0x109] sm:$0xff] %vm328, %v318
      %398 = vst.msk [vmem:[%s374 + $0x111] sm:$0xff] %vm328, %v319
      %399 = vst.msk [vmem:[%s374 + $0x121] sm:$0xff] %vm328, %v320
      %400 = vst.msk [vmem:[%s374 + $0x129] sm:$0xff] %vm328, %v321
      %401 = vst.msk [vmem:[%s374 + $0x139] sm:$0xff] %vm328, %v322
      %402 = vst.msk [vmem:[%s374 + $0x141] sm:$0xff] %vm328, %v323
      %403 = vst.msk [vmem:[%s374 + $0x151] sm:$0xff] %vm328, %v324
      %404 = vst.msk [vmem:[%s374 + $0x159] sm:$0xff] %vm328, %v325
      %405 = vst.msk [vmem:[%s374 + $0x169] sm:$0xff] %vm328, %v326
      %406 = vst.msk [vmem:[%s374 + $0x171] sm:$0xff] %vm328, %v327
      %v407 = vld [vmem:[#allocation2] sm:$0xff]
      %v408 = vld [vmem:[#allocation2 + $0x8] sm:$0xff]
      %v409 = vld [vmem:[#allocation2 + $0x18] sm:$0xff]
      %v410 = vld [vmem:[#allocation2 + $0x20] sm:$0xff]
      %v411 = vld [vmem:[#allocation2 + $0x30] sm:$0xff]
      %v412 = vld [vmem:[#allocation2 + $0x38] sm:$0xff]
      %v413 = vld [vmem:[#allocation2 + $0x48] sm:$0xff]
      %v414 = vld [vmem:[#allocation2 + $0x50] sm:$0xff]
      %v415 = vld [vmem:[#allocation2 + $0x60] sm:$0xff]
      %v416 = vld [vmem:[#allocation2 + $0x68] sm:$0xff]
      %v417 = vld [vmem:[#allocation2 + $0x78] sm:$0xff]
      %v418 = vld [vmem:[#allocation2 + $0x80] sm:$0xff]
      %v419 = vld [vmem:[#allocation2 + $0x90] sm:$0xff]
      %v420 = vld [vmem:[#allocation2 + $0x98] sm:$0xff]
      %v421 = vld [vmem:[#allocation2 + $0xa8] sm:$0xff]
      %v422 = vld [vmem:[#allocation2 + $0xb0] sm:$0xff]
      %v423 = vld [vmem:[#allocation2 + $0xc0] sm:$0xff]
      %v424 = vld [vmem:[#allocation2 + $0xc8] sm:$0xff]
      %v425 = vld [vmem:[#allocation2 + $0xd8] sm:$0xff]
      %v426 = vld [vmem:[#allocation2 + $0xe0] sm:$0xff]
      %v427 = vld [vmem:[#allocation2 + $0xf0] sm:$0xff]
      %v428 = vld [vmem:[#allocation2 + $0xf8] sm:$0xff]
      %v429 = vld [vmem:[#allocation2 + $0x108] sm:$0xff]
      %v430 = vld [vmem:[#allocation2 + $0x110] sm:$0xff]
      %v431 = vld [vmem:[#allocation2 + $0x120] sm:$0xff]
      %v432 = vld [vmem:[#allocation2 + $0x128] sm:$0xff]
      %v433 = vld [vmem:[#allocation2 + $0x138] sm:$0xff]
      %v434 = vld [vmem:[#allocation2 + $0x140] sm:$0xff]
      %v435 = vld [vmem:[#allocation2 + $0x150] sm:$0xff]
      %v436 = vld [vmem:[#allocation2 + $0x158] sm:$0xff]
      %v437 = vld [vmem:[#allocation2 + $0x168] sm:$0xff]
      %v438 = vld [vmem:[#allocation2 + $0x170] sm:$0xff]
      %v439 = vpack.c.bf16 %v408, %v407
      %v440 = vpack.c.bf16 %v410, %v409
      %v441 = vpack.c.bf16 %v412, %v411
      %v442 = vpack.c.bf16 %v414, %v413
      %v443 = vpack.c.bf16 %v416, %v415
      %v444 = vpack.c.bf16 %v418, %v417
      %v445 = vpack.c.bf16 %v420, %v419
      %v446 = vpack.c.bf16 %v422, %v421
      %v447 = vpack.c.bf16 %v424, %v423
      %v448 = vpack.c.bf16 %v426, %v425
      %v449 = vpack.c.bf16 %v428, %v427
      %v450 = vpack.c.bf16 %v430, %v429
      %v451 = vpack.c.bf16 %v432, %v431
      %v452 = vpack.c.bf16 %v434, %v433
      %v453 = vpack.c.bf16 %v436, %v435
      %v454 = vpack.c.bf16 %v438, %v437
      %v455 = vld [vmem:[%s3] sm:$0x3]
      %v456 = vld [vmem:[#allocation2 + $0x1] sm:$0xff]
      %v457 = vld [vmem:[#allocation2 + $0x9] sm:$0xff]
      %v458 = vld [vmem:[#allocation2 + $0x19] sm:$0xff]
      %v459 = vld [vmem:[#allocation2 + $0x21] sm:$0xff]
      %v460 = vld [vmem:[#allocation2 + $0x31] sm:$0xff]
      %v461 = vld [vmem:[#allocation2 + $0x39] sm:$0xff]
      %v462 = vld [vmem:[#allocation2 + $0x49] sm:$0xff]
      %v463 = vld [vmem:[#allocation2 + $0x51] sm:$0xff]
      %v464 = vld [vmem:[#allocation2 + $0x61] sm:$0xff]
      %v465 = vld [vmem:[#allocation2 + $0x69] sm:$0xff]
      %v466 = vld [vmem:[#allocation2 + $0x79] sm:$0xff]
      %v467 = vld [vmem:[#allocation2 + $0x81] sm:$0xff]
      %v468 = vld [vmem:[#allocation2 + $0x91] sm:$0xff]
      %v469 = vld [vmem:[#allocation2 + $0x99] sm:$0xff]
      %v470 = vld [vmem:[#allocation2 + $0xa9] sm:$0xff]
      %v471 = vld [vmem:[#allocation2 + $0xb1] sm:$0xff]
      %v472 = vld [vmem:[#allocation2 + $0xc1] sm:$0xff]
      %v473 = vld [vmem:[#allocation2 + $0xc9] sm:$0xff]
      %v474 = vld [vmem:[#allocation2 + $0xd9] sm:$0xff]
      %v475 = vld [vmem:[#allocation2 + $0xe1] sm:$0xff]
      %v476 = vld [vmem:[#allocation2 + $0xf1] sm:$0xff]
      %v477 = vld [vmem:[#allocation2 + $0xf9] sm:$0xff]
      %v478 = vld [vmem:[#allocation2 + $0x109] sm:$0xff]
      %v479 = vld [vmem:[#allocation2 + $0x111] sm:$0xff]
      %v480 = vld [vmem:[#allocation2 + $0x121] sm:$0xff]
      %v481 = vld [vmem:[#allocation2 + $0x129] sm:$0xff]
      %v482 = vld [vmem:[#allocation2 + $0x139] sm:$0xff]
      %v483 = vld [vmem:[#allocation2 + $0x141] sm:$0xff]
      %v484 = vld [vmem:[#allocation2 + $0x151] sm:$0xff]
      %v485 = vld [vmem:[#allocation2 + $0x159] sm:$0xff]
      %v486 = vld [vmem:[#allocation2 + $0x169] sm:$0xff]
      %v487 = vld [vmem:[#allocation2 + $0x171] sm:$0xff]
      %v488 = vpack.c.bf16 %v457, %v456
      %v489 = vpack.c.bf16 %v459, %v458
      %v490 = vpack.c.bf16 %v461, %v460
      %v491 = vpack.c.bf16 %v463, %v462
      %v492 = vpack.c.bf16 %v465, %v464
      %v493 = vpack.c.bf16 %v467, %v466
      %v494 = vpack.c.bf16 %v469, %v468
      %v495 = vpack.c.bf16 %v471, %v470
      %v496 = vpack.c.bf16 %v473, %v472
      %v497 = vpack.c.bf16 %v475, %v474
      %v498 = vpack.c.bf16 %v477, %v476
      %v499 = vpack.c.bf16 %v479, %v478
      %v500 = vpack.c.bf16 %v481, %v480
      %v501 = vpack.c.bf16 %v483, %v482
      %v502 = vpack.c.bf16 %v485, %v484
      %v503 = vpack.c.bf16 %v487, %v486
      %s504 = scalar_lea.vmem %s3, 2
      %v505 = vld [vmem:[%s504] sm:$0x3]
      %v507 = vsel %vm328, %v488, 0
      %v510 = vsel %vm328, %v489, 0
      %v513 = vsel %vm328, %v490, 0
      %v516 = vsel %vm328, %v491, 0
      %v519 = vsel %vm328, %v492, 0
      %v522 = vsel %vm328, %v493, 0
      %v525 = vsel %vm328, %v494, 0
      %v528 = vsel %vm328, %v495, 0
      %v531 = vsel %vm328, %v496, 0
      %v534 = vsel %vm328, %v497, 0
      %v537 = vsel %vm328, %v498, 0
      %v540 = vsel %vm328, %v499, 0
      %v543 = vsel %vm328, %v500, 0
      %v546 = vsel %vm328, %v501, 0
      %v549 = vsel %vm328, %v502, 0
      %v552 = vsel %vm328, %v503, 0
      %vm554 = vcmask 1041408
      %v556 = vsel %vm554, %v505, 0
      %558 = vmatprep.subr.bf16.mxu0 0
      %559 = vmatpush1.bf16.msra.mxu0 %v556
      %560 = vmatprep.subr.bf16.mxu0 0
      %561 = vmatpush1.bf16.msra.mxu0 0
      %562 = vmatprep.subr.bf16.mxu0 0
      %563 = vmatpush1.bf16.msra.mxu0 0
      %564 = vmatprep.subr.bf16.mxu0 0
      %565 = vmatpush1.bf16.msra.mxu0 0
      %566 = vmatprep.subr.bf16.mxu0 0
      %567 = vmatpush1.bf16.msra.mxu0 0
      %568 = vmatprep.subr.bf16.mxu0 0
      %569 = vmatpush1.bf16.msra.mxu0 0
      %570 = vmatprep.subr.bf16.mxu0 0
      %571 = vmatpush1.bf16.msra.mxu0 0
      %572 = vmatprep.subr.bf16.mxu0 0
      %573 = vmatpush1.bf16.msra.mxu0 0
      %574 = vmatprep.subr.bf16.mxu0 0
      %575 = vmatpush1.bf16.msra.mxu0 0
      %576 = vmatprep.subr.bf16.mxu0 0
      %577 = vmatpush1.bf16.msra.mxu0 0
      %578 = vmatprep.subr.bf16.mxu0 0
      %579 = vmatpush1.bf16.msra.mxu0 0
      %580 = vmatprep.subr.bf16.mxu0 0
      %581 = vmatpush1.bf16.msra.mxu0 0
      %582 = vmatprep.subr.bf16.mxu0 0
      %583 = vmatpush1.bf16.msra.mxu0 0
      %584 = vmatprep.subr.bf16.mxu0 0
      %585 = vmatpush1.bf16.msra.mxu0 0
      %586 = vmatprep.subr.bf16.mxu0 0
      %587 = vmatpush1.bf16.msra.mxu0 0
      %588 = vmatprep.subr.bf16.mxu0 0
      %589 = vmatpush1.bf16.msra.mxu0 0
      %590 = vmatprep.mubr.bf16.mxu0 0
      %591 = vmatmul.mubr.bf16.gmra.mrb[0].mxu0 %v507
      %v592 = vpop.f32.mrb[0].mxu0
      %v593 = vadd.f32 0.0, %v592
      %v594 = vpop.f32.mrb[0].mxu0
      %v595 = vpop.f32.mrb[0].mxu0
      %v596 = vadd.f32 0.0, %v595
      %v597 = vpop.f32.mrb[0].mxu0
      %598 = vmatprep.mubr.bf16.mxu0 0
      %599 = vmatmul.mubr.bf16.gmra.mrb[0].mxu0 %v510
      %v600 = vpop.f32.mrb[0].mxu0
      %v601 = vadd.f32 0.0, %v600
      %v602 = vpop.f32.mrb[0].mxu0
      %v603 = vpop.f32.mrb[0].mxu0
      %v604 = vadd.f32 0.0, %v603
      %v605 = vpop.f32.mrb[0].mxu0
      %606 = vmatprep.mubr.bf16.mxu0 0
      %607 = vmatmul.mubr.bf16.gmra.mrb[0].mxu0 %v513
      %v608 = vpop.f32.mrb[0].mxu0
      %v609 = vadd.f32 0.0, %v608
      %v610 = vpop.f32.mrb[0].mxu0
      %v611 = vpop.f32.mrb[0].mxu0
      %v612 = vadd.f32 0.0, %v611
      %v613 = vpop.f32.mrb[0].mxu0
      %614 = vmatprep.mubr.bf16.mxu0 0
      %615 = vmatmul.mubr.bf16.gmra.mrb[0].mxu0 %v516
      %v616 = vpop.f32.mrb[0].mxu0
      %v617 = vadd.f32 0.0, %v616
      %v618 = vpop.f32.mrb[0].mxu0
      %v619 = vpop.f32.mrb[0].mxu0
      %v620 = vadd.f32 0.0, %v619
      %v621 = vpop.f32.mrb[0].mxu0
      %622 = vmatprep.mubr.bf16.mxu0 0
      %623 = vmatmul.mubr.bf16.gmra.mrb[0].mxu0 %v519
      %v624 = vpop.f32.mrb[0].mxu0
      %v625 = vadd.f32 0.0, %v624
      %v626 = vpop.f32.mrb[0].mxu0
      %v627 = vpop.f32.mrb[0].mxu0
      %v628 = vadd.f32 0.0, %v627
      %v629 = vpop.f32.mrb[0].mxu0
      %630 = vmatprep.mubr.bf16.mxu0 0
      %631 = vmatmul.mubr.bf16.gmra.mrb[0].mxu0 %v522
      %v632 = vpop.f32.mrb[0].mxu0
      %v633 = vadd.f32 0.0, %v632
      %v634 = vpop.f32.mrb[0].mxu0
      %v635 = vpop.f32.mrb[0].mxu0
      %v636 = vadd.f32 0.0, %v635
      %v637 = vpop.f32.mrb[0].mxu0
      %638 = vmatprep.mubr.bf16.mxu0 0
      %639 = vmatmul.mubr.bf16.gmra.mrb[0].mxu0 %v525
      %v640 = vpop.f32.mrb[0].mxu0
      %v641 = vadd.f32 0.0, %v640
      %v642 = vpop.f32.mrb[0].mxu0
      %v643 = vpop.f32.mrb[0].mxu0
      %v644 = vadd.f32 0.0, %v643
      %v645 = vpop.f32.mrb[0].mxu0
      %646 = vmatprep.mubr.bf16.mxu0 0
      %647 = vmatmul.mubr.bf16.gmra.mrb[0].mxu0 %v528
      %v648 = vpop.f32.mrb[0].mxu0
      %v649 = vadd.f32 0.0, %v648
      %v650 = vpop.f32.mrb[0].mxu0
      %v651 = vpop.f32.mrb[0].mxu0
      %v652 = vadd.f32 0.0, %v651
      %v653 = vpop.f32.mrb[0].mxu0
      %654 = vmatprep.mubr.bf16.mxu0 0
      %655 = vmatmul.mubr.bf16.gmra.mrb[0].mxu0 %v531
      %v656 = vpop.f32.mrb[0].mxu0
      %v657 = vadd.f32 0.0, %v656
      %v658 = vpop.f32.mrb[0].mxu0
      %v659 = vpop.f32.mrb[0].mxu0
      %v660 = vadd.f32 0.0, %v659
      %v661 = vpop.f32.mrb[0].mxu0
      %662 = vmatprep.mubr.bf16.mxu0 0
      %663 = vmatmul.mubr.bf16.gmra.mrb[0].mxu0 %v534
      %v664 = vpop.f32.mrb[0].mxu0
      %v665 = vadd.f32 0.0, %v664
      %v666 = vpop.f32.mrb[0].mxu0
      %v667 = vpop.f32.mrb[0].mxu0
      %v668 = vadd.f32 0.0, %v667
      %v669 = vpop.f32.mrb[0].mxu0
      %670 = vmatprep.mubr.bf16.mxu0 0
      %671 = vmatmul.mubr.bf16.gmra.mrb[0].mxu0 %v537
      %v672 = vpop.f32.mrb[0].mxu0
      %v673 = vadd.f32 0.0, %v672
      %v674 = vpop.f32.mrb[0].mxu0
      %v675 = vpop.f32.mrb[0].mxu0
      %v676 = vadd.f32 0.0, %v675
      %v677 = vpop.f32.mrb[0].mxu0
      %678 = vmatprep.mubr.bf16.mxu0 0
      %679 = vmatmul.mubr.bf16.gmra.mrb[0].mxu0 %v540
      %v680 = vpop.f32.mrb[0].mxu0
      %v681 = vadd.f32 0.0, %v680
      %v682 = vpop.f32.mrb[0].mxu0
      %v683 = vpop.f32.mrb[0].mxu0
      %v684 = vadd.f32 0.0, %v683
      %v685 = vpop.f32.mrb[0].mxu0
      %686 = vmatprep.mubr.bf16.mxu0 0
      %687 = vmatmul.mubr.bf16.gmra.mrb[0].mxu0 %v543
      %v688 = vpop.f32.mrb[0].mxu0
      %v689 = vadd.f32 0.0, %v688
      %v690 = vpop.f32.mrb[0].mxu0
      %v691 = vpop.f32.mrb[0].mxu0
      %v692 = vadd.f32 0.0, %v691
      %v693 = vpop.f32.mrb[0].mxu0
      %694 = vmatprep.mubr.bf16.mxu0 0
      %695 = vmatmul.mubr.bf16.gmra.mrb[0].mxu0 %v546
      %v696 = vpop.f32.mrb[0].mxu0
      %v697 = vadd.f32 0.0, %v696
      %v698 = vpop.f32.mrb[0].mxu0
      %v699 = vpop.f32.mrb[0].mxu0
      %v700 = vadd.f32 0.0, %v699
      %v701 = vpop.f32.mrb[0].mxu0
      %702 = vmatprep.mubr.bf16.mxu0 0
      %703 = vmatmul.mubr.bf16.gmra.mrb[0].mxu0 %v549
      %v704 = vpop.f32.mrb[0].mxu0
      %v705 = vadd.f32 0.0, %v704
      %v706 = vpop.f32.mrb[0].mxu0
      %v707 = vpop.f32.mrb[0].mxu0
      %v708 = vadd.f32 0.0, %v707
      %v709 = vpop.f32.mrb[0].mxu0
      %710 = vmatprep.mubr.bf16.mxu0 0
      %711 = vmatmul.mubr.bf16.gmra.mrb[0].mxu0 %v552
      %v712 = vpop.f32.mrb[0].mxu0
      %v713 = vadd.f32 0.0, %v712
      %v714 = vpop.f32.mrb[0].mxu0
      %v715 = vpop.f32.mrb[0].mxu0
      %v716 = vadd.f32 0.0, %v715
      %v717 = vpop.f32.mrb[0].mxu0
      %718 = vdwg.mxu0
      %v720 = vsel %vm328, %v439, 0
      %v723 = vsel %vm328, %v440, 0
      %v726 = vsel %vm328, %v441, 0
      %v729 = vsel %vm328, %v442, 0
      %v732 = vsel %vm328, %v443, 0
      %v735 = vsel %vm328, %v444, 0
      %v738 = vsel %vm328, %v445, 0
      %v741 = vsel %vm328, %v446, 0
      %v744 = vsel %vm328, %v447, 0
      %v747 = vsel %vm328, %v448, 0
      %v750 = vsel %vm328, %v449, 0
      %v753 = vsel %vm328, %v450, 0
      %v756 = vsel %vm328, %v451, 0
      %v759 = vsel %vm328, %v452, 0
      %v762 = vsel %vm328, %v453, 0
      %v765 = vsel %vm328, %v454, 0
      %v768 = vsel %vm554, %v455, 0
      %770 = vmatprep.subr.bf16.mxu0 0
      %771 = vmatpush1.bf16.msra.mxu0 %v768
      %772 = vmatprep.subr.bf16.mxu0 0
      %773 = vmatpush1.bf16.msra.mxu0 0
      %774 = vmatprep.subr.bf16.mxu0 0
      %775 = vmatpush1.bf16.msra.mxu0 0
      %776 = vmatprep.subr.bf16.mxu0 0
      %777 = vmatpush1.bf16.msra.mxu0 0
      %778 = vmatprep.subr.bf16.mxu0 0
      %779 = vmatpush1.bf16.msra.mxu0 0
      %780 = vmatprep.subr.bf16.mxu0 0
      %781 = vmatpush1.bf16.msra.mxu0 0
      %782 = vmatprep.subr.bf16.mxu0 0
      %783 = vmatpush1.bf16.msra.mxu0 0
      %784 = vmatprep.subr.bf16.mxu0 0
      %785 = vmatpush1.bf16.msra.mxu0 0
      %786 = vmatprep.subr.bf16.mxu0 0
      %787 = vmatpush1.bf16.msra.mxu0 0
      %788 = vmatprep.subr.bf16.mxu0 0
      %789 = vmatpush1.bf16.msra.mxu0 0
      %790 = vmatprep.subr.bf16.mxu0 0
      %791 = vmatpush1.bf16.msra.mxu0 0
      %792 = vmatprep.subr.bf16.mxu0 0
      %793 = vmatpush1.bf16.msra.mxu0 0
      %794 = vmatprep.subr.bf16.mxu0 0
      %795 = vmatpush1.bf16.msra.mxu0 0
      %796 = vmatprep.subr.bf16.mxu0 0
      %797 = vmatpush1.bf16.msra.mxu0 0
      %798 = vmatprep.subr.bf16.mxu0 0
      %799 = vmatpush1.bf16.msra.mxu0 0
      %800 = vmatprep.subr.bf16.mxu0 0
      %801 = vmatpush1.bf16.msra.mxu0 0
      %802 = vmatprep.mubr.bf16.mxu0 0
      %803 = vmatmul.mubr.bf16.gmra.mrb[0].mxu0 %v720
      %v804 = vpop.f32.mrb[0].mxu0
      %v805 = vadd.f32 %v593, %v804
      %v806 = vpop.f32.mrb[0].mxu0
      %v807 = vpop.f32.mrb[0].mxu0
      %v808 = vadd.f32 %v596, %v807
      %v809 = vpop.f32.mrb[0].mxu0
      %810 = vmatprep.mubr.bf16.mxu0 0
      %811 = vmatmul.mubr.bf16.gmra.mrb[0].mxu0 %v723
      %v812 = vpop.f32.mrb[0].mxu0
      %v813 = vadd.f32 %v601, %v812
      %v814 = vpop.f32.mrb[0].mxu0
      %v815 = vpop.f32.mrb[0].mxu0
      %v816 = vadd.f32 %v604, %v815
      %v817 = vpop.f32.mrb[0].mxu0
      %818 = vmatprep.mubr.bf16.mxu0 0
      %819 = vmatmul.mubr.bf16.gmra.mrb[0].mxu0 %v726
      %v820 = vpop.f32.mrb[0].mxu0
      %v821 = vadd.f32 %v609, %v820
      %v822 = vpop.f32.mrb[0].mxu0
      %v823 = vpop.f32.mrb[0].mxu0
      %v824 = vadd.f32 %v612, %v823
      %v825 = vpop.f32.mrb[0].mxu0
      %826 = vmatprep.mubr.bf16.mxu0 0
      %827 = vmatmul.mubr.bf16.gmra.mrb[0].mxu0 %v729
      %v828 = vpop.f32.mrb[0].mxu0
      %v829 = vadd.f32 %v617, %v828
      %v830 = vpop.f32.mrb[0].mxu0
      %v831 = vpop.f32.mrb[0].mxu0
      %v832 = vadd.f32 %v620, %v831
      %v833 = vpop.f32.mrb[0].mxu0
      %834 = vmatprep.mubr.bf16.mxu0 0
      %835 = vmatmul.mubr.bf16.gmra.mrb[0].mxu0 %v732
      %v836 = vpop.f32.mrb[0].mxu0
      %v837 = vadd.f32 %v625, %v836
      %v838 = vpop.f32.mrb[0].mxu0
      %v839 = vpop.f32.mrb[0].mxu0
      %v840 = vadd.f32 %v628, %v839
      %v841 = vpop.f32.mrb[0].mxu0
      %842 = vmatprep.mubr.bf16.mxu0 0
      %843 = vmatmul.mubr.bf16.gmra.mrb[0].mxu0 %v735
      %v844 = vpop.f32.mrb[0].mxu0
      %v845 = vadd.f32 %v633, %v844
      %v846 = vpop.f32.mrb[0].mxu0
      %v847 = vpop.f32.mrb[0].mxu0
      %v848 = vadd.f32 %v636, %v847
      %v849 = vpop.f32.mrb[0].mxu0
      %850 = vmatprep.mubr.bf16.mxu0 0
      %851 = vmatmul.mubr.bf16.gmra.mrb[0].mxu0 %v738
      %v852 = vpop.f32.mrb[0].mxu0
      %v853 = vadd.f32 %v641, %v852
      %v854 = vpop.f32.mrb[0].mxu0
      %v855 = vpop.f32.mrb[0].mxu0
      %v856 = vadd.f32 %v644, %v855
      %v857 = vpop.f32.mrb[0].mxu0
      %858 = vmatprep.mubr.bf16.mxu0 0
      %859 = vmatmul.mubr.bf16.gmra.mrb[0].mxu0 %v741
      %v860 = vpop.f32.mrb[0].mxu0
      %v861 = vadd.f32 %v649, %v860
      %v862 = vpop.f32.mrb[0].mxu0
      %v863 = vpop.f32.mrb[0].mxu0
      %v864 = vadd.f32 %v652, %v863
      %v865 = vpop.f32.mrb[0].mxu0
      %866 = vmatprep.mubr.bf16.mxu0 0
      %867 = vmatmul.mubr.bf16.gmra.mrb[0].mxu0 %v744
      %v868 = vpop.f32.mrb[0].mxu0
      %v869 = vadd.f32 %v657, %v868
      %v870 = vpop.f32.mrb[0].mxu0
      %v871 = vpop.f32.mrb[0].mxu0
      %v872 = vadd.f32 %v660, %v871
      %v873 = vpop.f32.mrb[0].mxu0
      %874 = vmatprep.mubr.bf16.mxu0 0
      %875 = vmatmul.mubr.bf16.gmra.mrb[0].mxu0 %v747
      %v876 = vpop.f32.mrb[0].mxu0
      %v877 = vadd.f32 %v665, %v876
      %v878 = vpop.f32.mrb[0].mxu0
      %v879 = vpop.f32.mrb[0].mxu0
      %v880 = vadd.f32 %v668, %v879
      %v881 = vpop.f32.mrb[0].mxu0
      %882 = vmatprep.mubr.bf16.mxu0 0
      %883 = vmatmul.mubr.bf16.gmra.mrb[0].mxu0 %v750
      %v884 = vpop.f32.mrb[0].mxu0
      %v885 = vadd.f32 %v673, %v884
      %v886 = vpop.f32.mrb[0].mxu0
      %v887 = vpop.f32.mrb[0].mxu0
      %v888 = vadd.f32 %v676, %v887
      %v889 = vpop.f32.mrb[0].mxu0
      %890 = vmatprep.mubr.bf16.mxu0 0
      %891 = vmatmul.mubr.bf16.gmra.mrb[0].mxu0 %v753
      %v892 = vpop.f32.mrb[0].mxu0
      %v893 = vadd.f32 %v681, %v892
      %v894 = vpop.f32.mrb[0].mxu0
      %v895 = vpop.f32.mrb[0].mxu0
      %v896 = vadd.f32 %v684, %v895
      %v897 = vpop.f32.mrb[0].mxu0
      %898 = vmatprep.mubr.bf16.mxu0 0
      %899 = vmatmul.mubr.bf16.gmra.mrb[0].mxu0 %v756
      %v900 = vpop.f32.mrb[0].mxu0
      %v901 = vadd.f32 %v689, %v900
      %v902 = vpop.f32.mrb[0].mxu0
      %v903 = vpop.f32.mrb[0].mxu0
      %v904 = vadd.f32 %v692, %v903
      %v905 = vpop.f32.mrb[0].mxu0
      %906 = vmatprep.mubr.bf16.mxu0 0
      %907 = vmatmul.mubr.bf16.gmra.mrb[0].mxu0 %v759
      %v908 = vpop.f32.mrb[0].mxu0
      %v909 = vadd.f32 %v697, %v908
      %v910 = vpop.f32.mrb[0].mxu0
      %v911 = vpop.f32.mrb[0].mxu0
      %v912 = vadd.f32 %v700, %v911
      %v913 = vpop.f32.mrb[0].mxu0
      %914 = vmatprep.mubr.bf16.mxu0 0
      %915 = vmatmul.mubr.bf16.gmra.mrb[0].mxu0 %v762
      %v916 = vpop.f32.mrb[0].mxu0
      %v917 = vadd.f32 %v705, %v916
      %v918 = vpop.f32.mrb[0].mxu0
      %v919 = vpop.f32.mrb[0].mxu0
      %v920 = vadd.f32 %v708, %v919
      %v921 = vpop.f32.mrb[0].mxu0
      %922 = vmatprep.mubr.bf16.mxu0 0
      %923 = vmatmul.mubr.bf16.gmra.mrb[0].mxu0 %v765
      %v924 = vpop.f32.mrb[0].mxu0
      %v925 = vadd.f32 %v713, %v924
      %v926 = vpop.f32.mrb[0].mxu0
      %v927 = vpop.f32.mrb[0].mxu0
      %v928 = vadd.f32 %v716, %v927
      %v929 = vpop.f32.mrb[0].mxu0
      %930 = vdwg.mxu0
      %v931 = vld [vmem:[#allocation2 + $0x2] sm:$0xff]
      %v932 = vld [vmem:[#allocation2 + $0xa] sm:$0xff]
      %v933 = vld [vmem:[#allocation2 + $0x1a] sm:$0xff]
      %v934 = vld [vmem:[#allocation2 + $0x22] sm:$0xff]
      %v935 = vld [vmem:[#allocation2 + $0x32] sm:$0xff]
      %v936 = vld [vmem:[#allocation2 + $0x3a] sm:$0xff]
      %v937 = vld [vmem:[#allocation2 + $0x4a] sm:$0xff]
      %v938 = vld [vmem:[#allocation2 + $0x52] sm:$0xff]
      %v939 = vld [vmem:[#allocation2 + $0x62] sm:$0xff]
      %v940 = vld [vmem:[#allocation2 + $0x6a] sm:$0xff]
      %v941 = vld [vmem:[#allocation2 + $0x7a] sm:$0xff]
      %v942 = vld [vmem:[#allocation2 + $0x82] sm:$0xff]
      %v943 = vld [vmem:[#allocation2 + $0x92] sm:$0xff]
      %v944 = vld [vmem:[#allocation2 + $0x9a] sm:$0xff]
      %v945 = vld [vmem:[#allocation2 + $0xaa] sm:$0xff]
      %v946 = vld [vmem:[#allocation2 + $0xb2] sm:$0xff]
      %v947 = vld [vmem:[#allocation2 + $0xc2] sm:$0xff]
      %v948 = vld [vmem:[#allocation2 + $0xca] sm:$0xff]
      %v949 = vld [vmem:[#allocation2 + $0xda] sm:$0xff]
      %v950 = vld [vmem:[#allocation2 + $0xe2] sm:$0xff]
      %v951 = vld [vmem:[#allocation2 + $0xf2] sm:$0xff]
      %v952 = vld [vmem:[#allocation2 + $0xfa] sm:$0xff]
      %v953 = vld [vmem:[#allocation2 + $0x10a] sm:$0xff]
      %v954 = vld [vmem:[#allocation2 + $0x112] sm:$0xff]
      %v955 = vld [vmem:[#allocation2 + $0x122] sm:$0xff]
      %v956 = vld [vmem:[#allocation2 + $0x12a] sm:$0xff]
      %v957 = vld [vmem:[#allocation2 + $0x13a] sm:$0xff]
      %v958 = vld [vmem:[#allocation2 + $0x142] sm:$0xff]
      %v959 = vld [vmem:[#allocation2 + $0x152] sm:$0xff]
      %v960 = vld [vmem:[#allocation2 + $0x15a] sm:$0xff]
      %v961 = vld [vmem:[#allocation2 + $0x16a] sm:$0xff]
      %v962 = vld [vmem:[#allocation2 + $0x172] sm:$0xff]
      %v963 = vpack.c.bf16 %v932, %v931
      %v964 = vpack.c.bf16 %v934, %v933
      %v965 = vpack.c.bf16 %v936, %v935
      %v966 = vpack.c.bf16 %v938, %v937
      %v967 = vpack.c.bf16 %v940, %v939
      %v968 = vpack.c.bf16 %v942, %v941
      %v969 = vpack.c.bf16 %v944, %v943
      %v970 = vpack.c.bf16 %v946, %v945
      %v971 = vpack.c.bf16 %v948, %v947
      %v972 = vpack.c.bf16 %v950, %v949
      %v973 = vpack.c.bf16 %v952, %v951
      %v974 = vpack.c.bf16 %v954, %v953
      %v975 = vpack.c.bf16 %v956, %v955
      %v976 = vpack.c.bf16 %v958, %v957
      %v977 = vpack.c.bf16 %v960, %v959
      %v978 = vpack.c.bf16 %v962, %v961
      %s979 = scalar_lea.vmem %s3, 4
      %v980 = vld [vmem:[%s979] sm:$0x3]
      %v982 = vsel %vm328, %v963, 0
      %v985 = vsel %vm328, %v964, 0
      %v988 = vsel %vm328, %v965, 0
      %v991 = vsel %vm328, %v966, 0
      %v994 = vsel %vm328, %v967, 0
      %v997 = vsel %vm328, %v968, 0
      %v1000 = vsel %vm328, %v969, 0
      %v1003 = vsel %vm328, %v970, 0
      %v1006 = vsel %vm328, %v971, 0
      %v1009 = vsel %vm328, %v972, 0
      %v1012 = vsel %vm328, %v973, 0
      %v1015 = vsel %vm328, %v974, 0
      %v1018 = vsel %vm328, %v975, 0
      %v1021 = vsel %vm328, %v976, 0
      %v1024 = vsel %vm328, %v977, 0
      %v1027 = vsel %vm328, %v978, 0
      %v1030 = vsel %vm554, %v980, 0
      %1032 = vmatprep.subr.bf16.mxu0 0
      %1033 = vmatpush1.bf16.msra.mxu0 %v1030
      %1034 = vmatprep.subr.bf16.mxu0 0
      %1035 = vmatpush1.bf16.msra.mxu0 0
      %1036 = vmatprep.subr.bf16.mxu0 0
      %1037 = vmatpush1.bf16.msra.mxu0 0
      %1038 = vmatprep.subr.bf16.mxu0 0
      %1039 = vmatpush1.bf16.msra.mxu0 0
      %1040 = vmatprep.subr.bf16.mxu0 0
      %1041 = vmatpush1.bf16.msra.mxu0 0
      %1042 = vmatprep.subr.bf16.mxu0 0
      %1043 = vmatpush1.bf16.msra.mxu0 0
      %1044 = vmatprep.subr.bf16.mxu0 0
      %1045 = vmatpush1.bf16.msra.mxu0 0
      %1046 = vmatprep.subr.bf16.mxu0 0
      %1047 = vmatpush1.bf16.msra.mxu0 0
      %1048 = vmatprep.subr.bf16.mxu0 0
      %1049 = vmatpush1.bf16.msra.mxu0 0
      %1050 = vmatprep.subr.bf16.mxu0 0
      %1051 = vmatpush1.bf16.msra.mxu0 0
      %1052 = vmatprep.subr.bf16.mxu0 0
      %1053 = vmatpush1.bf16.msra.mxu0 0
      %1054 = vmatprep.subr.bf16.mxu0 0
      %1055 = vmatpush1.bf16.msra.mxu0 0
      %1056 = vmatprep.subr.bf16.mxu0 0
      %1057 = vmatpush1.bf16.msra.mxu0 0
      %1058 = vmatprep.subr.bf16.mxu0 0
      %1059 = vmatpush1.bf16.msra.mxu0 0
      %1060 = vmatprep.subr.bf16.mxu0 0
      %1061 = vmatpush1.bf16.msra.mxu0 0
      %1062 = vmatprep.subr.bf16.mxu0 0
      %1063 = vmatpush1.bf16.msra.mxu0 0
      %1064 = vmatprep.mubr.bf16.mxu0 0
      %1065 = vmatmul.mubr.bf16.gmra.mrb[0].mxu0 %v982
      %v1066 = vpop.f32.mrb[0].mxu0
      %v1067 = vadd.f32 0.0, %v1066
      %v1068 = vpop.f32.mrb[0].mxu0
      %v1069 = vpop.f32.mrb[0].mxu0
      %v1070 = vadd.f32 0.0, %v1069
      %v1071 = vpop.f32.mrb[0].mxu0
      %1072 = vmatprep.mubr.bf16.mxu0 0
      %1073 = vmatmul.mubr.bf16.gmra.mrb[0].mxu0 %v985
      %v1074 = vpop.f32.mrb[0].mxu0
      %v1075 = vadd.f32 0.0, %v1074
      %v1076 = vpop.f32.mrb[0].mxu0
      %v1077 = vpop.f32.mrb[0].mxu0
      %v1078 = vadd.f32 0.0, %v1077
      %v1079 = vpop.f32.mrb[0].mxu0
      %1080 = vmatprep.mubr.bf16.mxu0 0
      %1081 = vmatmul.mubr.bf16.gmra.mrb[0].mxu0 %v988
      %v1082 = vpop.f32.mrb[0].mxu0
      %v1083 = vadd.f32 0.0, %v1082
      %v1084 = vpop.f32.mrb[0].mxu0
      %v1085 = vpop.f32.mrb[0].mxu0
      %v1086 = vadd.f32 0.0, %v1085
      %v1087 = vpop.f32.mrb[0].mxu0
      %1088 = vmatprep.mubr.bf16.mxu0 0
      %1089 = vmatmul.mubr.bf16.gmra.mrb[0].mxu0 %v991
      %v1090 = vpop.f32.mrb[0].mxu0
      %v1091 = vadd.f32 0.0, %v1090
      %v1092 = vpop.f32.mrb[0].mxu0
      %v1093 = vpop.f32.mrb[0].mxu0
      %v1094 = vadd.f32 0.0, %v1093
      %v1095 = vpop.f32.mrb[0].mxu0
      %1096 = vmatprep.mubr.bf16.mxu0 0
      %1097 = vmatmul.mubr.bf16.gmra.mrb[0].mxu0 %v994
      %v1098 = vpop.f32.mrb[0].mxu0
      %v1099 = vadd.f32 0.0, %v1098
      %v1100 = vpop.f32.mrb[0].mxu0
      %v1101 = vpop.f32.mrb[0].mxu0
      %v1102 = vadd.f32 0.0, %v1101
      %v1103 = vpop.f32.mrb[0].mxu0
      %1104 = vmatprep.mubr.bf16.mxu0 0
      %1105 = vmatmul.mubr.bf16.gmra.mrb[0].mxu0 %v997
      %v1106 = vpop.f32.mrb[0].mxu0
      %v1107 = vadd.f32 0.0, %v1106
      %v1108 = vpop.f32.mrb[0].mxu0
      %v1109 = vpop.f32.mrb[0].mxu0
      %v1110 = vadd.f32 0.0, %v1109
      %v1111 = vpop.f32.mrb[0].mxu0
      %1112 = vmatprep.mubr.bf16.mxu0 0
      %1113 = vmatmul.mubr.bf16.gmra.mrb[0].mxu0 %v1000
      %v1114 = vpop.f32.mrb[0].mxu0
      %v1115 = vadd.f32 0.0, %v1114
      %v1116 = vpop.f32.mrb[0].mxu0
      %v1117 = vpop.f32.mrb[0].mxu0
      %v1118 = vadd.f32 0.0, %v1117
      %v1119 = vpop.f32.mrb[0].mxu0
      %1120 = vmatprep.mubr.bf16.mxu0 0
      %1121 = vmatmul.mubr.bf16.gmra.mrb[0].mxu0 %v1003
      %v1122 = vpop.f32.mrb[0].mxu0
      %v1123 = vadd.f32 0.0, %v1122
      %v1124 = vpop.f32.mrb[0].mxu0
      %v1125 = vpop.f32.mrb[0].mxu0
      %v1126 = vadd.f32 0.0, %v1125
      %v1127 = vpop.f32.mrb[0].mxu0
      %1128 = vmatprep.mubr.bf16.mxu0 0
      %1129 = vmatmul.mubr.bf16.gmra.mrb[0].mxu0 %v1006
      %v1130 = vpop.f32.mrb[0].mxu0
      %v1131 = vadd.f32 0.0, %v1130
      %v1132 = vpop.f32.mrb[0].mxu0
      %v1133 = vpop.f32.mrb[0].mxu0
      %v1134 = vadd.f32 0.0, %v1133
      %v1135 = vpop.f32.mrb[0].mxu0
      %1136 = vmatprep.mubr.bf16.mxu0 0
      %1137 = vmatmul.mubr.bf16.gmra.mrb[0].mxu0 %v1009
      %v1138 = vpop.f32.mrb[0].mxu0
      %v1139 = vadd.f32 0.0, %v1138
      %v1140 = vpop.f32.mrb[0].mxu0
      %v1141 = vpop.f32.mrb[0].mxu0
      %v1142 = vadd.f32 0.0, %v1141
      %v1143 = vpop.f32.mrb[0].mxu0
      %1144 = vmatprep.mubr.bf16.mxu0 0
      %1145 = vmatmul.mubr.bf16.gmra.mrb[0].mxu0 %v1012
      %v1146 = vpop.f32.mrb[0].mxu0
      %v1147 = vadd.f32 0.0, %v1146
      %v1148 = vpop.f32.mrb[0].mxu0
      %v1149 = vpop.f32.mrb[0].mxu0
      %v1150 = vadd.f32 0.0, %v1149
      %v1151 = vpop.f32.mrb[0].mxu0
      %1152 = vmatprep.mubr.bf16.mxu0 0
      %1153 = vmatmul.mubr.bf16.gmra.mrb[0].mxu0 %v1015
      %v1154 = vpop.f32.mrb[0].mxu0
      %v1155 = vadd.f32 0.0, %v1154
      %v1156 = vpop.f32.mrb[0].mxu0
      %v1157 = vpop.f32.mrb[0].mxu0
      %v1158 = vadd.f32 0.0, %v1157
      %v1159 = vpop.f32.mrb[0].mxu0
      %1160 = vmatprep.mubr.bf16.mxu0 0
      %1161 = vmatmul.mubr.bf16.gmra.mrb[0].mxu0 %v1018
      %v1162 = vpop.f32.mrb[0].mxu0
      %v1163 = vadd.f32 0.0, %v1162
      %v1164 = vpop.f32.mrb[0].mxu0
      %v1165 = vpop.f32.mrb[0].mxu0
      %v1166 = vadd.f32 0.0, %v1165
      %v1167 = vpop.f32.mrb[0].mxu0
      %1168 = vmatprep.mubr.bf16.mxu0 0
      %1169 = vmatmul.mubr.bf16.gmra.mrb[0].mxu0 %v1021
      %v1170 = vpop.f32.mrb[0].mxu0
      %v1171 = vadd.f32 0.0, %v1170
      %v1172 = vpop.f32.mrb[0].mxu0
      %v1173 = vpop.f32.mrb[0].mxu0
      %v1174 = vadd.f32 0.0, %v1173
      %v1175 = vpop.f32.mrb[0].mxu0
      %1176 = vmatprep.mubr.bf16.mxu0 0
      %1177 = vmatmul.mubr.bf16.gmra.mrb[0].mxu0 %v1024
      %v1178 = vpop.f32.mrb[0].mxu0
      %v1179 = vadd.f32 0.0, %v1178
      %v1180 = vpop.f32.mrb[0].mxu0
      %v1181 = vpop.f32.mrb[0].mxu0
      %v1182 = vadd.f32 0.0, %v1181
      %v1183 = vpop.f32.mrb[0].mxu0
      %1184 = vmatprep.mubr.bf16.mxu0 0
      %1185 = vmatmul.mubr.bf16.gmra.mrb[0].mxu0 %v1027
      %v1186 = vpop.f32.mrb[0].mxu0
      %v1187 = vadd.f32 0.0, %v1186
      %v1188 = vpop.f32.mrb[0].mxu0
      %v1189 = vpop.f32.mrb[0].mxu0
      %v1190 = vadd.f32 0.0, %v1189
      %v1191 = vpop.f32.mrb[0].mxu0
      %1192 = vdwg.mxu0
      %v1193 = vadd.f32 %v805, %v1067
      %v1194 = vadd.f32 %v808, %v1070
      %v1195 = vadd.f32 %v813, %v1075
      %v1196 = vadd.f32 %v816, %v1078
      %v1197 = vadd.f32 %v821, %v1083
      %v1198 = vadd.f32 %v824, %v1086
      %v1199 = vadd.f32 %v829, %v1091
      %v1200 = vadd.f32 %v832, %v1094
      %v1201 = vadd.f32 %v837, %v1099
      %v1202 = vadd.f32 %v840, %v1102
      %v1203 = vadd.f32 %v845, %v1107
      %v1204 = vadd.f32 %v848, %v1110
      %v1205 = vadd.f32 %v853, %v1115
      %v1206 = vadd.f32 %v856, %v1118
      %v1207 = vadd.f32 %v861, %v1123
      %v1208 = vadd.f32 %v864, %v1126
      %v1209 = vadd.f32 %v869, %v1131
      %v1210 = vadd.f32 %v872, %v1134
      %v1211 = vadd.f32 %v877, %v1139
      %v1212 = vadd.f32 %v880, %v1142
      %v1213 = vadd.f32 %v885, %v1147
      %v1214 = vadd.f32 %v888, %v1150
      %v1215 = vadd.f32 %v893, %v1155
      %v1216 = vadd.f32 %v896, %v1158
      %v1217 = vadd.f32 %v901, %v1163
      %v1218 = vadd.f32 %v904, %v1166
      %v1219 = vadd.f32 %v909, %v1171
      %v1220 = vadd.f32 %v912, %v1174
      %v1221 = vadd.f32 %v917, %v1179
      %v1222 = vadd.f32 %v920, %v1182
      %v1223 = vadd.f32 %v925, %v1187
      %v1224 = vadd.f32 %v928, %v1190
      %v1225 = vld [vmem:[%s374] sm:$0xff]
      %v1226 = vld [vmem:[%s374 + $0x8] sm:$0xff]
      %v1227 = vld [vmem:[%s374 + $0x18] sm:$0xff]
      %v1228 = vld [vmem:[%s374 + $0x20] sm:$0xff]
      %v1229 = vld [vmem:[%s374 + $0x30] sm:$0xff]
      %v1230 = vld [vmem:[%s374 + $0x38] sm:$0xff]
      %v1231 = vld [vmem:[%s374 + $0x48] sm:$0xff]
      %v1232 = vld [vmem:[%s374 + $0x50] sm:$0xff]
      %v1233 = vld [vmem:[%s374 + $0x60] sm:$0xff]
      %v1234 = vld [vmem:[%s374 + $0x68] sm:$0xff]
      %v1235 = vld [vmem:[%s374 + $0x78] sm:$0xff]
      %v1236 = vld [vmem:[%s374 + $0x80] sm:$0xff]
      %v1237 = vld [vmem:[%s374 + $0x90] sm:$0xff]
      %v1238 = vld [vmem:[%s374 + $0x98] sm:$0xff]
      %v1239 = vld [vmem:[%s374 + $0xa8] sm:$0xff]
      %v1240 = vld [vmem:[%s374 + $0xb0] sm:$0xff]
      %v1241 = vld [vmem:[%s374 + $0xc0] sm:$0xff]
      %v1242 = vld [vmem:[%s374 + $0xc8] sm:$0xff]
      %v1243 = vld [vmem:[%s374 + $0xd8] sm:$0xff]
      %v1244 = vld [vmem:[%s374 + $0xe0] sm:$0xff]
      %v1245 = vld [vmem:[%s374 + $0xf0] sm:$0xff]
      %v1246 = vld [vmem:[%s374 + $0xf8] sm:$0xff]
      %v1247 = vld [vmem:[%s374 + $0x108] sm:$0xff]
      %v1248 = vld [vmem:[%s374 + $0x110] sm:$0xff]
      %v1249 = vld [vmem:[%s374 + $0x120] sm:$0xff]
      %v1250 = vld [vmem:[%s374 + $0x128] sm:$0xff]
      %v1251 = vld [vmem:[%s374 + $0x138] sm:$0xff]
      %v1252 = vld [vmem:[%s374 + $0x140] sm:$0xff]
      %v1253 = vld [vmem:[%s374 + $0x150] sm:$0xff]
      %v1254 = vld [vmem:[%s374 + $0x158] sm:$0xff]
      %v1255 = vld [vmem:[%s374 + $0x168] sm:$0xff]
      %v1256 = vld [vmem:[%s374 + $0x170] sm:$0xff]
      %v1257 = vpack.c.bf16 %v1226, %v1225
      %v1258 = vpack.c.bf16 %v1228, %v1227
      %v1259 = vpack.c.bf16 %v1230, %v1229
      %v1260 = vpack.c.bf16 %v1232, %v1231
      %v1261 = vpack.c.bf16 %v1234, %v1233
      %v1262 = vpack.c.bf16 %v1236, %v1235
      %v1263 = vpack.c.bf16 %v1238, %v1237
      %v1264 = vpack.c.bf16 %v1240, %v1239
      %v1265 = vpack.c.bf16 %v1242, %v1241
      %v1266 = vpack.c.bf16 %v1244, %v1243
      %v1267 = vpack.c.bf16 %v1246, %v1245
      %v1268 = vpack.c.bf16 %v1248, %v1247
      %v1269 = vpack.c.bf16 %v1250, %v1249
      %v1270 = vpack.c.bf16 %v1252, %v1251
      %v1271 = vpack.c.bf16 %v1254, %v1253
      %v1272 = vpack.c.bf16 %v1256, %v1255
      %s1273 = scalar_lea.vmem %s3, 6
      %v1274 = vld [vmem:[%s1273] sm:$0x3]
      %v1276 = vsel %vm328, %v1257, 0
      %v1279 = vsel %vm328, %v1258, 0
      %v1282 = vsel %vm328, %v1259, 0
      %v1285 = vsel %vm328, %v1260, 0
      %v1288 = vsel %vm328, %v1261, 0
      %v1291 = vsel %vm328, %v1262, 0
      %v1294 = vsel %vm328, %v1263, 0
      %v1297 = vsel %vm328, %v1264, 0
      %v1300 = vsel %vm328, %v1265, 0
      %v1303 = vsel %vm328, %v1266, 0
      %v1306 = vsel %vm328, %v1267, 0
      %v1309 = vsel %vm328, %v1268, 0
      %v1312 = vsel %vm328, %v1269, 0
      %v1315 = vsel %vm328, %v1270, 0
      %v1318 = vsel %vm328, %v1271, 0
      %v1321 = vsel %vm328, %v1272, 0
      %v1324 = vsel %vm554, %v1274, 0
      %1326 = vmatprep.subr.bf16.mxu0 0
      %1327 = vmatpush1.bf16.msra.mxu0 %v1324
      %1328 = vmatprep.subr.bf16.mxu0 0
      %1329 = vmatpush1.bf16.msra.mxu0 0
      %1330 = vmatprep.subr.bf16.mxu0 0
      %1331 = vmatpush1.bf16.msra.mxu0 0
      %1332 = vmatprep.subr.bf16.mxu0 0
      %1333 = vmatpush1.bf16.msra.mxu0 0
      %1334 = vmatprep.subr.bf16.mxu0 0
      %1335 = vmatpush1.bf16.msra.mxu0 0
      %1336 = vmatprep.subr.bf16.mxu0 0
      %1337 = vmatpush1.bf16.msra.mxu0 0
      %1338 = vmatprep.subr.bf16.mxu0 0
      %1339 = vmatpush1.bf16.msra.mxu0 0
      %1340 = vmatprep.subr.bf16.mxu0 0
      %1341 = vmatpush1.bf16.msra.mxu0 0
      %1342 = vmatprep.subr.bf16.mxu0 0
      %1343 = vmatpush1.bf16.msra.mxu0 0
      %1344 = vmatprep.subr.bf16.mxu0 0
      %1345 = vmatpush1.bf16.msra.mxu0 0
      %1346 = vmatprep.subr.bf16.mxu0 0
      %1347 = vmatpush1.bf16.msra.mxu0 0
      %1348 = vmatprep.subr.bf16.mxu0 0
      %1349 = vmatpush1.bf16.msra.mxu0 0
      %1350 = vmatprep.subr.bf16.mxu0 0
      %1351 = vmatpush1.bf16.msra.mxu0 0
      %1352 = vmatprep.subr.bf16.mxu0 0
      %1353 = vmatpush1.bf16.msra.mxu0 0
      %1354 = vmatprep.subr.bf16.mxu0 0
      %1355 = vmatpush1.bf16.msra.mxu0 0
      %1356 = vmatprep.subr.bf16.mxu0 0
      %1357 = vmatpush1.bf16.msra.mxu0 0
      %1358 = vmatprep.mubr.bf16.mxu0 0
      %1359 = vmatmul.mubr.bf16.gmra.mrb[0].mxu0 %v1276
      %v1360 = vpop.f32.mrb[0].mxu0
      %v1361 = vadd.f32 0.0, %v1360
      %v1362 = vpop.f32.mrb[0].mxu0
      %v1363 = vpop.f32.mrb[0].mxu0
      %v1364 = vadd.f32 0.0, %v1363
      %v1365 = vpop.f32.mrb[0].mxu0
      %1366 = vmatprep.mubr.bf16.mxu0 0
      %1367 = vmatmul.mubr.bf16.gmra.mrb[0].mxu0 %v1279
      %v1368 = vpop.f32.mrb[0].mxu0
      %v1369 = vadd.f32 0.0, %v1368
      %v1370 = vpop.f32.mrb[0].mxu0
      %v1371 = vpop.f32.mrb[0].mxu0
      %v1372 = vadd.f32 0.0, %v1371
      %v1373 = vpop.f32.mrb[0].mxu0
      %1374 = vmatprep.mubr.bf16.mxu0 0
      %1375 = vmatmul.mubr.bf16.gmra.mrb[0].mxu0 %v1282
      %v1376 = vpop.f32.mrb[0].mxu0
      %v1377 = vadd.f32 0.0, %v1376
      %v1378 = vpop.f32.mrb[0].mxu0
      %v1379 = vpop.f32.mrb[0].mxu0
      %v1380 = vadd.f32 0.0, %v1379
      %v1381 = vpop.f32.mrb[0].mxu0
      %1382 = vmatprep.mubr.bf16.mxu0 0
      %1383 = vmatmul.mubr.bf16.gmra.mrb[0].mxu0 %v1285
      %v1384 = vpop.f32.mrb[0].mxu0
      %v1385 = vadd.f32 0.0, %v1384
      %v1386 = vpop.f32.mrb[0].mxu0
      %v1387 = vpop.f32.mrb[0].mxu0
      %v1388 = vadd.f32 0.0, %v1387
      %v1389 = vpop.f32.mrb[0].mxu0
      %1390 = vmatprep.mubr.bf16.mxu0 0
      %1391 = vmatmul.mubr.bf16.gmra.mrb[0].mxu0 %v1288
      %v1392 = vpop.f32.mrb[0].mxu0
      %v1393 = vadd.f32 0.0, %v1392
      %v1394 = vpop.f32.mrb[0].mxu0
      %v1395 = vpop.f32.mrb[0].mxu0
      %v1396 = vadd.f32 0.0, %v1395
      %v1397 = vpop.f32.mrb[0].mxu0
      %1398 = vmatprep.mubr.bf16.mxu0 0
      %1399 = vmatmul.mubr.bf16.gmra.mrb[0].mxu0 %v1291
      %v1400 = vpop.f32.mrb[0].mxu0
      %v1401 = vadd.f32 0.0, %v1400
      %v1402 = vpop.f32.mrb[0].mxu0
      %v1403 = vpop.f32.mrb[0].mxu0
      %v1404 = vadd.f32 0.0, %v1403
      %v1405 = vpop.f32.mrb[0].mxu0
      %1406 = vmatprep.mubr.bf16.mxu0 0
      %1407 = vmatmul.mubr.bf16.gmra.mrb[0].mxu0 %v1294
      %v1408 = vpop.f32.mrb[0].mxu0
      %v1409 = vadd.f32 0.0, %v1408
      %v1410 = vpop.f32.mrb[0].mxu0
      %v1411 = vpop.f32.mrb[0].mxu0
      %v1412 = vadd.f32 0.0, %v1411
      %v1413 = vpop.f32.mrb[0].mxu0
      %1414 = vmatprep.mubr.bf16.mxu0 0
      %1415 = vmatmul.mubr.bf16.gmra.mrb[0].mxu0 %v1297
      %v1416 = vpop.f32.mrb[0].mxu0
      %v1417 = vadd.f32 0.0, %v1416
      %v1418 = vpop.f32.mrb[0].mxu0
      %v1419 = vpop.f32.mrb[0].mxu0
      %v1420 = vadd.f32 0.0, %v1419
      %v1421 = vpop.f32.mrb[0].mxu0
      %1422 = vmatprep.mubr.bf16.mxu0 0
      %1423 = vmatmul.mubr.bf16.gmra.mrb[0].mxu0 %v1300
      %v1424 = vpop.f32.mrb[0].mxu0
      %v1425 = vadd.f32 0.0, %v1424
      %v1426 = vpop.f32.mrb[0].mxu0
      %v1427 = vpop.f32.mrb[0].mxu0
      %v1428 = vadd.f32 0.0, %v1427
      %v1429 = vpop.f32.mrb[0].mxu0
      %1430 = vmatprep.mubr.bf16.mxu0 0
      %1431 = vmatmul.mubr.bf16.gmra.mrb[0].mxu0 %v1303
      %v1432 = vpop.f32.mrb[0].mxu0
      %v1433 = vadd.f32 0.0, %v1432
      %v1434 = vpop.f32.mrb[0].mxu0
      %v1435 = vpop.f32.mrb[0].mxu0
      %v1436 = vadd.f32 0.0, %v1435
      %v1437 = vpop.f32.mrb[0].mxu0
      %1438 = vmatprep.mubr.bf16.mxu0 0
      %1439 = vmatmul.mubr.bf16.gmra.mrb[0].mxu0 %v1306
      %v1440 = vpop.f32.mrb[0].mxu0
      %v1441 = vadd.f32 0.0, %v1440
      %v1442 = vpop.f32.mrb[0].mxu0
      %v1443 = vpop.f32.mrb[0].mxu0
      %v1444 = vadd.f32 0.0, %v1443
      %v1445 = vpop.f32.mrb[0].mxu0
      %1446 = vmatprep.mubr.bf16.mxu0 0
      %1447 = vmatmul.mubr.bf16.gmra.mrb[0].mxu0 %v1309
      %v1448 = vpop.f32.mrb[0].mxu0
      %v1449 = vadd.f32 0.0, %v1448
      %v1450 = vpop.f32.mrb[0].mxu0
      %v1451 = vpop.f32.mrb[0].mxu0
      %v1452 = vadd.f32 0.0, %v1451
      %v1453 = vpop.f32.mrb[0].mxu0
      %1454 = vmatprep.mubr.bf16.mxu0 0
      %1455 = vmatmul.mubr.bf16.gmra.mrb[0].mxu0 %v1312
      %v1456 = vpop.f32.mrb[0].mxu0
      %v1457 = vadd.f32 0.0, %v1456
      %v1458 = vpop.f32.mrb[0].mxu0
      %v1459 = vpop.f32.mrb[0].mxu0
      %v1460 = vadd.f32 0.0, %v1459
      %v1461 = vpop.f32.mrb[0].mxu0
      %1462 = vmatprep.mubr.bf16.mxu0 0
      %1463 = vmatmul.mubr.bf16.gmra.mrb[0].mxu0 %v1315
      %v1464 = vpop.f32.mrb[0].mxu0
      %v1465 = vadd.f32 0.0, %v1464
      %v1466 = vpop.f32.mrb[0].mxu0
      %v1467 = vpop.f32.mrb[0].mxu0
      %v1468 = vadd.f32 0.0, %v1467
      %v1469 = vpop.f32.mrb[0].mxu0
      %1470 = vmatprep.mubr.bf16.mxu0 0
      %1471 = vmatmul.mubr.bf16.gmra.mrb[0].mxu0 %v1318
      %v1472 = vpop.f32.mrb[0].mxu0
      %v1473 = vadd.f32 0.0, %v1472
      %v1474 = vpop.f32.mrb[0].mxu0
      %v1475 = vpop.f32.mrb[0].mxu0
      %v1476 = vadd.f32 0.0, %v1475
      %v1477 = vpop.f32.mrb[0].mxu0
      %1478 = vmatprep.mubr.bf16.mxu0 0
      %1479 = vmatmul.mubr.bf16.gmra.mrb[0].mxu0 %v1321
      %v1480 = vpop.f32.mrb[0].mxu0
      %v1481 = vadd.f32 0.0, %v1480
      %v1482 = vpop.f32.mrb[0].mxu0
      %v1483 = vpop.f32.mrb[0].mxu0
      %v1484 = vadd.f32 0.0, %v1483
      %v1485 = vpop.f32.mrb[0].mxu0
      %1486 = vdwg.mxu0
      %v1487 = vadd.f32 %v1193, %v1361
      %v1488 = vadd.f32 %v1194, %v1364
      %v1489 = vadd.f32 %v1195, %v1369
      %v1490 = vadd.f32 %v1196, %v1372
      %v1491 = vadd.f32 %v1197, %v1377
      %v1492 = vadd.f32 %v1198, %v1380
      %v1493 = vadd.f32 %v1199, %v1385
      %v1494 = vadd.f32 %v1200, %v1388
      %v1495 = vadd.f32 %v1201, %v1393
      %v1496 = vadd.f32 %v1202, %v1396
      %v1497 = vadd.f32 %v1203, %v1401
      %v1498 = vadd.f32 %v1204, %v1404
      %v1499 = vadd.f32 %v1205, %v1409
      %v1500 = vadd.f32 %v1206, %v1412
      %v1501 = vadd.f32 %v1207, %v1417
      %v1502 = vadd.f32 %v1208, %v1420
      %v1503 = vadd.f32 %v1209, %v1425
      %v1504 = vadd.f32 %v1210, %v1428
      %v1505 = vadd.f32 %v1211, %v1433
      %v1506 = vadd.f32 %v1212, %v1436
      %v1507 = vadd.f32 %v1213, %v1441
      %v1508 = vadd.f32 %v1214, %v1444
      %v1509 = vadd.f32 %v1215, %v1449
      %v1510 = vadd.f32 %v1216, %v1452
      %v1511 = vadd.f32 %v1217, %v1457
      %v1512 = vadd.f32 %v1218, %v1460
      %v1513 = vadd.f32 %v1219, %v1465
      %v1514 = vadd.f32 %v1220, %v1468
      %v1515 = vadd.f32 %v1221, %v1473
      %v1516 = vadd.f32 %v1222, %v1476
      %v1517 = vadd.f32 %v1223, %v1481
      %v1518 = vadd.f32 %v1224, %v1484
      %v1519 = vld [vmem:[%s374 + $0x1] sm:$0xff]
      %v1520 = vld [vmem:[%s374 + $0x9] sm:$0xff]
      %v1521 = vld [vmem:[%s374 + $0x19] sm:$0xff]
      %v1522 = vld [vmem:[%s374 + $0x21] sm:$0xff]
      %v1523 = vld [vmem:[%s374 + $0x31] sm:$0xff]
      %v1524 = vld [vmem:[%s374 + $0x39] sm:$0xff]
      %v1525 = vld [vmem:[%s374 + $0x49] sm:$0xff]
      %v1526 = vld [vmem:[%s374 + $0x51] sm:$0xff]
      %v1527 = vld [vmem:[%s374 + $0x61] sm:$0xff]
      %v1528 = vld [vmem:[%s374 + $0x69] sm:$0xff]
      %v1529 = vld [vmem:[%s374 + $0x79] sm:$0xff]
      %v1530 = vld [vmem:[%s374 + $0x81] sm:$0xff]
      %v1531 = vld [vmem:[%s374 + $0x91] sm:$0xff]
      %v1532 = vld [vmem:[%s374 + $0x99] sm:$0xff]
      %v1533 = vld [vmem:[%s374 + $0xa9] sm:$0xff]
      %v1534 = vld [vmem:[%s374 + $0xb1] sm:$0xff]
      %v1535 = vld [vmem:[%s374 + $0xc1] sm:$0xff]
      %v1536 = vld [vmem:[%s374 + $0xc9] sm:$0xff]
      %v1537 = vld [vmem:[%s374 + $0xd9] sm:$0xff]
      %v1538 = vld [vmem:[%s374 + $0xe1] sm:$0xff]
      %v1539 = vld [vmem:[%s374 + $0xf1] sm:$0xff]
      %v1540 = vld [vmem:[%s374 + $0xf9] sm:$0xff]
      %v1541 = vld [vmem:[%s374 + $0x109] sm:$0xff]
      %v1542 = vld [vmem:[%s374 + $0x111] sm:$0xff]
      %v1543 = vld [vmem:[%s374 + $0x121] sm:$0xff]
      %v1544 = vld [vmem:[%s374 + $0x129] sm:$0xff]
      %v1545 = vld [vmem:[%s374 + $0x139] sm:$0xff]
      %v1546 = vld [vmem:[%s374 + $0x141] sm:$0xff]
      %v1547 = vld [vmem:[%s374 + $0x151] sm:$0xff]
      %v1548 = vld [vmem:[%s374 + $0x159] sm:$0xff]
      %v1549 = vld [vmem:[%s374 + $0x169] sm:$0xff]
      %v1550 = vld [vmem:[%s374 + $0x171] sm:$0xff]
      %v1551 = vpack.c.bf16 %v1520, %v1519
      %v1552 = vpack.c.bf16 %v1522, %v1521
      %v1553 = vpack.c.bf16 %v1524, %v1523
      %v1554 = vpack.c.bf16 %v1526, %v1525
      %v1555 = vpack.c.bf16 %v1528, %v1527
      %v1556 = vpack.c.bf16 %v1530, %v1529
      %v1557 = vpack.c.bf16 %v1532, %v1531
      %v1558 = vpack.c.bf16 %v1534, %v1533
      %v1559 = vpack.c.bf16 %v1536, %v1535
      %v1560 = vpack.c.bf16 %v1538, %v1537
      %v1561 = vpack.c.bf16 %v1540, %v1539
      %v1562 = vpack.c.bf16 %v1542, %v1541
      %v1563 = vpack.c.bf16 %v1544, %v1543
      %v1564 = vpack.c.bf16 %v1546, %v1545
      %v1565 = vpack.c.bf16 %v1548, %v1547
      %v1566 = vpack.c.bf16 %v1550, %v1549
      %s1567 = scalar_lea.vmem %s3, 8
      %v1568 = vld [vmem:[%s1567] sm:$0x3]
      %v1570 = vsel %vm328, %v1551, 0
      %v1573 = vsel %vm328, %v1552, 0
      %v1576 = vsel %vm328, %v1553, 0
      %v1579 = vsel %vm328, %v1554, 0
      %v1582 = vsel %vm328, %v1555, 0
      %v1585 = vsel %vm328, %v1556, 0
      %v1588 = vsel %vm328, %v1557, 0
      %v1591 = vsel %vm328, %v1558, 0
      %v1594 = vsel %vm328, %v1559, 0
      %v1597 = vsel %vm328, %v1560, 0
      %v1600 = vsel %vm328, %v1561, 0
      %v1603 = vsel %vm328, %v1562, 0
      %v1606 = vsel %vm328, %v1563, 0
      %v1609 = vsel %vm328, %v1564, 0
      %v1612 = vsel %vm328, %v1565, 0
      %v1615 = vsel %vm328, %v1566, 0
      %v1618 = vsel %vm554, %v1568, 0
      %1620 = vmatprep.subr.bf16.mxu0 0
      %1621 = vmatpush1.bf16.msra.mxu0 %v1618
      %1622 = vmatprep.subr.bf16.mxu0 0
      %1623 = vmatpush1.bf16.msra.mxu0 0
      %1624 = vmatprep.subr.bf16.mxu0 0
      %1625 = vmatpush1.bf16.msra.mxu0 0
      %1626 = vmatprep.subr.bf16.mxu0 0
      %1627 = vmatpush1.bf16.msra.mxu0 0
      %1628 = vmatprep.subr.bf16.mxu0 0
      %1629 = vmatpush1.bf16.msra.mxu0 0
      %1630 = vmatprep.subr.bf16.mxu0 0
      %1631 = vmatpush1.bf16.msra.mxu0 0
      %1632 = vmatprep.subr.bf16.mxu0 0
      %1633 = vmatpush1.bf16.msra.mxu0 0
      %1634 = vmatprep.subr.bf16.mxu0 0
      %1635 = vmatpush1.bf16.msra.mxu0 0
      %1636 = vmatprep.subr.bf16.mxu0 0
      %1637 = vmatpush1.bf16.msra.mxu0 0
      %1638 = vmatprep.subr.bf16.mxu0 0
      %1639 = vmatpush1.bf16.msra.mxu0 0
      %1640 = vmatprep.subr.bf16.mxu0 0
      %1641 = vmatpush1.bf16.msra.mxu0 0
      %1642 = vmatprep.subr.bf16.mxu0 0
      %1643 = vmatpush1.bf16.msra.mxu0 0
      %1644 = vmatprep.subr.bf16.mxu0 0
      %1645 = vmatpush1.bf16.msra.mxu0 0
      %1646 = vmatprep.subr.bf16.mxu0 0
      %1647 = vmatpush1.bf16.msra.mxu0 0
      %1648 = vmatprep.subr.bf16.mxu0 0
      %1649 = vmatpush1.bf16.msra.mxu0 0
      %1650 = vmatprep.subr.bf16.mxu0 0
      %1651 = vmatpush1.bf16.msra.mxu0 0
      %1652 = vmatprep.mubr.bf16.mxu0 0
      %1653 = vmatmul.mubr.bf16.gmra.mrb[0].mxu0 %v1570
      %v1654 = vpop.f32.mrb[0].mxu0
      %v1655 = vadd.f32 0.0, %v1654
      %v1656 = vpop.f32.mrb[0].mxu0
      %v1657 = vpop.f32.mrb[0].mxu0
      %v1658 = vadd.f32 0.0, %v1657
      %v1659 = vpop.f32.mrb[0].mxu0
      %1660 = vmatprep.mubr.bf16.mxu0 0
      %1661 = vmatmul.mubr.bf16.gmra.mrb[0].mxu0 %v1573
      %v1662 = vpop.f32.mrb[0].mxu0
      %v1663 = vadd.f32 0.0, %v1662
      %v1664 = vpop.f32.mrb[0].mxu0
      %v1665 = vpop.f32.mrb[0].mxu0
      %v1666 = vadd.f32 0.0, %v1665
      %v1667 = vpop.f32.mrb[0].mxu0
      %1668 = vmatprep.mubr.bf16.mxu0 0
      %1669 = vmatmul.mubr.bf16.gmra.mrb[0].mxu0 %v1576
      %v1670 = vpop.f32.mrb[0].mxu0
      %v1671 = vadd.f32 0.0, %v1670
      %v1672 = vpop.f32.mrb[0].mxu0
      %v1673 = vpop.f32.mrb[0].mxu0
      %v1674 = vadd.f32 0.0, %v1673
      %v1675 = vpop.f32.mrb[0].mxu0
      %1676 = vmatprep.mubr.bf16.mxu0 0
      %1677 = vmatmul.mubr.bf16.gmra.mrb[0].mxu0 %v1579
      %v1678 = vpop.f32.mrb[0].mxu0
      %v1679 = vadd.f32 0.0, %v1678
      %v1680 = vpop.f32.mrb[0].mxu0
      %v1681 = vpop.f32.mrb[0].mxu0
      %v1682 = vadd.f32 0.0, %v1681
      %v1683 = vpop.f32.mrb[0].mxu0
      %1684 = vmatprep.mubr.bf16.mxu0 0
      %1685 = vmatmul.mubr.bf16.gmra.mrb[0].mxu0 %v1582
      %v1686 = vpop.f32.mrb[0].mxu0
      %v1687 = vadd.f32 0.0, %v1686
      %v1688 = vpop.f32.mrb[0].mxu0
      %v1689 = vpop.f32.mrb[0].mxu0
      %v1690 = vadd.f32 0.0, %v1689
      %v1691 = vpop.f32.mrb[0].mxu0
      %1692 = vmatprep.mubr.bf16.mxu0 0
      %1693 = vmatmul.mubr.bf16.gmra.mrb[0].mxu0 %v1585
      %v1694 = vpop.f32.mrb[0].mxu0
      %v1695 = vadd.f32 0.0, %v1694
      %v1696 = vpop.f32.mrb[0].mxu0
      %v1697 = vpop.f32.mrb[0].mxu0
      %v1698 = vadd.f32 0.0, %v1697
      %v1699 = vpop.f32.mrb[0].mxu0
      %1700 = vmatprep.mubr.bf16.mxu0 0
      %1701 = vmatmul.mubr.bf16.gmra.mrb[0].mxu0 %v1588
      %v1702 = vpop.f32.mrb[0].mxu0
      %v1703 = vadd.f32 0.0, %v1702
      %v1704 = vpop.f32.mrb[0].mxu0
      %v1705 = vpop.f32.mrb[0].mxu0
      %v1706 = vadd.f32 0.0, %v1705
      %v1707 = vpop.f32.mrb[0].mxu0
      %1708 = vmatprep.mubr.bf16.mxu0 0
      %1709 = vmatmul.mubr.bf16.gmra.mrb[0].mxu0 %v1591
      %v1710 = vpop.f32.mrb[0].mxu0
      %v1711 = vadd.f32 0.0, %v1710
      %v1712 = vpop.f32.mrb[0].mxu0
      %v1713 = vpop.f32.mrb[0].mxu0
      %v1714 = vadd.f32 0.0, %v1713
      %v1715 = vpop.f32.mrb[0].mxu0
      %1716 = vmatprep.mubr.bf16.mxu0 0
      %1717 = vmatmul.mubr.bf16.gmra.mrb[0].mxu0 %v1594
      %v1718 = vpop.f32.mrb[0].mxu0
      %v1719 = vadd.f32 0.0, %v1718
      %v1720 = vpop.f32.mrb[0].mxu0
      %v1721 = vpop.f32.mrb[0].mxu0
      %v1722 = vadd.f32 0.0, %v1721
      %v1723 = vpop.f32.mrb[0].mxu0
      %1724 = vmatprep.mubr.bf16.mxu0 0
      %1725 = vmatmul.mubr.bf16.gmra.mrb[0].mxu0 %v1597
      %v1726 = vpop.f32.mrb[0].mxu0
      %v1727 = vadd.f32 0.0, %v1726
      %v1728 = vpop.f32.mrb[0].mxu0
      %v1729 = vpop.f32.mrb[0].mxu0
      %v1730 = vadd.f32 0.0, %v1729
      %v1731 = vpop.f32.mrb[0].mxu0
      %1732 = vmatprep.mubr.bf16.mxu0 0
      %1733 = vmatmul.mubr.bf16.gmra.mrb[0].mxu0 %v1600
      %v1734 = vpop.f32.mrb[0].mxu0
      %v1735 = vadd.f32 0.0, %v1734
      %v1736 = vpop.f32.mrb[0].mxu0
      %v1737 = vpop.f32.mrb[0].mxu0
      %v1738 = vadd.f32 0.0, %v1737
      %v1739 = vpop.f32.mrb[0].mxu0
      %1740 = vmatprep.mubr.bf16.mxu0 0
      %1741 = vmatmul.mubr.bf16.gmra.mrb[0].mxu0 %v1603
      %v1742 = vpop.f32.mrb[0].mxu0
      %v1743 = vadd.f32 0.0, %v1742
      %v1744 = vpop.f32.mrb[0].mxu0
      %v1745 = vpop.f32.mrb[0].mxu0
      %v1746 = vadd.f32 0.0, %v1745
      %v1747 = vpop.f32.mrb[0].mxu0
      %1748 = vmatprep.mubr.bf16.mxu0 0
      %1749 = vmatmul.mubr.bf16.gmra.mrb[0].mxu0 %v1606
      %v1750 = vpop.f32.mrb[0].mxu0
      %v1751 = vadd.f32 0.0, %v1750
      %v1752 = vpop.f32.mrb[0].mxu0
      %v1753 = vpop.f32.mrb[0].mxu0
      %v1754 = vadd.f32 0.0, %v1753
      %v1755 = vpop.f32.mrb[0].mxu0
      %1756 = vmatprep.mubr.bf16.mxu0 0
      %1757 = vmatmul.mubr.bf16.gmra.mrb[0].mxu0 %v1609
      %v1758 = vpop.f32.mrb[0].mxu0
      %v1759 = vadd.f32 0.0, %v1758
      %v1760 = vpop.f32.mrb[0].mxu0
      %v1761 = vpop.f32.mrb[0].mxu0
      %v1762 = vadd.f32 0.0, %v1761
      %v1763 = vpop.f32.mrb[0].mxu0
      %1764 = vmatprep.mubr.bf16.mxu0 0
      %1765 = vmatmul.mubr.bf16.gmra.mrb[0].mxu0 %v1612
      %v1766 = vpop.f32.mrb[0].mxu0
      %v1767 = vadd.f32 0.0, %v1766
      %v1768 = vpop.f32.mrb[0].mxu0
      %v1769 = vpop.f32.mrb[0].mxu0
      %v1770 = vadd.f32 0.0, %v1769
      %v1771 = vpop.f32.mrb[0].mxu0
      %1772 = vmatprep.mubr.bf16.mxu0 0
      %1773 = vmatmul.mubr.bf16.gmra.mrb[0].mxu0 %v1615
      %v1774 = vpop.f32.mrb[0].mxu0
      %v1775 = vadd.f32 0.0, %v1774
      %v1776 = vpop.f32.mrb[0].mxu0
      %v1777 = vpop.f32.mrb[0].mxu0
      %v1778 = vadd.f32 0.0, %v1777
      %v1779 = vpop.f32.mrb[0].mxu0
      %1780 = vdwg.mxu0
      %v1781 = vadd.f32 %v1487, %v1655
      %v1782 = vadd.f32 %v1488, %v1658
      %v1783 = vadd.f32 %v1489, %v1663
      %v1784 = vadd.f32 %v1490, %v1666
      %v1785 = vadd.f32 %v1491, %v1671
      %v1786 = vadd.f32 %v1492, %v1674
      %v1787 = vadd.f32 %v1493, %v1679
      %v1788 = vadd.f32 %v1494, %v1682
      %v1789 = vadd.f32 %v1495, %v1687
      %v1790 = vadd.f32 %v1496, %v1690
      %v1791 = vadd.f32 %v1497, %v1695
      %v1792 = vadd.f32 %v1498, %v1698
      %v1793 = vadd.f32 %v1499, %v1703
      %v1794 = vadd.f32 %v1500, %v1706
      %v1795 = vadd.f32 %v1501, %v1711
      %v1796 = vadd.f32 %v1502, %v1714
      %v1797 = vadd.f32 %v1503, %v1719
      %v1798 = vadd.f32 %v1504, %v1722
      %v1799 = vadd.f32 %v1505, %v1727
      %v1800 = vadd.f32 %v1506, %v1730
      %v1801 = vadd.f32 %v1507, %v1735
      %v1802 = vadd.f32 %v1508, %v1738
      %v1803 = vadd.f32 %v1509, %v1743
      %v1804 = vadd.f32 %v1510, %v1746
      %v1805 = vadd.f32 %v1511, %v1751
      %v1806 = vadd.f32 %v1512, %v1754
      %v1807 = vadd.f32 %v1513, %v1759
      %v1808 = vadd.f32 %v1514, %v1762
      %v1809 = vadd.f32 %v1515, %v1767
      %v1810 = vadd.f32 %v1516, %v1770
      %v1811 = vadd.f32 %v1517, %v1775
      %v1812 = vadd.f32 %v1518, %v1778
      %v1813 = vld [vmem:[%s374 + $0x2] sm:$0xff]
      %v1814 = vld [vmem:[%s374 + $0xa] sm:$0xff]
      %v1815 = vld [vmem:[%s374 + $0x1a] sm:$0xff]
      %v1816 = vld [vmem:[%s374 + $0x22] sm:$0xff]
      %v1817 = vld [vmem:[%s374 + $0x32] sm:$0xff]
      %v1818 = vld [vmem:[%s374 + $0x3a] sm:$0xff]
      %v1819 = vld [vmem:[%s374 + $0x4a] sm:$0xff]
      %v1820 = vld [vmem:[%s374 + $0x52] sm:$0xff]
      %v1821 = vld [vmem:[%s374 + $0x62] sm:$0xff]
      %v1822 = vld [vmem:[%s374 + $0x6a] sm:$0xff]
      %v1823 = vld [vmem:[%s374 + $0x7a] sm:$0xff]
      %v1824 = vld [vmem:[%s374 + $0x82] sm:$0xff]
      %v1825 = vld [vmem:[%s374 + $0x92] sm:$0xff]
      %v1826 = vld [vmem:[%s374 + $0x9a] sm:$0xff]
      %v1827 = vld [vmem:[%s374 + $0xaa] sm:$0xff]
      %v1828 = vld [vmem:[%s374 + $0xb2] sm:$0xff]
      %v1829 = vld [vmem:[%s374 + $0xc2] sm:$0xff]
      %v1830 = vld [vmem:[%s374 + $0xca] sm:$0xff]
      %v1831 = vld [vmem:[%s374 + $0xda] sm:$0xff]
      %v1832 = vld [vmem:[%s374 + $0xe2] sm:$0xff]
      %v1833 = vld [vmem:[%s374 + $0xf2] sm:$0xff]
      %v1834 = vld [vmem:[%s374 + $0xfa] sm:$0xff]
      %v1835 = vld [vmem:[%s374 + $0x10a] sm:$0xff]
      %v1836 = vld [vmem:[%s374 + $0x112] sm:$0xff]
      %v1837 = vld [vmem:[%s374 + $0x122] sm:$0xff]
      %v1838 = vld [vmem:[%s374 + $0x12a] sm:$0xff]
      %v1839 = vld [vmem:[%s374 + $0x13a] sm:$0xff]
      %v1840 = vld [vmem:[%s374 + $0x142] sm:$0xff]
      %v1841 = vld [vmem:[%s374 + $0x152] sm:$0xff]
      %v1842 = vld [vmem:[%s374 + $0x15a] sm:$0xff]
      %v1843 = vld [vmem:[%s374 + $0x16a] sm:$0xff]
      %v1844 = vld [vmem:[%s374 + $0x172] sm:$0xff]
      %v1845 = vpack.c.bf16 %v1814, %v1813
      %v1846 = vpack.c.bf16 %v1816, %v1815
      %v1847 = vpack.c.bf16 %v1818, %v1817
      %v1848 = vpack.c.bf16 %v1820, %v1819
      %v1849 = vpack.c.bf16 %v1822, %v1821
      %v1850 = vpack.c.bf16 %v1824, %v1823
      %v1851 = vpack.c.bf16 %v1826, %v1825
      %v1852 = vpack.c.bf16 %v1828, %v1827
      %v1853 = vpack.c.bf16 %v1830, %v1829
      %v1854 = vpack.c.bf16 %v1832, %v1831
      %v1855 = vpack.c.bf16 %v1834, %v1833
      %v1856 = vpack.c.bf16 %v1836, %v1835
      %v1857 = vpack.c.bf16 %v1838, %v1837
      %v1858 = vpack.c.bf16 %v1840, %v1839
      %v1859 = vpack.c.bf16 %v1842, %v1841
      %v1860 = vpack.c.bf16 %v1844, %v1843
      %s1861 = scalar_lea.vmem %s3, 10
      %v1862 = vld [vmem:[%s1861] sm:$0x3]
      %v1864 = vsel %vm328, %v1845, 0
      %v1867 = vsel %vm328, %v1846, 0
      %v1870 = vsel %vm328, %v1847, 0
      %v1873 = vsel %vm328, %v1848, 0
      %v1876 = vsel %vm328, %v1849, 0
      %v1879 = vsel %vm328, %v1850, 0
      %v1882 = vsel %vm328, %v1851, 0
      %v1885 = vsel %vm328, %v1852, 0
      %v1888 = vsel %vm328, %v1853, 0
      %v1891 = vsel %vm328, %v1854, 0
      %v1894 = vsel %vm328, %v1855, 0
      %v1897 = vsel %vm328, %v1856, 0
      %v1900 = vsel %vm328, %v1857, 0
      %v1903 = vsel %vm328, %v1858, 0
      %v1906 = vsel %vm328, %v1859, 0
      %v1909 = vsel %vm328, %v1860, 0
      %v1912 = vsel %vm554, %v1862, 0
      %1914 = vmatprep.subr.bf16.mxu0 0
      %1915 = vmatpush1.bf16.msra.mxu0 %v1912
      %1916 = vmatprep.subr.bf16.mxu0 0
      %1917 = vmatpush1.bf16.msra.mxu0 0
      %1918 = vmatprep.subr.bf16.mxu0 0
      %1919 = vmatpush1.bf16.msra.mxu0 0
      %1920 = vmatprep.subr.bf16.mxu0 0
      %1921 = vmatpush1.bf16.msra.mxu0 0
      %1922 = vmatprep.subr.bf16.mxu0 0
      %1923 = vmatpush1.bf16.msra.mxu0 0
      %1924 = vmatprep.subr.bf16.mxu0 0
      %1925 = vmatpush1.bf16.msra.mxu0 0
      %1926 = vmatprep.subr.bf16.mxu0 0
      %1927 = vmatpush1.bf16.msra.mxu0 0
      %1928 = vmatprep.subr.bf16.mxu0 0
      %1929 = vmatpush1.bf16.msra.mxu0 0
      %1930 = vmatprep.subr.bf16.mxu0 0
      %1931 = vmatpush1.bf16.msra.mxu0 0
      %1932 = vmatprep.subr.bf16.mxu0 0
      %1933 = vmatpush1.bf16.msra.mxu0 0
      %1934 = vmatprep.subr.bf16.mxu0 0
      %1935 = vmatpush1.bf16.msra.mxu0 0
      %1936 = vmatprep.subr.bf16.mxu0 0
      %1937 = vmatpush1.bf16.msra.mxu0 0
      %1938 = vmatprep.subr.bf16.mxu0 0
      %1939 = vmatpush1.bf16.msra.mxu0 0
      %1940 = vmatprep.subr.bf16.mxu0 0
      %1941 = vmatpush1.bf16.msra.mxu0 0
      %1942 = vmatprep.subr.bf16.mxu0 0
      %1943 = vmatpush1.bf16.msra.mxu0 0
      %1944 = vmatprep.subr.bf16.mxu0 0
      %1945 = vmatpush1.bf16.msra.mxu0 0
      %1946 = vmatprep.mubr.bf16.mxu0 0
      %1947 = vmatmul.mubr.bf16.gmra.mrb[0].mxu0 %v1864
      %v1948 = vpop.f32.mrb[0].mxu0
      %v1949 = vadd.f32 0.0, %v1948
      %v1950 = vpop.f32.mrb[0].mxu0
      %v1951 = vpop.f32.mrb[0].mxu0
      %v1952 = vadd.f32 0.0, %v1951
      %v1953 = vpop.f32.mrb[0].mxu0
      %1954 = vmatprep.mubr.bf16.mxu0 0
      %1955 = vmatmul.mubr.bf16.gmra.mrb[0].mxu0 %v1867
      %v1956 = vpop.f32.mrb[0].mxu0
      %v1957 = vadd.f32 0.0, %v1956
      %v1958 = vpop.f32.mrb[0].mxu0
      %v1959 = vpop.f32.mrb[0].mxu0
      %v1960 = vadd.f32 0.0, %v1959
      %v1961 = vpop.f32.mrb[0].mxu0
      %1962 = vmatprep.mubr.bf16.mxu0 0
      %1963 = vmatmul.mubr.bf16.gmra.mrb[0].mxu0 %v1870
      %v1964 = vpop.f32.mrb[0].mxu0
      %v1965 = vadd.f32 0.0, %v1964
      %v1966 = vpop.f32.mrb[0].mxu0
      %v1967 = vpop.f32.mrb[0].mxu0
      %v1968 = vadd.f32 0.0, %v1967
      %v1969 = vpop.f32.mrb[0].mxu0
      %1970 = vmatprep.mubr.bf16.mxu0 0
      %1971 = vmatmul.mubr.bf16.gmra.mrb[0].mxu0 %v1873
      %v1972 = vpop.f32.mrb[0].mxu0
      %v1973 = vadd.f32 0.0, %v1972
      %v1974 = vpop.f32.mrb[0].mxu0
      %v1975 = vpop.f32.mrb[0].mxu0
      %v1976 = vadd.f32 0.0, %v1975
      %v1977 = vpop.f32.mrb[0].mxu0
      %1978 = vmatprep.mubr.bf16.mxu0 0
      %1979 = vmatmul.mubr.bf16.gmra.mrb[0].mxu0 %v1876
      %v1980 = vpop.f32.mrb[0].mxu0
      %v1981 = vadd.f32 0.0, %v1980
      %v1982 = vpop.f32.mrb[0].mxu0
      %v1983 = vpop.f32.mrb[0].mxu0
      %v1984 = vadd.f32 0.0, %v1983
      %v1985 = vpop.f32.mrb[0].mxu0
      %1986 = vmatprep.mubr.bf16.mxu0 0
      %1987 = vmatmul.mubr.bf16.gmra.mrb[0].mxu0 %v1879
      %v1988 = vpop.f32.mrb[0].mxu0
      %v1989 = vadd.f32 0.0, %v1988
      %v1990 = vpop.f32.mrb[0].mxu0
      %v1991 = vpop.f32.mrb[0].mxu0
      %v1992 = vadd.f32 0.0, %v1991
      %v1993 = vpop.f32.mrb[0].mxu0
      %1994 = vmatprep.mubr.bf16.mxu0 0
      %1995 = vmatmul.mubr.bf16.gmra.mrb[0].mxu0 %v1882
      %v1996 = vpop.f32.mrb[0].mxu0
      %v1997 = vadd.f32 0.0, %v1996
      %v1998 = vpop.f32.mrb[0].mxu0
      %v1999 = vpop.f32.mrb[0].mxu0
      %v2000 = vadd.f32 0.0, %v1999
      %v2001 = vpop.f32.mrb[0].mxu0
      %2002 = vmatprep.mubr.bf16.mxu0 0
      %2003 = vmatmul.mubr.bf16.gmra.mrb[0].mxu0 %v1885
      %v2004 = vpop.f32.mrb[0].mxu0
      %v2005 = vadd.f32 0.0, %v2004
      %v2006 = vpop.f32.mrb[0].mxu0
      %v2007 = vpop.f32.mrb[0].mxu0
      %v2008 = vadd.f32 0.0, %v2007
      %v2009 = vpop.f32.mrb[0].mxu0
      %2010 = vmatprep.mubr.bf16.mxu0 0
      %2011 = vmatmul.mubr.bf16.gmra.mrb[0].mxu0 %v1888
      %v2012 = vpop.f32.mrb[0].mxu0
      %v2013 = vadd.f32 0.0, %v2012
      %v2014 = vpop.f32.mrb[0].mxu0
      %v2015 = vpop.f32.mrb[0].mxu0
      %v2016 = vadd.f32 0.0, %v2015
      %v2017 = vpop.f32.mrb[0].mxu0
      %2018 = vmatprep.mubr.bf16.mxu0 0
      %2019 = vmatmul.mubr.bf16.gmra.mrb[0].mxu0 %v1891
      %v2020 = vpop.f32.mrb[0].mxu0
      %v2021 = vadd.f32 0.0, %v2020
      %v2022 = vpop.f32.mrb[0].mxu0
      %v2023 = vpop.f32.mrb[0].mxu0
      %v2024 = vadd.f32 0.0, %v2023
      %v2025 = vpop.f32.mrb[0].mxu0
      %2026 = vmatprep.mubr.bf16.mxu0 0
      %2027 = vmatmul.mubr.bf16.gmra.mrb[0].mxu0 %v1894
      %v2028 = vpop.f32.mrb[0].mxu0
      %v2029 = vadd.f32 0.0, %v2028
      %v2030 = vpop.f32.mrb[0].mxu0
      %v2031 = vpop.f32.mrb[0].mxu0
      %v2032 = vadd.f32 0.0, %v2031
      %v2033 = vpop.f32.mrb[0].mxu0
      %2034 = vmatprep.mubr.bf16.mxu0 0
      %2035 = vmatmul.mubr.bf16.gmra.mrb[0].mxu0 %v1897
      %v2036 = vpop.f32.mrb[0].mxu0
      %v2037 = vadd.f32 0.0, %v2036
      %v2038 = vpop.f32.mrb[0].mxu0
      %v2039 = vpop.f32.mrb[0].mxu0
      %v2040 = vadd.f32 0.0, %v2039
      %v2041 = vpop.f32.mrb[0].mxu0
      %2042 = vmatprep.mubr.bf16.mxu0 0
      %2043 = vmatmul.mubr.bf16.gmra.mrb[0].mxu0 %v1900
      %v2044 = vpop.f32.mrb[0].mxu0
      %v2045 = vadd.f32 0.0, %v2044
      %v2046 = vpop.f32.mrb[0].mxu0
      %v2047 = vpop.f32.mrb[0].mxu0
      %v2048 = vadd.f32 0.0, %v2047
      %v2049 = vpop.f32.mrb[0].mxu0
      %2050 = vmatprep.mubr.bf16.mxu0 0
      %2051 = vmatmul.mubr.bf16.gmra.mrb[0].mxu0 %v1903
      %v2052 = vpop.f32.mrb[0].mxu0
      %v2053 = vadd.f32 0.0, %v2052
      %v2054 = vpop.f32.mrb[0].mxu0
      %v2055 = vpop.f32.mrb[0].mxu0
      %v2056 = vadd.f32 0.0, %v2055
      %v2057 = vpop.f32.mrb[0].mxu0
      %2058 = vmatprep.mubr.bf16.mxu0 0
      %2059 = vmatmul.mubr.bf16.gmra.mrb[0].mxu0 %v1906
      %v2060 = vpop.f32.mrb[0].mxu0
      %v2061 = vadd.f32 0.0, %v2060
      %v2062 = vpop.f32.mrb[0].mxu0
      %v2063 = vpop.f32.mrb[0].mxu0
      %v2064 = vadd.f32 0.0, %v2063
      %v2065 = vpop.f32.mrb[0].mxu0
      %2066 = vmatprep.mubr.bf16.mxu0 0
      %2067 = vmatmul.mubr.bf16.gmra.mrb[0].mxu0 %v1909
      %v2068 = vpop.f32.mrb[0].mxu0
      %v2069 = vadd.f32 0.0, %v2068
      %v2070 = vpop.f32.mrb[0].mxu0
      %v2071 = vpop.f32.mrb[0].mxu0
      %v2072 = vadd.f32 0.0, %v2071
      %v2073 = vpop.f32.mrb[0].mxu0
      %2074 = vdwg.mxu0
      %v2075 = vadd.f32 %v1781, %v1949
      %v2076 = vadd.f32 %v1782, %v1952
      %v2077 = vadd.f32 %v1783, %v1957
      %v2078 = vadd.f32 %v1784, %v1960
      %v2079 = vadd.f32 %v1785, %v1965
      %v2080 = vadd.f32 %v1786, %v1968
      %v2081 = vadd.f32 %v1787, %v1973
      %v2082 = vadd.f32 %v1788, %v1976
      %v2083 = vadd.f32 %v1789, %v1981
      %v2084 = vadd.f32 %v1790, %v1984
      %v2085 = vadd.f32 %v1791, %v1989
      %v2086 = vadd.f32 %v1792, %v1992
      %v2087 = vadd.f32 %v1793, %v1997
      %v2088 = vadd.f32 %v1794, %v2000
      %v2089 = vadd.f32 %v1795, %v2005
      %v2090 = vadd.f32 %v1796, %v2008
      %v2091 = vadd.f32 %v1797, %v2013
      %v2092 = vadd.f32 %v1798, %v2016
      %v2093 = vadd.f32 %v1799, %v2021
      %v2094 = vadd.f32 %v1800, %v2024
      %v2095 = vadd.f32 %v1801, %v2029
      %v2096 = vadd.f32 %v1802, %v2032
      %v2097 = vadd.f32 %v1803, %v2037
      %v2098 = vadd.f32 %v1804, %v2040
      %v2099 = vadd.f32 %v1805, %v2045
      %v2100 = vadd.f32 %v1806, %v2048
      %v2101 = vadd.f32 %v1807, %v2053
      %v2102 = vadd.f32 %v1808, %v2056
      %v2103 = vadd.f32 %v1809, %v2061
      %v2104 = vadd.f32 %v1810, %v2064
      %v2105 = vadd.f32 %v1811, %v2069
      %v2106 = vadd.f32 %v1812, %v2072
      %s2107 = scalar_lea.vmem [#allocation2], 48
      %v2108 = vld [vmem:[%s2107] sm:$0xff]
      %v2109 = vld [vmem:[%s2107 + $0x8] sm:$0xff]
      %v2110 = vld [vmem:[%s2107 + $0x18] sm:$0xff]
      %v2111 = vld [vmem:[%s2107 + $0x20] sm:$0xff]
      %v2112 = vld [vmem:[%s2107 + $0x30] sm:$0xff]
      %v2113 = vld [vmem:[%s2107 + $0x38] sm:$0xff]
      %v2114 = vld [vmem:[%s2107 + $0x48] sm:$0xff]
      %v2115 = vld [vmem:[%s2107 + $0x50] sm:$0xff]
      %v2116 = vld [vmem:[%s2107 + $0x60] sm:$0xff]
      %v2117 = vld [vmem:[%s2107 + $0x68] sm:$0xff]
      %v2118 = vld [vmem:[%s2107 + $0x78] sm:$0xff]
      %v2119 = vld [vmem:[%s2107 + $0x80] sm:$0xff]
      %v2120 = vld [vmem:[%s2107 + $0x90] sm:$0xff]
      %v2121 = vld [vmem:[%s2107 + $0x98] sm:$0xff]
      %v2122 = vld [vmem:[%s2107 + $0xa8] sm:$0xff]
      %v2123 = vld [vmem:[%s2107 + $0xb0] sm:$0xff]
      %v2124 = vld [vmem:[%s2107 + $0xc0] sm:$0xff]
      %v2125 = vld [vmem:[%s2107 + $0xc8] sm:$0xff]
      %v2126 = vld [vmem:[%s2107 + $0xd8] sm:$0xff]
      %v2127 = vld [vmem:[%s2107 + $0xe0] sm:$0xff]
      %v2128 = vld [vmem:[%s2107 + $0xf0] sm:$0xff]
      %v2129 = vld [vmem:[%s2107 + $0xf8] sm:$0xff]
      %v2130 = vld [vmem:[%s2107 + $0x108] sm:$0xff]
      %v2131 = vld [vmem:[%s2107 + $0x110] sm:$0xff]
      %v2132 = vld [vmem:[%s2107 + $0x120] sm:$0xff]
      %v2133 = vld [vmem:[%s2107 + $0x128] sm:$0xff]
      %v2134 = vld [vmem:[%s2107 + $0x138] sm:$0xff]
      %v2135 = vld [vmem:[%s2107 + $0x140] sm:$0xff]
      %v2136 = vld [vmem:[%s2107 + $0x150] sm:$0xff]
      %v2137 = vld [vmem:[%s2107 + $0x158] sm:$0xff]
      %v2138 = vld [vmem:[%s2107 + $0x168] sm:$0xff]
      %v2139 = vld [vmem:[%s2107 + $0x170] sm:$0xff]
      %v2140 = vpack.c.bf16 %v2109, %v2108
      %v2141 = vpack.c.bf16 %v2111, %v2110
      %v2142 = vpack.c.bf16 %v2113, %v2112
      %v2143 = vpack.c.bf16 %v2115, %v2114
      %v2144 = vpack.c.bf16 %v2117, %v2116
      %v2145 = vpack.c.bf16 %v2119, %v2118
      %v2146 = vpack.c.bf16 %v2121, %v2120
      %v2147 = vpack.c.bf16 %v2123, %v2122
      %v2148 = vpack.c.bf16 %v2125, %v2124
      %v2149 = vpack.c.bf16 %v2127, %v2126
      %v2150 = vpack.c.bf16 %v2129, %v2128
      %v2151 = vpack.c.bf16 %v2131, %v2130
      %v2152 = vpack.c.bf16 %v2133, %v2132
      %v2153 = vpack.c.bf16 %v2135, %v2134
      %v2154 = vpack.c.bf16 %v2137, %v2136
      %v2155 = vpack.c.bf16 %v2139, %v2138
      %s2156 = scalar_lea.vmem %s3, 12
      %v2157 = vld [vmem:[%s2156] sm:$0x3]
      %v2159 = vsel %vm328, %v2140, 0
      %v2162 = vsel %vm328, %v2141, 0
      %v2165 = vsel %vm328, %v2142, 0
      %v2168 = vsel %vm328, %v2143, 0
      %v2171 = vsel %vm328, %v2144, 0
      %v2174 = vsel %vm328, %v2145, 0
      %v2177 = vsel %vm328, %v2146, 0
      %v2180 = vsel %vm328, %v2147, 0
      %v2183 = vsel %vm328, %v2148, 0
      %v2186 = vsel %vm328, %v2149, 0
      %v2189 = vsel %vm328, %v2150, 0
      %v2192 = vsel %vm328, %v2151, 0
      %v2195 = vsel %vm328, %v2152, 0
      %v2198 = vsel %vm328, %v2153, 0
      %v2201 = vsel %vm328, %v2154, 0
      %v2204 = vsel %vm328, %v2155, 0
      %v2207 = vsel %vm554, %v2157, 0
      %2209 = vmatprep.subr.bf16.mxu0 0
      %2210 = vmatpush1.bf16.msra.mxu0 %v2207
      %2211 = vmatprep.subr.bf16.mxu0 0
      %2212 = vmatpush1.bf16.msra.mxu0 0
      %2213 = vmatprep.subr.bf16.mxu0 0
      %2214 = vmatpush1.bf16.msra.mxu0 0
      %2215 = vmatprep.subr.bf16.mxu0 0
      %2216 = vmatpush1.bf16.msra.mxu0 0
      %2217 = vmatprep.subr.bf16.mxu0 0
      %2218 = vmatpush1.bf16.msra.mxu0 0
      %2219 = vmatprep.subr.bf16.mxu0 0
      %2220 = vmatpush1.bf16.msra.mxu0 0
      %2221 = vmatprep.subr.bf16.mxu0 0
      %2222 = vmatpush1.bf16.msra.mxu0 0
      %2223 = vmatprep.subr.bf16.mxu0 0
      %2224 = vmatpush1.bf16.msra.mxu0 0
      %2225 = vmatprep.subr.bf16.mxu0 0
      %2226 = vmatpush1.bf16.msra.mxu0 0
      %2227 = vmatprep.subr.bf16.mxu0 0
      %2228 = vmatpush1.bf16.msra.mxu0 0
      %2229 = vmatprep.subr.bf16.mxu0 0
      %2230 = vmatpush1.bf16.msra.mxu0 0
      %2231 = vmatprep.subr.bf16.mxu0 0
      %2232 = vmatpush1.bf16.msra.mxu0 0
      %2233 = vmatprep.subr.bf16.mxu0 0
      %2234 = vmatpush1.bf16.msra.mxu0 0
      %2235 = vmatprep.subr.bf16.mxu0 0
      %2236 = vmatpush1.bf16.msra.mxu0 0
      %2237 = vmatprep.subr.bf16.mxu0 0
      %2238 = vmatpush1.bf16.msra.mxu0 0
      %2239 = vmatprep.subr.bf16.mxu0 0
      %2240 = vmatpush1.bf16.msra.mxu0 0
      %2241 = vmatprep.mubr.bf16.mxu0 0
      %2242 = vmatmul.mubr.bf16.gmra.mrb[0].mxu0 %v2159
      %v2243 = vpop.f32.mrb[0].mxu0
      %v2244 = vadd.f32 0.0, %v2243
      %v2245 = vpop.f32.mrb[0].mxu0
      %v2246 = vpop.f32.mrb[0].mxu0
      %v2247 = vadd.f32 0.0, %v2246
      %v2248 = vpop.f32.mrb[0].mxu0
      %2249 = vmatprep.mubr.bf16.mxu0 0
      %2250 = vmatmul.mubr.bf16.gmra.mrb[0].mxu0 %v2162
      %v2251 = vpop.f32.mrb[0].mxu0
      %v2252 = vadd.f32 0.0, %v2251
      %v2253 = vpop.f32.mrb[0].mxu0
      %v2254 = vpop.f32.mrb[0].mxu0
      %v2255 = vadd.f32 0.0, %v2254
      %v2256 = vpop.f32.mrb[0].mxu0
      %2257 = vmatprep.mubr.bf16.mxu0 0
      %2258 = vmatmul.mubr.bf16.gmra.mrb[0].mxu0 %v2165
      %v2259 = vpop.f32.mrb[0].mxu0
      %v2260 = vadd.f32 0.0, %v2259
      %v2261 = vpop.f32.mrb[0].mxu0
      %v2262 = vpop.f32.mrb[0].mxu0
      %v2263 = vadd.f32 0.0, %v2262
      %v2264 = vpop.f32.mrb[0].mxu0
      %2265 = vmatprep.mubr.bf16.mxu0 0
      %2266 = vmatmul.mubr.bf16.gmra.mrb[0].mxu0 %v2168
      %v2267 = vpop.f32.mrb[0].mxu0
      %v2268 = vadd.f32 0.0, %v2267
      %v2269 = vpop.f32.mrb[0].mxu0
      %v2270 = vpop.f32.mrb[0].mxu0
      %v2271 = vadd.f32 0.0, %v2270
      %v2272 = vpop.f32.mrb[0].mxu0
      %2273 = vmatprep.mubr.bf16.mxu0 0
      %2274 = vmatmul.mubr.bf16.gmra.mrb[0].mxu0 %v2171
      %v2275 = vpop.f32.mrb[0].mxu0
      %v2276 = vadd.f32 0.0, %v2275
      %v2277 = vpop.f32.mrb[0].mxu0
      %v2278 = vpop.f32.mrb[0].mxu0
      %v2279 = vadd.f32 0.0, %v2278
      %v2280 = vpop.f32.mrb[0].mxu0
      %2281 = vmatprep.mubr.bf16.mxu0 0
      %2282 = vmatmul.mubr.bf16.gmra.mrb[0].mxu0 %v2174
      %v2283 = vpop.f32.mrb[0].mxu0
      %v2284 = vadd.f32 0.0, %v2283
      %v2285 = vpop.f32.mrb[0].mxu0
      %v2286 = vpop.f32.mrb[0].mxu0
      %v2287 = vadd.f32 0.0, %v2286
      %v2288 = vpop.f32.mrb[0].mxu0
      %2289 = vmatprep.mubr.bf16.mxu0 0
      %2290 = vmatmul.mubr.bf16.gmra.mrb[0].mxu0 %v2177
      %v2291 = vpop.f32.mrb[0].mxu0
      %v2292 = vadd.f32 0.0, %v2291
      %v2293 = vpop.f32.mrb[0].mxu0
      %v2294 = vpop.f32.mrb[0].mxu0
      %v2295 = vadd.f32 0.0, %v2294
      %v2296 = vpop.f32.mrb[0].mxu0
      %2297 = vmatprep.mubr.bf16.mxu0 0
      %2298 = vmatmul.mubr.bf16.gmra.mrb[0].mxu0 %v2180
      %v2299 = vpop.f32.mrb[0].mxu0
      %v2300 = vadd.f32 0.0, %v2299
      %v2301 = vpop.f32.mrb[0].mxu0
      %v2302 = vpop.f32.mrb[0].mxu0
      %v2303 = vadd.f32 0.0, %v2302
      %v2304 = vpop.f32.mrb[0].mxu0
      %2305 = vmatprep.mubr.bf16.mxu0 0
      %2306 = vmatmul.mubr.bf16.gmra.mrb[0].mxu0 %v2183
      %v2307 = vpop.f32.mrb[0].mxu0
      %v2308 = vadd.f32 0.0, %v2307
      %v2309 = vpop.f32.mrb[0].mxu0
      %v2310 = vpop.f32.mrb[0].mxu0
      %v2311 = vadd.f32 0.0, %v2310
      %v2312 = vpop.f32.mrb[0].mxu0
      %2313 = vmatprep.mubr.bf16.mxu0 0
      %2314 = vmatmul.mubr.bf16.gmra.mrb[0].mxu0 %v2186
      %v2315 = vpop.f32.mrb[0].mxu0
      %v2316 = vadd.f32 0.0, %v2315
      %v2317 = vpop.f32.mrb[0].mxu0
      %v2318 = vpop.f32.mrb[0].mxu0
      %v2319 = vadd.f32 0.0, %v2318
      %v2320 = vpop.f32.mrb[0].mxu0
      %2321 = vmatprep.mubr.bf16.mxu0 0
      %2322 = vmatmul.mubr.bf16.gmra.mrb[0].mxu0 %v2189
      %v2323 = vpop.f32.mrb[0].mxu0
      %v2324 = vadd.f32 0.0, %v2323
      %v2325 = vpop.f32.mrb[0].mxu0
      %v2326 = vpop.f32.mrb[0].mxu0
      %v2327 = vadd.f32 0.0, %v2326
      %v2328 = vpop.f32.mrb[0].mxu0
      %2329 = vmatprep.mubr.bf16.mxu0 0
      %2330 = vmatmul.mubr.bf16.gmra.mrb[0].mxu0 %v2192
      %v2331 = vpop.f32.mrb[0].mxu0
      %v2332 = vadd.f32 0.0, %v2331
      %v2333 = vpop.f32.mrb[0].mxu0
      %v2334 = vpop.f32.mrb[0].mxu0
      %v2335 = vadd.f32 0.0, %v2334
      %v2336 = vpop.f32.mrb[0].mxu0
      %2337 = vmatprep.mubr.bf16.mxu0 0
      %2338 = vmatmul.mubr.bf16.gmra.mrb[0].mxu0 %v2195
      %v2339 = vpop.f32.mrb[0].mxu0
      %v2340 = vadd.f32 0.0, %v2339
      %v2341 = vpop.f32.mrb[0].mxu0
      %v2342 = vpop.f32.mrb[0].mxu0
      %v2343 = vadd.f32 0.0, %v2342
      %v2344 = vpop.f32.mrb[0].mxu0
      %2345 = vmatprep.mubr.bf16.mxu0 0
      %2346 = vmatmul.mubr.bf16.gmra.mrb[0].mxu0 %v2198
      %v2347 = vpop.f32.mrb[0].mxu0
      %v2348 = vadd.f32 0.0, %v2347
      %v2349 = vpop.f32.mrb[0].mxu0
      %v2350 = vpop.f32.mrb[0].mxu0
      %v2351 = vadd.f32 0.0, %v2350
      %v2352 = vpop.f32.mrb[0].mxu0
      %2353 = vmatprep.mubr.bf16.mxu0 0
      %2354 = vmatmul.mubr.bf16.gmra.mrb[0].mxu0 %v2201
      %v2355 = vpop.f32.mrb[0].mxu0
      %v2356 = vadd.f32 0.0, %v2355
      %v2357 = vpop.f32.mrb[0].mxu0
      %v2358 = vpop.f32.mrb[0].mxu0
      %v2359 = vadd.f32 0.0, %v2358
      %v2360 = vpop.f32.mrb[0].mxu0
      %2361 = vmatprep.mubr.bf16.mxu0 0
      %2362 = vmatmul.mubr.bf16.gmra.mrb[0].mxu0 %v2204
      %v2363 = vpop.f32.mrb[0].mxu0
      %v2364 = vadd.f32 0.0, %v2363
      %v2365 = vpop.f32.mrb[0].mxu0
      %v2366 = vpop.f32.mrb[0].mxu0
      %v2367 = vadd.f32 0.0, %v2366
      %v2368 = vpop.f32.mrb[0].mxu0
      %2369 = vdwg.mxu0
      %v2370 = vadd.f32 %v2075, %v2244
      %v2371 = vadd.f32 %v2076, %v2247
      %v2372 = vadd.f32 %v2077, %v2252
      %v2373 = vadd.f32 %v2078, %v2255
      %v2374 = vadd.f32 %v2079, %v2260
      %v2375 = vadd.f32 %v2080, %v2263
      %v2376 = vadd.f32 %v2081, %v2268
      %v2377 = vadd.f32 %v2082, %v2271
      %v2378 = vadd.f32 %v2083, %v2276
      %v2379 = vadd.f32 %v2084, %v2279
      %v2380 = vadd.f32 %v2085, %v2284
      %v2381 = vadd.f32 %v2086, %v2287
      %v2382 = vadd.f32 %v2087, %v2292
      %v2383 = vadd.f32 %v2088, %v2295
      %v2384 = vadd.f32 %v2089, %v2300
      %v2385 = vadd.f32 %v2090, %v2303
      %v2386 = vadd.f32 %v2091, %v2308
      %v2387 = vadd.f32 %v2092, %v2311
      %v2388 = vadd.f32 %v2093, %v2316
      %v2389 = vadd.f32 %v2094, %v2319
      %v2390 = vadd.f32 %v2095, %v2324
      %v2391 = vadd.f32 %v2096, %v2327
      %v2392 = vadd.f32 %v2097, %v2332
      %v2393 = vadd.f32 %v2098, %v2335
      %v2394 = vadd.f32 %v2099, %v2340
      %v2395 = vadd.f32 %v2100, %v2343
      %v2396 = vadd.f32 %v2101, %v2348
      %v2397 = vadd.f32 %v2102, %v2351
      %v2398 = vadd.f32 %v2103, %v2356
      %v2399 = vadd.f32 %v2104, %v2359
      %v2400 = vadd.f32 %v2105, %v2364
      %v2401 = vadd.f32 %v2106, %v2367
      %v2402 = vld [vmem:[%s2107 + $0x1] sm:$0xff]
      %v2403 = vld [vmem:[%s2107 + $0x9] sm:$0xff]
      %v2404 = vld [vmem:[%s2107 + $0x19] sm:$0xff]
      %v2405 = vld [vmem:[%s2107 + $0x21] sm:$0xff]
      %v2406 = vld [vmem:[%s2107 + $0x31] sm:$0xff]
      %v2407 = vld [vmem:[%s2107 + $0x39] sm:$0xff]
      %v2408 = vld [vmem:[%s2107 + $0x49] sm:$0xff]
      %v2409 = vld [vmem:[%s2107 + $0x51] sm:$0xff]
      %v2410 = vld [vmem:[%s2107 + $0x61] sm:$0xff]
      %v2411 = vld [vmem:[%s2107 + $0x69] sm:$0xff]
      %v2412 = vld [vmem:[%s2107 + $0x79] sm:$0xff]
      %v2413 = vld [vmem:[%s2107 + $0x81] sm:$0xff]
      %v2414 = vld [vmem:[%s2107 + $0x91] sm:$0xff]
      %v2415 = vld [vmem:[%s2107 + $0x99] sm:$0xff]
      %v2416 = vld [vmem:[%s2107 + $0xa9] sm:$0xff]
      %v2417 = vld [vmem:[%s2107 + $0xb1] sm:$0xff]
      %v2418 = vld [vmem:[%s2107 + $0xc1] sm:$0xff]
      %v2419 = vld [vmem:[%s2107 + $0xc9] sm:$0xff]
      %v2420 = vld [vmem:[%s2107 + $0xd9] sm:$0xff]
      %v2421 = vld [vmem:[%s2107 + $0xe1] sm:$0xff]
      %v2422 = vld [vmem:[%s2107 + $0xf1] sm:$0xff]
      %v2423 = vld [vmem:[%s2107 + $0xf9] sm:$0xff]
      %v2424 = vld [vmem:[%s2107 + $0x109] sm:$0xff]
      %v2425 = vld [vmem:[%s2107 + $0x111] sm:$0xff]
      %v2426 = vld [vmem:[%s2107 + $0x121] sm:$0xff]
      %v2427 = vld [vmem:[%s2107 + $0x129] sm:$0xff]
      %v2428 = vld [vmem:[%s2107 + $0x139] sm:$0xff]
      %v2429 = vld [vmem:[%s2107 + $0x141] sm:$0xff]
      %v2430 = vld [vmem:[%s2107 + $0x151] sm:$0xff]
      %v2431 = vld [vmem:[%s2107 + $0x159] sm:$0xff]
      %v2432 = vld [vmem:[%s2107 + $0x169] sm:$0xff]
      %v2433 = vld [vmem:[%s2107 + $0x171] sm:$0xff]
      %v2434 = vpack.c.bf16 %v2403, %v2402
      %v2435 = vpack.c.bf16 %v2405, %v2404
      %v2436 = vpack.c.bf16 %v2407, %v2406
      %v2437 = vpack.c.bf16 %v2409, %v2408
      %v2438 = vpack.c.bf16 %v2411, %v2410
      %v2439 = vpack.c.bf16 %v2413, %v2412
      %v2440 = vpack.c.bf16 %v2415, %v2414
      %v2441 = vpack.c.bf16 %v2417, %v2416
      %v2442 = vpack.c.bf16 %v2419, %v2418
      %v2443 = vpack.c.bf16 %v2421, %v2420
      %v2444 = vpack.c.bf16 %v2423, %v2422
      %v2445 = vpack.c.bf16 %v2425, %v2424
      %v2446 = vpack.c.bf16 %v2427, %v2426
      %v2447 = vpack.c.bf16 %v2429, %v2428
      %v2448 = vpack.c.bf16 %v2431, %v2430
      %v2449 = vpack.c.bf16 %v2433, %v2432
      %s2450 = scalar_lea.vmem %s3, 14
      %v2451 = vld [vmem:[%s2450] sm:$0x3]
      %v2453 = vsel %vm328, %v2434, 0
      %v2456 = vsel %vm328, %v2435, 0
      %v2459 = vsel %vm328, %v2436, 0
      %v2462 = vsel %vm328, %v2437, 0
      %v2465 = vsel %vm328, %v2438, 0
      %v2468 = vsel %vm328, %v2439, 0
      %v2471 = vsel %vm328, %v2440, 0
      %v2474 = vsel %vm328, %v2441, 0
      %v2477 = vsel %vm328, %v2442, 0
      %v2480 = vsel %vm328, %v2443, 0
      %v2483 = vsel %vm328, %v2444, 0
      %v2486 = vsel %vm328, %v2445, 0
      %v2489 = vsel %vm328, %v2446, 0
      %v2492 = vsel %vm328, %v2447, 0
      %v2495 = vsel %vm328, %v2448, 0
      %v2498 = vsel %vm328, %v2449, 0
      %v2501 = vsel %vm554, %v2451, 0
      %2503 = vmatprep.subr.bf16.mxu0 0
      %2504 = vmatpush1.bf16.msra.mxu0 %v2501
      %2505 = vmatprep.subr.bf16.mxu0 0
      %2506 = vmatpush1.bf16.msra.mxu0 0
      %2507 = vmatprep.subr.bf16.mxu0 0
      %2508 = vmatpush1.bf16.msra.mxu0 0
      %2509 = vmatprep.subr.bf16.mxu0 0
      %2510 = vmatpush1.bf16.msra.mxu0 0
      %2511 = vmatprep.subr.bf16.mxu0 0
      %2512 = vmatpush1.bf16.msra.mxu0 0
      %2513 = vmatprep.subr.bf16.mxu0 0
      %2514 = vmatpush1.bf16.msra.mxu0 0
      %2515 = vmatprep.subr.bf16.mxu0 0
      %2516 = vmatpush1.bf16.msra.mxu0 0
      %2517 = vmatprep.subr.bf16.mxu0 0
      %2518 = vmatpush1.bf16.msra.mxu0 0
      %2519 = vmatprep.subr.bf16.mxu0 0
      %2520 = vmatpush1.bf16.msra.mxu0 0
      %2521 = vmatprep.subr.bf16.mxu0 0
      %2522 = vmatpush1.bf16.msra.mxu0 0
      %2523 = vmatprep.subr.bf16.mxu0 0
      %2524 = vmatpush1.bf16.msra.mxu0 0
      %2525 = vmatprep.subr.bf16.mxu0 0
      %2526 = vmatpush1.bf16.msra.mxu0 0
      %2527 = vmatprep.subr.bf16.mxu0 0
      %2528 = vmatpush1.bf16.msra.mxu0 0
      %2529 = vmatprep.subr.bf16.mxu0 0
      %2530 = vmatpush1.bf16.msra.mxu0 0
      %2531 = vmatprep.subr.bf16.mxu0 0
      %2532 = vmatpush1.bf16.msra.mxu0 0
      %2533 = vmatprep.subr.bf16.mxu0 0
      %2534 = vmatpush1.bf16.msra.mxu0 0
      %2535 = vmatprep.mubr.bf16.mxu0 0
      %2536 = vmatmul.mubr.bf16.gmra.mrb[0].mxu0 %v2453
      %v2537 = vpop.f32.mrb[0].mxu0
      %v2538 = vadd.f32 0.0, %v2537
      %v2539 = vpop.f32.mrb[0].mxu0
      %v2540 = vpop.f32.mrb[0].mxu0
      %v2541 = vadd.f32 0.0, %v2540
      %v2542 = vpop.f32.mrb[0].mxu0
      %2543 = vmatprep.mubr.bf16.mxu0 0
      %2544 = vmatmul.mubr.bf16.gmra.mrb[0].mxu0 %v2456
      %v2545 = vpop.f32.mrb[0].mxu0
      %v2546 = vadd.f32 0.0, %v2545
      %v2547 = vpop.f32.mrb[0].mxu0
      %v2548 = vpop.f32.mrb[0].mxu0
      %v2549 = vadd.f32 0.0, %v2548
      %v2550 = vpop.f32.mrb[0].mxu0
      %2551 = vmatprep.mubr.bf16.mxu0 0
      %2552 = vmatmul.mubr.bf16.gmra.mrb[0].mxu0 %v2459
      %v2553 = vpop.f32.mrb[0].mxu0
      %v2554 = vadd.f32 0.0, %v2553
      %v2555 = vpop.f32.mrb[0].mxu0
      %v2556 = vpop.f32.mrb[0].mxu0
      %v2557 = vadd.f32 0.0, %v2556
      %v2558 = vpop.f32.mrb[0].mxu0
      %2559 = vmatprep.mubr.bf16.mxu0 0
      %2560 = vmatmul.mubr.bf16.gmra.mrb[0].mxu0 %v2462
      %v2561 = vpop.f32.mrb[0].mxu0
      %v2562 = vadd.f32 0.0, %v2561
      %v2563 = vpop.f32.mrb[0].mxu0
      %v2564 = vpop.f32.mrb[0].mxu0
      %v2565 = vadd.f32 0.0, %v2564
      %v2566 = vpop.f32.mrb[0].mxu0
      %2567 = vmatprep.mubr.bf16.mxu0 0
      %2568 = vmatmul.mubr.bf16.gmra.mrb[0].mxu0 %v2465
      %v2569 = vpop.f32.mrb[0].mxu0
      %v2570 = vadd.f32 0.0, %v2569
      %v2571 = vpop.f32.mrb[0].mxu0
      %v2572 = vpop.f32.mrb[0].mxu0
      %v2573 = vadd.f32 0.0, %v2572
      %v2574 = vpop.f32.mrb[0].mxu0
      %2575 = vmatprep.mubr.bf16.mxu0 0
      %2576 = vmatmul.mubr.bf16.gmra.mrb[0].mxu0 %v2468
      %v2577 = vpop.f32.mrb[0].mxu0
      %v2578 = vadd.f32 0.0, %v2577
      %v2579 = vpop.f32.mrb[0].mxu0
      %v2580 = vpop.f32.mrb[0].mxu0
      %v2581 = vadd.f32 0.0, %v2580
      %v2582 = vpop.f32.mrb[0].mxu0
      %2583 = vmatprep.mubr.bf16.mxu0 0
      %2584 = vmatmul.mubr.bf16.gmra.mrb[0].mxu0 %v2471
      %v2585 = vpop.f32.mrb[0].mxu0
      %v2586 = vadd.f32 0.0, %v2585
      %v2587 = vpop.f32.mrb[0].mxu0
      %v2588 = vpop.f32.mrb[0].mxu0
      %v2589 = vadd.f32 0.0, %v2588
      %v2590 = vpop.f32.mrb[0].mxu0
      %2591 = vmatprep.mubr.bf16.mxu0 0
      %2592 = vmatmul.mubr.bf16.gmra.mrb[0].mxu0 %v2474
      %v2593 = vpop.f32.mrb[0].mxu0
      %v2594 = vadd.f32 0.0, %v2593
      %v2595 = vpop.f32.mrb[0].mxu0
      %v2596 = vpop.f32.mrb[0].mxu0
      %v2597 = vadd.f32 0.0, %v2596
      %v2598 = vpop.f32.mrb[0].mxu0
      %2599 = vmatprep.mubr.bf16.mxu0 0
      %2600 = vmatmul.mubr.bf16.gmra.mrb[0].mxu0 %v2477
      %v2601 = vpop.f32.mrb[0].mxu0
      %v2602 = vadd.f32 0.0, %v2601
      %v2603 = vpop.f32.mrb[0].mxu0
      %v2604 = vpop.f32.mrb[0].mxu0
      %v2605 = vadd.f32 0.0, %v2604
      %v2606 = vpop.f32.mrb[0].mxu0
      %2607 = vmatprep.mubr.bf16.mxu0 0
      %2608 = vmatmul.mubr.bf16.gmra.mrb[0].mxu0 %v2480
      %v2609 = vpop.f32.mrb[0].mxu0
      %v2610 = vadd.f32 0.0, %v2609
      %v2611 = vpop.f32.mrb[0].mxu0
      %v2612 = vpop.f32.mrb[0].mxu0
      %v2613 = vadd.f32 0.0, %v2612
      %v2614 = vpop.f32.mrb[0].mxu0
      %2615 = vmatprep.mubr.bf16.mxu0 0
      %2616 = vmatmul.mubr.bf16.gmra.mrb[0].mxu0 %v2483
      %v2617 = vpop.f32.mrb[0].mxu0
      %v2618 = vadd.f32 0.0, %v2617
      %v2619 = vpop.f32.mrb[0].mxu0
      %v2620 = vpop.f32.mrb[0].mxu0
      %v2621 = vadd.f32 0.0, %v2620
      %v2622 = vpop.f32.mrb[0].mxu0
      %2623 = vmatprep.mubr.bf16.mxu0 0
      %2624 = vmatmul.mubr.bf16.gmra.mrb[0].mxu0 %v2486
      %v2625 = vpop.f32.mrb[0].mxu0
      %v2626 = vadd.f32 0.0, %v2625
      %v2627 = vpop.f32.mrb[0].mxu0
      %v2628 = vpop.f32.mrb[0].mxu0
      %v2629 = vadd.f32 0.0, %v2628
      %v2630 = vpop.f32.mrb[0].mxu0
      %2631 = vmatprep.mubr.bf16.mxu0 0
      %2632 = vmatmul.mubr.bf16.gmra.mrb[0].mxu0 %v2489
      %v2633 = vpop.f32.mrb[0].mxu0
      %v2634 = vadd.f32 0.0, %v2633
      %v2635 = vpop.f32.mrb[0].mxu0
      %v2636 = vpop.f32.mrb[0].mxu0
      %v2637 = vadd.f32 0.0, %v2636
      %v2638 = vpop.f32.mrb[0].mxu0
      %2639 = vmatprep.mubr.bf16.mxu0 0
      %2640 = vmatmul.mubr.bf16.gmra.mrb[0].mxu0 %v2492
      %v2641 = vpop.f32.mrb[0].mxu0
      %v2642 = vadd.f32 0.0, %v2641
      %v2643 = vpop.f32.mrb[0].mxu0
      %v2644 = vpop.f32.mrb[0].mxu0
      %v2645 = vadd.f32 0.0, %v2644
      %v2646 = vpop.f32.mrb[0].mxu0
      %2647 = vmatprep.mubr.bf16.mxu0 0
      %2648 = vmatmul.mubr.bf16.gmra.mrb[0].mxu0 %v2495
      %v2649 = vpop.f32.mrb[0].mxu0
      %v2650 = vadd.f32 0.0, %v2649
      %v2651 = vpop.f32.mrb[0].mxu0
      %v2652 = vpop.f32.mrb[0].mxu0
      %v2653 = vadd.f32 0.0, %v2652
      %v2654 = vpop.f32.mrb[0].mxu0
      %2655 = vmatprep.mubr.bf16.mxu0 0
      %2656 = vmatmul.mubr.bf16.gmra.mrb[0].mxu0 %v2498
      %v2657 = vpop.f32.mrb[0].mxu0
      %v2658 = vadd.f32 0.0, %v2657
      %v2659 = vpop.f32.mrb[0].mxu0
      %v2660 = vpop.f32.mrb[0].mxu0
      %v2661 = vadd.f32 0.0, %v2660
      %v2662 = vpop.f32.mrb[0].mxu0
      %2663 = vdwg.mxu0
      %v2664 = vadd.f32 %v2370, %v2538
      %v2665 = vadd.f32 %v2371, %v2541
      %v2666 = vadd.f32 %v2372, %v2546
      %v2667 = vadd.f32 %v2373, %v2549
      %v2668 = vadd.f32 %v2374, %v2554
      %v2669 = vadd.f32 %v2375, %v2557
      %v2670 = vadd.f32 %v2376, %v2562
      %v2671 = vadd.f32 %v2377, %v2565
      %v2672 = vadd.f32 %v2378, %v2570
      %v2673 = vadd.f32 %v2379, %v2573
      %v2674 = vadd.f32 %v2380, %v2578
      %v2675 = vadd.f32 %v2381, %v2581
      %v2676 = vadd.f32 %v2382, %v2586
      %v2677 = vadd.f32 %v2383, %v2589
      %v2678 = vadd.f32 %v2384, %v2594
      %v2679 = vadd.f32 %v2385, %v2597
      %v2680 = vadd.f32 %v2386, %v2602
      %v2681 = vadd.f32 %v2387, %v2605
      %v2682 = vadd.f32 %v2388, %v2610
      %v2683 = vadd.f32 %v2389, %v2613
      %v2684 = vadd.f32 %v2390, %v2618
      %v2685 = vadd.f32 %v2391, %v2621
      %v2686 = vadd.f32 %v2392, %v2626
      %v2687 = vadd.f32 %v2393, %v2629
      %v2688 = vadd.f32 %v2394, %v2634
      %v2689 = vadd.f32 %v2395, %v2637
      %v2690 = vadd.f32 %v2396, %v2642
      %v2691 = vadd.f32 %v2397, %v2645
      %v2692 = vadd.f32 %v2398, %v2650
      %v2693 = vadd.f32 %v2399, %v2653
      %v2694 = vadd.f32 %v2400, %v2658
      %v2695 = vadd.f32 %v2401, %v2661
      %v2696 = vld [vmem:[%s2107 + $0x2] sm:$0xff]
      %v2697 = vld [vmem:[%s2107 + $0xa] sm:$0xff]
      %v2698 = vld [vmem:[%s2107 + $0x1a] sm:$0xff]
      %v2699 = vld [vmem:[%s2107 + $0x22] sm:$0xff]
      %v2700 = vld [vmem:[%s2107 + $0x32] sm:$0xff]
      %v2701 = vld [vmem:[%s2107 + $0x3a] sm:$0xff]
      %v2702 = vld [vmem:[%s2107 + $0x4a] sm:$0xff]
      %v2703 = vld [vmem:[%s2107 + $0x52] sm:$0xff]
      %v2704 = vld [vmem:[%s2107 + $0x62] sm:$0xff]
      %v2705 = vld [vmem:[%s2107 + $0x6a] sm:$0xff]
      %v2706 = vld [vmem:[%s2107 + $0x7a] sm:$0xff]
      %v2707 = vld [vmem:[%s2107 + $0x82] sm:$0xff]
      %v2708 = vld [vmem:[%s2107 + $0x92] sm:$0xff]
      %v2709 = vld [vmem:[%s2107 + $0x9a] sm:$0xff]
      %v2710 = vld [vmem:[%s2107 + $0xaa] sm:$0xff]
      %v2711 = vld [vmem:[%s2107 + $0xb2] sm:$0xff]
      %v2712 = vld [vmem:[%s2107 + $0xc2] sm:$0xff]
      %v2713 = vld [vmem:[%s2107 + $0xca] sm:$0xff]
      %v2714 = vld [vmem:[%s2107 + $0xda] sm:$0xff]
      %v2715 = vld [vmem:[%s2107 + $0xe2] sm:$0xff]
      %v2716 = vld [vmem:[%s2107 + $0xf2] sm:$0xff]
      %v2717 = vld [vmem:[%s2107 + $0xfa] sm:$0xff]
      %v2718 = vld [vmem:[%s2107 + $0x10a] sm:$0xff]
      %v2719 = vld [vmem:[%s2107 + $0x112] sm:$0xff]
      %v2720 = vld [vmem:[%s2107 + $0x122] sm:$0xff]
      %v2721 = vld [vmem:[%s2107 + $0x12a] sm:$0xff]
      %v2722 = vld [vmem:[%s2107 + $0x13a] sm:$0xff]
      %v2723 = vld [vmem:[%s2107 + $0x142] sm:$0xff]
      %v2724 = vld [vmem:[%s2107 + $0x152] sm:$0xff]
      %v2725 = vld [vmem:[%s2107 + $0x15a] sm:$0xff]
      %v2726 = vld [vmem:[%s2107 + $0x16a] sm:$0xff]
      %v2727 = vld [vmem:[%s2107 + $0x172] sm:$0xff]
      %v2728 = vpack.c.bf16 %v2697, %v2696
      %v2729 = vpack.c.bf16 %v2699, %v2698
      %v2730 = vpack.c.bf16 %v2701, %v2700
      %v2731 = vpack.c.bf16 %v2703, %v2702
      %v2732 = vpack.c.bf16 %v2705, %v2704
      %v2733 = vpack.c.bf16 %v2707, %v2706
      %v2734 = vpack.c.bf16 %v2709, %v2708
      %v2735 = vpack.c.bf16 %v2711, %v2710
      %v2736 = vpack.c.bf16 %v2713, %v2712
      %v2737 = vpack.c.bf16 %v2715, %v2714
      %v2738 = vpack.c.bf16 %v2717, %v2716
      %v2739 = vpack.c.bf16 %v2719, %v2718
      %v2740 = vpack.c.bf16 %v2721, %v2720
      %v2741 = vpack.c.bf16 %v2723, %v2722
      %v2742 = vpack.c.bf16 %v2725, %v2724
      %v2743 = vpack.c.bf16 %v2727, %v2726
      %s2744 = scalar_lea.vmem %s3, 16
      %v2745 = vld [vmem:[%s2744] sm:$0x3]
      %v2747 = vsel %vm328, %v2728, 0
      %v2750 = vsel %vm328, %v2729, 0
      %v2753 = vsel %vm328, %v2730, 0
      %v2756 = vsel %vm328, %v2731, 0
      %v2759 = vsel %vm328, %v2732, 0
      %v2762 = vsel %vm328, %v2733, 0
      %v2765 = vsel %vm328, %v2734, 0
      %v2768 = vsel %vm328, %v2735, 0
      %v2771 = vsel %vm328, %v2736, 0
      %v2774 = vsel %vm328, %v2737, 0
      %v2777 = vsel %vm328, %v2738, 0
      %v2780 = vsel %vm328, %v2739, 0
      %v2783 = vsel %vm328, %v2740, 0
      %v2786 = vsel %vm328, %v2741, 0
      %v2789 = vsel %vm328, %v2742, 0
      %v2792 = vsel %vm328, %v2743, 0
      %v2795 = vsel %vm554, %v2745, 0
      %2797 = vmatprep.subr.bf16.mxu0 0
      %2798 = vmatpush1.bf16.msra.mxu0 %v2795
      %2799 = vmatprep.subr.bf16.mxu0 0
      %2800 = vmatpush1.bf16.msra.mxu0 0
      %2801 = vmatprep.subr.bf16.mxu0 0
      %2802 = vmatpush1.bf16.msra.mxu0 0
      %2803 = vmatprep.subr.bf16.mxu0 0
      %2804 = vmatpush1.bf16.msra.mxu0 0
      %2805 = vmatprep.subr.bf16.mxu0 0
      %2806 = vmatpush1.bf16.msra.mxu0 0
      %2807 = vmatprep.subr.bf16.mxu0 0
      %2808 = vmatpush1.bf16.msra.mxu0 0
      %2809 = vmatprep.subr.bf16.mxu0 0
      %2810 = vmatpush1.bf16.msra.mxu0 0
      %2811 = vmatprep.subr.bf16.mxu0 0
      %2812 = vmatpush1.bf16.msra.mxu0 0
      %2813 = vmatprep.subr.bf16.mxu0 0
      %2814 = vmatpush1.bf16.msra.mxu0 0
      %2815 = vmatprep.subr.bf16.mxu0 0
      %2816 = vmatpush1.bf16.msra.mxu0 0
      %2817 = vmatprep.subr.bf16.mxu0 0
      %2818 = vmatpush1.bf16.msra.mxu0 0
      %2819 = vmatprep.subr.bf16.mxu0 0
      %2820 = vmatpush1.bf16.msra.mxu0 0
      %2821 = vmatprep.subr.bf16.mxu0 0
      %2822 = vmatpush1.bf16.msra.mxu0 0
      %2823 = vmatprep.subr.bf16.mxu0 0
      %2824 = vmatpush1.bf16.msra.mxu0 0
      %2825 = vmatprep.subr.bf16.mxu0 0
      %2826 = vmatpush1.bf16.msra.mxu0 0
      %2827 = vmatprep.subr.bf16.mxu0 0
      %2828 = vmatpush1.bf16.msra.mxu0 0
      %2829 = vmatprep.mubr.bf16.mxu0 0
      %2830 = vmatmul.mubr.bf16.gmra.mrb[0].mxu0 %v2747
      %v2831 = vpop.f32.mrb[0].mxu0
      %v2832 = vadd.f32 0.0, %v2831
      %v2833 = vpop.f32.mrb[0].mxu0
      %v2834 = vpop.f32.mrb[0].mxu0
      %v2835 = vadd.f32 0.0, %v2834
      %v2836 = vpop.f32.mrb[0].mxu0
      %2837 = vmatprep.mubr.bf16.mxu0 0
      %2838 = vmatmul.mubr.bf16.gmra.mrb[0].mxu0 %v2750
      %v2839 = vpop.f32.mrb[0].mxu0
      %v2840 = vadd.f32 0.0, %v2839
      %v2841 = vpop.f32.mrb[0].mxu0
      %v2842 = vpop.f32.mrb[0].mxu0
      %v2843 = vadd.f32 0.0, %v2842
      %v2844 = vpop.f32.mrb[0].mxu0
      %2845 = vmatprep.mubr.bf16.mxu0 0
      %2846 = vmatmul.mubr.bf16.gmra.mrb[0].mxu0 %v2753
      %v2847 = vpop.f32.mrb[0].mxu0
      %v2848 = vadd.f32 0.0, %v2847
      %v2849 = vpop.f32.mrb[0].mxu0
      %v2850 = vpop.f32.mrb[0].mxu0
      %v2851 = vadd.f32 0.0, %v2850
      %v2852 = vpop.f32.mrb[0].mxu0
      %2853 = vmatprep.mubr.bf16.mxu0 0
      %2854 = vmatmul.mubr.bf16.gmra.mrb[0].mxu0 %v2756
      %v2855 = vpop.f32.mrb[0].mxu0
      %v2856 = vadd.f32 0.0, %v2855
      %v2857 = vpop.f32.mrb[0].mxu0
      %v2858 = vpop.f32.mrb[0].mxu0
      %v2859 = vadd.f32 0.0, %v2858
      %v2860 = vpop.f32.mrb[0].mxu0
      %2861 = vmatprep.mubr.bf16.mxu0 0
      %2862 = vmatmul.mubr.bf16.gmra.mrb[0].mxu0 %v2759
      %v2863 = vpop.f32.mrb[0].mxu0
      %v2864 = vadd.f32 0.0, %v2863
      %v2865 = vpop.f32.mrb[0].mxu0
      %v2866 = vpop.f32.mrb[0].mxu0
      %v2867 = vadd.f32 0.0, %v2866
      %v2868 = vpop.f32.mrb[0].mxu0
      %2869 = vmatprep.mubr.bf16.mxu0 0
      %2870 = vmatmul.mubr.bf16.gmra.mrb[0].mxu0 %v2762
      %v2871 = vpop.f32.mrb[0].mxu0
      %v2872 = vadd.f32 0.0, %v2871
      %v2873 = vpop.f32.mrb[0].mxu0
      %v2874 = vpop.f32.mrb[0].mxu0
      %v2875 = vadd.f32 0.0, %v2874
      %v2876 = vpop.f32.mrb[0].mxu0
      %2877 = vmatprep.mubr.bf16.mxu0 0
      %2878 = vmatmul.mubr.bf16.gmra.mrb[0].mxu0 %v2765
      %v2879 = vpop.f32.mrb[0].mxu0
      %v2880 = vadd.f32 0.0, %v2879
      %v2881 = vpop.f32.mrb[0].mxu0
      %v2882 = vpop.f32.mrb[0].mxu0
      %v2883 = vadd.f32 0.0, %v2882
      %v2884 = vpop.f32.mrb[0].mxu0
      %2885 = vmatprep.mubr.bf16.mxu0 0
      %2886 = vmatmul.mubr.bf16.gmra.mrb[0].mxu0 %v2768
      %v2887 = vpop.f32.mrb[0].mxu0
      %v2888 = vadd.f32 0.0, %v2887
      %v2889 = vpop.f32.mrb[0].mxu0
      %v2890 = vpop.f32.mrb[0].mxu0
      %v2891 = vadd.f32 0.0, %v2890
      %v2892 = vpop.f32.mrb[0].mxu0
      %2893 = vmatprep.mubr.bf16.mxu0 0
      %2894 = vmatmul.mubr.bf16.gmra.mrb[0].mxu0 %v2771
      %v2895 = vpop.f32.mrb[0].mxu0
      %v2896 = vadd.f32 0.0, %v2895
      %v2897 = vpop.f32.mrb[0].mxu0
      %v2898 = vpop.f32.mrb[0].mxu0
      %v2899 = vadd.f32 0.0, %v2898
      %v2900 = vpop.f32.mrb[0].mxu0
      %2901 = vmatprep.mubr.bf16.mxu0 0
      %2902 = vmatmul.mubr.bf16.gmra.mrb[0].mxu0 %v2774
      %v2903 = vpop.f32.mrb[0].mxu0
      %v2904 = vadd.f32 0.0, %v2903
      %v2905 = vpop.f32.mrb[0].mxu0
      %v2906 = vpop.f32.mrb[0].mxu0
      %v2907 = vadd.f32 0.0, %v2906
      %v2908 = vpop.f32.mrb[0].mxu0
      %2909 = vmatprep.mubr.bf16.mxu0 0
      %2910 = vmatmul.mubr.bf16.gmra.mrb[0].mxu0 %v2777
      %v2911 = vpop.f32.mrb[0].mxu0
      %v2912 = vadd.f32 0.0, %v2911
      %v2913 = vpop.f32.mrb[0].mxu0
      %v2914 = vpop.f32.mrb[0].mxu0
      %v2915 = vadd.f32 0.0, %v2914
      %v2916 = vpop.f32.mrb[0].mxu0
      %2917 = vmatprep.mubr.bf16.mxu0 0
      %2918 = vmatmul.mubr.bf16.gmra.mrb[0].mxu0 %v2780
      %v2919 = vpop.f32.mrb[0].mxu0
      %v2920 = vadd.f32 0.0, %v2919
      %v2921 = vpop.f32.mrb[0].mxu0
      %v2922 = vpop.f32.mrb[0].mxu0
      %v2923 = vadd.f32 0.0, %v2922
      %v2924 = vpop.f32.mrb[0].mxu0
      %2925 = vmatprep.mubr.bf16.mxu0 0
      %2926 = vmatmul.mubr.bf16.gmra.mrb[0].mxu0 %v2783
      %v2927 = vpop.f32.mrb[0].mxu0
      %v2928 = vadd.f32 0.0, %v2927
      %v2929 = vpop.f32.mrb[0].mxu0
      %v2930 = vpop.f32.mrb[0].mxu0
      %v2931 = vadd.f32 0.0, %v2930
      %v2932 = vpop.f32.mrb[0].mxu0
      %2933 = vmatprep.mubr.bf16.mxu0 0
      %2934 = vmatmul.mubr.bf16.gmra.mrb[0].mxu0 %v2786
      %v2935 = vpop.f32.mrb[0].mxu0
      %v2936 = vadd.f32 0.0, %v2935
      %v2937 = vpop.f32.mrb[0].mxu0
      %v2938 = vpop.f32.mrb[0].mxu0
      %v2939 = vadd.f32 0.0, %v2938
      %v2940 = vpop.f32.mrb[0].mxu0
      %2941 = vmatprep.mubr.bf16.mxu0 0
      %2942 = vmatmul.mubr.bf16.gmra.mrb[0].mxu0 %v2789
      %v2943 = vpop.f32.mrb[0].mxu0
      %v2944 = vadd.f32 0.0, %v2943
      %v2945 = vpop.f32.mrb[0].mxu0
      %v2946 = vpop.f32.mrb[0].mxu0
      %v2947 = vadd.f32 0.0, %v2946
      %v2948 = vpop.f32.mrb[0].mxu0
      %2949 = vmatprep.mubr.bf16.mxu0 0
      %2950 = vmatmul.mubr.bf16.gmra.mrb[0].mxu0 %v2792
      %v2951 = vpop.f32.mrb[0].mxu0
      %v2952 = vadd.f32 0.0, %v2951
      %v2953 = vpop.f32.mrb[0].mxu0
      %v2954 = vpop.f32.mrb[0].mxu0
      %v2955 = vadd.f32 0.0, %v2954
      %v2956 = vpop.f32.mrb[0].mxu0
      %2957 = vdwg.mxu0
      %v2958 = vadd.f32 %v2664, %v2832
      %v2959 = vadd.f32 %v2665, %v2835
      %v2960 = vadd.f32 %v2666, %v2840
      %v2961 = vadd.f32 %v2667, %v2843
      %v2962 = vadd.f32 %v2668, %v2848
      %v2963 = vadd.f32 %v2669, %v2851
      %v2964 = vadd.f32 %v2670, %v2856
      %v2965 = vadd.f32 %v2671, %v2859
      %v2966 = vadd.f32 %v2672, %v2864
      %v2967 = vadd.f32 %v2673, %v2867
      %v2968 = vadd.f32 %v2674, %v2872
      %v2969 = vadd.f32 %v2675, %v2875
      %v2970 = vadd.f32 %v2676, %v2880
      %v2971 = vadd.f32 %v2677, %v2883
      %v2972 = vadd.f32 %v2678, %v2888
      %v2973 = vadd.f32 %v2679, %v2891
      %v2974 = vadd.f32 %v2680, %v2896
      %v2975 = vadd.f32 %v2681, %v2899
      %v2976 = vadd.f32 %v2682, %v2904
      %v2977 = vadd.f32 %v2683, %v2907
      %v2978 = vadd.f32 %v2684, %v2912
      %v2979 = vadd.f32 %v2685, %v2915
      %v2980 = vadd.f32 %v2686, %v2920
      %v2981 = vadd.f32 %v2687, %v2923
      %v2982 = vadd.f32 %v2688, %v2928
      %v2983 = vadd.f32 %v2689, %v2931
      %v2984 = vadd.f32 %v2690, %v2936
      %v2985 = vadd.f32 %v2691, %v2939
      %v2986 = vadd.f32 %v2692, %v2944
      %v2987 = vadd.f32 %v2693, %v2947
      %v2988 = vadd.f32 %v2694, %v2952
      %v2989 = vadd.f32 %v2695, %v2955
      %v2990 = vld [vmem:[%s4] sm:$0x1]
      %v2992 = vlaneseq
      %v2993 = vshrl.u32 %v2992, 7
      %v2994 = vsub.s32 0, %v2993
      %v2995 = vrot.slane %v2990, %v2994
      %v2997 = vadd.f32 %v2958, %v2995
      %v2998 = vadd.f32 %v2959, %v2995
      %v2999 = vadd.f32 %v2960, %v2995
      %v3000 = vadd.f32 %v2961, %v2995
      %v3001 = vadd.f32 %v2962, %v2995
      %v3002 = vadd.f32 %v2963, %v2995
      %v3003 = vadd.f32 %v2964, %v2995
      %v3004 = vadd.f32 %v2965, %v2995
      %v3005 = vadd.f32 %v2966, %v2995
      %v3006 = vadd.f32 %v2967, %v2995
      %v3007 = vadd.f32 %v2968, %v2995
      %v3008 = vadd.f32 %v2969, %v2995
      %v3009 = vadd.f32 %v2970, %v2995
      %v3010 = vadd.f32 %v2971, %v2995
      %v3011 = vadd.f32 %v2972, %v2995
      %v3012 = vadd.f32 %v2973, %v2995
      %v3013 = vadd.f32 %v2974, %v2995
      %v3014 = vadd.f32 %v2975, %v2995
      %v3015 = vadd.f32 %v2976, %v2995
      %v3016 = vadd.f32 %v2977, %v2995
      %v3017 = vadd.f32 %v2978, %v2995
      %v3018 = vadd.f32 %v2979, %v2995
      %v3019 = vadd.f32 %v2980, %v2995
      %v3020 = vadd.f32 %v2981, %v2995
      %v3021 = vadd.f32 %v2982, %v2995
      %v3022 = vadd.f32 %v2983, %v2995
      %v3023 = vadd.f32 %v2984, %v2995
      %v3024 = vadd.f32 %v2985, %v2995
      %v3025 = vadd.f32 %v2986, %v2995
      %v3026 = vadd.f32 %v2987, %v2995
      %v3027 = vadd.f32 %v2988, %v2995
      %v3028 = vadd.f32 %v2989, %v2995
      %v3029 = vsel %vm328, %v2997, 0.0
      %v3030 = vsel %vm328, %v2998, 0.0
      %v3031 = vadd.f32 %v3029, %v3030
      %v3032 = vsel %vm328, %v2999, 0.0
      %v3033 = vadd.f32 %v3031, %v3032
      %v3034 = vsel %vm328, %v3000, 0.0
      %v3035 = vadd.f32 %v3033, %v3034
      %v3036 = vsel %vm328, %v3001, 0.0
      %v3037 = vadd.f32 %v3035, %v3036
      %v3038 = vsel %vm328, %v3002, 0.0
      %v3039 = vadd.f32 %v3037, %v3038
      %v3040 = vsel %vm328, %v3003, 0.0
      %v3041 = vadd.f32 %v3039, %v3040
      %v3042 = vsel %vm328, %v3004, 0.0
      %v3043 = vadd.f32 %v3041, %v3042
      %v3044 = vsel %vm328, %v3005, 0.0
      %v3045 = vadd.f32 %v3043, %v3044
      %v3046 = vsel %vm328, %v3006, 0.0
      %v3047 = vadd.f32 %v3045, %v3046
      %v3048 = vsel %vm328, %v3007, 0.0
      %v3049 = vadd.f32 %v3047, %v3048
      %v3050 = vsel %vm328, %v3008, 0.0
      %v3051 = vadd.f32 %v3049, %v3050
      %v3052 = vsel %vm328, %v3009, 0.0
      %v3053 = vadd.f32 %v3051, %v3052
      %v3054 = vsel %vm328, %v3010, 0.0
      %v3055 = vadd.f32 %v3053, %v3054
      %v3056 = vsel %vm328, %v3011, 0.0
      %v3057 = vadd.f32 %v3055, %v3056
      %v3058 = vsel %vm328, %v3012, 0.0
      %v3059 = vadd.f32 %v3057, %v3058
      %v3060 = vsel %vm328, %v3013, 0.0
      %v3061 = vadd.f32 %v3059, %v3060
      %v3062 = vsel %vm328, %v3014, 0.0
      %v3063 = vadd.f32 %v3061, %v3062
      %v3064 = vsel %vm328, %v3015, 0.0
      %v3065 = vadd.f32 %v3063, %v3064
      %v3066 = vsel %vm328, %v3016, 0.0
      %v3067 = vadd.f32 %v3065, %v3066
      %v3068 = vsel %vm328, %v3017, 0.0
      %v3069 = vadd.f32 %v3067, %v3068
      %v3070 = vsel %vm328, %v3018, 0.0
      %v3071 = vadd.f32 %v3069, %v3070
      %v3072 = vsel %vm328, %v3019, 0.0
      %v3073 = vadd.f32 %v3071, %v3072
      %v3074 = vsel %vm328, %v3020, 0.0
      %v3075 = vadd.f32 %v3073, %v3074
      %v3076 = vsel %vm328, %v3021, 0.0
      %v3077 = vadd.f32 %v3075, %v3076
      %v3078 = vsel %vm328, %v3022, 0.0
      %v3079 = vadd.f32 %v3077, %v3078
      %v3080 = vsel %vm328, %v3023, 0.0
      %v3081 = vadd.f32 %v3079, %v3080
      %v3082 = vsel %vm328, %v3024, 0.0
      %v3083 = vadd.f32 %v3081, %v3082
      %v3084 = vsel %vm328, %v3025, 0.0
      %v3085 = vadd.f32 %v3083, %v3084
      %v3086 = vsel %vm328, %v3026, 0.0
      %v3087 = vadd.f32 %v3085, %v3086
      %v3088 = vsel %vm328, %v3027, 0.0
      %v3089 = vadd.f32 %v3087, %v3088
      %v3090 = vsel %vm328, %v3028, 0.0
      %v3091 = vadd.f32 %v3089, %v3090
      %v3092 = vrot.slane %v3091, 4
      %v3093 = vadd.f32 %v3091, %v3092
      %v3094 = vrot.slane %v3093, 2
      %v3095 = vadd.f32 %v3093, %v3094
      %v3096 = vrot.slane %v3095, 1
      %v3097 = vadd.f32 %v3095, %v3096
      %3098 = vst.msk [vmem:[%s262] sm:$0x1] %vm337, %v3097
      %v3099 = vmul.f32 %v2997, %v2997
      %v3100 = vmul.f32 %v2998, %v2998
      %v3101 = vmul.f32 %v2999, %v2999
      %v3102 = vmul.f32 %v3000, %v3000
      %v3103 = vmul.f32 %v3001, %v3001
      %v3104 = vmul.f32 %v3002, %v3002
      %v3105 = vmul.f32 %v3003, %v3003
      %v3106 = vmul.f32 %v3004, %v3004
      %v3107 = vmul.f32 %v3005, %v3005
      %v3108 = vmul.f32 %v3006, %v3006
      %v3109 = vmul.f32 %v3007, %v3007
      %v3110 = vmul.f32 %v3008, %v3008
      %v3111 = vmul.f32 %v3009, %v3009
      %v3112 = vmul.f32 %v3010, %v3010
      %v3113 = vmul.f32 %v3011, %v3011
      %v3114 = vmul.f32 %v3012, %v3012
      %v3115 = vmul.f32 %v3013, %v3013
      %v3116 = vmul.f32 %v3014, %v3014
      %v3117 = vmul.f32 %v3015, %v3015
      %v3118 = vmul.f32 %v3016, %v3016
      %v3119 = vmul.f32 %v3017, %v3017
      %v3120 = vmul.f32 %v3018, %v3018
      %v3121 = vmul.f32 %v3019, %v3019
      %v3122 = vmul.f32 %v3020, %v3020
      %v3123 = vmul.f32 %v3021, %v3021
      %v3124 = vmul.f32 %v3022, %v3022
      %v3125 = vmul.f32 %v3023, %v3023
      %v3126 = vmul.f32 %v3024, %v3024
      %v3127 = vmul.f32 %v3025, %v3025
      %v3128 = vmul.f32 %v3026, %v3026
      %v3129 = vmul.f32 %v3027, %v3027
      %v3130 = vmul.f32 %v3028, %v3028
      %v3131 = vsel %vm328, %v3099, 0.0
      %v3132 = vsel %vm328, %v3100, 0.0
      %v3133 = vadd.f32 %v3131, %v3132
      %v3134 = vsel %vm328, %v3101, 0.0
      %v3135 = vadd.f32 %v3133, %v3134
      %v3136 = vsel %vm328, %v3102, 0.0
      %v3137 = vadd.f32 %v3135, %v3136
      %v3138 = vsel %vm328, %v3103, 0.0
      %v3139 = vadd.f32 %v3137, %v3138
      %v3140 = vsel %vm328, %v3104, 0.0
      %v3141 = vadd.f32 %v3139, %v3140
      %v3142 = vsel %vm328, %v3105, 0.0
      %v3143 = vadd.f32 %v3141, %v3142
      %v3144 = vsel %vm328, %v3106, 0.0
      %v3145 = vadd.f32 %v3143, %v3144
      %v3146 = vsel %vm328, %v3107, 0.0
      %v3147 = vadd.f32 %v3145, %v3146
      %v3148 = vsel %vm328, %v3108, 0.0
      %v3149 = vadd.f32 %v3147, %v3148
      %v3150 = vsel %vm328, %v3109, 0.0
      %v3151 = vadd.f32 %v3149, %v3150
      %v3152 = vsel %vm328, %v3110, 0.0
      %v3153 = vadd.f32 %v3151, %v3152
      %v3154 = vsel %vm328, %v3111, 0.0
      %v3155 = vadd.f32 %v3153, %v3154
      %v3156 = vsel %vm328, %v3112, 0.0
      %v3157 = vadd.f32 %v3155, %v3156
      %v3158 = vsel %vm328, %v3113, 0.0
      %v3159 = vadd.f32 %v3157, %v3158
      %v3160 = vsel %vm328, %v3114, 0.0
      %v3161 = vadd.f32 %v3159, %v3160
      %v3162 = vsel %vm328, %v3115, 0.0
      %v3163 = vadd.f32 %v3161, %v3162
      %v3164 = vsel %vm328, %v3116, 0.0
      %v3165 = vadd.f32 %v3163, %v3164
      %v3166 = vsel %vm328, %v3117, 0.0
      %v3167 = vadd.f32 %v3165, %v3166
      %v3168 = vsel %vm328, %v3118, 0.0
      %v3169 = vadd.f32 %v3167, %v3168
      %v3170 = vsel %vm328, %v3119, 0.0
      %v3171 = vadd.f32 %v3169, %v3170
      %v3172 = vsel %vm328, %v3120, 0.0
      %v3173 = vadd.f32 %v3171, %v3172
      %v3174 = vsel %vm328, %v3121, 0.0
      %v3175 = vadd.f32 %v3173, %v3174
      %v3176 = vsel %vm328, %v3122, 0.0
      %v3177 = vadd.f32 %v3175, %v3176
      %v3178 = vsel %vm328, %v3123, 0.0
      %v3179 = vadd.f32 %v3177, %v3178
      %v3180 = vsel %vm328, %v3124, 0.0
      %v3181 = vadd.f32 %v3179, %v3180
      %v3182 = vsel %vm328, %v3125, 0.0
      %v3183 = vadd.f32 %v3181, %v3182
      %v3184 = vsel %vm328, %v3126, 0.0
      %v3185 = vadd.f32 %v3183, %v3184
      %v3186 = vsel %vm328, %v3127, 0.0
      %v3187 = vadd.f32 %v3185, %v3186
      %v3188 = vsel %vm328, %v3128, 0.0
      %v3189 = vadd.f32 %v3187, %v3188
      %v3190 = vsel %vm328, %v3129, 0.0
      %v3191 = vadd.f32 %v3189, %v3190
      %v3192 = vsel %vm328, %v3130, 0.0
      %v3193 = vadd.f32 %v3191, %v3192
      %v3194 = vrot.slane %v3193, 4
      %v3195 = vadd.f32 %v3193, %v3194
      %v3196 = vrot.slane %v3195, 2
      %v3197 = vadd.f32 %v3195, %v3196
      %v3198 = vrot.slane %v3197, 1
      %v3199 = vadd.f32 %v3197, %v3198
      %3200 = vst.msk [vmem:[%s262 + $0x1] sm:$0x1] %vm337, %v3199
      %v3201 = vpack.c.bf16 %v2998, %v2997
      %v3202 = vpack.c.bf16 %v3000, %v2999
      %v3203 = vpack.c.bf16 %v3002, %v3001
      %v3204 = vpack.c.bf16 %v3004, %v3003
      %v3205 = vpack.c.bf16 %v3006, %v3005
      %v3206 = vpack.c.bf16 %v3008, %v3007
      %v3207 = vpack.c.bf16 %v3010, %v3009
      %v3208 = vpack.c.bf16 %v3012, %v3011
      %v3209 = vpack.c.bf16 %v3014, %v3013
      %v3210 = vpack.c.bf16 %v3016, %v3015
      %v3211 = vpack.c.bf16 %v3018, %v3017
      %v3212 = vpack.c.bf16 %v3020, %v3019
      %v3213 = vpack.c.bf16 %v3022, %v3021
      %v3214 = vpack.c.bf16 %v3024, %v3023
      %v3215 = vpack.c.bf16 %v3026, %v3025
      %v3216 = vpack.c.bf16 %v3028, %v3027
      %v3233 = vunpack.c.l.b16 %v3201
      %v3234 = vunpack.c.h.b16 %v3201
      %v3235 = vunpack.c.l.b16 %v3202
      %v3236 = vunpack.c.h.b16 %v3202
      %v3237 = vunpack.c.l.b16 %v3203
      %v3238 = vunpack.c.h.b16 %v3203
      %v3239 = vunpack.c.l.b16 %v3204
      %v3240 = vunpack.c.h.b16 %v3204
      %v3241 = vunpack.c.l.b16 %v3205
      %v3242 = vunpack.c.h.b16 %v3205
      %v3243 = vunpack.c.l.b16 %v3206
      %v3244 = vunpack.c.h.b16 %v3206
      %v3245 = vunpack.c.l.b16 %v3207
      %v3246 = vunpack.c.h.b16 %v3207
      %v3247 = vunpack.c.l.b16 %v3208
      %v3248 = vunpack.c.h.b16 %v3208
      %v3249 = vunpack.c.l.b16 %v3209
      %v3250 = vunpack.c.h.b16 %v3209
      %v3251 = vunpack.c.l.b16 %v3210
      %v3252 = vunpack.c.h.b16 %v3210
      %v3253 = vunpack.c.l.b16 %v3211
      %v3254 = vunpack.c.h.b16 %v3211
      %v3255 = vunpack.c.l.b16 %v3212
      %v3256 = vunpack.c.h.b16 %v3212
      %v3257 = vunpack.c.l.b16 %v3213
      %v3258 = vunpack.c.h.b16 %v3213
      %v3259 = vunpack.c.l.b16 %v3214
      %v3260 = vunpack.c.h.b16 %v3214
      %v3261 = vunpack.c.l.b16 %v3215
      %v3262 = vunpack.c.h.b16 %v3215
      %v3263 = vunpack.c.l.b16 %v3216
      %v3264 = vunpack.c.h.b16 %v3216
      %v3265 = vpack.c.b16 %v3233, %v3233
      %v3266 = vpack.c.b16 %v3234, %v3234
      %v3267 = vpack.c.b16 %v3235, %v3235
      %v3268 = vpack.c.b16 %v3236, %v3236
      %v3269 = vpack.c.b16 %v3237, %v3237
      %v3270 = vpack.c.b16 %v3238, %v3238
      %v3271 = vpack.c.b16 %v3239, %v3239
      %v3272 = vpack.c.b16 %v3240, %v3240
      %v3273 = vpack.c.b16 %v3241, %v3241
      %v3274 = vpack.c.b16 %v3242, %v3242
      %v3275 = vpack.c.b16 %v3243, %v3243
      %v3276 = vpack.c.b16 %v3244, %v3244
      %v3277 = vpack.c.b16 %v3245, %v3245
      %v3278 = vpack.c.b16 %v3246, %v3246
      %v3279 = vpack.c.b16 %v3247, %v3247
      %v3280 = vpack.c.b16 %v3248, %v3248
      %v3281 = vpack.c.b16 %v3249, %v3249
      %v3282 = vpack.c.b16 %v3250, %v3250
      %v3283 = vpack.c.b16 %v3251, %v3251
      %v3284 = vpack.c.b16 %v3252, %v3252
      %v3285 = vpack.c.b16 %v3253, %v3253
      %v3286 = vpack.c.b16 %v3254, %v3254
      %v3287 = vpack.c.b16 %v3255, %v3255
      %v3288 = vpack.c.b16 %v3256, %v3256
      %v3289 = vpack.c.b16 %v3257, %v3257
      %v3290 = vpack.c.b16 %v3258, %v3258
      %v3291 = vpack.c.b16 %v3259, %v3259
      %v3292 = vpack.c.b16 %v3260, %v3260
      %v3293 = vpack.c.b16 %v3261, %v3261
      %v3294 = vpack.c.b16 %v3262, %v3262
      %v3295 = vpack.c.b16 %v3263, %v3263
      %v3296 = vpack.c.b16 %v3264, %v3264
      %vm3329 = vcmask 27648
      %3330 = vst.msk [vmem:[%s258] sm:$0xf] %vm3329, %v3265
      %3331 = vst.msk [vmem:[%s258 + $0x4] sm:$0xf] %vm3329, %v3266
      %3332 = vst.msk [vmem:[%s258 + $0x8] sm:$0xf] %vm3329, %v3267
      %3333 = vst.msk [vmem:[%s258 + $0xc] sm:$0xf] %vm3329, %v3268
      %3334 = vst.msk [vmem:[%s258 + $0x10] sm:$0xf] %vm3329, %v3269
      %3335 = vst.msk [vmem:[%s258 + $0x14] sm:$0xf] %vm3329, %v3270
      %3336 = vst.msk [vmem:[%s258 + $0x18] sm:$0xf] %vm3329, %v3271
      %3337 = vst.msk [vmem:[%s258 + $0x1c] sm:$0xf] %vm3329, %v3272
      %3338 = vst.msk [vmem:[%s258 + $0x20] sm:$0xf] %vm3329, %v3273
      %3339 = vst.msk [vmem:[%s258 + $0x24] sm:$0xf] %vm3329, %v3274
      %3340 = vst.msk [vmem:[%s258 + $0x28] sm:$0xf] %vm3329, %v3275
      %3341 = vst.msk [vmem:[%s258 + $0x2c] sm:$0xf] %vm3329, %v3276
      %3342 = vst.msk [vmem:[%s258 + $0x30] sm:$0xf] %vm3329, %v3277
      %3343 = vst.msk [vmem:[%s258 + $0x34] sm:$0xf] %vm3329, %v3278
      %3344 = vst.msk [vmem:[%s258 + $0x38] sm:$0xf] %vm3329, %v3279
      %3345 = vst.msk [vmem:[%s258 + $0x3c] sm:$0xf] %vm3329, %v3280
      %3346 = vst.msk [vmem:[%s258 + $0x40] sm:$0xf] %vm3329, %v3281
      %3347 = vst.msk [vmem:[%s258 + $0x44] sm:$0xf] %vm3329, %v3282
      %3348 = vst.msk [vmem:[%s258 + $0x48] sm:$0xf] %vm3329, %v3283
      %3349 = vst.msk [vmem:[%s258 + $0x4c] sm:$0xf] %vm3329, %v3284
      %3350 = vst.msk [vmem:[%s258 + $0x50] sm:$0xf] %vm3329, %v3285
      %3351 = vst.msk [vmem:[%s258 + $0x54] sm:$0xf] %vm3329, %v3286
      %3352 = vst.msk [vmem:[%s258 + $0x58] sm:$0xf] %vm3329, %v3287
      %3353 = vst.msk [vmem:[%s258 + $0x5c] sm:$0xf] %vm3329, %v3288
      %3354 = vst.msk [vmem:[%s258 + $0x60] sm:$0xf] %vm3329, %v3289
      %3355 = vst.msk [vmem:[%s258 + $0x64] sm:$0xf] %vm3329, %v3290
      %3356 = vst.msk [vmem:[%s258 + $0x68] sm:$0xf] %vm3329, %v3291
      %3357 = vst.msk [vmem:[%s258 + $0x6c] sm:$0xf] %vm3329, %v3292
      %3358 = vst.msk [vmem:[%s258 + $0x70] sm:$0xf] %vm3329, %v3293
      %3359 = vst.msk [vmem:[%s258 + $0x74] sm:$0xf] %vm3329, %v3294
      %3360 = vst.msk [vmem:[%s258 + $0x78] sm:$0xf] %vm3329, %v3295
      %3361 = vst.msk [vmem:[%s258 + $0x7c] sm:$0xf] %vm3329, %v3296
      %p3362 = scmp.lt.s32.totalorder %s18, 1
      %s3363 = scalar_select %p3362, %s18, 1
      %s3364 = smul.addr %s3363, 32
      %s3365 = smul.addr %s3364, 4
      %s3366 = scalar_lea.vmem %s5, %s3365
      %p3367 = scmp.lt.s32.totalorder %s18, 1
      %s3368 = scalar_select %p3367, %s18, 1
      %s3369 = smul.addr %s3368, 2
      %s3370 = scalar_lea.vmem %s6, %s3369
      // Predicated region
      $region41: #{residual_block.3} parent=39 // pred_check
        %p3371 = pneg %p146
      $region42: #{residual_block.3} parent=39 // pred_check_branch
        %3373 = sbr.rel (%p3371) target = $region44
      $region43: #{residual_block.3} parent=39 // pred_region
        _
      $region44: #{residual_block.3} parent=39 // pred_fallthru
        _
      // Predicated region
      $region45: #{residual_block.3} parent=39 // pred_check
        %p3374 = pneg %p172
      $region46: #{residual_block.3} parent=39 // pred_check_branch
        %3376 = sbr.rel (%p3374) target = $region48
      $region47: #{residual_block.3} parent=39 // pred_region
        _
      $region48: #{residual_block.3} parent=39 // pred_fallthru
        _
    $region40: #{residual_block.3} parent=5 // pred_fallthru
      _
    %p3377 = scmp.le.s32.totalorder 2, %s13
    // Predicated region
    $region49: #{residual_block.3} parent=5 // pred_check
      %p3378 = pneg %p3377
    $region50: #{residual_block.3} parent=5 // pred_check_branch
      %3380 = sbr.rel (%p3378) target = $region52
    $region51: #{residual_block.3} parent=5 // pred_region
      %s3381 = ssub.s32 %s13, 2
      // Predicated region
      $region53: #{residual_block.3} parent=51 // pred_check
        %p3382 = pneg %p152
      $region54: #{residual_block.3} parent=51 // pred_check_branch
        %3384 = sbr.rel (%p3382) target = $region56
      $region55: #{residual_block.3} parent=51 // pred_region
        %p3385 = scmp.lt.s32.totalorder %s19, 1
        %s3386 = scalar_select %p3385, %s19, 1
        %s3387 = smul.addr %s3386, 32
        %s3388 = smul.addr %s3387, 4
        %s3389 = scalar_lea.vmem %s5, %s3388
      $region56: #{residual_block.3} parent=51 // pred_fallthru
        _
      // Predicated region
      $region57: #{residual_block.3} parent=51 // pred_check
        %p3390 = pneg %p178
      $region58: #{residual_block.3} parent=51 // pred_check_branch
        %3392 = sbr.rel (%p3390) target = $region60
      $region59: #{residual_block.3} parent=51 // pred_region
        %p3393 = scmp.lt.s32.totalorder %s19, 1
        %s3394 = scalar_select %p3393, %s19, 1
        %s3395 = smul.addr %s3394, 2
        %s3396 = scalar_lea.vmem %s6, %s3395
      $region60: #{residual_block.3} parent=51 // pred_fallthru
        _
    $region52: #{residual_block.3} parent=5 // pred_fallthru
      _
  $region6: #{residual_block.3} parent=0 // loop_footer
    %s17 = sadd.s32 1, %s13
  $region7: #{residual_block.3} parent=0 // loop_footer_branch
    %12 = sbr.rel target = $region3
  $region8: #{residual_block.3} parent=0 // loop_exit
    _

// kernel: residual_block.4
$region0: #{residual_block.4}
  #allocation0 [shape = 'u32[]', space=smem, size = 0x4, offset = 0x4, fixed_abs, tag = 'smem constant byte address 0x4 - core index']
  #allocation1 [shape = 'u32[144,128]{1,0:T(1,128)}', space=vmem, size = 0x12000, scoped, tag = 'internal scratch']
  #allocation2 [shape = 'f32[18,18,4]{2,1,0:T(8,128)}', space=vmem, size = 0x36000, scoped, tag = 'scratch operand']
  %s0 = inlined_call_operand.vmem [shape: bf16[2,256,4], index: 0, kind: input, shape index: {}]
  %s1 = inlined_call_operand.vmem [shape: f32[1,4], index: 1, kind: input, shape index: {}]
  %s2 = inlined_call_operand.vmem [shape: f32[1,4], index: 2, kind: input, shape index: {}]
  %s3 = inlined_call_operand.vmem [shape: bf16[9,4,4], index: 3, kind: input, shape index: {}]
  %s4 = inlined_call_operand.vmem [shape: f32[1,4], index: 4, kind: input, shape index: {}]
  %s5 = inlined_call_operand.vmem [shape: bf16[2,256,4], index: 5, kind: output, shape index: {0}]
  %s6 = inlined_call_operand.vmem [shape: f32[2,2,4], index: 6, kind: output, shape index: {1}]
  %7 = xla_tuple %s5, %s6
  %s8 = sld [smem:[#allocation0]]
  $region61: #{residual_block.4} parent=0
    _
  %s10 = ssub.s32 1, %s8
  %s11 = scalar_select 0, %s10, %s8
  loop: start=0, step=1, limit=4
  $region2: #{residual_block.4} parent=0 // loop_pre_header
    _
  $region3: #{residual_block.4} parent=0 // loop_header
    %s13 = sphi 0, %s17
    %p14 = scmp.ge.s32.totalorder %s13, 4
    %s23 = sphi 0, %s25
    %s26 = sphi 0, %s23
    %s27 = sphi 0, %s26
    %s43 = sphi 0, %s27
    %s47 = sphi 0, %s47
    %s49 = sphi 0, %s47
    %s50 = sphi 0, %s49
    %s64 = sphi 0, %s50
    %s68 = sphi 0, %s68
    %s70 = sphi 0, %s68
    %s71 = sphi 0, %s70
    %s85 = sphi 0, %s71
    %s89 = sphi 0, %s89
    %s91 = sphi 0, %s89
    %s92 = sphi 0, %s91
    %s106 = sphi 0, %s92
    %s110 = sphi 0, %s110
    %s112 = sphi 0, %s110
    %s113 = sphi 0, %s112
    %s127 = sphi 0, %s113
    %s133 = sphi 0, %s135
    %s136 = sphi 0, %s133
    %s137 = sphi 0, %s136
    %s153 = sphi 0, %s137
    %s159 = sphi 0, %s161
    %s162 = sphi 0, %s159
    %s163 = sphi 0, %s162
    %s179 = sphi 0, %s163
  $region4: #{residual_block.4} parent=0 // loop_header_branch
    %16 = sbr.rel (%p14) target = $region8
  $region5: #{residual_block.4} parent=0 // loop_body
    %s18 = ssub.s32 %s13, 1
    %s19 = ssub.s32 %s13, 2
    %s20 = sadd.s32 %s13, 1
    %s21 = ssub.s32 %s13, %s20
    %p22 = scmp.eq.s32.totalorder %s21, 0
    %s24 = sadd.s32 %s23, 1
    %s25 = scalar_select %p22, %s23, %s24
    %p28 = pneg %p22
    %p29 = scmp.eq.s32.totalorder %s13, 1
    %p30 = por %p28, %p29
    %p31 = scmp.ne.s32.totalorder %s23, %s26
    %p32 = scmp.eq.s32.totalorder %s13, 0
    %p33 = por %p31, %p32
    %p34 = scmp.ne.s32.totalorder %s23, %s26
    %p35 = scmp.eq.s32.totalorder %s18, 1
    %p36 = por %p34, %p35
    %p37 = scmp.ne.s32.totalorder %s26, %s27
    %p38 = scmp.eq.s32.totalorder %s18, 0
    %p39 = por %p37, %p38
    %p40 = scmp.ne.s32.totalorder %s26, %s27
    %p41 = scmp.eq.s32.totalorder %s19, 1
    %p42 = por %p40, %p41
    %p44 = scmp.ne.s32.totalorder %s27, %s43
    %p45 = scmp.eq.s32.totalorder %s19, 0
    %p46 = por %p44, %p45
    %s48 = sadd.s32 %s47, 1
    %p51 = scmp.eq.s32.totalorder %s13, 1
    %p52 = scmp.ne.s32.totalorder %s47, %s49
    %p53 = scmp.eq.s32.totalorder %s13, 0
    %p54 = por %p52, %p53
    %p55 = scmp.ne.s32.totalorder %s47, %s49
    %p56 = scmp.eq.s32.totalorder %s18, 1
    %p57 = por %p55, %p56
    %p58 = scmp.ne.s32.totalorder %s49, %s50
    %p59 = scmp.eq.s32.totalorder %s18, 0
    %p60 = por %p58, %p59
    %p61 = scmp.ne.s32.totalorder %s49, %s50
    %p62 = scmp.eq.s32.totalorder %s19, 1
    %p63 = por %p61, %p62
    %p65 = scmp.ne.s32.totalorder %s50, %s64
    %p66 = scmp.eq.s32.totalorder %s19, 0
    %p67 = por %p65, %p66
    %s69 = sadd.s32 %s68, 1
    %p72 = scmp.eq.s32.totalorder %s13, 1
    %p73 = scmp.ne.s32.totalorder %s68, %s70
    %p74 = scmp.eq.s32.totalorder %s13, 0
    %p75 = por %p73, %p74
    %p76 = scmp.ne.s32.totalorder %s68, %s70
    %p77 = scmp.eq.s32.totalorder %s18, 1
    %p78 = por %p76, %p77
    %p79 = scmp.ne.s32.totalorder %s70, %s71
    %p80 = scmp.eq.s32.totalorder %s18, 0
    %p81 = por %p79, %p80
    %p82 = scmp.ne.s32.totalorder %s70, %s71
    %p83 = scmp.eq.s32.totalorder %s19, 1
    %p84 = por %p82, %p83
    %p86 = scmp.ne.s32.totalorder %s71, %s85
    %p87 = scmp.eq.s32.totalorder %s19, 0
    %p88 = por %p86, %p87
    %s90 = sadd.s32 %s89, 1
    %p93 = scmp.eq.s32.totalorder %s13, 1
    %p94 = scmp.ne.s32.totalorder %s89, %s91
    %p95 = scmp.eq.s32.totalorder %s13, 0
    %p96 = por %p94, %p95
    %p97 = scmp.ne.s32.totalorder %s89, %s91
    %p98 = scmp.eq.s32.totalorder %s18, 1
    %p99 = por %p97, %p98
    %p100 = scmp.ne.s32.totalorder %s91, %s92
    %p101 = scmp.eq.s32.totalorder %s18, 0
    %p102 = por %p100, %p101
    %p103 = scmp.ne.s32.totalorder %s91, %s92
    %p104 = scmp.eq.s32.totalorder %s19, 1
    %p105 = por %p103, %p104
    %p107 = scmp.ne.s32.totalorder %s92, %s106
    %p108 = scmp.eq.s32.totalorder %s19, 0
    %p109 = por %p107, %p108
    %s111 = sadd.s32 %s110, 1
    %p114 = scmp.eq.s32.totalorder %s13, 1
    %p115 = scmp.ne.s32.totalorder %s110, %s112
    %p116 = scmp.eq.s32.totalorder %s13, 0
    %p117 = por %p115, %p116
    %p118 = scmp.ne.s32.totalorder %s110, %s112
    %p119 = scmp.eq.s32.totalorder %s18, 1
    %p120 = por %p118, %p119
    %p121 = scmp.ne.s32.totalorder %s112, %s113
    %p122 = scmp.eq.s32.totalorder %s18, 0
    %p123 = por %p121, %p122
    %p124 = scmp.ne.s32.totalorder %s112, %s113
    %p125 = scmp.eq.s32.totalorder %s19, 1
    %p126 = por %p124, %p125
    %p128 = scmp.ne.s32.totalorder %s113, %s127
    %p129 = scmp.eq.s32.totalorder %s19, 0
    %p130 = por %p128, %p129
    %s131 = ssub.s32 %s13, %s20
    %p132 = scmp.eq.s32.totalorder %s131, 0
    %s134 = sadd.s32 %s133, 1
    %s135 = scalar_select %p132, %s133, %s134
    %p138 = pneg %p132
    %p139 = scmp.eq.s32.totalorder %s13, 1
    %p140 = por %p138, %p139
    %p141 = scmp.ne.s32.totalorder %s133, %s136
    %p142 = scmp.eq.s32.totalorder %s13, 0
    %p143 = por %p141, %p142
    %p144 = scmp.ne.s32.totalorder %s133, %s136
    %p145 = scmp.eq.s32.totalorder %s18, 1
    %p146 = por %p144, %p145
    %p147 = scmp.ne.s32.totalorder %s136, %s137
    %p148 = scmp.eq.s32.totalorder %s18, 0
    %p149 = por %p147, %p148
    %p150 = scmp.ne.s32.totalorder %s136, %s137
    %p151 = scmp.eq.s32.totalorder %s19, 1
    %p152 = por %p150, %p151
    %p154 = scmp.ne.s32.totalorder %s137, %s153
    %p155 = scmp.eq.s32.totalorder %s19, 0
    %p156 = por %p154, %p155
    %s157 = ssub.s32 %s13, %s20
    %p158 = scmp.eq.s32.totalorder %s157, 0
    %s160 = sadd.s32 %s159, 1
    %s161 = scalar_select %p158, %s159, %s160
    %p164 = pneg %p158
    %p165 = scmp.eq.s32.totalorder %s13, 1
    %p166 = por %p164, %p165
    %p167 = scmp.ne.s32.totalorder %s159, %s162
    %p168 = scmp.eq.s32.totalorder %s13, 0
    %p169 = por %p167, %p168
    %p170 = scmp.ne.s32.totalorder %s159, %s162
    %p171 = scmp.eq.s32.totalorder %s18, 1
    %p172 = por %p170, %p171
    %p173 = scmp.ne.s32.totalorder %s162, %s163
    %p174 = scmp.eq.s32.totalorder %s18, 0
    %p175 = por %p173, %p174
    %p176 = scmp.ne.s32.totalorder %s162, %s163
    %p177 = scmp.eq.s32.totalorder %s19, 1
    %p178 = por %p176, %p177
    %p180 = scmp.ne.s32.totalorder %s163, %s179
    %p181 = scmp.eq.s32.totalorder %s19, 0
    %p182 = por %p180, %p181
    %p183 = scmp.le.s32.totalorder 1, %s13
    %p184 = scmp.lt.s32.totalorder %s13, 3
    %p185 = pnand %p183, %p184
    %p186 = pneg %p185
    // Predicated region
    $region9: #{residual_block.4} parent=5 // pred_check
      _
    $region10: #{residual_block.4} parent=5 // pred_check_branch
      %188 = sbr.rel (%p185) target = $region12
    $region11: #{residual_block.4} parent=5 // pred_region
      %s189 = ssub.s32 %s13, 1
      // Predicated region
      $region13: #{residual_block.4} parent=11 // pred_check
        %p190 = pneg %p60
      $region14: #{residual_block.4} parent=11 // pred_check_branch
        %192 = sbr.rel (%p190) target = $region16
      $region15: #{residual_block.4} parent=11 // pred_region
        _
      $region16: #{residual_block.4} parent=11 // pred_fallthru
        _
      // Predicated region
      $region17: #{residual_block.4} parent=11 // pred_check
        %p193 = pneg %p81
      $region18: #{residual_block.4} parent=11 // pred_check_branch
        %195 = sbr.rel (%p193) target = $region20
      $region19: #{residual_block.4} parent=11 // pred_region
        _
      $region20: #{residual_block.4} parent=11 // pred_fallthru
        _
      // Predicated region
      $region21: #{residual_block.4} parent=11 // pred_check
        %p196 = pneg %p102
      $region22: #{residual_block.4} parent=11 // pred_check_branch
        %198 = sbr.rel (%p196) target = $region24
      $region23: #{residual_block.4} parent=11 // pred_region
        _
      $region24: #{residual_block.4} parent=11 // pred_fallthru
        _
      // Predicated region
      $region25: #{residual_block.4} parent=11 // pred_check
        %p199 = pneg %p123
      $region26: #{residual_block.4} parent=11 // pred_check_branch
        %201 = sbr.rel (%p199) target = $region28
      $region27: #{residual_block.4} parent=11 // pred_region
        _
      $region28: #{residual_block.4} parent=11 // pred_fallthru
        _
    $region12: #{residual_block.4} parent=5 // pred_fallthru
      _
    %p202 = scmp.lt.s32.totalorder %s13, 2
    // Predicated region
    $region29: #{residual_block.4} parent=5 // pred_check
      %p203 = pneg %p202
    $region30: #{residual_block.4} parent=5 // pred_check_branch
      %205 = sbr.rel (%p203) target = $region32
    $region31: #{residual_block.4} parent=5 // pred_region
      // Predicated region
      $region33: #{residual_block.4} parent=31 // pred_check
        %p206 = pneg %p33
      $region34: #{residual_block.4} parent=31 // pred_check_branch
        %208 = sbr.rel (%p206) target = $region36
      $region35: #{residual_block.4} parent=31 // pred_region
        %p209 = scmp.lt.s32.totalorder %s13, 1
        %s210 = scalar_select %p209, %s13, 1
        %s211 = smul.addr %s210, 32
        %s212 = smul.addr %s211, 4
        %s213 = scalar_lea.vmem %s0, %s212
      $region36: #{residual_block.4} parent=31 // pred_fallthru
        _
    $region32: #{residual_block.4} parent=5 // pred_fallthru
      _
    %p214 = scmp.le.s32.totalorder 1, %s13
    %p215 = scmp.lt.s32.totalorder %s13, 3
    %p216 = pnand %p214, %p215
    %p217 = pneg %p216
    // Predicated region
    $region37: #{residual_block.4} parent=5 // pred_check
      _
    $region38: #{residual_block.4} parent=5 // pred_check_branch
      %219 = sbr.rel (%p216) target = $region40
    $region39: #{residual_block.4} parent=5 // pred_region
      %s220 = ssub.s32 %s13, 1
      %p221 = scmp.lt.s32.totalorder %s18, 1
      %s222 = scalar_select %p221, %s18, 1
      %s223 = smul.addr %s222, 32
      %s224 = smul.addr %s223, 4
      %s225 = scalar_lea.vmem %s0, %s224
      %p226 = pneg %p39
      %p227 = pneg %p36
      %p228 = pneg %p60
      %p229 = pneg %p57
      %p230 = pneg %p81
      %p231 = pneg %p78
      %p232 = pneg %p102
      %p233 = pneg %p99
      %p234 = pneg %p123
      %p235 = pneg %p120
      %p236 = pneg %p149
      %p237 = pneg %p146
      %p238 = scmp.lt.s32.totalorder %s18, 1
      %s239 = scalar_select %p238, %s18, 1
      %s240 = smul.addr %s239, 32
      %s241 = smul.addr %s240, 4
      %s242 = scalar_lea.vmem %s5, %s241
      %p243 = pneg %p175
      %p244 = pneg %p172
      %p245 = scmp.lt.s32.totalorder %s18, 1
      %s246 = scalar_select %p245, %s18, 1
      %s247 = smul.addr %s246, 2
      %s248 = scalar_lea.vmem %s6, %s247
      %p249 = scmp.lt.s32.totalorder %s18, 1
      %s250 = scalar_select %p249, %s18, 1
      %s251 = smul.addr %s250, 32
      %s252 = smul.addr %s251, 4
      %s253 = scalar_lea.vmem %s0, %s252
      %p254 = scmp.lt.s32.totalorder %s18, 1
      %s255 = scalar_select %p254, %s18, 1
      %s256 = smul.addr %s255, 32
      %s257 = smul.addr %s256, 4
      %s258 = scalar_lea.vmem %s5, %s257
      %p259 = scmp.lt.s32.totalorder %s18, 1
      %s260 = scalar_select %p259, %s18, 1
      %s261 = smul.addr %s260, 2
      %s262 = scalar_lea.vmem %s6, %s261
      %v264 = vld [vmem:[%s253] sm:$0xf]
      %v265 = vld [vmem:[%s253 + $0x4] sm:$0xf]
      %v266 = vld [vmem:[%s253 + $0x8] sm:$0xf]
      %v267 = vld [vmem:[%s253 + $0xc] sm:$0xf]
      %v268 = vld [vmem:[%s253 + $0x10] sm:$0xf]
      %v269 = vld [vmem:[%s253 + $0x14] sm:$0xf]
      %v270 = vld [vmem:[%s253 + $0x18] sm:$0xf]
      %v271 = vld [vmem:[%s253 + $0x1c] sm:$0xf]
      %v272 = vld [vmem:[%s253 + $0x20] sm:$0xf]
      %v273 = vld [vmem:[%s253 + $0x24] sm:$0xf]
      %v274 = vld [vmem:[%s253 + $0x28] sm:$0xf]
      %v275 = vld [vmem:[%s253 + $0x2c] sm:$0xf]
      %v276 = vld [vmem:[%s253 + $0x30] sm:$0xf]
      %v277 = vld [vmem:[%s253 + $0x34] sm:$0xf]
      %v278 = vld [vmem:[%s253 + $0x38] sm:$0xf]
      %v279 = vld [vmem:[%s253 + $0x3c] sm:$0xf]
      %v280 = vld [vmem:[%s253 + $0x40] sm:$0xf]
      %v281 = vld [vmem:[%s253 + $0x44] sm:$0xf]
      %v282 = vld [vmem:[%s253 + $0x48] sm:$0xf]
      %v283 = vld [vmem:[%s253 + $0x4c] sm:$0xf]
      %v284 = vld [vmem:[%s253 + $0x50] sm:$0xf]
      %v285 = vld [vmem:[%s253 + $0x54] sm:$0xf]
      %v286 = vld [vmem:[%s253 + $0x58] sm:$0xf]
      %v287 = vld [vmem:[%s253 + $0x5c] sm:$0xf]
      %v288 = vld [vmem:[%s253 + $0x60] sm:$0xf]
      %v289 = vld [vmem:[%s253 + $0x64] sm:$0xf]
      %v290 = vld [vmem:[%s253 + $0x68] sm:$0xf]
      %v291 = vld [vmem:[%s253 + $0x6c] sm:$0xf]
      %v292 = vld [vmem:[%s253 + $0x70] sm:$0xf]
      %v293 = vld [vmem:[%s253 + $0x74] sm:$0xf]
      %v294 = vld [vmem:[%s253 + $0x78] sm:$0xf]
      %v295 = vld [vmem:[%s253 + $0x7c] sm:$0xf]
      %v296 = vunpack.c.l.bf16 %v264
      %v297 = vunpack.c.l.bf16 %v265
      %v298 = vunpack.c.l.bf16 %v266
      %v299 = vunpack.c.l.bf16 %v267
      %v300 = vunpack.c.l.bf16 %v268
      %v301 = vunpack.c.l.bf16 %v269
      %v302 = vunpack.c.l.bf16 %v270
      %v303 = vunpack.c.l.bf16 %v271
      %v304 = vunpack.c.l.bf16 %v272
      %v305 = vunpack.c.l.bf16 %v273
      %v306 = vunpack.c.l.bf16 %v274
      %v307 = vunpack.c.l.bf16 %v275
      %v308 = vunpack.c.l.bf16 %v276
      %v309 = vunpack.c.l.bf16 %v277
      %v310 = vunpack.c.l.bf16 %v278
      %v311 = vunpack.c.l.bf16 %v279
      %v312 = vunpack.c.l.bf16 %v280
      %v313 = vunpack.c.l.bf16 %v281
      %v314 = vunpack.c.l.bf16 %v282
      %v315 = vunpack.c.l.bf16 %v283
      %v316 = vunpack.c.l.bf16 %v284
      %v317 = vunpack.c.l.bf16 %v285
      %v318 = vunpack.c.l.bf16 %v286
      %v319 = vunpack.c.l.bf16 %v287
      %v320 = vunpack.c.l.bf16 %v288
      %v321 = vunpack.c.l.bf16 %v289
      %v322 = vunpack.c.l.bf16 %v290
      %v323 = vunpack.c.l.bf16 %v291
      %v324 = vunpack.c.l.bf16 %v292
      %v325 = vunpack.c.l.bf16 %v293
      %v326 = vunpack.c.l.bf16 %v294
      %v327 = vunpack.c.l.bf16 %v295
      %v328 = vld [vmem:[%s1] sm:$0x1]
      %v330 = vlaneseq
      %v331 = vshrl.u32 %v330, 7
      %v332 = vsub.s32 0, %v331
      %v333 = vrot.slane %v328, %v332
      %v335 = vmul.f32 %v296, %v333
      %v336 = vmul.f32 %v297, %v333
      %v337 = vmul.f32 %v298, %v333
      %v338 = vmul.f32 %v299, %v333
      %v339 = vmul.f32 %v300, %v333
      %v340 = vmul.f32 %v301, %v333
      %v341 = vmul.f32 %v302, %v333
      %v342 = vmul.f32 %v303, %v333
      %v343 = vmul.f32 %v304, %v333
      %v344 = vmul.f32 %v305, %v333
      %v345 = vmul.f32 %v306, %v333
      %v346 = vmul.f32 %v307, %v333
      %v347 = vmul.f32 %v308, %v333
      %v348 = vmul.f32 %v309, %v333
      %v349 = vmul.f32 %v310, %v333
      %v350 = vmul.f32 %v311, %v333
      %v351 = vmul.f32 %v312, %v333
      %v352 = vmul.f32 %v313, %v333
      %v353 = vmul.f32 %v314, %v333
      %v354 = vmul.f32 %v315, %v333
      %v355 = vmul.f32 %v316, %v333
      %v356 = vmul.f32 %v317, %v333
      %v357 = vmul.f32 %v318, %v333
      %v358 = vmul.f32 %v319, %v333
      %v359 = vmul.f32 %v320, %v333
      %v360 = vmul.f32 %v321, %v333
      %v361 = vmul.f32 %v322, %v333
      %v362 = vmul.f32 %v323, %v333
      %v363 = vmul.f32 %v324, %v333
      %v364 = vmul.f32 %v325, %v333
      %v365 = vmul.f32 %v326, %v333
      %v366 = vmul.f32 %v327, %v333
      %v367 = vld [vmem:[%s2] sm:$0x1]
      %v369 = vlaneseq
      %v370 = vshrl.u32 %v369, 7
      %v371 = vsub.s32 0, %v370
      %v372 = vrot.slane %v367, %v371
      %v374 = vadd.f32 %v335, %v372
      %v375 = vadd.f32 %v336, %v372
      %v376 = vadd.f32 %v337, %v372
      %v377 = vadd.f32 %v338, %v372
      %v378 = vadd.f32 %v339, %v372
      %v379 = vadd.f32 %v340, %v372
      %v380 = vadd.f32 %v341, %v372
      %v381 = vadd.f32 %v342, %v372
      %v382 = vadd.f32 %v343, %v372
      %v383 = vadd.f32 %v344, %v372
      %v384 = vadd.f32 %v345, %v372
      %v385 = vadd.f32 %v346, %v372
      %v386 = vadd.f32 %v347, %v372
      %v387 = vadd.f32 %v348, %v372
      %v388 = vadd.f32 %v349, %v372
      %v389 = vadd.f32 %v350, %v372
      %v390 = vadd.f32 %v351, %v372
      %v391 = vadd.f32 %v352, %v372
      %v392 = vadd.f32 %v353, %v372
      %v393 = vadd.f32 %v354, %v372
      %v394 = vadd.f32 %v355, %v372
      %v395 = vadd.f32 %v356, %v372
      %v396 = vadd.f32 %v357, %v372
      %v397 = vadd.f32 %v358, %v372
      %v398 = vadd.f32 %v359, %v372
      %v399 = vadd.f32 %v360, %v372
      %v400 = vadd.f32 %v361, %v372
      %v401 = vadd.f32 %v362, %v372
      %v402 = vadd.f32 %v363, %v372
      %v403 = vadd.f32 %v364, %v372
      %v404 = vadd.f32 %v365, %v372
      %v405 = vadd.f32 %v366, %v372
      %vm406 = vcmp.gt.f32.partialorder %v374, 0.0
      %vm407 = vcmp.gt.f32.partialorder %v375, 0.0
      %vm408 = vcmp.gt.f32.partialorder %v376, 0.0
      %vm409 = vcmp.gt.f32.partialorder %v377, 0.0
      %vm410 = vcmp.gt.f32.partialorder %v378, 0.0
      %vm411 = vcmp.gt.f32.partialorder %v379, 0.0
      %vm412 = vcmp.gt.f32.partialorder %v380, 0.0
      %vm413 = vcmp.gt.f32.partialorder %v381, 0.0
      %vm414 = vcmp.gt.f32.partialorder %v382, 0.0
      %vm415 = vcmp.gt.f32.partialorder %v383, 0.0
      %vm416 = vcmp.gt.f32.partialorder %v384, 0.0
      %vm417 = vcmp.gt.f32.partialorder %v385, 0.0
      %vm418 = vcmp.gt.f32.partialorder %v386, 0.0
      %vm419 = vcmp.gt.f32.partialorder %v387, 0.0
      %vm420 = vcmp.gt.f32.partialorder %v388, 0.0
      %vm421 = vcmp.gt.f32.partialorder %v389, 0.0
      %vm422 = vcmp.gt.f32.partialorder %v390, 0.0
      %vm423 = vcmp.gt.f32.partialorder %v391, 0.0
      %vm424 = vcmp.gt.f32.partialorder %v392, 0.0
      %vm425 = vcmp.gt.f32.partialorder %v393, 0.0
      %vm426 = vcmp.gt.f32.partialorder %v394, 0.0
      %vm427 = vcmp.gt.f32.partialorder %v395, 0.0
      %vm428 = vcmp.gt.f32.partialorder %v396, 0.0
      %vm429 = vcmp.gt.f32.partialorder %v397, 0.0
      %vm430 = vcmp.gt.f32.partialorder %v398, 0.0
      %vm431 = vcmp.gt.f32.partialorder %v399, 0.0
      %vm432 = vcmp.gt.f32.partialorder %v400, 0.0
      %vm433 = vcmp.gt.f32.partialorder %v401, 0.0
      %vm434 = vcmp.gt.f32.partialorder %v402, 0.0
      %vm435 = vcmp.gt.f32.partialorder %v403, 0.0
      %vm436 = vcmp.gt.f32.partialorder %v404, 0.0
      %vm437 = vcmp.gt.f32.partialorder %v405, 0.0
      %v438 = vmul.f32 %v374, 0.01
      %v439 = vmul.f32 %v375, 0.01
      %v440 = vmul.f32 %v376, 0.01
      %v441 = vmul.f32 %v377, 0.01
      %v442 = vmul.f32 %v378, 0.01
      %v443 = vmul.f32 %v379, 0.01
      %v444 = vmul.f32 %v380, 0.01
      %v445 = vmul.f32 %v381, 0.01
      %v446 = vmul.f32 %v382, 0.01
      %v447 = vmul.f32 %v383, 0.01
      %v448 = vmul.f32 %v384, 0.01
      %v449 = vmul.f32 %v385, 0.01
      %v450 = vmul.f32 %v386, 0.01
      %v451 = vmul.f32 %v387, 0.01
      %v452 = vmul.f32 %v388, 0.01
      %v453 = vmul.f32 %v389, 0.01
      %v454 = vmul.f32 %v390, 0.01
      %v455 = vmul.f32 %v391, 0.01
      %v456 = vmul.f32 %v392, 0.01
      %v457 = vmul.f32 %v393, 0.01
      %v458 = vmul.f32 %v394, 0.01
      %v459 = vmul.f32 %v395, 0.01
      %v460 = vmul.f32 %v396, 0.01
      %v461 = vmul.f32 %v397, 0.01
      %v462 = vmul.f32 %v398, 0.01
      %v463 = vmul.f32 %v399, 0.01
      %v464 = vmul.f32 %v400, 0.01
      %v465 = vmul.f32 %v401, 0.01
      %v466 = vmul.f32 %v402, 0.01
      %v467 = vmul.f32 %v403, 0.01
      %v468 = vmul.f32 %v404, 0.01
      %v469 = vmul.f32 %v405, 0.01
      %v470 = vsel %vm406, %v374, %v438
      %v471 = vsel %vm407, %v375, %v439
      %v472 = vsel %vm408, %v376, %v440
      %v473 = vsel %vm409, %v377, %v441
      %v474 = vsel %vm410, %v378, %v442
      %v475 = vsel %vm411, %v379, %v443
      %v476 = vsel %vm412, %v380, %v444
      %v477 = vsel %vm413, %v381, %v445
      %v478 = vsel %vm414, %v382, %v446
      %v479 = vsel %vm415, %v383, %v447
      %v480 = vsel %vm416, %v384, %v448
      %v481 = vsel %vm417, %v385, %v449
      %v482 = vsel %vm418, %v386, %v450
      %v483 = vsel %vm419, %v387, %v451
      %v484 = vsel %vm420, %v388, %v452
      %v485 = vsel %vm421, %v389, %v453
      %v486 = vsel %vm422, %v390, %v454
      %v487 = vsel %vm423, %v391, %v455
      %v488 = vsel %vm424, %v392, %v456
      %v489 = vsel %vm425, %v393, %v457
      %v490 = vsel %vm426, %v394, %v458
      %v491 = vsel %vm427, %v395, %v459
      %v492 = vsel %vm428, %v396, %v460
      %v493 = vsel %vm429, %v397, %v461
      %v494 = vsel %vm430, %v398, %v462
      %v495 = vsel %vm431, %v399, %v463
      %v496 = vsel %vm432, %v400, %v464
      %v497 = vsel %vm433, %v401, %v465
      %v498 = vsel %vm434, %v402, %v466
      %v499 = vsel %vm435, %v403, %v467
      %v500 = vsel %vm436, %v404, %v468
      %v501 = vsel %vm437, %v405, %v469
      %vm502 = vcmask 31744
      %503 = vst.msk [vmem:[#allocation2] sm:$0xff] %vm502, 0.0
      %504 = vst.msk [vmem:[#allocation2 + $0x8] sm:$0xff] %vm502, 0.0
      %vm505 = vcmask 25600
      %506 = vst.msk [vmem:[#allocation2 + $0x10] sm:$0x3] %vm505, 0.0
      %s507 = scalar_lea.vmem [#allocation2], 408
      %508 = vst.msk [vmem:[%s507] sm:$0xff] %vm502, 0.0
      %509 = vst.msk [vmem:[%s507 + $0x8] sm:$0xff] %vm502, 0.0
      %510 = vst.msk [vmem:[%s507 + $0x10] sm:$0x3] %vm505, 0.0
      %vm511 = vcmask 24576
      %512 = vst.msk [vmem:[#allocation2] sm:$0x1] %vm511, 0.0
      %513 = vst.msk [vmem:[#allocation2 + $0x18] sm:$0x1] %vm511, 0.0
      %514 = vst.msk [vmem:[#allocation2 + $0x30] sm:$0x1] %vm511, 0.0
      %515 = vst.msk [vmem:[#allocation2 + $0x48] sm:$0x1] %vm511, 0.0
      %516 = vst.msk [vmem:[#allocation2 + $0x60] sm:$0x1] %vm511, 0.0
      %517 = vst.msk [vmem:[#allocation2 + $0x78] sm:$0x1] %vm511, 0.0
      %518 = vst.msk [vmem:[#allocation2 + $0x90] sm:$0x1] %vm511, 0.0
      %519 = vst.msk [vmem:[#allocation2 + $0xa8] sm:$0x1] %vm511, 0.0
      %520 = vst.msk [vmem:[#allocation2 + $0xc0] sm:$0x1] %vm511, 0.0
      %521 = vst.msk [vmem:[#allocation2 + $0xd8] sm:$0x1] %vm511, 0.0
      %522 = vst.msk [vmem:[#allocation2 + $0xf0] sm:$0x1] %vm511, 0.0
      %523 = vst.msk [vmem:[#allocation2 + $0x108] sm:$0x1] %vm511, 0.0
      %524 = vst.msk [vmem:[#allocation2 + $0x120] sm:$0x1] %vm511, 0.0
      %525 = vst.msk [vmem:[#allocation2 + $0x138] sm:$0x1] %vm511, 0.0
      %526 = vst.msk [vmem:[#allocation2 + $0x150] sm:$0x1] %vm511, 0.0
      %527 = vst.msk [vmem:[#allocation2 + $0x168] sm:$0x1] %vm511, 0.0
      %528 = vst.msk [vmem:[#allocation2 + $0x180] sm:$0x1] %vm511, 0.0
      %529 = vst.msk [vmem:[#allocation2 + $0x198] sm:$0x1] %vm511, 0.0
      %530 = vst.msk [vmem:[#allocation2 + $0x11] sm:$0x1] %vm511, 0.0
      %531 = vst.msk [vmem:[#allocation2 + $0x29] sm:$0x1] %vm511, 0.0
      %532 = vst.msk [vmem:[#allocation2 + $0x41] sm:$0x1] %vm511, 0.0
      %533 = vst.msk [vmem:[#allocation2 + $0x59] sm:$0x1] %vm511, 0.0
      %534 = vst.msk [vmem:[#allocation2 + $0x71] sm:$0x1] %vm511, 0.0
      %535 = vst.msk [vmem:[#allocation2 + $0x89] sm:$0x1] %vm511, 0.0
      %536 = vst.msk [vmem:[#allocation2 + $0xa1] sm:$0x1] %vm511, 0.0
      %537 = vst.msk [vmem:[#allocation2 + $0xb9] sm:$0x1] %vm511, 0.0
      %538 = vst.msk [vmem:[#allocation2 + $0xd1] sm:$0x1] %vm511, 0.0
      %539 = vst.msk [vmem:[#allocation2 + $0xe9] sm:$0x1] %vm511, 0.0
      %540 = vst.msk [vmem:[#allocation2 + $0x101] sm:$0x1] %vm511, 0.0
      %541 = vst.msk [vmem:[#allocation2 + $0x119] sm:$0x1] %vm511, 0.0
      %542 = vst.msk [vmem:[#allocation2 + $0x131] sm:$0x1] %vm511, 0.0
      %543 = vst.msk [vmem:[#allocation2 + $0x149] sm:$0x1] %vm511, 0.0
      %544 = vst.msk [vmem:[#allocation2 + $0x161] sm:$0x1] %vm511, 0.0
      %545 = vst.msk [vmem:[#allocation2 + $0x179] sm:$0x1] %vm511, 0.0
      %546 = vst.msk [vmem:[#allocation2 + $0x191] sm:$0x1] %vm511, 0.0
      %547 = vst.msk [vmem:[#allocation2 + $0x1a9] sm:$0x1] %vm511, 0.0
      %s548 = scalar_lea.vmem [#allocation2], 24
      %549 = vst.msk [vmem:[%s548 + $0x1] sm:$0xff] %vm502, %v470
      %550 = vst.msk [vmem:[%s548 + $0x9] sm:$0xff] %vm502, %v471
      %551 = vst.msk [vmem:[%s548 + $0x19] sm:$0xff] %vm502, %v472
      %552 = vst.msk [vmem:[%s548 + $0x21] sm:$0xff] %vm502, %v473
      %553 = vst.msk [vmem:[%s548 + $0x31] sm:$0xff] %vm502, %v474
      %554 = vst.msk [vmem:[%s548 + $0x39] sm:$0xff] %vm502, %v475
      %555 = vst.msk [vmem:[%s548 + $0x49] sm:$0xff] %vm502, %v476
      %556 = vst.msk [vmem:[%s548 + $0x51] sm:$0xff] %vm502, %v477
      %557 = vst.msk [vmem:[%s548 + $0x61] sm:$0xff] %vm502, %v478
      %558 = vst.msk [vmem:[%s548 + $0x69] sm:$0xff] %vm502, %v479
      %559 = vst.msk [vmem:[%s548 + $0x79] sm:$0xff] %vm502, %v480
      %560 = vst.msk [vmem:[%s548 + $0x81] sm:$0xff] %vm502, %v481
      %561 = vst.msk [vmem:[%s548 + $0x91] sm:$0xff] %vm502, %v482
      %562 = vst.msk [vmem:[%s548 + $0x99] sm:$0xff] %vm502, %v483
      %563 = vst.msk [vmem:[%s548 + $0xa9] sm:$0xff] %vm502, %v484
      %564 = vst.msk [vmem:[%s548 + $0xb1] sm:$0xff] %vm502, %v485
      %565 = vst.msk [vmem:[%s548 + $0xc1] sm:$0xff] %vm502, %v486
      %566 = vst.msk [vmem:[%s548 + $0xc9] sm:$0xff] %vm502, %v487
      %567 = vst.msk [vmem:[%s548 + $0xd9] sm:$0xff] %vm502, %v488
      %568 = vst.msk [vmem:[%s548 + $0xe1] sm:$0xff] %vm502, %v489
      %569 = vst.msk [vmem:[%s548 + $0xf1] sm:$0xff] %vm502, %v490
      %570 = vst.msk [vmem:[%s548 + $0xf9] sm:$0xff] %vm502, %v491
      %571 = vst.msk [vmem:[%s548 + $0x109] sm:$0xff] %vm502, %v492
      %572 = vst.msk [vmem:[%s548 + $0x111] sm:$0xff] %vm502, %v493
      %573 = vst.msk [vmem:[%s548 + $0x121] sm:$0xff] %vm502, %v494
      %574 = vst.msk [vmem:[%s548 + $0x129] sm:$0xff] %vm502, %v495
      %575 = vst.msk [vmem:[%s548 + $0x139] sm:$0xff] %vm502, %v496
      %576 = vst.msk [vmem:[%s548 + $0x141] sm:$0xff] %vm502, %v497
      %577 = vst.msk [vmem:[%s548 + $0x151] sm:$0xff] %vm502, %v498
      %578 = vst.msk [vmem:[%s548 + $0x159] sm:$0xff] %vm502, %v499
      %579 = vst.msk [vmem:[%s548 + $0x169] sm:$0xff] %vm502, %v500
      %580 = vst.msk [vmem:[%s548 + $0x171] sm:$0xff] %vm502, %v501
      %v581 = vld [vmem:[#allocation2] sm:$0xff]
      %v582 = vld [vmem:[#allocation2 + $0x8] sm:$0xff]
      %v583 = vld [vmem:[#allocation2 + $0x18] sm:$0xff]
      %v584 = vld [vmem:[#allocation2 + $0x20] sm:$0xff]
      %v585 = vld [vmem:[#allocation2 + $0x30] sm:$0xff]
      %v586 = vld [vmem:[#allocation2 + $0x38] sm:$0xff]
      %v587 = vld [vmem:[#allocation2 + $0x48] sm:$0xff]
      %v588 = vld [vmem:[#allocation2 + $0x50] sm:$0xff]
      %v589 = vld [vmem:[#allocation2 + $0x60] sm:$0xff]
      %v590 = vld [vmem:[#allocation2 + $0x68] sm:$0xff]
      %v591 = vld [vmem:[#allocation2 + $0x78] sm:$0xff]
      %v592 = vld [vmem:[#allocation2 + $0x80] sm:$0xff]
      %v593 = vld [vmem:[#allocation2 + $0x90] sm:$0xff]
      %v594 = vld [vmem:[#allocation2 + $0x98] sm:$0xff]
      %v595 = vld [vmem:[#allocation2 + $0xa8] sm:$0xff]
      %v596 = vld [vmem:[#allocation2 + $0xb0] sm:$0xff]
      %v597 = vld [vmem:[#allocation2 + $0xc0] sm:$0xff]
      %v598 = vld [vmem:[#allocation2 + $0xc8] sm:$0xff]
      %v599 = vld [vmem:[#allocation2 + $0xd8] sm:$0xff]
      %v600 = vld [vmem:[#allocation2 + $0xe0] sm:$0xff]
      %v601 = vld [vmem:[#allocation2 + $0xf0] sm:$0xff]
      %v602 = vld [vmem:[#allocation2 + $0xf8] sm:$0xff]
      %v603 = vld [vmem:[#allocation2 + $0x108] sm:$0xff]
      %v604 = vld [vmem:[#allocation2 + $0x110] sm:$0xff]
      %v605 = vld [vmem:[#allocation2 + $0x120] sm:$0xff]
      %v606 = vld [vmem:[#allocation2 + $0x128] sm:$0xff]
      %v607 = vld [vmem:[#allocation2 + $0x138] sm:$0xff]
      %v608 = vld [vmem:[#allocation2 + $0x140] sm:$0xff]
      %v609 = vld [vmem:[#allocation2 + $0x150] sm:$0xff]
      %v610 = vld [vmem:[#allocation2 + $0x158] sm:$0xff]
      %v611 = vld [vmem:[#allocation2 + $0x168] sm:$0xff]
      %v612 = vld [vmem:[#allocation2 + $0x170] sm:$0xff]
      %v613 = vpack.c.bf16 %v582, %v581
      %v614 = vpack.c.bf16 %v584, %v583
      %v615 = vpack.c.bf16 %v586, %v585
      %v616 = vpack.c.bf16 %v588, %v587
      %v617 = vpack.c.bf16 %v590, %v589
      %v618 = vpack.c.bf16 %v592, %v591
      %v619 = vpack.c.bf16 %v594, %v593
      %v620 = vpack.c.bf16 %v596, %v595
      %v621 = vpack.c.bf16 %v598, %v597
      %v622 = vpack.c.bf16 %v600, %v599
      %v623 = vpack.c.bf16 %v602, %v601
      %v624 = vpack.c.bf16 %v604, %v603
      %v625 = vpack.c.bf16 %v606, %v605
      %v626 = vpack.c.bf16 %v608, %v607
      %v627 = vpack.c.bf16 %v610, %v609
      %v628 = vpack.c.bf16 %v612, %v611
      %v629 = vld [vmem:[%s3] sm:$0x3]
      %v630 = vld [vmem:[#allocation2 + $0x1] sm:$0xff]
      %v631 = vld [vmem:[#allocation2 + $0x9] sm:$0xff]
      %v632 = vld [vmem:[#allocation2 + $0x19] sm:$0xff]
      %v633 = vld [vmem:[#allocation2 + $0x21] sm:$0xff]
      %v634 = vld [vmem:[#allocation2 + $0x31] sm:$0xff]
      %v635 = vld [vmem:[#allocation2 + $0x39] sm:$0xff]
      %v636 = vld [vmem:[#allocation2 + $0x49] sm:$0xff]
      %v637 = vld [vmem:[#allocation2 + $0x51] sm:$0xff]
      %v638 = vld [vmem:[#allocation2 + $0x61] sm:$0xff]
      %v639 = vld [vmem:[#allocation2 + $0x69] sm:$0xff]
      %v640 = vld [vmem:[#allocation2 + $0x79] sm:$0xff]
      %v641 = vld [vmem:[#allocation2 + $0x81] sm:$0xff]
      %v642 = vld [vmem:[#allocation2 + $0x91] sm:$0xff]
      %v643 = vld [vmem:[#allocation2 + $0x99] sm:$0xff]
      %v644 = vld [vmem:[#allocation2 + $0xa9] sm:$0xff]
      %v645 = vld [vmem:[#allocation2 + $0xb1] sm:$0xff]
      %v646 = vld [vmem:[#allocation2 + $0xc1] sm:$0xff]
      %v647 = vld [vmem:[#allocation2 + $0xc9] sm:$0xff]
      %v648 = vld [vmem:[#allocation2 + $0xd9] sm:$0xff]
      %v649 = vld [vmem:[#allocation2 + $0xe1] sm:$0xff]
      %v650 = vld [vmem:[#allocation2 + $0xf1] sm:$0xff]
      %v651 = vld [vmem:[#allocation2 + $0xf9] sm:$0xff]
      %v652 = vld [vmem:[#allocation2 + $0x109] sm:$0xff]
      %v653 = vld [vmem:[#allocation2 + $0x111] sm:$0xff]
      %v654 = vld [vmem:[#allocation2 + $0x121] sm:$0xff]
      %v655 = vld [vmem:[#allocation2 + $0x129] sm:$0xff]
      %v656 = vld [vmem:[#allocation2 + $0x139] sm:$0xff]
      %v657 = vld [vmem:[#allocation2 + $0x141] sm:$0xff]
      %v658 = vld [vmem:[#allocation2 + $0x151] sm:$0xff]
      %v659 = vld [vmem:[#allocation2 + $0x159] sm:$0xff]
      %v660 = vld [vmem:[#allocation2 + $0x169] sm:$0xff]
      %v661 = vld [vmem:[#allocation2 + $0x171] sm:$0xff]
      %v662 = vpack.c.bf16 %v631, %v630
      %v663 = vpack.c.bf16 %v633, %v632
      %v664 = vpack.c.bf16 %v635, %v634
      %v665 = vpack.c.bf16 %v637, %v636
      %v666 = vpack.c.bf16 %v639, %v638
      %v667 = vpack.c.bf16 %v641, %v640
      %v668 = vpack.c.bf16 %v643, %v642
      %v669 = vpack.c.bf16 %v645, %v644
      %v670 = vpack.c.bf16 %v647, %v646
      %v671 = vpack.c.bf16 %v649, %v648
      %v672 = vpack.c.bf16 %v651, %v650
      %v673 = vpack.c.bf16 %v653, %v652
      %v674 = vpack.c.bf16 %v655, %v654
      %v675 = vpack.c.bf16 %v657, %v656
      %v676 = vpack.c.bf16 %v659, %v658
      %v677 = vpack.c.bf16 %v661, %v660
      %s678 = scalar_lea.vmem %s3, 2
      %v679 = vld [vmem:[%s678] sm:$0x3]
      %v681 = vsel %vm502, %v662, 0
      %v684 = vsel %vm502, %v663, 0
      %v687 = vsel %vm502, %v664, 0
      %v690 = vsel %vm502, %v665, 0
      %v693 = vsel %vm502, %v666, 0
      %v696 = vsel %vm502, %v667, 0
      %v699 = vsel %vm502, %v668, 0
      %v702 = vsel %vm502, %v669, 0
      %v705 = vsel %vm502, %v670, 0
      %v708 = vsel %vm502, %v671, 0
      %v711 = vsel %vm502, %v672, 0
      %v714 = vsel %vm502, %v673, 0
      %v717 = vsel %vm502, %v674, 0
      %v720 = vsel %vm502, %v675, 0
      %v723 = vsel %vm502, %v676, 0
      %v726 = vsel %vm502, %v677, 0
      %vm728 = vcmask 1041408
      %v730 = vsel %vm728, %v679, 0
      %732 = vmatprep.subr.bf16.mxu0 0
      %733 = vmatpush1.bf16.msra.mxu0 %v730
      %734 = vmatprep.subr.bf16.mxu0 0
      %735 = vmatpush1.bf16.msra.mxu0 0
      %736 = vmatprep.subr.bf16.mxu0 0
      %737 = vmatpush1.bf16.msra.mxu0 0
      %738 = vmatprep.subr.bf16.mxu0 0
      %739 = vmatpush1.bf16.msra.mxu0 0
      %740 = vmatprep.subr.bf16.mxu0 0
      %741 = vmatpush1.bf16.msra.mxu0 0
      %742 = vmatprep.subr.bf16.mxu0 0
      %743 = vmatpush1.bf16.msra.mxu0 0
      %744 = vmatprep.subr.bf16.mxu0 0
      %745 = vmatpush1.bf16.msra.mxu0 0
      %746 = vmatprep.subr.bf16.mxu0 0
      %747 = vmatpush1.bf16.msra.mxu0 0
      %748 = vmatprep.subr.bf16.mxu0 0
      %749 = vmatpush1.bf16.msra.mxu0 0
      %750 = vmatprep.subr.bf16.mxu0 0
      %751 = vmatpush1.bf16.msra.mxu0 0
      %752 = vmatprep.subr.bf16.mxu0 0
      %753 = vmatpush1.bf16.msra.mxu0 0
      %754 = vmatprep.subr.bf16.mxu0 0
      %755 = vmatpush1.bf16.msra.mxu0 0
      %756 = vmatprep.subr.bf16.mxu0 0
      %757 = vmatpush1.bf16.msra.mxu0 0
      %758 = vmatprep.subr.bf16.mxu0 0
      %759 = vmatpush1.bf16.msra.mxu0 0
      %760 = vmatprep.subr.bf16.mxu0 0
      %761 = vmatpush1.bf16.msra.mxu0 0
      %762 = vmatprep.subr.bf16.mxu0 0
      %763 = vmatpush1.bf16.msra.mxu0 0
      %764 = vmatprep.mubr.bf16.mxu0 0
      %765 = vmatmul.mubr.bf16.gmra.mrb[0].mxu0 %v681
      %v766 = vpop.f32.mrb[0].mxu0
      %v767 = vadd.f32 0.0, %v766
      %v768 = vpop.f32.mrb[0].mxu0
      %v769 = vpop.f32.mrb[0].mxu0
      %v770 = vadd.f32 0.0, %v769
      %v771 = vpop.f32.mrb[0].mxu0
      %772 = vmatprep.mubr.bf16.mxu0 0
      %773 = vmatmul.mubr.bf16.gmra.mrb[0].mxu0 %v684
      %v774 = vpop.f32.mrb[0].mxu0
      %v775 = vadd.f32 0.0, %v774
      %v776 = vpop.f32.mrb[0].mxu0
      %v777 = vpop.f32.mrb[0].mxu0
      %v778 = vadd.f32 0.0, %v777
      %v779 = vpop.f32.mrb[0].mxu0
      %780 = vmatprep.mubr.bf16.mxu0 0
      %781 = vmatmul.mubr.bf16.gmra.mrb[0].mxu0 %v687
      %v782 = vpop.f32.mrb[0].mxu0
      %v783 = vadd.f32 0.0, %v782
      %v784 = vpop.f32.mrb[0].mxu0
      %v785 = vpop.f32.mrb[0].mxu0
      %v786 = vadd.f32 0.0, %v785
      %v787 = vpop.f32.mrb[0].mxu0
      %788 = vmatprep.mubr.bf16.mxu0 0
      %789 = vmatmul.mubr.bf16.gmra.mrb[0].mxu0 %v690
      %v790 = vpop.f32.mrb[0].mxu0
      %v791 = vadd.f32 0.0, %v790
      %v792 = vpop.f32.mrb[0].mxu0
      %v793 = vpop.f32.mrb[0].mxu0
      %v794 = vadd.f32 0.0, %v793
      %v795 = vpop.f32.mrb[0].mxu0
      %796 = vmatprep.mubr.bf16.mxu0 0
      %797 = vmatmul.mubr.bf16.gmra.mrb[0].mxu0 %v693
      %v798 = vpop.f32.mrb[0].mxu0
      %v799 = vadd.f32 0.0, %v798
      %v800 = vpop.f32.mrb[0].mxu0
      %v801 = vpop.f32.mrb[0].mxu0
      %v802 = vadd.f32 0.0, %v801
      %v803 = vpop.f32.mrb[0].mxu0
      %804 = vmatprep.mubr.bf16.mxu0 0
      %805 = vmatmul.mubr.bf16.gmra.mrb[0].mxu0 %v696
      %v806 = vpop.f32.mrb[0].mxu0
      %v807 = vadd.f32 0.0, %v806
      %v808 = vpop.f32.mrb[0].mxu0
      %v809 = vpop.f32.mrb[0].mxu0
      %v810 = vadd.f32 0.0, %v809
      %v811 = vpop.f32.mrb[0].mxu0
      %812 = vmatprep.mubr.bf16.mxu0 0
      %813 = vmatmul.mubr.bf16.gmra.mrb[0].mxu0 %v699
      %v814 = vpop.f32.mrb[0].mxu0
      %v815 = vadd.f32 0.0, %v814
      %v816 = vpop.f32.mrb[0].mxu0
      %v817 = vpop.f32.mrb[0].mxu0
      %v818 = vadd.f32 0.0, %v817
      %v819 = vpop.f32.mrb[0].mxu0
      %820 = vmatprep.mubr.bf16.mxu0 0
      %821 = vmatmul.mubr.bf16.gmra.mrb[0].mxu0 %v702
      %v822 = vpop.f32.mrb[0].mxu0
      %v823 = vadd.f32 0.0, %v822
      %v824 = vpop.f32.mrb[0].mxu0
      %v825 = vpop.f32.mrb[0].mxu0
      %v826 = vadd.f32 0.0, %v825
      %v827 = vpop.f32.mrb[0].mxu0
      %828 = vmatprep.mubr.bf16.mxu0 0
      %829 = vmatmul.mubr.bf16.gmra.mrb[0].mxu0 %v705
      %v830 = vpop.f32.mrb[0].mxu0
      %v831 = vadd.f32 0.0, %v830
      %v832 = vpop.f32.mrb[0].mxu0
      %v833 = vpop.f32.mrb[0].mxu0
      %v834 = vadd.f32 0.0, %v833
      %v835 = vpop.f32.mrb[0].mxu0
      %836 = vmatprep.mubr.bf16.mxu0 0
      %837 = vmatmul.mubr.bf16.gmra.mrb[0].mxu0 %v708
      %v838 = vpop.f32.mrb[0].mxu0
      %v839 = vadd.f32 0.0, %v838
      %v840 = vpop.f32.mrb[0].mxu0
      %v841 = vpop.f32.mrb[0].mxu0
      %v842 = vadd.f32 0.0, %v841
      %v843 = vpop.f32.mrb[0].mxu0
      %844 = vmatprep.mubr.bf16.mxu0 0
      %845 = vmatmul.mubr.bf16.gmra.mrb[0].mxu0 %v711
      %v846 = vpop.f32.mrb[0].mxu0
      %v847 = vadd.f32 0.0, %v846
      %v848 = vpop.f32.mrb[0].mxu0
      %v849 = vpop.f32.mrb[0].mxu0
      %v850 = vadd.f32 0.0, %v849
      %v851 = vpop.f32.mrb[0].mxu0
      %852 = vmatprep.mubr.bf16.mxu0 0
      %853 = vmatmul.mubr.bf16.gmra.mrb[0].mxu0 %v714
      %v854 = vpop.f32.mrb[0].mxu0
      %v855 = vadd.f32 0.0, %v854
      %v856 = vpop.f32.mrb[0].mxu0
      %v857 = vpop.f32.mrb[0].mxu0
      %v858 = vadd.f32 0.0, %v857
      %v859 = vpop.f32.mrb[0].mxu0
      %860 = vmatprep.mubr.bf16.mxu0 0
      %861 = vmatmul.mubr.bf16.gmra.mrb[0].mxu0 %v717
      %v862 = vpop.f32.mrb[0].mxu0
      %v863 = vadd.f32 0.0, %v862
      %v864 = vpop.f32.mrb[0].mxu0
      %v865 = vpop.f32.mrb[0].mxu0
      %v866 = vadd.f32 0.0, %v865
      %v867 = vpop.f32.mrb[0].mxu0
      %868 = vmatprep.mubr.bf16.mxu0 0
      %869 = vmatmul.mubr.bf16.gmra.mrb[0].mxu0 %v720
      %v870 = vpop.f32.mrb[0].mxu0
      %v871 = vadd.f32 0.0, %v870
      %v872 = vpop.f32.mrb[0].mxu0
      %v873 = vpop.f32.mrb[0].mxu0
      %v874 = vadd.f32 0.0, %v873
      %v875 = vpop.f32.mrb[0].mxu0
      %876 = vmatprep.mubr.bf16.mxu0 0
      %877 = vmatmul.mubr.bf16.gmra.mrb[0].mxu0 %v723
      %v878 = vpop.f32.mrb[0].mxu0
      %v879 = vadd.f32 0.0, %v878
      %v880 = vpop.f32.mrb[0].mxu0
      %v881 = vpop.f32.mrb[0].mxu0
      %v882 = vadd.f32 0.0, %v881
      %v883 = vpop.f32.mrb[0].mxu0
      %884 = vmatprep.mubr.bf16.mxu0 0
      %885 = vmatmul.mubr.bf16.gmra.mrb[0].mxu0 %v726
      %v886 = vpop.f32.mrb[0].mxu0
      %v887 = vadd.f32 0.0, %v886
      %v888 = vpop.f32.mrb[0].mxu0
      %v889 = vpop.f32.mrb[0].mxu0
      %v890 = vadd.f32 0.0, %v889
      %v891 = vpop.f32.mrb[0].mxu0
      %892 = vdwg.mxu0
      %v894 = vsel %vm502, %v613, 0
      %v897 = vsel %vm502, %v614, 0
      %v900 = vsel %vm502, %v615, 0
      %v903 = vsel %vm502, %v616, 0
      %v906 = vsel %vm502, %v617, 0
      %v909 = vsel %vm502, %v618, 0
      %v912 = vsel %vm502, %v619, 0
      %v915 = vsel %vm502, %v620, 0
      %v918 = vsel %vm502, %v621, 0
      %v921 = vsel %vm502, %v622, 0
      %v924 = vsel %vm502, %v623, 0
      %v927 = vsel %vm502, %v624, 0
      %v930 = vsel %vm502, %v625, 0
      %v933 = vsel %vm502, %v626, 0
      %v936 = vsel %vm502, %v627, 0
      %v939 = vsel %vm502, %v628, 0
      %v942 = vsel %vm728, %v629, 0
      %944 = vmatprep.subr.bf16.mxu0 0
      %945 = vmatpush1.bf16.msra.mxu0 %v942
      %946 = vmatprep.subr.bf16.mxu0 0
      %947 = vmatpush1.bf16.msra.mxu0 0
      %948 = vmatprep.subr.bf16.mxu0 0
      %949 = vmatpush1.bf16.msra.mxu0 0
      %950 = vmatprep.subr.bf16.mxu0 0
      %951 = vmatpush1.bf16.msra.mxu0 0
      %952 = vmatprep.subr.bf16.mxu0 0
      %953 = vmatpush1.bf16.msra.mxu0 0
      %954 = vmatprep.subr.bf16.mxu0 0
      %955 = vmatpush1.bf16.msra.mxu0 0
      %956 = vmatprep.subr.bf16.mxu0 0
      %957 = vmatpush1.bf16.msra.mxu0 0
      %958 = vmatprep.subr.bf16.mxu0 0
      %959 = vmatpush1.bf16.msra.mxu0 0
      %960 = vmatprep.subr.bf16.mxu0 0
      %961 = vmatpush1.bf16.msra.mxu0 0
      %962 = vmatprep.subr.bf16.mxu0 0
      %963 = vmatpush1.bf16.msra.mxu0 0
      %964 = vmatprep.subr.bf16.mxu0 0
      %965 = vmatpush1.bf16.msra.mxu0 0
      %966 = vmatprep.subr.bf16.mxu0 0
      %967 = vmatpush1.bf16.msra.mxu0 0
      %968 = vmatprep.subr.bf16.mxu0 0
      %969 = vmatpush1.bf16.msra.mxu0 0
      %970 = vmatprep.subr.bf16.mxu0 0
      %971 = vmatpush1.bf16.msra.mxu0 0
      %972 = vmatprep.subr.bf16.mxu0 0
      %973 = vmatpush1.bf16.msra.mxu0 0
      %974 = vmatprep.subr.bf16.mxu0 0
      %975 = vmatpush1.bf16.msra.mxu0 0
      %976 = vmatprep.mubr.bf16.mxu0 0
      %977 = vmatmul.mubr.bf16.gmra.mrb[0].mxu0 %v894
      %v978 = vpop.f32.mrb[0].mxu0
      %v979 = vadd.f32 %v767, %v978
      %v980 = vpop.f32.mrb[0].mxu0
      %v981 = vpop.f32.mrb[0].mxu0
      %v982 = vadd.f32 %v770, %v981
      %v983 = vpop.f32.mrb[0].mxu0
      %984 = vmatprep.mubr.bf16.mxu0 0
      %985 = vmatmul.mubr.bf16.gmra.mrb[0].mxu0 %v897
      %v986 = vpop.f32.mrb[0].mxu0
      %v987 = vadd.f32 %v775, %v986
      %v988 = vpop.f32.mrb[0].mxu0
      %v989 = vpop.f32.mrb[0].mxu0
      %v990 = vadd.f32 %v778, %v989
      %v991 = vpop.f32.mrb[0].mxu0
      %992 = vmatprep.mubr.bf16.mxu0 0
      %993 = vmatmul.mubr.bf16.gmra.mrb[0].mxu0 %v900
      %v994 = vpop.f32.mrb[0].mxu0
      %v995 = vadd.f32 %v783, %v994
      %v996 = vpop.f32.mrb[0].mxu0
      %v997 = vpop.f32.mrb[0].mxu0
      %v998 = vadd.f32 %v786, %v997
      %v999 = vpop.f32.mrb[0].mxu0
      %1000 = vmatprep.mubr.bf16.mxu0 0
      %1001 = vmatmul.mubr.bf16.gmra.mrb[0].mxu0 %v903
      %v1002 = vpop.f32.mrb[0].mxu0
      %v1003 = vadd.f32 %v791, %v1002
      %v1004 = vpop.f32.mrb[0].mxu0
      %v1005 = vpop.f32.mrb[0].mxu0
      %v1006 = vadd.f32 %v794, %v1005
      %v1007 = vpop.f32.mrb[0].mxu0
      %1008 = vmatprep.mubr.bf16.mxu0 0
      %1009 = vmatmul.mubr.bf16.gmra.mrb[0].mxu0 %v906
      %v1010 = vpop.f32.mrb[0].mxu0
      %v1011 = vadd.f32 %v799, %v1010
      %v1012 = vpop.f32.mrb[0].mxu0
      %v1013 = vpop.f32.mrb[0].mxu0
      %v1014 = vadd.f32 %v802, %v1013
      %v1015 = vpop.f32.mrb[0].mxu0
      %1016 = vmatprep.mubr.bf16.mxu0 0
      %1017 = vmatmul.mubr.bf16.gmra.mrb[0].mxu0 %v909
      %v1018 = vpop.f32.mrb[0].mxu0
      %v1019 = vadd.f32 %v807, %v1018
      %v1020 = vpop.f32.mrb[0].mxu0
      %v1021 = vpop.f32.mrb[0].mxu0
      %v1022 = vadd.f32 %v810, %v1021
      %v1023 = vpop.f32.mrb[0].mxu0
      %1024 = vmatprep.mubr.bf16.mxu0 0
      %1025 = vmatmul.mubr.bf16.gmra.mrb[0].mxu0 %v912
      %v1026 = vpop.f32.mrb[0].mxu0
      %v1027 = vadd.f32 %v815, %v1026
      %v1028 = vpop.f32.mrb[0].mxu0
      %v1029 = vpop.f32.mrb[0].mxu0
      %v1030 = vadd.f32 %v818, %v1029
      %v1031 = vpop.f32.mrb[0].mxu0
      %1032 = vmatprep.mubr.bf16.mxu0 0
      %1033 = vmatmul.mubr.bf16.gmra.mrb[0].mxu0 %v915
      %v1034 = vpop.f32.mrb[0].mxu0
      %v1035 = vadd.f32 %v823, %v1034
      %v1036 = vpop.f32.mrb[0].mxu0
      %v1037 = vpop.f32.mrb[0].mxu0
      %v1038 = vadd.f32 %v826, %v1037
      %v1039 = vpop.f32.mrb[0].mxu0
      %1040 = vmatprep.mubr.bf16.mxu0 0
      %1041 = vmatmul.mubr.bf16.gmra.mrb[0].mxu0 %v918
      %v1042 = vpop.f32.mrb[0].mxu0
      %v1043 = vadd.f32 %v831, %v1042
      %v1044 = vpop.f32.mrb[0].mxu0
      %v1045 = vpop.f32.mrb[0].mxu0
      %v1046 = vadd.f32 %v834, %v1045
      %v1047 = vpop.f32.mrb[0].mxu0
      %1048 = vmatprep.mubr.bf16.mxu0 0
      %1049 = vmatmul.mubr.bf16.gmra.mrb[0].mxu0 %v921
      %v1050 = vpop.f32.mrb[0].mxu0
      %v1051 = vadd.f32 %v839, %v1050
      %v1052 = vpop.f32.mrb[0].mxu0
      %v1053 = vpop.f32.mrb[0].mxu0
      %v1054 = vadd.f32 %v842, %v1053
      %v1055 = vpop.f32.mrb[0].mxu0
      %1056 = vmatprep.mubr.bf16.mxu0 0
      %1057 = vmatmul.mubr.bf16.gmra.mrb[0].mxu0 %v924
      %v1058 = vpop.f32.mrb[0].mxu0
      %v1059 = vadd.f32 %v847, %v1058
      %v1060 = vpop.f32.mrb[0].mxu0
      %v1061 = vpop.f32.mrb[0].mxu0
      %v1062 = vadd.f32 %v850, %v1061
      %v1063 = vpop.f32.mrb[0].mxu0
      %1064 = vmatprep.mubr.bf16.mxu0 0
      %1065 = vmatmul.mubr.bf16.gmra.mrb[0].mxu0 %v927
      %v1066 = vpop.f32.mrb[0].mxu0
      %v1067 = vadd.f32 %v855, %v1066
      %v1068 = vpop.f32.mrb[0].mxu0
      %v1069 = vpop.f32.mrb[0].mxu0
      %v1070 = vadd.f32 %v858, %v1069
      %v1071 = vpop.f32.mrb[0].mxu0
      %1072 = vmatprep.mubr.bf16.mxu0 0
      %1073 = vmatmul.mubr.bf16.gmra.mrb[0].mxu0 %v930
      %v1074 = vpop.f32.mrb[0].mxu0
      %v1075 = vadd.f32 %v863, %v1074
      %v1076 = vpop.f32.mrb[0].mxu0
      %v1077 = vpop.f32.mrb[0].mxu0
      %v1078 = vadd.f32 %v866, %v1077
      %v1079 = vpop.f32.mrb[0].mxu0
      %1080 = vmatprep.mubr.bf16.mxu0 0
      %1081 = vmatmul.mubr.bf16.gmra.mrb[0].mxu0 %v933
      %v1082 = vpop.f32.mrb[0].mxu0
      %v1083 = vadd.f32 %v871, %v1082
      %v1084 = vpop.f32.mrb[0].mxu0
      %v1085 = vpop.f32.mrb[0].mxu0
      %v1086 = vadd.f32 %v874, %v1085
      %v1087 = vpop.f32.mrb[0].mxu0
      %1088 = vmatprep.mubr.bf16.mxu0 0
      %1089 = vmatmul.mubr.bf16.gmra.mrb[0].mxu0 %v936
      %v1090 = vpop.f32.mrb[0].mxu0
      %v1091 = vadd.f32 %v879, %v1090
      %v1092 = vpop.f32.mrb[0].mxu0
      %v1093 = vpop.f32.mrb[0].mxu0
      %v1094 = vadd.f32 %v882, %v1093
      %v1095 = vpop.f32.mrb[0].mxu0
      %1096 = vmatprep.mubr.bf16.mxu0 0
      %1097 = vmatmul.mubr.bf16.gmra.mrb[0].mxu0 %v939
      %v1098 = vpop.f32.mrb[0].mxu0
      %v1099 = vadd.f32 %v887, %v1098
      %v1100 = vpop.f32.mrb[0].mxu0
      %v1101 = vpop.f32.mrb[0].mxu0
      %v1102 = vadd.f32 %v890, %v1101
      %v1103 = vpop.f32.mrb[0].mxu0
      %1104 = vdwg.mxu0
      %v1105 = vld [vmem:[#allocation2 + $0x2] sm:$0xff]
      %v1106 = vld [vmem:[#allocation2 + $0xa] sm:$0xff]
      %v1107 = vld [vmem:[#allocation2 + $0x1a] sm:$0xff]
      %v1108 = vld [vmem:[#allocation2 + $0x22] sm:$0xff]
      %v1109 = vld [vmem:[#allocation2 + $0x32] sm:$0xff]
      %v1110 = vld [vmem:[#allocation2 + $0x3a] sm:$0xff]
      %v1111 = vld [vmem:[#allocation2 + $0x4a] sm:$0xff]
      %v1112 = vld [vmem:[#allocation2 + $0x52] sm:$0xff]
      %v1113 = vld [vmem:[#allocation2 + $0x62] sm:$0xff]
      %v1114 = vld [vmem:[#allocation2 + $0x6a] sm:$0xff]
      %v1115 = vld [vmem:[#allocation2 + $0x7a] sm:$0xff]
      %v1116 = vld [vmem:[#allocation2 + $0x82] sm:$0xff]
      %v1117 = vld [vmem:[#allocation2 + $0x92] sm:$0xff]
      %v1118 = vld [vmem:[#allocation2 + $0x9a] sm:$0xff]
      %v1119 = vld [vmem:[#allocation2 + $0xaa] sm:$0xff]
      %v1120 = vld [vmem:[#allocation2 + $0xb2] sm:$0xff]
      %v1121 = vld [vmem:[#allocation2 + $0xc2] sm:$0xff]
      %v1122 = vld [vmem:[#allocation2 + $0xca] sm:$0xff]
      %v1123 = vld [vmem:[#allocation2 + $0xda] sm:$0xff]
      %v1124 = vld [vmem:[#allocation2 + $0xe2] sm:$0xff]
      %v1125 = vld [vmem:[#allocation2 + $0xf2] sm:$0xff]
      %v1126 = vld [vmem:[#allocation2 + $0xfa] sm:$0xff]
      %v1127 = vld [vmem:[#allocation2 + $0x10a] sm:$0xff]
      %v1128 = vld [vmem:[#allocation2 + $0x112] sm:$0xff]
      %v1129 = vld [vmem:[#allocation2 + $0x122] sm:$0xff]
      %v1130 = vld [vmem:[#allocation2 + $0x12a] sm:$0xff]
      %v1131 = vld [vmem:[#allocation2 + $0x13a] sm:$0xff]
      %v1132 = vld [vmem:[#allocation2 + $0x142] sm:$0xff]
      %v1133 = vld [vmem:[#allocation2 + $0x152] sm:$0xff]
      %v1134 = vld [vmem:[#allocation2 + $0x15a] sm:$0xff]
      %v1135 = vld [vmem:[#allocation2 + $0x16a] sm:$0xff]
      %v1136 = vld [vmem:[#allocation2 + $0x172] sm:$0xff]
      %v1137 = vpack.c.bf16 %v1106, %v1105
      %v1138 = vpack.c.bf16 %v1108, %v1107
      %v1139 = vpack.c.bf16 %v1110, %v1109
      %v1140 = vpack.c.bf16 %v1112, %v1111
      %v1141 = vpack.c.bf16 %v1114, %v1113
      %v1142 = vpack.c.bf16 %v1116, %v1115
      %v1143 = vpack.c.bf16 %v1118, %v1117
      %v1144 = vpack.c.bf16 %v1120, %v1119
      %v1145 = vpack.c.bf16 %v1122, %v1121
      %v1146 = vpack.c.bf16 %v1124, %v1123
      %v1147 = vpack.c.bf16 %v1126, %v1125
      %v1148 = vpack.c.bf16 %v1128, %v1127
      %v1149 = vpack.c.bf16 %v1130, %v1129
      %v1150 = vpack.c.bf16 %v1132, %v1131
      %v1151 = vpack.c.bf16 %v1134, %v1133
      %v1152 = vpack.c.bf16 %v1136, %v1135
      %s1153 = scalar_lea.vmem %s3, 4
      %v1154 = vld [vmem:[%s1153] sm:$0x3]
      %v1156 = vsel %vm502, %v1137, 0
      %v1159 = vsel %vm502, %v1138, 0
      %v1162 = vsel %vm502, %v1139, 0
      %v1165 = vsel %vm502, %v1140, 0
      %v1168 = vsel %vm502, %v1141, 0
      %v1171 = vsel %vm502, %v1142, 0
      %v1174 = vsel %vm502, %v1143, 0
      %v1177 = vsel %vm502, %v1144, 0
      %v1180 = vsel %vm502, %v1145, 0
      %v1183 = vsel %vm502, %v1146, 0
      %v1186 = vsel %vm502, %v1147, 0
      %v1189 = vsel %vm502, %v1148, 0
      %v1192 = vsel %vm502, %v1149, 0
      %v1195 = vsel %vm502, %v1150, 0
      %v1198 = vsel %vm502, %v1151, 0
      %v1201 = vsel %vm502, %v1152, 0
      %v1204 = vsel %vm728, %v1154, 0
      %1206 = vmatprep.subr.bf16.mxu0 0
      %1207 = vmatpush1.bf16.msra.mxu0 %v1204
      %1208 = vmatprep.subr.bf16.mxu0 0
      %1209 = vmatpush1.bf16.msra.mxu0 0
      %1210 = vmatprep.subr.bf16.mxu0 0
      %1211 = vmatpush1.bf16.msra.mxu0 0
      %1212 = vmatprep.subr.bf16.mxu0 0
      %1213 = vmatpush1.bf16.msra.mxu0 0
      %1214 = vmatprep.subr.bf16.mxu0 0
      %1215 = vmatpush1.bf16.msra.mxu0 0
      %1216 = vmatprep.subr.bf16.mxu0 0
      %1217 = vmatpush1.bf16.msra.mxu0 0
      %1218 = vmatprep.subr.bf16.mxu0 0
      %1219 = vmatpush1.bf16.msra.mxu0 0
      %1220 = vmatprep.subr.bf16.mxu0 0
      %1221 = vmatpush1.bf16.msra.mxu0 0
      %1222 = vmatprep.subr.bf16.mxu0 0
      %1223 = vmatpush1.bf16.msra.mxu0 0
      %1224 = vmatprep.subr.bf16.mxu0 0
      %1225 = vmatpush1.bf16.msra.mxu0 0
      %1226 = vmatprep.subr.bf16.mxu0 0
      %1227 = vmatpush1.bf16.msra.mxu0 0
      %1228 = vmatprep.subr.bf16.mxu0 0
      %1229 = vmatpush1.bf16.msra.mxu0 0
      %1230 = vmatprep.subr.bf16.mxu0 0
      %1231 = vmatpush1.bf16.msra.mxu0 0
      %1232 = vmatprep.subr.bf16.mxu0 0
      %1233 = vmatpush1.bf16.msra.mxu0 0
      %1234 = vmatprep.subr.bf16.mxu0 0
      %1235 = vmatpush1.bf16.msra.mxu0 0
      %1236 = vmatprep.subr.bf16.mxu0 0
      %1237 = vmatpush1.bf16.msra.mxu0 0
      %1238 = vmatprep.mubr.bf16.mxu0 0
      %1239 = vmatmul.mubr.bf16.gmra.mrb[0].mxu0 %v1156
      %v1240 = vpop.f32.mrb[0].mxu0
      %v1241 = vadd.f32 0.0, %v1240
      %v1242 = vpop.f32.mrb[0].mxu0
      %v1243 = vpop.f32.mrb[0].mxu0
      %v1244 = vadd.f32 0.0, %v1243
      %v1245 = vpop.f32.mrb[0].mxu0
      %1246 = vmatprep.mubr.bf16.mxu0 0
      %1247 = vmatmul.mubr.bf16.gmra.mrb[0].mxu0 %v1159
      %v1248 = vpop.f32.mrb[0].mxu0
      %v1249 = vadd.f32 0.0, %v1248
      %v1250 = vpop.f32.mrb[0].mxu0
      %v1251 = vpop.f32.mrb[0].mxu0
      %v1252 = vadd.f32 0.0, %v1251
      %v1253 = vpop.f32.mrb[0].mxu0
      %1254 = vmatprep.mubr.bf16.mxu0 0
      %1255 = vmatmul.mubr.bf16.gmra.mrb[0].mxu0 %v1162
      %v1256 = vpop.f32.mrb[0].mxu0
      %v1257 = vadd.f32 0.0, %v1256
      %v1258 = vpop.f32.mrb[0].mxu0
      %v1259 = vpop.f32.mrb[0].mxu0
      %v1260 = vadd.f32 0.0, %v1259
      %v1261 = vpop.f32.mrb[0].mxu0
      %1262 = vmatprep.mubr.bf16.mxu0 0
      %1263 = vmatmul.mubr.bf16.gmra.mrb[0].mxu0 %v1165
      %v1264 = vpop.f32.mrb[0].mxu0
      %v1265 = vadd.f32 0.0, %v1264
      %v1266 = vpop.f32.mrb[0].mxu0
      %v1267 = vpop.f32.mrb[0].mxu0
      %v1268 = vadd.f32 0.0, %v1267
      %v1269 = vpop.f32.mrb[0].mxu0
      %1270 = vmatprep.mubr.bf16.mxu0 0
      %1271 = vmatmul.mubr.bf16.gmra.mrb[0].mxu0 %v1168
      %v1272 = vpop.f32.mrb[0].mxu0
      %v1273 = vadd.f32 0.0, %v1272
      %v1274 = vpop.f32.mrb[0].mxu0
      %v1275 = vpop.f32.mrb[0].mxu0
      %v1276 = vadd.f32 0.0, %v1275
      %v1277 = vpop.f32.mrb[0].mxu0
      %1278 = vmatprep.mubr.bf16.mxu0 0
      %1279 = vmatmul.mubr.bf16.gmra.mrb[0].mxu0 %v1171
      %v1280 = vpop.f32.mrb[0].mxu0
      %v1281 = vadd.f32 0.0, %v1280
      %v1282 = vpop.f32.mrb[0].mxu0
      %v1283 = vpop.f32.mrb[0].mxu0
      %v1284 = vadd.f32 0.0, %v1283
      %v1285 = vpop.f32.mrb[0].mxu0
      %1286 = vmatprep.mubr.bf16.mxu0 0
      %1287 = vmatmul.mubr.bf16.gmra.mrb[0].mxu0 %v1174
      %v1288 = vpop.f32.mrb[0].mxu0
      %v1289 = vadd.f32 0.0, %v1288
      %v1290 = vpop.f32.mrb[0].mxu0
      %v1291 = vpop.f32.mrb[0].mxu0
      %v1292 = vadd.f32 0.0, %v1291
      %v1293 = vpop.f32.mrb[0].mxu0
      %1294 = vmatprep.mubr.bf16.mxu0 0
      %1295 = vmatmul.mubr.bf16.gmra.mrb[0].mxu0 %v1177
      %v1296 = vpop.f32.mrb[0].mxu0
      %v1297 = vadd.f32 0.0, %v1296
      %v1298 = vpop.f32.mrb[0].mxu0
      %v1299 = vpop.f32.mrb[0].mxu0
      %v1300 = vadd.f32 0.0, %v1299
      %v1301 = vpop.f32.mrb[0].mxu0
      %1302 = vmatprep.mubr.bf16.mxu0 0
      %1303 = vmatmul.mubr.bf16.gmra.mrb[0].mxu0 %v1180
      %v1304 = vpop.f32.mrb[0].mxu0
      %v1305 = vadd.f32 0.0, %v1304
      %v1306 = vpop.f32.mrb[0].mxu0
      %v1307 = vpop.f32.mrb[0].mxu0
      %v1308 = vadd.f32 0.0, %v1307
      %v1309 = vpop.f32.mrb[0].mxu0
      %1310 = vmatprep.mubr.bf16.mxu0 0
      %1311 = vmatmul.mubr.bf16.gmra.mrb[0].mxu0 %v1183
      %v1312 = vpop.f32.mrb[0].mxu0
      %v1313 = vadd.f32 0.0, %v1312
      %v1314 = vpop.f32.mrb[0].mxu0
      %v1315 = vpop.f32.mrb[0].mxu0
      %v1316 = vadd.f32 0.0, %v1315
      %v1317 = vpop.f32.mrb[0].mxu0
      %1318 = vmatprep.mubr.bf16.mxu0 0
      %1319 = vmatmul.mubr.bf16.gmra.mrb[0].mxu0 %v1186
      %v1320 = vpop.f32.mrb[0].mxu0
      %v1321 = vadd.f32 0.0, %v1320
      %v1322 = vpop.f32.mrb[0].mxu0
      %v1323 = vpop.f32.mrb[0].mxu0
      %v1324 = vadd.f32 0.0, %v1323
      %v1325 = vpop.f32.mrb[0].mxu0
      %1326 = vmatprep.mubr.bf16.mxu0 0
      %1327 = vmatmul.mubr.bf16.gmra.mrb[0].mxu0 %v1189
      %v1328 = vpop.f32.mrb[0].mxu0
      %v1329 = vadd.f32 0.0, %v1328
      %v1330 = vpop.f32.mrb[0].mxu0
      %v1331 = vpop.f32.mrb[0].mxu0
      %v1332 = vadd.f32 0.0, %v1331
      %v1333 = vpop.f32.mrb[0].mxu0
      %1334 = vmatprep.mubr.bf16.mxu0 0
      %1335 = vmatmul.mubr.bf16.gmra.mrb[0].mxu0 %v1192
      %v1336 = vpop.f32.mrb[0].mxu0
      %v1337 = vadd.f32 0.0, %v1336
      %v1338 = vpop.f32.mrb[0].mxu0
      %v1339 = vpop.f32.mrb[0].mxu0
      %v1340 = vadd.f32 0.0, %v1339
      %v1341 = vpop.f32.mrb[0].mxu0
      %1342 = vmatprep.mubr.bf16.mxu0 0
      %1343 = vmatmul.mubr.bf16.gmra.mrb[0].mxu0 %v1195
      %v1344 = vpop.f32.mrb[0].mxu0
      %v1345 = vadd.f32 0.0, %v1344
      %v1346 = vpop.f32.mrb[0].mxu0
      %v1347 = vpop.f32.mrb[0].mxu0
      %v1348 = vadd.f32 0.0, %v1347
      %v1349 = vpop.f32.mrb[0].mxu0
      %1350 = vmatprep.mubr.bf16.mxu0 0
      %1351 = vmatmul.mubr.bf16.gmra.mrb[0].mxu0 %v1198
      %v1352 = vpop.f32.mrb[0].mxu0
      %v1353 = vadd.f32 0.0, %v1352
      %v1354 = vpop.f32.mrb[0].mxu0
      %v1355 = vpop.f32.mrb[0].mxu0
      %v1356 = vadd.f32 0.0, %v1355
      %v1357 = vpop.f32.mrb[0].mxu0
      %1358 = vmatprep.mubr.bf16.mxu0 0
      %1359 = vmatmul.mubr.bf16.gmra.mrb[0].mxu0 %v1201
      %v1360 = vpop.f32.mrb[0].mxu0
      %v1361 = vadd.f32 0.0, %v1360
      %v1362 = vpop.f32.mrb[0].mxu0
      %v1363 = vpop.f32.mrb[0].mxu0
      %v1364 = vadd.f32 0.0, %v1363
      %v1365 = vpop.f32.mrb[0].mxu0
      %1366 = vdwg.mxu0
      %v1367 = vadd.f32 %v979, %v1241
      %v1368 = vadd.f32 %v982, %v1244
      %v1369 = vadd.f32 %v987, %v1249
      %v1370 = vadd.f32 %v990, %v1252
      %v1371 = vadd.f32 %v995, %v1257
      %v1372 = vadd.f32 %v998, %v1260
      %v1373 = vadd.f32 %v1003, %v1265
      %v1374 = vadd.f32 %v1006, %v1268
      %v1375 = vadd.f32 %v1011, %v1273
      %v1376 = vadd.f32 %v1014, %v1276
      %v1377 = vadd.f32 %v1019, %v1281
      %v1378 = vadd.f32 %v1022, %v1284
      %v1379 = vadd.f32 %v1027, %v1289
      %v1380 = vadd.f32 %v1030, %v1292
      %v1381 = vadd.f32 %v1035, %v1297
      %v1382 = vadd.f32 %v1038, %v1300
      %v1383 = vadd.f32 %v1043, %v1305
      %v1384 = vadd.f32 %v1046, %v1308
      %v1385 = vadd.f32 %v1051, %v1313
      %v1386 = vadd.f32 %v1054, %v1316
      %v1387 = vadd.f32 %v1059, %v1321
      %v1388 = vadd.f32 %v1062, %v1324
      %v1389 = vadd.f32 %v1067, %v1329
      %v1390 = vadd.f32 %v1070, %v1332
      %v1391 = vadd.f32 %v1075, %v1337
      %v1392 = vadd.f32 %v1078, %v1340
      %v1393 = vadd.f32 %v1083, %v1345
      %v1394 = vadd.f32 %v1086, %v1348
      %v1395 = vadd.f32 %v1091, %v1353
      %v1396 = vadd.f32 %v1094, %v1356
      %v1397 = vadd.f32 %v1099, %v1361
      %v1398 = vadd.f32 %v1102, %v1364
      %v1399 = vld [vmem:[%s548] sm:$0xff]
      %v1400 = vld [vmem:[%s548 + $0x8] sm:$0xff]
      %v1401 = vld [vmem:[%s548 + $0x18] sm:$0xff]
      %v1402 = vld [vmem:[%s548 + $0x20] sm:$0xff]
      %v1403 = vld [vmem:[%s548 + $0x30] sm:$0xff]
      %v1404 = vld [vmem:[%s548 + $0x38] sm:$0xff]
      %v1405 = vld [vmem:[%s548 + $0x48] sm:$0xff]
      %v1406 = vld [vmem:[%s548 + $0x50] sm:$0xff]
      %v1407 = vld [vmem:[%s548 + $0x60] sm:$0xff]
      %v1408 = vld [vmem:[%s548 + $0x68] sm:$0xff]
      %v1409 = vld [vmem:[%s548 + $0x78] sm:$0xff]
      %v1410 = vld [vmem:[%s548 + $0x80] sm:$0xff]
      %v1411 = vld [vmem:[%s548 + $0x90] sm:$0xff]
      %v1412 = vld [vmem:[%s548 + $0x98] sm:$0xff]
      %v1413 = vld [vmem:[%s548 + $0xa8] sm:$0xff]
      %v1414 = vld [vmem:[%s548 + $0xb0] sm:$0xff]
      %v1415 = vld [vmem:[%s548 + $0xc0] sm:$0xff]
      %v1416 = vld [vmem:[%s548 + $0xc8] sm:$0xff]
      %v1417 = vld [vmem:[%s548 + $0xd8] sm:$0xff]
      %v1418 = vld [vmem:[%s548 + $0xe0] sm:$0xff]
      %v1419 = vld [vmem:[%s548 + $0xf0] sm:$0xff]
      %v1420 = vld [vmem:[%s548 + $0xf8] sm:$0xff]
      %v1421 = vld [vmem:[%s548 + $0x108] sm:$0xff]
      %v1422 = vld [vmem:[%s548 + $0x110] sm:$0xff]
      %v1423 = vld [vmem:[%s548 + $0x120] sm:$0xff]
      %v1424 = vld [vmem:[%s548 + $0x128] sm:$0xff]
      %v1425 = vld [vmem:[%s548 + $0x138] sm:$0xff]
      %v1426 = vld [vmem:[%s548 + $0x140] sm:$0xff]
      %v1427 = vld [vmem:[%s548 + $0x150] sm:$0xff]
      %v1428 = vld [vmem:[%s548 + $0x158] sm:$0xff]
      %v1429 = vld [vmem:[%s548 + $0x168] sm:$0xff]
      %v1430 = vld [vmem:[%s548 + $0x170] sm:$0xff]
      %v1431 = vpack.c.bf16 %v1400, %v1399
      %v1432 = vpack.c.bf16 %v1402, %v1401
      %v1433 = vpack.c.bf16 %v1404, %v1403
      %v1434 = vpack.c.bf16 %v1406, %v1405
      %v1435 = vpack.c.bf16 %v1408, %v1407
      %v1436 = vpack.c.bf16 %v1410, %v1409
      %v1437 = vpack.c.bf16 %v1412, %v1411
      %v1438 = vpack.c.bf16 %v1414, %v1413
      %v1439 = vpack.c.bf16 %v1416, %v1415
      %v1440 = vpack.c.bf16 %v1418, %v1417
      %v1441 = vpack.c.bf16 %v1420, %v1419
      %v1442 = vpack.c.bf16 %v1422, %v1421
      %v1443 = vpack.c.bf16 %v1424, %v1423
      %v1444 = vpack.c.bf16 %v1426, %v1425
      %v1445 = vpack.c.bf16 %v1428, %v1427
      %v1446 = vpack.c.bf16 %v1430, %v1429
      %s1447 = scalar_lea.vmem %s3, 6
      %v1448 = vld [vmem:[%s1447] sm:$0x3]
      %v1450 = vsel %vm502, %v1431, 0
      %v1453 = vsel %vm502, %v1432, 0
      %v1456 = vsel %vm502, %v1433, 0
      %v1459 = vsel %vm502, %v1434, 0
      %v1462 = vsel %vm502, %v1435, 0
      %v1465 = vsel %vm502, %v1436, 0
      %v1468 = vsel %vm502, %v1437, 0
      %v1471 = vsel %vm502, %v1438, 0
      %v1474 = vsel %vm502, %v1439, 0
      %v1477 = vsel %vm502, %v1440, 0
      %v1480 = vsel %vm502, %v1441, 0
      %v1483 = vsel %vm502, %v1442, 0
      %v1486 = vsel %vm502, %v1443, 0
      %v1489 = vsel %vm502, %v1444, 0
      %v1492 = vsel %vm502, %v1445, 0
      %v1495 = vsel %vm502, %v1446, 0
      %v1498 = vsel %vm728, %v1448, 0
      %1500 = vmatprep.subr.bf16.mxu0 0
      %1501 = vmatpush1.bf16.msra.mxu0 %v1498
      %1502 = vmatprep.subr.bf16.mxu0 0
      %1503 = vmatpush1.bf16.msra.mxu0 0
      %1504 = vmatprep.subr.bf16.mxu0 0
      %1505 = vmatpush1.bf16.msra.mxu0 0
      %1506 = vmatprep.subr.bf16.mxu0 0
      %1507 = vmatpush1.bf16.msra.mxu0 0
      %1508 = vmatprep.subr.bf16.mxu0 0
      %1509 = vmatpush1.bf16.msra.mxu0 0
      %1510 = vmatprep.subr.bf16.mxu0 0
      %1511 = vmatpush1.bf16.msra.mxu0 0
      %1512 = vmatprep.subr.bf16.mxu0 0
      %1513 = vmatpush1.bf16.msra.mxu0 0
      %1514 = vmatprep.subr.bf16.mxu0 0
      %1515 = vmatpush1.bf16.msra.mxu0 0
      %1516 = vmatprep.subr.bf16.mxu0 0
      %1517 = vmatpush1.bf16.msra.mxu0 0
      %1518 = vmatprep.subr.bf16.mxu0 0
      %1519 = vmatpush1.bf16.msra.mxu0 0
      %1520 = vmatprep.subr.bf16.mxu0 0
      %1521 = vmatpush1.bf16.msra.mxu0 0
      %1522 = vmatprep.subr.bf16.mxu0 0
      %1523 = vmatpush1.bf16.msra.mxu0 0
      %1524 = vmatprep.subr.bf16.mxu0 0
      %1525 = vmatpush1.bf16.msra.mxu0 0
      %1526 = vmatprep.subr.bf16.mxu0 0
      %1527 = vmatpush1.bf16.msra.mxu0 0
      %1528 = vmatprep.subr.bf16.mxu0 0
      %1529 = vmatpush1.bf16.msra.mxu0 0
      %1530 = vmatprep.subr.bf16.mxu0 0
      %1531 = vmatpush1.bf16.msra.mxu0 0
      %1532 = vmatprep.mubr.bf16.mxu0 0
      %1533 = vmatmul.mubr.bf16.gmra.mrb[0].mxu0 %v1450
      %v1534 = vpop.f32.mrb[0].mxu0
      %v1535 = vadd.f32 0.0, %v1534
      %v1536 = vpop.f32.mrb[0].mxu0
      %v1537 = vpop.f32.mrb[0].mxu0
      %v1538 = vadd.f32 0.0, %v1537
      %v1539 = vpop.f32.mrb[0].mxu0
      %1540 = vmatprep.mubr.bf16.mxu0 0
      %1541 = vmatmul.mubr.bf16.gmra.mrb[0].mxu0 %v1453
      %v1542 = vpop.f32.mrb[0].mxu0
      %v1543 = vadd.f32 0.0, %v1542
      %v1544 = vpop.f32.mrb[0].mxu0
      %v1545 = vpop.f32.mrb[0].mxu0
      %v1546 = vadd.f32 0.0, %v1545
      %v1547 = vpop.f32.mrb[0].mxu0
      %1548 = vmatprep.mubr.bf16.mxu0 0
      %1549 = vmatmul.mubr.bf16.gmra.mrb[0].mxu0 %v1456
      %v1550 = vpop.f32.mrb[0].mxu0
      %v1551 = vadd.f32 0.0, %v1550
      %v1552 = vpop.f32.mrb[0].mxu0
      %v1553 = vpop.f32.mrb[0].mxu0
      %v1554 = vadd.f32 0.0, %v1553
      %v1555 = vpop.f32.mrb[0].mxu0
      %1556 = vmatprep.mubr.bf16.mxu0 0
      %1557 = vmatmul.mubr.bf16.gmra.mrb[0].mxu0 %v1459
      %v1558 = vpop.f32.mrb[0].mxu0
      %v1559 = vadd.f32 0.0, %v1558
      %v1560 = vpop.f32.mrb[0].mxu0
      %v1561 = vpop.f32.mrb[0].mxu0
      %v1562 = vadd.f32 0.0, %v1561
      %v1563 = vpop.f32.mrb[0].mxu0
      %1564 = vmatprep.mubr.bf16.mxu0 0
      %1565 = vmatmul.mubr.bf16.gmra.mrb[0].mxu0 %v1462
      %v1566 = vpop.f32.mrb[0].mxu0
      %v1567 = vadd.f32 0.0, %v1566
      %v1568 = vpop.f32.mrb[0].mxu0
      %v1569 = vpop.f32.mrb[0].mxu0
      %v1570 = vadd.f32 0.0, %v1569
      %v1571 = vpop.f32.mrb[0].mxu0
      %1572 = vmatprep.mubr.bf16.mxu0 0
      %1573 = vmatmul.mubr.bf16.gmra.mrb[0].mxu0 %v1465
      %v1574 = vpop.f32.mrb[0].mxu0
      %v1575 = vadd.f32 0.0, %v1574
      %v1576 = vpop.f32.mrb[0].mxu0
      %v1577 = vpop.f32.mrb[0].mxu0
      %v1578 = vadd.f32 0.0, %v1577
      %v1579 = vpop.f32.mrb[0].mxu0
      %1580 = vmatprep.mubr.bf16.mxu0 0
      %1581 = vmatmul.mubr.bf16.gmra.mrb[0].mxu0 %v1468
      %v1582 = vpop.f32.mrb[0].mxu0
      %v1583 = vadd.f32 0.0, %v1582
      %v1584 = vpop.f32.mrb[0].mxu0
      %v1585 = vpop.f32.mrb[0].mxu0
      %v1586 = vadd.f32 0.0, %v1585
      %v1587 = vpop.f32.mrb[0].mxu0
      %1588 = vmatprep.mubr.bf16.mxu0 0
      %1589 = vmatmul.mubr.bf16.gmra.mrb[0].mxu0 %v1471
      %v1590 = vpop.f32.mrb[0].mxu0
      %v1591 = vadd.f32 0.0, %v1590
      %v1592 = vpop.f32.mrb[0].mxu0
      %v1593 = vpop.f32.mrb[0].mxu0
      %v1594 = vadd.f32 0.0, %v1593
      %v1595 = vpop.f32.mrb[0].mxu0
      %1596 = vmatprep.mubr.bf16.mxu0 0
      %1597 = vmatmul.mubr.bf16.gmra.mrb[0].mxu0 %v1474
      %v1598 = vpop.f32.mrb[0].mxu0
      %v1599 = vadd.f32 0.0, %v1598
      %v1600 = vpop.f32.mrb[0].mxu0
      %v1601 = vpop.f32.mrb[0].mxu0
      %v1602 = vadd.f32 0.0, %v1601
      %v1603 = vpop.f32.mrb[0].mxu0
      %1604 = vmatprep.mubr.bf16.mxu0 0
      %1605 = vmatmul.mubr.bf16.gmra.mrb[0].mxu0 %v1477
      %v1606 = vpop.f32.mrb[0].mxu0
      %v1607 = vadd.f32 0.0, %v1606
      %v1608 = vpop.f32.mrb[0].mxu0
      %v1609 = vpop.f32.mrb[0].mxu0
      %v1610 = vadd.f32 0.0, %v1609
      %v1611 = vpop.f32.mrb[0].mxu0
      %1612 = vmatprep.mubr.bf16.mxu0 0
      %1613 = vmatmul.mubr.bf16.gmra.mrb[0].mxu0 %v1480
      %v1614 = vpop.f32.mrb[0].mxu0
      %v1615 = vadd.f32 0.0, %v1614
      %v1616 = vpop.f32.mrb[0].mxu0
      %v1617 = vpop.f32.mrb[0].mxu0
      %v1618 = vadd.f32 0.0, %v1617
      %v1619 = vpop.f32.mrb[0].mxu0
      %1620 = vmatprep.mubr.bf16.mxu0 0
      %1621 = vmatmul.mubr.bf16.gmra.mrb[0].mxu0 %v1483
      %v1622 = vpop.f32.mrb[0].mxu0
      %v1623 = vadd.f32 0.0, %v1622
      %v1624 = vpop.f32.mrb[0].mxu0
      %v1625 = vpop.f32.mrb[0].mxu0
      %v1626 = vadd.f32 0.0, %v1625
      %v1627 = vpop.f32.mrb[0].mxu0
      %1628 = vmatprep.mubr.bf16.mxu0 0
      %1629 = vmatmul.mubr.bf16.gmra.mrb[0].mxu0 %v1486
      %v1630 = vpop.f32.mrb[0].mxu0
      %v1631 = vadd.f32 0.0, %v1630
      %v1632 = vpop.f32.mrb[0].mxu0
      %v1633 = vpop.f32.mrb[0].mxu0
      %v1634 = vadd.f32 0.0, %v1633
      %v1635 = vpop.f32.mrb[0].mxu0
      %1636 = vmatprep.mubr.bf16.mxu0 0
      %1637 = vmatmul.mubr.bf16.gmra.mrb[0].mxu0 %v1489
      %v1638 = vpop.f32.mrb[0].mxu0
      %v1639 = vadd.f32 0.0, %v1638
      %v1640 = vpop.f32.mrb[0].mxu0
      %v1641 = vpop.f32.mrb[0].mxu0
      %v1642 = vadd.f32 0.0, %v1641
      %v1643 = vpop.f32.mrb[0].mxu0
      %1644 = vmatprep.mubr.bf16.mxu0 0
      %1645 = vmatmul.mubr.bf16.gmra.mrb[0].mxu0 %v1492
      %v1646 = vpop.f32.mrb[0].mxu0
      %v1647 = vadd.f32 0.0, %v1646
      %v1648 = vpop.f32.mrb[0].mxu0
      %v1649 = vpop.f32.mrb[0].mxu0
      %v1650 = vadd.f32 0.0, %v1649
      %v1651 = vpop.f32.mrb[0].mxu0
      %1652 = vmatprep.mubr.bf16.mxu0 0
      %1653 = vmatmul.mubr.bf16.gmra.mrb[0].mxu0 %v1495
      %v1654 = vpop.f32.mrb[0].mxu0
      %v1655 = vadd.f32 0.0, %v1654
      %v1656 = vpop.f32.mrb[0].mxu0
      %v1657 = vpop.f32.mrb[0].mxu0
      %v1658 = vadd.f32 0.0, %v1657
      %v1659 = vpop.f32.mrb[0].mxu0
      %1660 = vdwg.mxu0
      %v1661 = vadd.f32 %v1367, %v1535
      %v1662 = vadd.f32 %v1368, %v1538
      %v1663 = vadd.f32 %v1369, %v1543
      %v1664 = vadd.f32 %v1370, %v1546
      %v1665 = vadd.f32 %v1371, %v1551
      %v1666 = vadd.f32 %v1372, %v1554
      %v1667 = vadd.f32 %v1373, %v1559
      %v1668 = vadd.f32 %v1374, %v1562
      %v1669 = vadd.f32 %v1375, %v1567
      %v1670 = vadd.f32 %v1376, %v1570
      %v1671 = vadd.f32 %v1377, %v1575
      %v1672 = vadd.f32 %v1378, %v1578
      %v1673 = vadd.f32 %v1379, %v1583
      %v1674 = vadd.f32 %v1380, %v1586
      %v1675 = vadd.f32 %v1381, %v1591
      %v1676 = vadd.f32 %v1382, %v1594
      %v1677 = vadd.f32 %v1383, %v1599
      %v1678 = vadd.f32 %v1384, %v1602
      %v1679 = vadd.f32 %v1385, %v1607
      %v1680 = vadd.f32 %v1386, %v1610
      %v1681 = vadd.f32 %v1387, %v1615
      %v1682 = vadd.f32 %v1388, %v1618
      %v1683 = vadd.f32 %v1389, %v1623
      %v1684 = vadd.f32 %v1390, %v1626
      %v1685 = vadd.f32 %v1391, %v1631
      %v1686 = vadd.f32 %v1392, %v1634
      %v1687 = vadd.f32 %v1393, %v1639
      %v1688 = vadd.f32 %v1394, %v1642
      %v1689 = vadd.f32 %v1395, %v1647
      %v1690 = vadd.f32 %v1396, %v1650
      %v1691 = vadd.f32 %v1397, %v1655
      %v1692 = vadd.f32 %v1398, %v1658
      %v1693 = vld [vmem:[%s548 + $0x1] sm:$0xff]
      %v1694 = vld [vmem:[%s548 + $0x9] sm:$0xff]
      %v1695 = vld [vmem:[%s548 + $0x19] sm:$0xff]
      %v1696 = vld [vmem:[%s548 + $0x21] sm:$0xff]
      %v1697 = vld [vmem:[%s548 + $0x31] sm:$0xff]
      %v1698 = vld [vmem:[%s548 + $0x39] sm:$0xff]
      %v1699 = vld [vmem:[%s548 + $0x49] sm:$0xff]
      %v1700 = vld [vmem:[%s548 + $0x51] sm:$0xff]
      %v1701 = vld [vmem:[%s548 + $0x61] sm:$0xff]
      %v1702 = vld [vmem:[%s548 + $0x69] sm:$0xff]
      %v1703 = vld [vmem:[%s548 + $0x79] sm:$0xff]
      %v1704 = vld [vmem:[%s548 + $0x81] sm:$0xff]
      %v1705 = vld [vmem:[%s548 + $0x91] sm:$0xff]
      %v1706 = vld [vmem:[%s548 + $0x99] sm:$0xff]
      %v1707 = vld [vmem:[%s548 + $0xa9] sm:$0xff]
      %v1708 = vld [vmem:[%s548 + $0xb1] sm:$0xff]
      %v1709 = vld [vmem:[%s548 + $0xc1] sm:$0xff]
      %v1710 = vld [vmem:[%s548 + $0xc9] sm:$0xff]
      %v1711 = vld [vmem:[%s548 + $0xd9] sm:$0xff]
      %v1712 = vld [vmem:[%s548 + $0xe1] sm:$0xff]
      %v1713 = vld [vmem:[%s548 + $0xf1] sm:$0xff]
      %v1714 = vld [vmem:[%s548 + $0xf9] sm:$0xff]
      %v1715 = vld [vmem:[%s548 + $0x109] sm:$0xff]
      %v1716 = vld [vmem:[%s548 + $0x111] sm:$0xff]
      %v1717 = vld [vmem:[%s548 + $0x121] sm:$0xff]
      %v1718 = vld [vmem:[%s548 + $0x129] sm:$0xff]
      %v1719 = vld [vmem:[%s548 + $0x139] sm:$0xff]
      %v1720 = vld [vmem:[%s548 + $0x141] sm:$0xff]
      %v1721 = vld [vmem:[%s548 + $0x151] sm:$0xff]
      %v1722 = vld [vmem:[%s548 + $0x159] sm:$0xff]
      %v1723 = vld [vmem:[%s548 + $0x169] sm:$0xff]
      %v1724 = vld [vmem:[%s548 + $0x171] sm:$0xff]
      %v1725 = vpack.c.bf16 %v1694, %v1693
      %v1726 = vpack.c.bf16 %v1696, %v1695
      %v1727 = vpack.c.bf16 %v1698, %v1697
      %v1728 = vpack.c.bf16 %v1700, %v1699
      %v1729 = vpack.c.bf16 %v1702, %v1701
      %v1730 = vpack.c.bf16 %v1704, %v1703
      %v1731 = vpack.c.bf16 %v1706, %v1705
      %v1732 = vpack.c.bf16 %v1708, %v1707
      %v1733 = vpack.c.bf16 %v1710, %v1709
      %v1734 = vpack.c.bf16 %v1712, %v1711
      %v1735 = vpack.c.bf16 %v1714, %v1713
      %v1736 = vpack.c.bf16 %v1716, %v1715
      %v1737 = vpack.c.bf16 %v1718, %v1717
      %v1738 = vpack.c.bf16 %v1720, %v1719
      %v1739 = vpack.c.bf16 %v1722, %v1721
      %v1740 = vpack.c.bf16 %v1724, %v1723
      %s1741 = scalar_lea.vmem %s3, 8
      %v1742 = vld [vmem:[%s1741] sm:$0x3]
      %v1744 = vsel %vm502, %v1725, 0
      %v1747 = vsel %vm502, %v1726, 0
      %v1750 = vsel %vm502, %v1727, 0
      %v1753 = vsel %vm502, %v1728, 0
      %v1756 = vsel %vm502, %v1729, 0
      %v1759 = vsel %vm502, %v1730, 0
      %v1762 = vsel %vm502, %v1731, 0
      %v1765 = vsel %vm502, %v1732, 0
      %v1768 = vsel %vm502, %v1733, 0
      %v1771 = vsel %vm502, %v1734, 0
      %v1774 = vsel %vm502, %v1735, 0
      %v1777 = vsel %vm502, %v1736, 0
      %v1780 = vsel %vm502, %v1737, 0
      %v1783 = vsel %vm502, %v1738, 0
      %v1786 = vsel %vm502, %v1739, 0
      %v1789 = vsel %vm502, %v1740, 0
      %v1792 = vsel %vm728, %v1742, 0
      %1794 = vmatprep.subr.bf16.mxu0 0
      %1795 = vmatpush1.bf16.msra.mxu0 %v1792
      %1796 = vmatprep.subr.bf16.mxu0 0
      %1797 = vmatpush1.bf16.msra.mxu0 0
      %1798 = vmatprep.subr.bf16.mxu0 0
      %1799 = vmatpush1.bf16.msra.mxu0 0
      %1800 = vmatprep.subr.bf16.mxu0 0
      %1801 = vmatpush1.bf16.msra.mxu0 0
      %1802 = vmatprep.subr.bf16.mxu0 0
      %1803 = vmatpush1.bf16.msra.mxu0 0
      %1804 = vmatprep.subr.bf16.mxu0 0
      %1805 = vmatpush1.bf16.msra.mxu0 0
      %1806 = vmatprep.subr.bf16.mxu0 0
      %1807 = vmatpush1.bf16.msra.mxu0 0
      %1808 = vmatprep.subr.bf16.mxu0 0
      %1809 = vmatpush1.bf16.msra.mxu0 0
      %1810 = vmatprep.subr.bf16.mxu0 0
      %1811 = vmatpush1.bf16.msra.mxu0 0
      %1812 = vmatprep.subr.bf16.mxu0 0
      %1813 = vmatpush1.bf16.msra.mxu0 0
      %1814 = vmatprep.subr.bf16.mxu0 0
      %1815 = vmatpush1.bf16.msra.mxu0 0
      %1816 = vmatprep.subr.bf16.mxu0 0
      %1817 = vmatpush1.bf16.msra.mxu0 0
      %1818 = vmatprep.subr.bf16.mxu0 0
      %1819 = vmatpush1.bf16.msra.mxu0 0
      %1820 = vmatprep.subr.bf16.mxu0 0
      %1821 = vmatpush1.bf16.msra.mxu0 0
      %1822 = vmatprep.subr.bf16.mxu0 0
      %1823 = vmatpush1.bf16.msra.mxu0 0
      %1824 = vmatprep.subr.bf16.mxu0 0
      %1825 = vmatpush1.bf16.msra.mxu0 0
      %1826 = vmatprep.mubr.bf16.mxu0 0
      %1827 = vmatmul.mubr.bf16.gmra.mrb[0].mxu0 %v1744
      %v1828 = vpop.f32.mrb[0].mxu0
      %v1829 = vadd.f32 0.0, %v1828
      %v1830 = vpop.f32.mrb[0].mxu0
      %v1831 = vpop.f32.mrb[0].mxu0
      %v1832 = vadd.f32 0.0, %v1831
      %v1833 = vpop.f32.mrb[0].mxu0
      %1834 = vmatprep.mubr.bf16.mxu0 0
      %1835 = vmatmul.mubr.bf16.gmra.mrb[0].mxu0 %v1747
      %v1836 = vpop.f32.mrb[0].mxu0
      %v1837 = vadd.f32 0.0, %v1836
      %v1838 = vpop.f32.mrb[0].mxu0
      %v1839 = vpop.f32.mrb[0].mxu0
      %v1840 = vadd.f32 0.0, %v1839
      %v1841 = vpop.f32.mrb[0].mxu0
      %1842 = vmatprep.mubr.bf16.mxu0 0
      %1843 = vmatmul.mubr.bf16.gmra.mrb[0].mxu0 %v1750
      %v1844 = vpop.f32.mrb[0].mxu0
      %v1845 = vadd.f32 0.0, %v1844
      %v1846 = vpop.f32.mrb[0].mxu0
      %v1847 = vpop.f32.mrb[0].mxu0
      %v1848 = vadd.f32 0.0, %v1847
      %v1849 = vpop.f32.mrb[0].mxu0
      %1850 = vmatprep.mubr.bf16.mxu0 0
      %1851 = vmatmul.mubr.bf16.gmra.mrb[0].mxu0 %v1753
      %v1852 = vpop.f32.mrb[0].mxu0
      %v1853 = vadd.f32 0.0, %v1852
      %v1854 = vpop.f32.mrb[0].mxu0
      %v1855 = vpop.f32.mrb[0].mxu0
      %v1856 = vadd.f32 0.0, %v1855
      %v1857 = vpop.f32.mrb[0].mxu0
      %1858 = vmatprep.mubr.bf16.mxu0 0
      %1859 = vmatmul.mubr.bf16.gmra.mrb[0].mxu0 %v1756
      %v1860 = vpop.f32.mrb[0].mxu0
      %v1861 = vadd.f32 0.0, %v1860
      %v1862 = vpop.f32.mrb[0].mxu0
      %v1863 = vpop.f32.mrb[0].mxu0
      %v1864 = vadd.f32 0.0, %v1863
      %v1865 = vpop.f32.mrb[0].mxu0
      %1866 = vmatprep.mubr.bf16.mxu0 0
      %1867 = vmatmul.mubr.bf16.gmra.mrb[0].mxu0 %v1759
      %v1868 = vpop.f32.mrb[0].mxu0
      %v1869 = vadd.f32 0.0, %v1868
      %v1870 = vpop.f32.mrb[0].mxu0
      %v1871 = vpop.f32.mrb[0].mxu0
      %v1872 = vadd.f32 0.0, %v1871
      %v1873 = vpop.f32.mrb[0].mxu0
      %1874 = vmatprep.mubr.bf16.mxu0 0
      %1875 = vmatmul.mubr.bf16.gmra.mrb[0].mxu0 %v1762
      %v1876 = vpop.f32.mrb[0].mxu0
      %v1877 = vadd.f32 0.0, %v1876
      %v1878 = vpop.f32.mrb[0].mxu0
      %v1879 = vpop.f32.mrb[0].mxu0
      %v1880 = vadd.f32 0.0, %v1879
      %v1881 = vpop.f32.mrb[0].mxu0
      %1882 = vmatprep.mubr.bf16.mxu0 0
      %1883 = vmatmul.mubr.bf16.gmra.mrb[0].mxu0 %v1765
      %v1884 = vpop.f32.mrb[0].mxu0
      %v1885 = vadd.f32 0.0, %v1884
      %v1886 = vpop.f32.mrb[0].mxu0
      %v1887 = vpop.f32.mrb[0].mxu0
      %v1888 = vadd.f32 0.0, %v1887
      %v1889 = vpop.f32.mrb[0].mxu0
      %1890 = vmatprep.mubr.bf16.mxu0 0
      %1891 = vmatmul.mubr.bf16.gmra.mrb[0].mxu0 %v1768
      %v1892 = vpop.f32.mrb[0].mxu0
      %v1893 = vadd.f32 0.0, %v1892
      %v1894 = vpop.f32.mrb[0].mxu0
      %v1895 = vpop.f32.mrb[0].mxu0
      %v1896 = vadd.f32 0.0, %v1895
      %v1897 = vpop.f32.mrb[0].mxu0
      %1898 = vmatprep.mubr.bf16.mxu0 0
      %1899 = vmatmul.mubr.bf16.gmra.mrb[0].mxu0 %v1771
      %v1900 = vpop.f32.mrb[0].mxu0
      %v1901 = vadd.f32 0.0, %v1900
      %v1902 = vpop.f32.mrb[0].mxu0
      %v1903 = vpop.f32.mrb[0].mxu0
      %v1904 = vadd.f32 0.0, %v1903
      %v1905 = vpop.f32.mrb[0].mxu0
      %1906 = vmatprep.mubr.bf16.mxu0 0
      %1907 = vmatmul.mubr.bf16.gmra.mrb[0].mxu0 %v1774
      %v1908 = vpop.f32.mrb[0].mxu0
      %v1909 = vadd.f32 0.0, %v1908
      %v1910 = vpop.f32.mrb[0].mxu0
      %v1911 = vpop.f32.mrb[0].mxu0
      %v1912 = vadd.f32 0.0, %v1911
      %v1913 = vpop.f32.mrb[0].mxu0
      %1914 = vmatprep.mubr.bf16.mxu0 0
      %1915 = vmatmul.mubr.bf16.gmra.mrb[0].mxu0 %v1777
      %v1916 = vpop.f32.mrb[0].mxu0
      %v1917 = vadd.f32 0.0, %v1916
      %v1918 = vpop.f32.mrb[0].mxu0
      %v1919 = vpop.f32.mrb[0].mxu0
      %v1920 = vadd.f32 0.0, %v1919
      %v1921 = vpop.f32.mrb[0].mxu0
      %1922 = vmatprep.mubr.bf16.mxu0 0
      %1923 = vmatmul.mubr.bf16.gmra.mrb[0].mxu0 %v1780
      %v1924 = vpop.f32.mrb[0].mxu0
      %v1925 = vadd.f32 0.0, %v1924
      %v1926 = vpop.f32.mrb[0].mxu0
      %v1927 = vpop.f32.mrb[0].mxu0
      %v1928 = vadd.f32 0.0, %v1927
      %v1929 = vpop.f32.mrb[0].mxu0
      %1930 = vmatprep.mubr.bf16.mxu0 0
      %1931 = vmatmul.mubr.bf16.gmra.mrb[0].mxu0 %v1783
      %v1932 = vpop.f32.mrb[0].mxu0
      %v1933 = vadd.f32 0.0, %v1932
      %v1934 = vpop.f32.mrb[0].mxu0
      %v1935 = vpop.f32.mrb[0].mxu0
      %v1936 = vadd.f32 0.0, %v1935
      %v1937 = vpop.f32.mrb[0].mxu0
      %1938 = vmatprep.mubr.bf16.mxu0 0
      %1939 = vmatmul.mubr.bf16.gmra.mrb[0].mxu0 %v1786
      %v1940 = vpop.f32.mrb[0].mxu0
      %v1941 = vadd.f32 0.0, %v1940
      %v1942 = vpop.f32.mrb[0].mxu0
      %v1943 = vpop.f32.mrb[0].mxu0
      %v1944 = vadd.f32 0.0, %v1943
      %v1945 = vpop.f32.mrb[0].mxu0
      %1946 = vmatprep.mubr.bf16.mxu0 0
      %1947 = vmatmul.mubr.bf16.gmra.mrb[0].mxu0 %v1789
      %v1948 = vpop.f32.mrb[0].mxu0
      %v1949 = vadd.f32 0.0, %v1948
      %v1950 = vpop.f32.mrb[0].mxu0
      %v1951 = vpop.f32.mrb[0].mxu0
      %v1952 = vadd.f32 0.0, %v1951
      %v1953 = vpop.f32.mrb[0].mxu0
      %1954 = vdwg.mxu0
      %v1955 = vadd.f32 %v1661, %v1829
      %v1956 = vadd.f32 %v1662, %v1832
      %v1957 = vadd.f32 %v1663, %v1837
      %v1958 = vadd.f32 %v1664, %v1840
      %v1959 = vadd.f32 %v1665, %v1845
      %v1960 = vadd.f32 %v1666, %v1848
      %v1961 = vadd.f32 %v1667, %v1853
      %v1962 = vadd.f32 %v1668, %v1856
      %v1963 = vadd.f32 %v1669, %v1861
      %v1964 = vadd.f32 %v1670, %v1864
      %v1965 = vadd.f32 %v1671, %v1869
      %v1966 = vadd.f32 %v1672, %v1872
      %v1967 = vadd.f32 %v1673, %v1877
      %v1968 = vadd.f32 %v1674, %v1880
      %v1969 = vadd.f32 %v1675, %v1885
      %v1970 = vadd.f32 %v1676, %v1888
      %v1971 = vadd.f32 %v1677, %v1893
      %v1972 = vadd.f32 %v1678, %v1896
      %v1973 = vadd.f32 %v1679, %v1901
      %v1974 = vadd.f32 %v1680, %v1904
      %v1975 = vadd.f32 %v1681, %v1909
      %v1976 = vadd.f32 %v1682, %v1912
      %v1977 = vadd.f32 %v1683, %v1917
      %v1978 = vadd.f32 %v1684, %v1920
      %v1979 = vadd.f32 %v1685, %v1925
      %v1980 = vadd.f32 %v1686, %v1928
      %v1981 = vadd.f32 %v1687, %v1933
      %v1982 = vadd.f32 %v1688, %v1936
      %v1983 = vadd.f32 %v1689, %v1941
      %v1984 = vadd.f32 %v1690, %v1944
      %v1985 = vadd.f32 %v1691, %v1949
      %v1986 = vadd.f32 %v1692, %v1952
      %v1987 = vld [vmem:[%s548 + $0x2] sm:$0xff]
      %v1988 = vld [vmem:[%s548 + $0xa] sm:$0xff]
      %v1989 = vld [vmem:[%s548 + $0x1a] sm:$0xff]
      %v1990 = vld [vmem:[%s548 + $0x22] sm:$0xff]
      %v1991 = vld [vmem:[%s548 + $0x32] sm:$0xff]
      %v1992 = vld [vmem:[%s548 + $0x3a] sm:$0xff]
      %v1993 = vld [vmem:[%s548 + $0x4a] sm:$0xff]
      %v1994 = vld [vmem:[%s548 + $0x52] sm:$0xff]
      %v1995 = vld [vmem:[%s548 + $0x62] sm:$0xff]
      %v1996 = vld [vmem:[%s548 + $0x6a] sm:$0xff]
      %v1997 = vld [vmem:[%s548 + $0x7a] sm:$0xff]
      %v1998 = vld [vmem:[%s548 + $0x82] sm:$0xff]
      %v1999 = vld [vmem:[%s548 + $0x92] sm:$0xff]
      %v2000 = vld [vmem:[%s548 + $0x9a] sm:$0xff]
      %v2001 = vld [vmem:[%s548 + $0xaa] sm:$0xff]
      %v2002 = vld [vmem:[%s548 + $0xb2] sm:$0xff]
      %v2003 = vld [vmem:[%s548 + $0xc2] sm:$0xff]
      %v2004 = vld [vmem:[%s548 + $0xca] sm:$0xff]
      %v2005 = vld [vmem:[%s548 + $0xda] sm:$0xff]
      %v2006 = vld [vmem:[%s548 + $0xe2] sm:$0xff]
      %v2007 = vld [vmem:[%s548 + $0xf2] sm:$0xff]
      %v2008 = vld [vmem:[%s548 + $0xfa] sm:$0xff]
      %v2009 = vld [vmem:[%s548 + $0x10a] sm:$0xff]
      %v2010 = vld [vmem:[%s548 + $0x112] sm:$0xff]
      %v2011 = vld [vmem:[%s548 + $0x122] sm:$0xff]
      %v2012 = vld [vmem:[%s548 + $0x12a] sm:$0xff]
      %v2013 = vld [vmem:[%s548 + $0x13a] sm:$0xff]
      %v2014 = vld [vmem:[%s548 + $0x142] sm:$0xff]
      %v2015 = vld [vmem:[%s548 + $0x152] sm:$0xff]
      %v2016 = vld [vmem:[%s548 + $0x15a] sm:$0xff]
      %v2017 = vld [vmem:[%s548 + $0x16a] sm:$0xff]
      %v2018 = vld [vmem:[%s548 + $0x172] sm:$0xff]
      %v2019 = vpack.c.bf16 %v1988, %v1987
      %v2020 = vpack.c.bf16 %v1990, %v1989
      %v2021 = vpack.c.bf16 %v1992, %v1991
      %v2022 = vpack.c.bf16 %v1994, %v1993
      %v2023 = vpack.c.bf16 %v1996, %v1995
      %v2024 = vpack.c.bf16 %v1998, %v1997
      %v2025 = vpack.c.bf16 %v2000, %v1999
      %v2026 = vpack.c.bf16 %v2002, %v2001
      %v2027 = vpack.c.bf16 %v2004, %v2003
      %v2028 = vpack.c.bf16 %v2006, %v2005
      %v2029 = vpack.c.bf16 %v2008, %v2007
      %v2030 = vpack.c.bf16 %v2010, %v2009
      %v2031 = vpack.c.bf16 %v2012, %v2011
      %v2032 = vpack.c.bf16 %v2014, %v2013
      %v2033 = vpack.c.bf16 %v2016, %v2015
      %v2034 = vpack.c.bf16 %v2018, %v2017
      %s2035 = scalar_lea.vmem %s3, 10
      %v2036 = vld [vmem:[%s2035] sm:$0x3]
      %v2038 = vsel %vm502, %v2019, 0
      %v2041 = vsel %vm502, %v2020, 0
      %v2044 = vsel %vm502, %v2021, 0
      %v2047 = vsel %vm502, %v2022, 0
      %v2050 = vsel %vm502, %v2023, 0
      %v2053 = vsel %vm502, %v2024, 0
      %v2056 = vsel %vm502, %v2025, 0
      %v2059 = vsel %vm502, %v2026, 0
      %v2062 = vsel %vm502, %v2027, 0
      %v2065 = vsel %vm502, %v2028, 0
      %v2068 = vsel %vm502, %v2029, 0
      %v2071 = vsel %vm502, %v2030, 0
      %v2074 = vsel %vm502, %v2031, 0
      %v2077 = vsel %vm502, %v2032, 0
      %v2080 = vsel %vm502, %v2033, 0
      %v2083 = vsel %vm502, %v2034, 0
      %v2086 = vsel %vm728, %v2036, 0
      %2088 = vmatprep.subr.bf16.mxu0 0
      %2089 = vmatpush1.bf16.msra.mxu0 %v2086
      %2090 = vmatprep.subr.bf16.mxu0 0
      %2091 = vmatpush1.bf16.msra.mxu0 0
      %2092 = vmatprep.subr.bf16.mxu0 0
      %2093 = vmatpush1.bf16.msra.mxu0 0
      %2094 = vmatprep.subr.bf16.mxu0 0
      %2095 = vmatpush1.bf16.msra.mxu0 0
      %2096 = vmatprep.subr.bf16.mxu0 0
      %2097 = vmatpush1.bf16.msra.mxu0 0
      %2098 = vmatprep.subr.bf16.mxu0 0
      %2099 = vmatpush1.bf16.msra.mxu0 0
      %2100 = vmatprep.subr.bf16.mxu0 0
      %2101 = vmatpush1.bf16.msra.mxu0 0
      %2102 = vmatprep.subr.bf16.mxu0 0
      %2103 = vmatpush1.bf16.msra.mxu0 0
      %2104 = vmatprep.subr.bf16.mxu0 0
      %2105 = vmatpush1.bf16.msra.mxu0 0
      %2106 = vmatprep.subr.bf16.mxu0 0
      %2107 = vmatpush1.bf16.msra.mxu0 0
      %2108 = vmatprep.subr.bf16.mxu0 0
      %2109 = vmatpush1.bf16.msra.mxu0 0
      %2110 = vmatprep.subr.bf16.mxu0 0
      %2111 = vmatpush1.bf16.msra.mxu0 0
      %2112 = vmatprep.subr.bf16.mxu0 0
      %2113 = vmatpush1.bf16.msra.mxu0 0
      %2114 = vmatprep.subr.bf16.mxu0 0
      %2115 = vmatpush1.bf16.msra.mxu0 0
      %2116 = vmatprep.subr.bf16.mxu0 0
      %2117 = vmatpush1.bf16.msra.mxu0 0
      %2118 = vmatprep.subr.bf16.mxu0 0
      %2119 = vmatpush1.bf16.msra.mxu0 0
      %2120 = vmatprep.mubr.bf16.mxu0 0
      %2121 = vmatmul.mubr.bf16.gmra.mrb[0].mxu0 %v2038
      %v2122 = vpop.f32.mrb[0].mxu0
      %v2123 = vadd.f32 0.0, %v2122
      %v2124 = vpop.f32.mrb[0].mxu0
      %v2125 = vpop.f32.mrb[0].mxu0
      %v2126 = vadd.f32 0.0, %v2125
      %v2127 = vpop.f32.mrb[0].mxu0
      %2128 = vmatprep.mubr.bf16.mxu0 0
      %2129 = vmatmul.mubr.bf16.gmra.mrb[0].mxu0 %v2041
      %v2130 = vpop.f32.mrb[0].mxu0
      %v2131 = vadd.f32 0.0, %v2130
      %v2132 = vpop.f32.mrb[0].mxu0
      %v2133 = vpop.f32.mrb[0].mxu0
      %v2134 = vadd.f32 0.0, %v2133
      %v2135 = vpop.f32.mrb[0].mxu0
      %2136 = vmatprep.mubr.bf16.mxu0 0
      %2137 = vmatmul.mubr.bf16.gmra.mrb[0].mxu0 %v2044
      %v2138 = vpop.f32.mrb[0].mxu0
      %v2139 = vadd.f32 0.0, %v2138
      %v2140 = vpop.f32.mrb[0].mxu0
      %v2141 = vpop.f32.mrb[0].mxu0
      %v2142 = vadd.f32 0.0, %v2141
      %v2143 = vpop.f32.mrb[0].mxu0
      %2144 = vmatprep.mubr.bf16.mxu0 0
      %2145 = vmatmul.mubr.bf16.gmra.mrb[0].mxu0 %v2047
      %v2146 = vpop.f32.mrb[0].mxu0
      %v2147 = vadd.f32 0.0, %v2146
      %v2148 = vpop.f32.mrb[0].mxu0
      %v2149 = vpop.f32.mrb[0].mxu0
      %v2150 = vadd.f32 0.0, %v2149
      %v2151 = vpop.f32.mrb[0].mxu0
      %2152 = vmatprep.mubr.bf16.mxu0 0
      %2153 = vmatmul.mubr.bf16.gmra.mrb[0].mxu0 %v2050
      %v2154 = vpop.f32.mrb[0].mxu0
      %v2155 = vadd.f32 0.0, %v2154
      %v2156 = vpop.f32.mrb[0].mxu0
      %v2157 = vpop.f32.mrb[0].mxu0
      %v2158 = vadd.f32 0.0, %v2157
      %v2159 = vpop.f32.mrb[0].mxu0
      %2160 = vmatprep.mubr.bf16.mxu0 0
      %2161 = vmatmul.mubr.bf16.gmra.mrb[0].mxu0 %v2053
      %v2162 = vpop.f32.mrb[0].mxu0
      %v2163 = vadd.f32 0.0, %v2162
      %v2164 = vpop.f32.mrb[0].mxu0
      %v2165 = vpop.f32.mrb[0].mxu0
      %v2166 = vadd.f32 0.0, %v2165
      %v2167 = vpop.f32.mrb[0].mxu0
      %2168 = vmatprep.mubr.bf16.mxu0 0
      %2169 = vmatmul.mubr.bf16.gmra.mrb[0].mxu0 %v2056
      %v2170 = vpop.f32.mrb[0].mxu0
      %v2171 = vadd.f32 0.0, %v2170
      %v2172 = vpop.f32.mrb[0].mxu0
      %v2173 = vpop.f32.mrb[0].mxu0
      %v2174 = vadd.f32 0.0, %v2173
      %v2175 = vpop.f32.mrb[0].mxu0
      %2176 = vmatprep.mubr.bf16.mxu0 0
      %2177 = vmatmul.mubr.bf16.gmra.mrb[0].mxu0 %v2059
      %v2178 = vpop.f32.mrb[0].mxu0
      %v2179 = vadd.f32 0.0, %v2178
      %v2180 = vpop.f32.mrb[0].mxu0
      %v2181 = vpop.f32.mrb[0].mxu0
      %v2182 = vadd.f32 0.0, %v2181
      %v2183 = vpop.f32.mrb[0].mxu0
      %2184 = vmatprep.mubr.bf16.mxu0 0
      %2185 = vmatmul.mubr.bf16.gmra.mrb[0].mxu0 %v2062
      %v2186 = vpop.f32.mrb[0].mxu0
      %v2187 = vadd.f32 0.0, %v2186
      %v2188 = vpop.f32.mrb[0].mxu0
      %v2189 = vpop.f32.mrb[0].mxu0
      %v2190 = vadd.f32 0.0, %v2189
      %v2191 = vpop.f32.mrb[0].mxu0
      %2192 = vmatprep.mubr.bf16.mxu0 0
      %2193 = vmatmul.mubr.bf16.gmra.mrb[0].mxu0 %v2065
      %v2194 = vpop.f32.mrb[0].mxu0
      %v2195 = vadd.f32 0.0, %v2194
      %v2196 = vpop.f32.mrb[0].mxu0
      %v2197 = vpop.f32.mrb[0].mxu0
      %v2198 = vadd.f32 0.0, %v2197
      %v2199 = vpop.f32.mrb[0].mxu0
      %2200 = vmatprep.mubr.bf16.mxu0 0
      %2201 = vmatmul.mubr.bf16.gmra.mrb[0].mxu0 %v2068
      %v2202 = vpop.f32.mrb[0].mxu0
      %v2203 = vadd.f32 0.0, %v2202
      %v2204 = vpop.f32.mrb[0].mxu0
      %v2205 = vpop.f32.mrb[0].mxu0
      %v2206 = vadd.f32 0.0, %v2205
      %v2207 = vpop.f32.mrb[0].mxu0
      %2208 = vmatprep.mubr.bf16.mxu0 0
      %2209 = vmatmul.mubr.bf16.gmra.mrb[0].mxu0 %v2071
      %v2210 = vpop.f32.mrb[0].mxu0
      %v2211 = vadd.f32 0.0, %v2210
      %v2212 = vpop.f32.mrb[0].mxu0
      %v2213 = vpop.f32.mrb[0].mxu0
      %v2214 = vadd.f32 0.0, %v2213
      %v2215 = vpop.f32.mrb[0].mxu0
      %2216 = vmatprep.mubr.bf16.mxu0 0
      %2217 = vmatmul.mubr.bf16.gmra.mrb[0].mxu0 %v2074
      %v2218 = vpop.f32.mrb[0].mxu0
      %v2219 = vadd.f32 0.0, %v2218
      %v2220 = vpop.f32.mrb[0].mxu0
      %v2221 = vpop.f32.mrb[0].mxu0
      %v2222 = vadd.f32 0.0, %v2221
      %v2223 = vpop.f32.mrb[0].mxu0
      %2224 = vmatprep.mubr.bf16.mxu0 0
      %2225 = vmatmul.mubr.bf16.gmra.mrb[0].mxu0 %v2077
      %v2226 = vpop.f32.mrb[0].mxu0
      %v2227 = vadd.f32 0.0, %v2226
      %v2228 = vpop.f32.mrb[0].mxu0
      %v2229 = vpop.f32.mrb[0].mxu0
      %v2230 = vadd.f32 0.0, %v2229
      %v2231 = vpop.f32.mrb[0].mxu0
      %2232 = vmatprep.mubr.bf16.mxu0 0
      %2233 = vmatmul.mubr.bf16.gmra.mrb[0].mxu0 %v2080
      %v2234 = vpop.f32.mrb[0].mxu0
      %v2235 = vadd.f32 0.0, %v2234
      %v2236 = vpop.f32.mrb[0].mxu0
      %v2237 = vpop.f32.mrb[0].mxu0
      %v2238 = vadd.f32 0.0, %v2237
      %v2239 = vpop.f32.mrb[0].mxu0
      %2240 = vmatprep.mubr.bf16.mxu0 0
      %2241 = vmatmul.mubr.bf16.gmra.mrb[0].mxu0 %v2083
      %v2242 = vpop.f32.mrb[0].mxu0
      %v2243 = vadd.f32 0.0, %v2242
      %v2244 = vpop.f32.mrb[0].mxu0
      %v2245 = vpop.f32.mrb[0].mxu0
      %v2246 = vadd.f32 0.0, %v2245
      %v2247 = vpop.f32.mrb[0].mxu0
      %2248 = vdwg.mxu0
      %v2249 = vadd.f32 %v1955, %v2123
      %v2250 = vadd.f32 %v1956, %v2126
      %v2251 = vadd.f32 %v1957, %v2131
      %v2252 = vadd.f32 %v1958, %v2134
      %v2253 = vadd.f32 %v1959, %v2139
      %v2254 = vadd.f32 %v1960, %v2142
      %v2255 = vadd.f32 %v1961, %v2147
      %v2256 = vadd.f32 %v1962, %v2150
      %v2257 = vadd.f32 %v1963, %v2155
      %v2258 = vadd.f32 %v1964, %v2158
      %v2259 = vadd.f32 %v1965, %v2163
      %v2260 = vadd.f32 %v1966, %v2166
      %v2261 = vadd.f32 %v1967, %v2171
      %v2262 = vadd.f32 %v1968, %v2174
      %v2263 = vadd.f32 %v1969, %v2179
      %v2264 = vadd.f32 %v1970, %v2182
      %v2265 = vadd.f32 %v1971, %v2187
      %v2266 = vadd.f32 %v1972, %v2190
      %v2267 = vadd.f32 %v1973, %v2195
      %v2268 = vadd.f32 %v1974, %v2198
      %v2269 = vadd.f32 %v1975, %v2203
      %v2270 = vadd.f32 %v1976, %v2206
      %v2271 = vadd.f32 %v1977, %v2211
      %v2272 = vadd.f32 %v1978, %v2214
      %v2273 = vadd.f32 %v1979, %v2219
      %v2274 = vadd.f32 %v1980, %v2222
      %v2275 = vadd.f32 %v1981, %v2227
      %v2276 = vadd.f32 %v1982, %v2230
      %v2277 = vadd.f32 %v1983, %v2235
      %v2278 = vadd.f32 %v1984, %v2238
      %v2279 = vadd.f32 %v1985, %v2243
      %v2280 = vadd.f32 %v1986, %v2246
      %s2281 = scalar_lea.vmem [#allocation2], 48
      %v2282 = vld [vmem:[%s2281] sm:$0xff]
      %v2283 = vld [vmem:[%s2281 + $0x8] sm:$0xff]
      %v2284 = vld [vmem:[%s2281 + $0x18] sm:$0xff]
      %v2285 = vld [vmem:[%s2281 + $0x20] sm:$0xff]
      %v2286 = vld [vmem:[%s2281 + $0x30] sm:$0xff]
      %v2287 = vld [vmem:[%s2281 + $0x38] sm:$0xff]
      %v2288 = vld [vmem:[%s2281 + $0x48] sm:$0xff]
      %v2289 = vld [vmem:[%s2281 + $0x50] sm:$0xff]
      %v2290 = vld [vmem:[%s2281 + $0x60] sm:$0xff]
      %v2291 = vld [vmem:[%s2281 + $0x68] sm:$0xff]
      %v2292 = vld [vmem:[%s2281 + $0x78] sm:$0xff]
      %v2293 = vld [vmem:[%s2281 + $0x80] sm:$0xff]
      %v2294 = vld [vmem:[%s2281 + $0x90] sm:$0xff]
      %v2295 = vld [vmem:[%s2281 + $0x98] sm:$0xff]
      %v2296 = vld [vmem:[%s2281 + $0xa8] sm:$0xff]
      %v2297 = vld [vmem:[%s2281 + $0xb0] sm:$0xff]
      %v2298 = vld [vmem:[%s2281 + $0xc0] sm:$0xff]
      %v2299 = vld [vmem:[%s2281 + $0xc8] sm:$0xff]
      %v2300 = vld [vmem:[%s2281 + $0xd8] sm:$0xff]
      %v2301 = vld [vmem:[%s2281 + $0xe0] sm:$0xff]
      %v2302 = vld [vmem:[%s2281 + $0xf0] sm:$0xff]
      %v2303 = vld [vmem:[%s2281 + $0xf8] sm:$0xff]
      %v2304 = vld [vmem:[%s2281 + $0x108] sm:$0xff]
      %v2305 = vld [vmem:[%s2281 + $0x110] sm:$0xff]
      %v2306 = vld [vmem:[%s2281 + $0x120] sm:$0xff]
      %v2307 = vld [vmem:[%s2281 + $0x128] sm:$0xff]
      %v2308 = vld [vmem:[%s2281 + $0x138] sm:$0xff]
      %v2309 = vld [vmem:[%s2281 + $0x140] sm:$0xff]
      %v2310 = vld [vmem:[%s2281 + $0x150] sm:$0xff]
      %v2311 = vld [vmem:[%s2281 + $0x158] sm:$0xff]
      %v2312 = vld [vmem:[%s2281 + $0x168] sm:$0xff]
      %v2313 = vld [vmem:[%s2281 + $0x170] sm:$0xff]
      %v2314 = vpack.c.bf16 %v2283, %v2282
      %v2315 = vpack.c.bf16 %v2285, %v2284
      %v2316 = vpack.c.bf16 %v2287, %v2286
      %v2317 = vpack.c.bf16 %v2289, %v2288
      %v2318 = vpack.c.bf16 %v2291, %v2290
      %v2319 = vpack.c.bf16 %v2293, %v2292
      %v2320 = vpack.c.bf16 %v2295, %v2294
      %v2321 = vpack.c.bf16 %v2297, %v2296
      %v2322 = vpack.c.bf16 %v2299, %v2298
      %v2323 = vpack.c.bf16 %v2301, %v2300
      %v2324 = vpack.c.bf16 %v2303, %v2302
      %v2325 = vpack.c.bf16 %v2305, %v2304
      %v2326 = vpack.c.bf16 %v2307, %v2306
      %v2327 = vpack.c.bf16 %v2309, %v2308
      %v2328 = vpack.c.bf16 %v2311, %v2310
      %v2329 = vpack.c.bf16 %v2313, %v2312
      %s2330 = scalar_lea.vmem %s3, 12
      %v2331 = vld [vmem:[%s2330] sm:$0x3]
      %v2333 = vsel %vm502, %v2314, 0
      %v2336 = vsel %vm502, %v2315, 0
      %v2339 = vsel %vm502, %v2316, 0
      %v2342 = vsel %vm502, %v2317, 0
      %v2345 = vsel %vm502, %v2318, 0
      %v2348 = vsel %vm502, %v2319, 0
      %v2351 = vsel %vm502, %v2320, 0
      %v2354 = vsel %vm502, %v2321, 0
      %v2357 = vsel %vm502, %v2322, 0
      %v2360 = vsel %vm502, %v2323, 0
      %v2363 = vsel %vm502, %v2324, 0
      %v2366 = vsel %vm502, %v2325, 0
      %v2369 = vsel %vm502, %v2326, 0
      %v2372 = vsel %vm502, %v2327, 0
      %v2375 = vsel %vm502, %v2328, 0
      %v2378 = vsel %vm502, %v2329, 0
      %v2381 = vsel %vm728, %v2331, 0
      %2383 = vmatprep.subr.bf16.mxu0 0
      %2384 = vmatpush1.bf16.msra.mxu0 %v2381
      %2385 = vmatprep.subr.bf16.mxu0 0
      %2386 = vmatpush1.bf16.msra.mxu0 0
      %2387 = vmatprep.subr.bf16.mxu0 0
      %2388 = vmatpush1.bf16.msra.mxu0 0
      %2389 = vmatprep.subr.bf16.mxu0 0
      %2390 = vmatpush1.bf16.msra.mxu0 0
      %2391 = vmatprep.subr.bf16.mxu0 0
      %2392 = vmatpush1.bf16.msra.mxu0 0
      %2393 = vmatprep.subr.bf16.mxu0 0
      %2394 = vmatpush1.bf16.msra.mxu0 0
      %2395 = vmatprep.subr.bf16.mxu0 0
      %2396 = vmatpush1.bf16.msra.mxu0 0
      %2397 = vmatprep.subr.bf16.mxu0 0
      %2398 = vmatpush1.bf16.msra.mxu0 0
      %2399 = vmatprep.subr.bf16.mxu0 0
      %2400 = vmatpush1.bf16.msra.mxu0 0
      %2401 = vmatprep.subr.bf16.mxu0 0
      %2402 = vmatpush1.bf16.msra.mxu0 0
      %2403 = vmatprep.subr.bf16.mxu0 0
      %2404 = vmatpush1.bf16.msra.mxu0 0
      %2405 = vmatprep.subr.bf16.mxu0 0
      %2406 = vmatpush1.bf16.msra.mxu0 0
      %2407 = vmatprep.subr.bf16.mxu0 0
      %2408 = vmatpush1.bf16.msra.mxu0 0
      %2409 = vmatprep.subr.bf16.mxu0 0
      %2410 = vmatpush1.bf16.msra.mxu0 0
      %2411 = vmatprep.subr.bf16.mxu0 0
      %2412 = vmatpush1.bf16.msra.mxu0 0
      %2413 = vmatprep.subr.bf16.mxu0 0
      %2414 = vmatpush1.bf16.msra.mxu0 0
      %2415 = vmatprep.mubr.bf16.mxu0 0
      %2416 = vmatmul.mubr.bf16.gmra.mrb[0].mxu0 %v2333
      %v2417 = vpop.f32.mrb[0].mxu0
      %v2418 = vadd.f32 0.0, %v2417
      %v2419 = vpop.f32.mrb[0].mxu0
      %v2420 = vpop.f32.mrb[0].mxu0
      %v2421 = vadd.f32 0.0, %v2420
      %v2422 = vpop.f32.mrb[0].mxu0
      %2423 = vmatprep.mubr.bf16.mxu0 0
      %2424 = vmatmul.mubr.bf16.gmra.mrb[0].mxu0 %v2336
      %v2425 = vpop.f32.mrb[0].mxu0
      %v2426 = vadd.f32 0.0, %v2425
      %v2427 = vpop.f32.mrb[0].mxu0
      %v2428 = vpop.f32.mrb[0].mxu0
      %v2429 = vadd.f32 0.0, %v2428
      %v2430 = vpop.f32.mrb[0].mxu0
      %2431 = vmatprep.mubr.bf16.mxu0 0
      %2432 = vmatmul.mubr.bf16.gmra.mrb[0].mxu0 %v2339
      %v2433 = vpop.f32.mrb[0].mxu0
      %v2434 = vadd.f32 0.0, %v2433
      %v2435 = vpop.f32.mrb[0].mxu0
      %v2436 = vpop.f32.mrb[0].mxu0
      %v2437 = vadd.f32 0.0, %v2436
      %v2438 = vpop.f32.mrb[0].mxu0
      %2439 = vmatprep.mubr.bf16.mxu0 0
      %2440 = vmatmul.mubr.bf16.gmra.mrb[0].mxu0 %v2342
      %v2441 = vpop.f32.mrb[0].mxu0
      %v2442 = vadd.f32 0.0, %v2441
      %v2443 = vpop.f32.mrb[0].mxu0
      %v2444 = vpop.f32.mrb[0].mxu0
      %v2445 = vadd.f32 0.0, %v2444
      %v2446 = vpop.f32.mrb[0].mxu0
      %2447 = vmatprep.mubr.bf16.mxu0 0
      %2448 = vmatmul.mubr.bf16.gmra.mrb[0].mxu0 %v2345
      %v2449 = vpop.f32.mrb[0].mxu0
      %v2450 = vadd.f32 0.0, %v2449
      %v2451 = vpop.f32.mrb[0].mxu0
      %v2452 = vpop.f32.mrb[0].mxu0
      %v2453 = vadd.f32 0.0, %v2452
      %v2454 = vpop.f32.mrb[0].mxu0
      %2455 = vmatprep.mubr.bf16.mxu0 0
      %2456 = vmatmul.mubr.bf16.gmra.mrb[0].mxu0 %v2348
      %v2457 = vpop.f32.mrb[0].mxu0
      %v2458 = vadd.f32 0.0, %v2457
      %v2459 = vpop.f32.mrb[0].mxu0
      %v2460 = vpop.f32.mrb[0].mxu0
      %v2461 = vadd.f32 0.0, %v2460
      %v2462 = vpop.f32.mrb[0].mxu0
      %2463 = vmatprep.mubr.bf16.mxu0 0
      %2464 = vmatmul.mubr.bf16.gmra.mrb[0].mxu0 %v2351
      %v2465 = vpop.f32.mrb[0].mxu0
      %v2466 = vadd.f32 0.0, %v2465
      %v2467 = vpop.f32.mrb[0].mxu0
      %v2468 = vpop.f32.mrb[0].mxu0
      %v2469 = vadd.f32 0.0, %v2468
      %v2470 = vpop.f32.mrb[0].mxu0
      %2471 = vmatprep.mubr.bf16.mxu0 0
      %2472 = vmatmul.mubr.bf16.gmra.mrb[0].mxu0 %v2354
      %v2473 = vpop.f32.mrb[0].mxu0
      %v2474 = vadd.f32 0.0, %v2473
      %v2475 = vpop.f32.mrb[0].mxu0
      %v2476 = vpop.f32.mrb[0].mxu0
      %v2477 = vadd.f32 0.0, %v2476
      %v2478 = vpop.f32.mrb[0].mxu0
      %2479 = vmatprep.mubr.bf16.mxu0 0
      %2480 = vmatmul.mubr.bf16.gmra.mrb[0].mxu0 %v2357
      %v2481 = vpop.f32.mrb[0].mxu0
      %v2482 = vadd.f32 0.0, %v2481
      %v2483 = vpop.f32.mrb[0].mxu0
      %v2484 = vpop.f32.mrb[0].mxu0
      %v2485 = vadd.f32 0.0, %v2484
      %v2486 = vpop.f32.mrb[0].mxu0
      %2487 = vmatprep.mubr.bf16.mxu0 0
      %2488 = vmatmul.mubr.bf16.gmra.mrb[0].mxu0 %v2360
      %v2489 = vpop.f32.mrb[0].mxu0
      %v2490 = vadd.f32 0.0, %v2489
      %v2491 = vpop.f32.mrb[0].mxu0
      %v2492 = vpop.f32.mrb[0].mxu0
      %v2493 = vadd.f32 0.0, %v2492
      %v2494 = vpop.f32.mrb[0].mxu0
      %2495 = vmatprep.mubr.bf16.mxu0 0
      %2496 = vmatmul.mubr.bf16.gmra.mrb[0].mxu0 %v2363
      %v2497 = vpop.f32.mrb[0].mxu0
      %v2498 = vadd.f32 0.0, %v2497
      %v2499 = vpop.f32.mrb[0].mxu0
      %v2500 = vpop.f32.mrb[0].mxu0
      %v2501 = vadd.f32 0.0, %v2500
      %v2502 = vpop.f32.mrb[0].mxu0
      %2503 = vmatprep.mubr.bf16.mxu0 0
      %2504 = vmatmul.mubr.bf16.gmra.mrb[0].mxu0 %v2366
      %v2505 = vpop.f32.mrb[0].mxu0
      %v2506 = vadd.f32 0.0, %v2505
      %v2507 = vpop.f32.mrb[0].mxu0
      %v2508 = vpop.f32.mrb[0].mxu0
      %v2509 = vadd.f32 0.0, %v2508
      %v2510 = vpop.f32.mrb[0].mxu0
      %2511 = vmatprep.mubr.bf16.mxu0 0
      %2512 = vmatmul.mubr.bf16.gmra.mrb[0].mxu0 %v2369
      %v2513 = vpop.f32.mrb[0].mxu0
      %v2514 = vadd.f32 0.0, %v2513
      %v2515 = vpop.f32.mrb[0].mxu0
      %v2516 = vpop.f32.mrb[0].mxu0
      %v2517 = vadd.f32 0.0, %v2516
      %v2518 = vpop.f32.mrb[0].mxu0
      %2519 = vmatprep.mubr.bf16.mxu0 0
      %2520 = vmatmul.mubr.bf16.gmra.mrb[0].mxu0 %v2372
      %v2521 = vpop.f32.mrb[0].mxu0
      %v2522 = vadd.f32 0.0, %v2521
      %v2523 = vpop.f32.mrb[0].mxu0
      %v2524 = vpop.f32.mrb[0].mxu0
      %v2525 = vadd.f32 0.0, %v2524
      %v2526 = vpop.f32.mrb[0].mxu0
      %2527 = vmatprep.mubr.bf16.mxu0 0
      %2528 = vmatmul.mubr.bf16.gmra.mrb[0].mxu0 %v2375
      %v2529 = vpop.f32.mrb[0].mxu0
      %v2530 = vadd.f32 0.0, %v2529
      %v2531 = vpop.f32.mrb[0].mxu0
      %v2532 = vpop.f32.mrb[0].mxu0
      %v2533 = vadd.f32 0.0, %v2532
      %v2534 = vpop.f32.mrb[0].mxu0
      %2535 = vmatprep.mubr.bf16.mxu0 0
      %2536 = vmatmul.mubr.bf16.gmra.mrb[0].mxu0 %v2378
      %v2537 = vpop.f32.mrb[0].mxu0
      %v2538 = vadd.f32 0.0, %v2537
      %v2539 = vpop.f32.mrb[0].mxu0
      %v2540 = vpop.f32.mrb[0].mxu0
      %v2541 = vadd.f32 0.0, %v2540
      %v2542 = vpop.f32.mrb[0].mxu0
      %2543 = vdwg.mxu0
      %v2544 = vadd.f32 %v2249, %v2418
      %v2545 = vadd.f32 %v2250, %v2421
      %v2546 = vadd.f32 %v2251, %v2426
      %v2547 = vadd.f32 %v2252, %v2429
      %v2548 = vadd.f32 %v2253, %v2434
      %v2549 = vadd.f32 %v2254, %v2437
      %v2550 = vadd.f32 %v2255, %v2442
      %v2551 = vadd.f32 %v2256, %v2445
      %v2552 = vadd.f32 %v2257, %v2450
      %v2553 = vadd.f32 %v2258, %v2453
      %v2554 = vadd.f32 %v2259, %v2458
      %v2555 = vadd.f32 %v2260, %v2461
      %v2556 = vadd.f32 %v2261, %v2466
      %v2557 = vadd.f32 %v2262, %v2469
      %v2558 = vadd.f32 %v2263, %v2474
      %v2559 = vadd.f32 %v2264, %v2477
      %v2560 = vadd.f32 %v2265, %v2482
      %v2561 = vadd.f32 %v2266, %v2485
      %v2562 = vadd.f32 %v2267, %v2490
      %v2563 = vadd.f32 %v2268, %v2493
      %v2564 = vadd.f32 %v2269, %v2498
      %v2565 = vadd.f32 %v2270, %v2501
      %v2566 = vadd.f32 %v2271, %v2506
      %v2567 = vadd.f32 %v2272, %v2509
      %v2568 = vadd.f32 %v2273, %v2514
      %v2569 = vadd.f32 %v2274, %v2517
      %v2570 = vadd.f32 %v2275, %v2522
      %v2571 = vadd.f32 %v2276, %v2525
      %v2572 = vadd.f32 %v2277, %v2530
      %v2573 = vadd.f32 %v2278, %v2533
      %v2574 = vadd.f32 %v2279, %v2538
      %v2575 = vadd.f32 %v2280, %v2541
      %v2576 = vld [vmem:[%s2281 + $0x1] sm:$0xff]
      %v2577 = vld [vmem:[%s2281 + $0x9] sm:$0xff]
      %v2578 = vld [vmem:[%s2281 + $0x19] sm:$0xff]
      %v2579 = vld [vmem:[%s2281 + $0x21] sm:$0xff]
      %v2580 = vld [vmem:[%s2281 + $0x31] sm:$0xff]
      %v2581 = vld [vmem:[%s2281 + $0x39] sm:$0xff]
      %v2582 = vld [vmem:[%s2281 + $0x49] sm:$0xff]
      %v2583 = vld [vmem:[%s2281 + $0x51] sm:$0xff]
      %v2584 = vld [vmem:[%s2281 + $0x61] sm:$0xff]
      %v2585 = vld [vmem:[%s2281 + $0x69] sm:$0xff]
      %v2586 = vld [vmem:[%s2281 + $0x79] sm:$0xff]
      %v2587 = vld [vmem:[%s2281 + $0x81] sm:$0xff]
      %v2588 = vld [vmem:[%s2281 + $0x91] sm:$0xff]
      %v2589 = vld [vmem:[%s2281 + $0x99] sm:$0xff]
      %v2590 = vld [vmem:[%s2281 + $0xa9] sm:$0xff]
      %v2591 = vld [vmem:[%s2281 + $0xb1] sm:$0xff]
      %v2592 = vld [vmem:[%s2281 + $0xc1] sm:$0xff]
      %v2593 = vld [vmem:[%s2281 + $0xc9] sm:$0xff]
      %v2594 = vld [vmem:[%s2281 + $0xd9] sm:$0xff]
      %v2595 = vld [vmem:[%s2281 + $0xe1] sm:$0xff]
      %v2596 = vld [vmem:[%s2281 + $0xf1] sm:$0xff]
      %v2597 = vld [vmem:[%s2281 + $0xf9] sm:$0xff]
      %v2598 = vld [vmem:[%s2281 + $0x109] sm:$0xff]
      %v2599 = vld [vmem:[%s2281 + $0x111] sm:$0xff]
      %v2600 = vld [vmem:[%s2281 + $0x121] sm:$0xff]
      %v2601 = vld [vmem:[%s2281 + $0x129] sm:$0xff]
      %v2602 = vld [vmem:[%s2281 + $0x139] sm:$0xff]
      %v2603 = vld [vmem:[%s2281 + $0x141] sm:$0xff]
      %v2604 = vld [vmem:[%s2281 + $0x151] sm:$0xff]
      %v2605 = vld [vmem:[%s2281 + $0x159] sm:$0xff]
      %v2606 = vld [vmem:[%s2281 + $0x169] sm:$0xff]
      %v2607 = vld [vmem:[%s2281 + $0x171] sm:$0xff]
      %v2608 = vpack.c.bf16 %v2577, %v2576
      %v2609 = vpack.c.bf16 %v2579, %v2578
      %v2610 = vpack.c.bf16 %v2581, %v2580
      %v2611 = vpack.c.bf16 %v2583, %v2582
      %v2612 = vpack.c.bf16 %v2585, %v2584
      %v2613 = vpack.c.bf16 %v2587, %v2586
      %v2614 = vpack.c.bf16 %v2589, %v2588
      %v2615 = vpack.c.bf16 %v2591, %v2590
      %v2616 = vpack.c.bf16 %v2593, %v2592
      %v2617 = vpack.c.bf16 %v2595, %v2594
      %v2618 = vpack.c.bf16 %v2597, %v2596
      %v2619 = vpack.c.bf16 %v2599, %v2598
      %v2620 = vpack.c.bf16 %v2601, %v2600
      %v2621 = vpack.c.bf16 %v2603, %v2602
      %v2622 = vpack.c.bf16 %v2605, %v2604
      %v2623 = vpack.c.bf16 %v2607, %v2606
      %s2624 = scalar_lea.vmem %s3, 14
      %v2625 = vld [vmem:[%s2624] sm:$0x3]
      %v2627 = vsel %vm502, %v2608, 0
      %v2630 = vsel %vm502, %v2609, 0
      %v2633 = vsel %vm502, %v2610, 0
      %v2636 = vsel %vm502, %v2611, 0
      %v2639 = vsel %vm502, %v2612, 0
      %v2642 = vsel %vm502, %v2613, 0
      %v2645 = vsel %vm502, %v2614, 0
      %v2648 = vsel %vm502, %v2615, 0
      %v2651 = vsel %vm502, %v2616, 0
      %v2654 = vsel %vm502, %v2617, 0
      %v2657 = vsel %vm502, %v2618, 0
      %v2660 = vsel %vm502, %v2619, 0
      %v2663 = vsel %vm502, %v2620, 0
      %v2666 = vsel %vm502, %v2621, 0
      %v2669 = vsel %vm502, %v2622, 0
      %v2672 = vsel %vm502, %v2623, 0
      %v2675 = vsel %vm728, %v2625, 0
      %2677 = vmatprep.subr.bf16.mxu0 0
      %2678 = vmatpush1.bf16.msra.mxu0 %v2675
      %2679 = vmatprep.subr.bf16.mxu0 0
      %2680 = vmatpush1.bf16.msra.mxu0 0
      %2681 = vmatprep.subr.bf16.mxu0 0
      %2682 = vmatpush1.bf16.msra.mxu0 0
      %2683 = vmatprep.subr.bf16.mxu0 0
      %2684 = vmatpush1.bf16.msra.mxu0 0
      %2685 = vmatprep.subr.bf16.mxu0 0
      %2686 = vmatpush1.bf16.msra.mxu0 0
      %2687 = vmatprep.subr.bf16.mxu0 0
      %2688 = vmatpush1.bf16.msra.mxu0 0
      %2689 = vmatprep.subr.bf16.mxu0 0
      %2690 = vmatpush1.bf16.msra.mxu0 0
      %2691 = vmatprep.subr.bf16.mxu0 0
      %2692 = vmatpush1.bf16.msra.mxu0 0
      %2693 = vmatprep.subr.bf16.mxu0 0
      %2694 = vmatpush1.bf16.msra.mxu0 0
      %2695 = vmatprep.subr.bf16.mxu0 0
      %2696 = vmatpush1.bf16.msra.mxu0 0
      %2697 = vmatprep.subr.bf16.mxu0 0
      %2698 = vmatpush1.bf16.msra.mxu0 0
      %2699 = vmatprep.subr.bf16.mxu0 0
      %2700 = vmatpush1.bf16.msra.mxu0 0
      %2701 = vmatprep.subr.bf16.mxu0 0
      %2702 = vmatpush1.bf16.msra.mxu0 0
      %2703 = vmatprep.subr.bf16.mxu0 0
      %2704 = vmatpush1.bf16.msra.mxu0 0
      %2705 = vmatprep.subr.bf16.mxu0 0
      %2706 = vmatpush1.bf16.msra.mxu0 0
      %2707 = vmatprep.subr.bf16.mxu0 0
      %2708 = vmatpush1.bf16.msra.mxu0 0
      %2709 = vmatprep.mubr.bf16.mxu0 0
      %2710 = vmatmul.mubr.bf16.gmra.mrb[0].mxu0 %v2627
      %v2711 = vpop.f32.mrb[0].mxu0
      %v2712 = vadd.f32 0.0, %v2711
      %v2713 = vpop.f32.mrb[0].mxu0
      %v2714 = vpop.f32.mrb[0].mxu0
      %v2715 = vadd.f32 0.0, %v2714
      %v2716 = vpop.f32.mrb[0].mxu0
      %2717 = vmatprep.mubr.bf16.mxu0 0
      %2718 = vmatmul.mubr.bf16.gmra.mrb[0].mxu0 %v2630
      %v2719 = vpop.f32.mrb[0].mxu0
      %v2720 = vadd.f32 0.0, %v2719
      %v2721 = vpop.f32.mrb[0].mxu0
      %v2722 = vpop.f32.mrb[0].mxu0
      %v2723 = vadd.f32 0.0, %v2722
      %v2724 = vpop.f32.mrb[0].mxu0
      %2725 = vmatprep.mubr.bf16.mxu0 0
      %2726 = vmatmul.mubr.bf16.gmra.mrb[0].mxu0 %v2633
      %v2727 = vpop.f32.mrb[0].mxu0
      %v2728 = vadd.f32 0.0, %v2727
      %v2729 = vpop.f32.mrb[0].mxu0
      %v2730 = vpop.f32.mrb[0].mxu0
      %v2731 = vadd.f32 0.0, %v2730
      %v2732 = vpop.f32.mrb[0].mxu0
      %2733 = vmatprep.mubr.bf16.mxu0 0
      %2734 = vmatmul.mubr.bf16.gmra.mrb[0].mxu0 %v2636
      %v2735 = vpop.f32.mrb[0].mxu0
      %v2736 = vadd.f32 0.0, %v2735
      %v2737 = vpop.f32.mrb[0].mxu0
      %v2738 = vpop.f32.mrb[0].mxu0
      %v2739 = vadd.f32 0.0, %v2738
      %v2740 = vpop.f32.mrb[0].mxu0
      %2741 = vmatprep.mubr.bf16.mxu0 0
      %2742 = vmatmul.mubr.bf16.gmra.mrb[0].mxu0 %v2639
      %v2743 = vpop.f32.mrb[0].mxu0
      %v2744 = vadd.f32 0.0, %v2743
      %v2745 = vpop.f32.mrb[0].mxu0
      %v2746 = vpop.f32.mrb[0].mxu0
      %v2747 = vadd.f32 0.0, %v2746
      %v2748 = vpop.f32.mrb[0].mxu0
      %2749 = vmatprep.mubr.bf16.mxu0 0
      %2750 = vmatmul.mubr.bf16.gmra.mrb[0].mxu0 %v2642
      %v2751 = vpop.f32.mrb[0].mxu0
      %v2752 = vadd.f32 0.0, %v2751
      %v2753 = vpop.f32.mrb[0].mxu0
      %v2754 = vpop.f32.mrb[0].mxu0
      %v2755 = vadd.f32 0.0, %v2754
      %v2756 = vpop.f32.mrb[0].mxu0
      %2757 = vmatprep.mubr.bf16.mxu0 0
      %2758 = vmatmul.mubr.bf16.gmra.mrb[0].mxu0 %v2645
      %v2759 = vpop.f32.mrb[0].mxu0
      %v2760 = vadd.f32 0.0, %v2759
      %v2761 = vpop.f32.mrb[0].mxu0
      %v2762 = vpop.f32.mrb[0].mxu0
      %v2763 = vadd.f32 0.0, %v2762
      %v2764 = vpop.f32.mrb[0].mxu0
      %2765 = vmatprep.mubr.bf16.mxu0 0
      %2766 = vmatmul.mubr.bf16.gmra.mrb[0].mxu0 %v2648
      %v2767 = vpop.f32.mrb[0].mxu0
      %v2768 = vadd.f32 0.0, %v2767
      %v2769 = vpop.f32.mrb[0].mxu0
      %v2770 = vpop.f32.mrb[0].mxu0
      %v2771 = vadd.f32 0.0, %v2770
      %v2772 = vpop.f32.mrb[0].mxu0
      %2773 = vmatprep.mubr.bf16.mxu0 0
      %2774 = vmatmul.mubr.bf16.gmra.mrb[0].mxu0 %v2651
      %v2775 = vpop.f32.mrb[0].mxu0
      %v2776 = vadd.f32 0.0, %v2775
      %v2777 = vpop.f32.mrb[0].mxu0
      %v2778 = vpop.f32.mrb[0].mxu0
      %v2779 = vadd.f32 0.0, %v2778
      %v2780 = vpop.f32.mrb[0].mxu0
      %2781 = vmatprep.mubr.bf16.mxu0 0
      %2782 = vmatmul.mubr.bf16.gmra.mrb[0].mxu0 %v2654
      %v2783 = vpop.f32.mrb[0].mxu0
      %v2784 = vadd.f32 0.0, %v2783
      %v2785 = vpop.f32.mrb[0].mxu0
      %v2786 = vpop.f32.mrb[0].mxu0
      %v2787 = vadd.f32 0.0, %v2786
      %v2788 = vpop.f32.mrb[0].mxu0
      %2789 = vmatprep.mubr.bf16.mxu0 0
      %2790 = vmatmul.mubr.bf16.gmra.mrb[0].mxu0 %v2657
      %v2791 = vpop.f32.mrb[0].mxu0
      %v2792 = vadd.f32 0.0, %v2791
      %v2793 = vpop.f32.mrb[0].mxu0
      %v2794 = vpop.f32.mrb[0].mxu0
      %v2795 = vadd.f32 0.0, %v2794
      %v2796 = vpop.f32.mrb[0].mxu0
      %2797 = vmatprep.mubr.bf16.mxu0 0
      %2798 = vmatmul.mubr.bf16.gmra.mrb[0].mxu0 %v2660
      %v2799 = vpop.f32.mrb[0].mxu0
      %v2800 = vadd.f32 0.0, %v2799
      %v2801 = vpop.f32.mrb[0].mxu0
      %v2802 = vpop.f32.mrb[0].mxu0
      %v2803 = vadd.f32 0.0, %v2802
      %v2804 = vpop.f32.mrb[0].mxu0
      %2805 = vmatprep.mubr.bf16.mxu0 0
      %2806 = vmatmul.mubr.bf16.gmra.mrb[0].mxu0 %v2663
      %v2807 = vpop.f32.mrb[0].mxu0
      %v2808 = vadd.f32 0.0, %v2807
      %v2809 = vpop.f32.mrb[0].mxu0
      %v2810 = vpop.f32.mrb[0].mxu0
      %v2811 = vadd.f32 0.0, %v2810
      %v2812 = vpop.f32.mrb[0].mxu0
      %2813 = vmatprep.mubr.bf16.mxu0 0
      %2814 = vmatmul.mubr.bf16.gmra.mrb[0].mxu0 %v2666
      %v2815 = vpop.f32.mrb[0].mxu0
      %v2816 = vadd.f32 0.0, %v2815
      %v2817 = vpop.f32.mrb[0].mxu0
      %v2818 = vpop.f32.mrb[0].mxu0
      %v2819 = vadd.f32 0.0, %v2818
      %v2820 = vpop.f32.mrb[0].mxu0
      %2821 = vmatprep.mubr.bf16.mxu0 0
      %2822 = vmatmul.mubr.bf16.gmra.mrb[0].mxu0 %v2669
      %v2823 = vpop.f32.mrb[0].mxu0
      %v2824 = vadd.f32 0.0, %v2823
      %v2825 = vpop.f32.mrb[0].mxu0
      %v2826 = vpop.f32.mrb[0].mxu0
      %v2827 = vadd.f32 0.0, %v2826
      %v2828 = vpop.f32.mrb[0].mxu0
      %2829 = vmatprep.mubr.bf16.mxu0 0
      %2830 = vmatmul.mubr.bf16.gmra.mrb[0].mxu0 %v2672
      %v2831 = vpop.f32.mrb[0].mxu0
      %v2832 = vadd.f32 0.0, %v2831
      %v2833 = vpop.f32.mrb[0].mxu0
      %v2834 = vpop.f32.mrb[0].mxu0
      %v2835 = vadd.f32 0.0, %v2834
      %v2836 = vpop.f32.mrb[0].mxu0
      %2837 = vdwg.mxu0
      %v2838 = vadd.f32 %v2544, %v2712
      %v2839 = vadd.f32 %v2545, %v2715
      %v2840 = vadd.f32 %v2546, %v2720
      %v2841 = vadd.f32 %v2547, %v2723
      %v2842 = vadd.f32 %v2548, %v2728
      %v2843 = vadd.f32 %v2549, %v2731
      %v2844 = vadd.f32 %v2550, %v2736
      %v2845 = vadd.f32 %v2551, %v2739
      %v2846 = vadd.f32 %v2552, %v2744
      %v2847 = vadd.f32 %v2553, %v2747
      %v2848 = vadd.f32 %v2554, %v2752
      %v2849 = vadd.f32 %v2555, %v2755
      %v2850 = vadd.f32 %v2556, %v2760
      %v2851 = vadd.f32 %v2557, %v2763
      %v2852 = vadd.f32 %v2558, %v2768
      %v2853 = vadd.f32 %v2559, %v2771
      %v2854 = vadd.f32 %v2560, %v2776
      %v2855 = vadd.f32 %v2561, %v2779
      %v2856 = vadd.f32 %v2562, %v2784
      %v2857 = vadd.f32 %v2563, %v2787
      %v2858 = vadd.f32 %v2564, %v2792
      %v2859 = vadd.f32 %v2565, %v2795
      %v2860 = vadd.f32 %v2566, %v2800
      %v2861 = vadd.f32 %v2567, %v2803
      %v2862 = vadd.f32 %v2568, %v2808
      %v2863 = vadd.f32 %v2569, %v2811
      %v2864 = vadd.f32 %v2570, %v2816
      %v2865 = vadd.f32 %v2571, %v2819
      %v2866 = vadd.f32 %v2572, %v2824
      %v2867 = vadd.f32 %v2573, %v2827
      %v2868 = vadd.f32 %v2574, %v2832
      %v2869 = vadd.f32 %v2575, %v2835
      %v2870 = vld [vmem:[%s2281 + $0x2] sm:$0xff]
      %v2871 = vld [vmem:[%s2281 + $0xa] sm:$0xff]
      %v2872 = vld [vmem:[%s2281 + $0x1a] sm:$0xff]
      %v2873 = vld [vmem:[%s2281 + $0x22] sm:$0xff]
      %v2874 = vld [vmem:[%s2281 + $0x32] sm:$0xff]
      %v2875 = vld [vmem:[%s2281 + $0x3a] sm:$0xff]
      %v2876 = vld [vmem:[%s2281 + $0x4a] sm:$0xff]
      %v2877 = vld [vmem:[%s2281 + $0x52] sm:$0xff]
      %v2878 = vld [vmem:[%s2281 + $0x62] sm:$0xff]
      %v2879 = vld [vmem:[%s2281 + $0x6a] sm:$0xff]
      %v2880 = vld [vmem:[%s2281 + $0x7a] sm:$0xff]
      %v2881 = vld [vmem:[%s2281 + $0x82] sm:$0xff]
      %v2882 = vld [vmem:[%s2281 + $0x92] sm:$0xff]
      %v2883 = vld [vmem:[%s2281 + $0x9a] sm:$0xff]
      %v2884 = vld [vmem:[%s2281 + $0xaa] sm:$0xff]
      %v2885 = vld [vmem:[%s2281 + $0xb2] sm:$0xff]
      %v2886 = vld [vmem:[%s2281 + $0xc2] sm:$0xff]
      %v2887 = vld [vmem:[%s2281 + $0xca] sm:$0xff]
      %v2888 = vld [vmem:[%s2281 + $0xda] sm:$0xff]
      %v2889 = vld [vmem:[%s2281 + $0xe2] sm:$0xff]
      %v2890 = vld [vmem:[%s2281 + $0xf2] sm:$0xff]
      %v2891 = vld [vmem:[%s2281 + $0xfa] sm:$0xff]
      %v2892 = vld [vmem:[%s2281 + $0x10a] sm:$0xff]
      %v2893 = vld [vmem:[%s2281 + $0x112] sm:$0xff]
      %v2894 = vld [vmem:[%s2281 + $0x122] sm:$0xff]
      %v2895 = vld [vmem:[%s2281 + $0x12a] sm:$0xff]
      %v2896 = vld [vmem:[%s2281 + $0x13a] sm:$0xff]
      %v2897 = vld [vmem:[%s2281 + $0x142] sm:$0xff]
      %v2898 = vld [vmem:[%s2281 + $0x152] sm:$0xff]
      %v2899 = vld [vmem:[%s2281 + $0x15a] sm:$0xff]
      %v2900 = vld [vmem:[%s2281 + $0x16a] sm:$0xff]
      %v2901 = vld [vmem:[%s2281 + $0x172] sm:$0xff]
      %v2902 = vpack.c.bf16 %v2871, %v2870
      %v2903 = vpack.c.bf16 %v2873, %v2872
      %v2904 = vpack.c.bf16 %v2875, %v2874
      %v2905 = vpack.c.bf16 %v2877, %v2876
      %v2906 = vpack.c.bf16 %v2879, %v2878
      %v2907 = vpack.c.bf16 %v2881, %v2880
      %v2908 = vpack.c.bf16 %v2883, %v2882
      %v2909 = vpack.c.bf16 %v2885, %v2884
      %v2910 = vpack.c.bf16 %v2887, %v2886
      %v2911 = vpack.c.bf16 %v2889, %v2888
      %v2912 = vpack.c.bf16 %v2891, %v2890
      %v2913 = vpack.c.bf16 %v2893, %v2892
      %v2914 = vpack.c.bf16 %v2895, %v2894
      %v2915 = vpack.c.bf16 %v2897, %v2896
      %v2916 = vpack.c.bf16 %v2899, %v2898
      %v2917 = vpack.c.bf16 %v2901, %v2900
      %s2918 = scalar_lea.vmem %s3, 16
      %v2919 = vld [vmem:[%s2918] sm:$0x3]
      %v2921 = vsel %vm502, %v2902, 0
      %v2924 = vsel %vm502, %v2903, 0
      %v2927 = vsel %vm502, %v2904, 0
      %v2930 = vsel %vm502, %v2905, 0
      %v2933 = vsel %vm502, %v2906, 0
      %v2936 = vsel %vm502, %v2907, 0
      %v2939 = vsel %vm502, %v2908, 0
      %v2942 = vsel %vm502, %v2909, 0
      %v2945 = vsel %vm502, %v2910, 0
      %v2948 = vsel %vm502, %v2911, 0
      %v2951 = vsel %vm502, %v2912, 0
      %v2954 = vsel %vm502, %v2913, 0
      %v2957 = vsel %vm502, %v2914, 0
      %v2960 = vsel %vm502, %v2915, 0
      %v2963 = vsel %vm502, %v2916, 0
      %v2966 = vsel %vm502, %v2917, 0
      %v2969 = vsel %vm728, %v2919, 0
      %2971 = vmatprep.subr.bf16.mxu0 0
      %2972 = vmatpush1.bf16.msra.mxu0 %v2969
      %2973 = vmatprep.subr.bf16.mxu0 0
      %2974 = vmatpush1.bf16.msra.mxu0 0
      %2975 = vmatprep.subr.bf16.mxu0 0
      %2976 = vmatpush1.bf16.msra.mxu0 0
      %2977 = vmatprep.subr.bf16.mxu0 0
      %2978 = vmatpush1.bf16.msra.mxu0 0
      %2979 = vmatprep.subr.bf16.mxu0 0
      %2980 = vmatpush1.bf16.msra.mxu0 0
      %2981 = vmatprep.subr.bf16.mxu0 0
      %2982 = vmatpush1.bf16.msra.mxu0 0
      %2983 = vmatprep.subr.bf16.mxu0 0
      %2984 = vmatpush1.bf16.msra.mxu0 0
      %2985 = vmatprep.subr.bf16.mxu0 0
      %2986 = vmatpush1.bf16.msra.mxu0 0
      %2987 = vmatprep.subr.bf16.mxu0 0
      %2988 = vmatpush1.bf16.msra.mxu0 0
      %2989 = vmatprep.subr.bf16.mxu0 0
      %2990 = vmatpush1.bf16.msra.mxu0 0
      %2991 = vmatprep.subr.bf16.mxu0 0
      %2992 = vmatpush1.bf16.msra.mxu0 0
      %2993 = vmatprep.subr.bf16.mxu0 0
      %2994 = vmatpush1.bf16.msra.mxu0 0
      %2995 = vmatprep.subr.bf16.mxu0 0
      %2996 = vmatpush1.bf16.msra.mxu0 0
      %2997 = vmatprep.subr.bf16.mxu0 0
      %2998 = vmatpush1.bf16.msra.mxu0 0
      %2999 = vmatprep.subr.bf16.mxu0 0
      %3000 = vmatpush1.bf16.msra.mxu0 0
      %3001 = vmatprep.subr.bf16.mxu0 0
      %3002 = vmatpush1.bf16.msra.mxu0 0
      %3003 = vmatprep.mubr.bf16.mxu0 0
      %3004 = vmatmul.mubr.bf16.gmra.mrb[0].mxu0 %v2921
      %v3005 = vpop.f32.mrb[0].mxu0
      %v3006 = vadd.f32 0.0, %v3005
      %v3007 = vpop.f32.mrb[0].mxu0
      %v3008 = vpop.f32.mrb[0].mxu0
      %v3009 = vadd.f32 0.0, %v3008
      %v3010 = vpop.f32.mrb[0].mxu0
      %3011 = vmatprep.mubr.bf16.mxu0 0
      %3012 = vmatmul.mubr.bf16.gmra.mrb[0].mxu0 %v2924
      %v3013 = vpop.f32.mrb[0].mxu0
      %v3014 = vadd.f32 0.0, %v3013
      %v3015 = vpop.f32.mrb[0].mxu0
      %v3016 = vpop.f32.mrb[0].mxu0
      %v3017 = vadd.f32 0.0, %v3016
      %v3018 = vpop.f32.mrb[0].mxu0
      %3019 = vmatprep.mubr.bf16.mxu0 0
      %3020 = vmatmul.mubr.bf16.gmra.mrb[0].mxu0 %v2927
      %v3021 = vpop.f32.mrb[0].mxu0
      %v3022 = vadd.f32 0.0, %v3021
      %v3023 = vpop.f32.mrb[0].mxu0
      %v3024 = vpop.f32.mrb[0].mxu0
      %v3025 = vadd.f32 0.0, %v3024
      %v3026 = vpop.f32.mrb[0].mxu0
      %3027 = vmatprep.mubr.bf16.mxu0 0
      %3028 = vmatmul.mubr.bf16.gmra.mrb[0].mxu0 %v2930
      %v3029 = vpop.f32.mrb[0].mxu0
      %v3030 = vadd.f32 0.0, %v3029
      %v3031 = vpop.f32.mrb[0].mxu0
      %v3032 = vpop.f32.mrb[0].mxu0
      %v3033 = vadd.f32 0.0, %v3032
      %v3034 = vpop.f32.mrb[0].mxu0
      %3035 = vmatprep.mubr.bf16.mxu0 0
      %3036 = vmatmul.mubr.bf16.gmra.mrb[0].mxu0 %v2933
      %v3037 = vpop.f32.mrb[0].mxu0
      %v3038 = vadd.f32 0.0, %v3037
      %v3039 = vpop.f32.mrb[0].mxu0
      %v3040 = vpop.f32.mrb[0].mxu0
      %v3041 = vadd.f32 0.0, %v3040
      %v3042 = vpop.f32.mrb[0].mxu0
      %3043 = vmatprep.mubr.bf16.mxu0 0
      %3044 = vmatmul.mubr.bf16.gmra.mrb[0].mxu0 %v2936
      %v3045 = vpop.f32.mrb[0].mxu0
      %v3046 = vadd.f32 0.0, %v3045
      %v3047 = vpop.f32.mrb[0].mxu0
      %v3048 = vpop.f32.mrb[0].mxu0
      %v3049 = vadd.f32 0.0, %v3048
      %v3050 = vpop.f32.mrb[0].mxu0
      %3051 = vmatprep.mubr.bf16.mxu0 0
      %3052 = vmatmul.mubr.bf16.gmra.mrb[0].mxu0 %v2939
      %v3053 = vpop.f32.mrb[0].mxu0
      %v3054 = vadd.f32 0.0, %v3053
      %v3055 = vpop.f32.mrb[0].mxu0
      %v3056 = vpop.f32.mrb[0].mxu0
      %v3057 = vadd.f32 0.0, %v3056
      %v3058 = vpop.f32.mrb[0].mxu0
      %3059 = vmatprep.mubr.bf16.mxu0 0
      %3060 = vmatmul.mubr.bf16.gmra.mrb[0].mxu0 %v2942
      %v3061 = vpop.f32.mrb[0].mxu0
      %v3062 = vadd.f32 0.0, %v3061
      %v3063 = vpop.f32.mrb[0].mxu0
      %v3064 = vpop.f32.mrb[0].mxu0
      %v3065 = vadd.f32 0.0, %v3064
      %v3066 = vpop.f32.mrb[0].mxu0
      %3067 = vmatprep.mubr.bf16.mxu0 0
      %3068 = vmatmul.mubr.bf16.gmra.mrb[0].mxu0 %v2945
      %v3069 = vpop.f32.mrb[0].mxu0
      %v3070 = vadd.f32 0.0, %v3069
      %v3071 = vpop.f32.mrb[0].mxu0
      %v3072 = vpop.f32.mrb[0].mxu0
      %v3073 = vadd.f32 0.0, %v3072
      %v3074 = vpop.f32.mrb[0].mxu0
      %3075 = vmatprep.mubr.bf16.mxu0 0
      %3076 = vmatmul.mubr.bf16.gmra.mrb[0].mxu0 %v2948
      %v3077 = vpop.f32.mrb[0].mxu0
      %v3078 = vadd.f32 0.0, %v3077
      %v3079 = vpop.f32.mrb[0].mxu0
      %v3080 = vpop.f32.mrb[0].mxu0
      %v3081 = vadd.f32 0.0, %v3080
      %v3082 = vpop.f32.mrb[0].mxu0
      %3083 = vmatprep.mubr.bf16.mxu0 0
      %3084 = vmatmul.mubr.bf16.gmra.mrb[0].mxu0 %v2951
      %v3085 = vpop.f32.mrb[0].mxu0
      %v3086 = vadd.f32 0.0, %v3085
      %v3087 = vpop.f32.mrb[0].mxu0
      %v3088 = vpop.f32.mrb[0].mxu0
      %v3089 = vadd.f32 0.0, %v3088
      %v3090 = vpop.f32.mrb[0].mxu0
      %3091 = vmatprep.mubr.bf16.mxu0 0
      %3092 = vmatmul.mubr.bf16.gmra.mrb[0].mxu0 %v2954
      %v3093 = vpop.f32.mrb[0].mxu0
      %v3094 = vadd.f32 0.0, %v3093
      %v3095 = vpop.f32.mrb[0].mxu0
      %v3096 = vpop.f32.mrb[0].mxu0
      %v3097 = vadd.f32 0.0, %v3096
      %v3098 = vpop.f32.mrb[0].mxu0
      %3099 = vmatprep.mubr.bf16.mxu0 0
      %3100 = vmatmul.mubr.bf16.gmra.mrb[0].mxu0 %v2957
      %v3101 = vpop.f32.mrb[0].mxu0
      %v3102 = vadd.f32 0.0, %v3101
      %v3103 = vpop.f32.mrb[0].mxu0
      %v3104 = vpop.f32.mrb[0].mxu0
      %v3105 = vadd.f32 0.0, %v3104
      %v3106 = vpop.f32.mrb[0].mxu0
      %3107 = vmatprep.mubr.bf16.mxu0 0
      %3108 = vmatmul.mubr.bf16.gmra.mrb[0].mxu0 %v2960
      %v3109 = vpop.f32.mrb[0].mxu0
      %v3110 = vadd.f32 0.0, %v3109
      %v3111 = vpop.f32.mrb[0].mxu0
      %v3112 = vpop.f32.mrb[0].mxu0
      %v3113 = vadd.f32 0.0, %v3112
      %v3114 = vpop.f32.mrb[0].mxu0
      %3115 = vmatprep.mubr.bf16.mxu0 0
      %3116 = vmatmul.mubr.bf16.gmra.mrb[0].mxu0 %v2963
      %v3117 = vpop.f32.mrb[0].mxu0
      %v3118 = vadd.f32 0.0, %v3117
      %v3119 = vpop.f32.mrb[0].mxu0
      %v3120 = vpop.f32.mrb[0].mxu0
      %v3121 = vadd.f32 0.0, %v3120
      %v3122 = vpop.f32.mrb[0].mxu0
      %3123 = vmatprep.mubr.bf16.mxu0 0
      %3124 = vmatmul.mubr.bf16.gmra.mrb[0].mxu0 %v2966
      %v3125 = vpop.f32.mrb[0].mxu0
      %v3126 = vadd.f32 0.0, %v3125
      %v3127 = vpop.f32.mrb[0].mxu0
      %v3128 = vpop.f32.mrb[0].mxu0
      %v3129 = vadd.f32 0.0, %v3128
      %v3130 = vpop.f32.mrb[0].mxu0
      %3131 = vdwg.mxu0
      %v3132 = vadd.f32 %v2838, %v3006
      %v3133 = vadd.f32 %v2839, %v3009
      %v3134 = vadd.f32 %v2840, %v3014
      %v3135 = vadd.f32 %v2841, %v3017
      %v3136 = vadd.f32 %v2842, %v3022
      %v3137 = vadd.f32 %v2843, %v3025
      %v3138 = vadd.f32 %v2844, %v3030
      %v3139 = vadd.f32 %v2845, %v3033
      %v3140 = vadd.f32 %v2846, %v3038
      %v3141 = vadd.f32 %v2847, %v3041
      %v3142 = vadd.f32 %v2848, %v3046
      %v3143 = vadd.f32 %v2849, %v3049
      %v3144 = vadd.f32 %v2850, %v3054
      %v3145 = vadd.f32 %v2851, %v3057
      %v3146 = vadd.f32 %v2852, %v3062
      %v3147 = vadd.f32 %v2853, %v3065
      %v3148 = vadd.f32 %v2854, %v3070
      %v3149 = vadd.f32 %v2855, %v3073
      %v3150 = vadd.f32 %v2856, %v3078
      %v3151 = vadd.f32 %v2857, %v3081
      %v3152 = vadd.f32 %v2858, %v3086
      %v3153 = vadd.f32 %v2859, %v3089
      %v3154 = vadd.f32 %v2860, %v3094
      %v3155 = vadd.f32 %v2861, %v3097
      %v3156 = vadd.f32 %v2862, %v3102
      %v3157 = vadd.f32 %v2863, %v3105
      %v3158 = vadd.f32 %v2864, %v3110
      %v3159 = vadd.f32 %v2865, %v3113
      %v3160 = vadd.f32 %v2866, %v3118
      %v3161 = vadd.f32 %v2867, %v3121
      %v3162 = vadd.f32 %v2868, %v3126
      %v3163 = vadd.f32 %v2869, %v3129
      %v3164 = vld [vmem:[%s4] sm:$0x1]
      %v3166 = vlaneseq
      %v3167 = vshrl.u32 %v3166, 7
      %v3168 = vsub.s32 0, %v3167
      %v3169 = vrot.slane %v3164, %v3168
      %v3171 = vadd.f32 %v3132, %v3169
      %v3172 = vadd.f32 %v3133, %v3169
      %v3173 = vadd.f32 %v3134, %v3169
      %v3174 = vadd.f32 %v3135, %v3169
      %v3175 = vadd.f32 %v3136, %v3169
      %v3176 = vadd.f32 %v3137, %v3169
      %v3177 = vadd.f32 %v3138, %v3169
      %v3178 = vadd.f32 %v3139, %v3169
      %v3179 = vadd.f32 %v3140, %v3169
      %v3180 = vadd.f32 %v3141, %v3169
      %v3181 = vadd.f32 %v3142, %v3169
      %v3182 = vadd.f32 %v3143, %v3169
      %v3183 = vadd.f32 %v3144, %v3169
      %v3184 = vadd.f32 %v3145, %v3169
      %v3185 = vadd.f32 %v3146, %v3169
      %v3186 = vadd.f32 %v3147, %v3169
      %v3187 = vadd.f32 %v3148, %v3169
      %v3188 = vadd.f32 %v3149, %v3169
      %v3189 = vadd.f32 %v3150, %v3169
      %v3190 = vadd.f32 %v3151, %v3169
      %v3191 = vadd.f32 %v3152, %v3169
      %v3192 = vadd.f32 %v3153, %v3169
      %v3193 = vadd.f32 %v3154, %v3169
      %v3194 = vadd.f32 %v3155, %v3169
      %v3195 = vadd.f32 %v3156, %v3169
      %v3196 = vadd.f32 %v3157, %v3169
      %v3197 = vadd.f32 %v3158, %v3169
      %v3198 = vadd.f32 %v3159, %v3169
      %v3199 = vadd.f32 %v3160, %v3169
      %v3200 = vadd.f32 %v3161, %v3169
      %v3201 = vadd.f32 %v3162, %v3169
      %v3202 = vadd.f32 %v3163, %v3169
      %v3203 = vsel %vm502, %v3171, 0.0
      %v3204 = vsel %vm502, %v3172, 0.0
      %v3205 = vadd.f32 %v3203, %v3204
      %v3206 = vsel %vm502, %v3173, 0.0
      %v3207 = vadd.f32 %v3205, %v3206
      %v3208 = vsel %vm502, %v3174, 0.0
      %v3209 = vadd.f32 %v3207, %v3208
      %v3210 = vsel %vm502, %v3175, 0.0
      %v3211 = vadd.f32 %v3209, %v3210
      %v3212 = vsel %vm502, %v3176, 0.0
      %v3213 = vadd.f32 %v3211, %v3212
      %v3214 = vsel %vm502, %v3177, 0.0
      %v3215 = vadd.f32 %v3213, %v3214
      %v3216 = vsel %vm502, %v3178, 0.0
      %v3217 = vadd.f32 %v3215, %v3216
      %v3218 = vsel %vm502, %v3179, 0.0
      %v3219 = vadd.f32 %v3217, %v3218
      %v3220 = vsel %vm502, %v3180, 0.0
      %v3221 = vadd.f32 %v3219, %v3220
      %v3222 = vsel %vm502, %v3181, 0.0
      %v3223 = vadd.f32 %v3221, %v3222
      %v3224 = vsel %vm502, %v3182, 0.0
      %v3225 = vadd.f32 %v3223, %v3224
      %v3226 = vsel %vm502, %v3183, 0.0
      %v3227 = vadd.f32 %v3225, %v3226
      %v3228 = vsel %vm502, %v3184, 0.0
      %v3229 = vadd.f32 %v3227, %v3228
      %v3230 = vsel %vm502, %v3185, 0.0
      %v3231 = vadd.f32 %v3229, %v3230
      %v3232 = vsel %vm502, %v3186, 0.0
      %v3233 = vadd.f32 %v3231, %v3232
      %v3234 = vsel %vm502, %v3187, 0.0
      %v3235 = vadd.f32 %v3233, %v3234
      %v3236 = vsel %vm502, %v3188, 0.0
      %v3237 = vadd.f32 %v3235, %v3236
      %v3238 = vsel %vm502, %v3189, 0.0
      %v3239 = vadd.f32 %v3237, %v3238
      %v3240 = vsel %vm502, %v3190, 0.0
      %v3241 = vadd.f32 %v3239, %v3240
      %v3242 = vsel %vm502, %v3191, 0.0
      %v3243 = vadd.f32 %v3241, %v3242
      %v3244 = vsel %vm502, %v3192, 0.0
      %v3245 = vadd.f32 %v3243, %v3244
      %v3246 = vsel %vm502, %v3193, 0.0
      %v3247 = vadd.f32 %v3245, %v3246
      %v3248 = vsel %vm502, %v3194, 0.0
      %v3249 = vadd.f32 %v3247, %v3248
      %v3250 = vsel %vm502, %v3195, 0.0
      %v3251 = vadd.f32 %v3249, %v3250
      %v3252 = vsel %vm502, %v3196, 0.0
      %v3253 = vadd.f32 %v3251, %v3252
      %v3254 = vsel %vm502, %v3197, 0.0
      %v3255 = vadd.f32 %v3253, %v3254
      %v3256 = vsel %vm502, %v3198, 0.0
      %v3257 = vadd.f32 %v3255, %v3256
      %v3258 = vsel %vm502, %v3199, 0.0
      %v3259 = vadd.f32 %v3257, %v3258
      %v3260 = vsel %vm502, %v3200, 0.0
      %v3261 = vadd.f32 %v3259, %v3260
      %v3262 = vsel %vm502, %v3201, 0.0
      %v3263 = vadd.f32 %v3261, %v3262
      %v3264 = vsel %vm502, %v3202, 0.0
      %v3265 = vadd.f32 %v3263, %v3264
      %v3266 = vrot.slane %v3265, 4
      %v3267 = vadd.f32 %v3265, %v3266
      %v3268 = vrot.slane %v3267, 2
      %v3269 = vadd.f32 %v3267, %v3268
      %v3270 = vrot.slane %v3269, 1
      %v3271 = vadd.f32 %v3269, %v3270
      %3272 = vst.msk [vmem:[%s262] sm:$0x1] %vm511, %v3271
      %v3273 = vmul.f32 %v3171, %v3171
      %v3274 = vmul.f32 %v3172, %v3172
      %v3275 = vmul.f32 %v3173, %v3173
      %v3276 = vmul.f32 %v3174, %v3174
      %v3277 = vmul.f32 %v3175, %v3175
      %v3278 = vmul.f32 %v3176, %v3176
      %v3279 = vmul.f32 %v3177, %v3177
      %v3280 = vmul.f32 %v3178, %v3178
      %v3281 = vmul.f32 %v3179, %v3179
      %v3282 = vmul.f32 %v3180, %v3180
      %v3283 = vmul.f32 %v3181, %v3181
      %v3284 = vmul.f32 %v3182, %v3182
      %v3285 = vmul.f32 %v3183, %v3183
      %v3286 = vmul.f32 %v3184, %v3184
      %v3287 = vmul.f32 %v3185, %v3185
      %v3288 = vmul.f32 %v3186, %v3186
      %v3289 = vmul.f32 %v3187, %v3187
      %v3290 = vmul.f32 %v3188, %v3188
      %v3291 = vmul.f32 %v3189, %v3189
      %v3292 = vmul.f32 %v3190, %v3190
      %v3293 = vmul.f32 %v3191, %v3191
      %v3294 = vmul.f32 %v3192, %v3192
      %v3295 = vmul.f32 %v3193, %v3193
      %v3296 = vmul.f32 %v3194, %v3194
      %v3297 = vmul.f32 %v3195, %v3195
      %v3298 = vmul.f32 %v3196, %v3196
      %v3299 = vmul.f32 %v3197, %v3197
      %v3300 = vmul.f32 %v3198, %v3198
      %v3301 = vmul.f32 %v3199, %v3199
      %v3302 = vmul.f32 %v3200, %v3200
      %v3303 = vmul.f32 %v3201, %v3201
      %v3304 = vmul.f32 %v3202, %v3202
      %v3305 = vsel %vm502, %v3273, 0.0
      %v3306 = vsel %vm502, %v3274, 0.0
      %v3307 = vadd.f32 %v3305, %v3306
      %v3308 = vsel %vm502, %v3275, 0.0
      %v3309 = vadd.f32 %v3307, %v3308
      %v3310 = vsel %vm502, %v3276, 0.0
      %v3311 = vadd.f32 %v3309, %v3310
      %v3312 = vsel %vm502, %v3277, 0.0
      %v3313 = vadd.f32 %v3311, %v3312
      %v3314 = vsel %vm502, %v3278, 0.0
      %v3315 = vadd.f32 %v3313, %v3314
      %v3316 = vsel %vm502, %v3279, 0.0
      %v3317 = vadd.f32 %v3315, %v3316
      %v3318 = vsel %vm502, %v3280, 0.0
      %v3319 = vadd.f32 %v3317, %v3318
      %v3320 = vsel %vm502, %v3281, 0.0
      %v3321 = vadd.f32 %v3319, %v3320
      %v3322 = vsel %vm502, %v3282, 0.0
      %v3323 = vadd.f32 %v3321, %v3322
      %v3324 = vsel %vm502, %v3283, 0.0
      %v3325 = vadd.f32 %v3323, %v3324
      %v3326 = vsel %vm502, %v3284, 0.0
      %v3327 = vadd.f32 %v3325, %v3326
      %v3328 = vsel %vm502, %v3285, 0.0
      %v3329 = vadd.f32 %v3327, %v3328
      %v3330 = vsel %vm502, %v3286, 0.0
      %v3331 = vadd.f32 %v3329, %v3330
      %v3332 = vsel %vm502, %v3287, 0.0
      %v3333 = vadd.f32 %v3331, %v3332
      %v3334 = vsel %vm502, %v3288, 0.0
      %v3335 = vadd.f32 %v3333, %v3334
      %v3336 = vsel %vm502, %v3289, 0.0
      %v3337 = vadd.f32 %v3335, %v3336
      %v3338 = vsel %vm502, %v3290, 0.0
      %v3339 = vadd.f32 %v3337, %v3338
      %v3340 = vsel %vm502, %v3291, 0.0
      %v3341 = vadd.f32 %v3339, %v3340
      %v3342 = vsel %vm502, %v3292, 0.0
      %v3343 = vadd.f32 %v3341, %v3342
      %v3344 = vsel %vm502, %v3293, 0.0
      %v3345 = vadd.f32 %v3343, %v3344
      %v3346 = vsel %vm502, %v3294, 0.0
      %v3347 = vadd.f32 %v3345, %v3346
      %v3348 = vsel %vm502, %v3295, 0.0
      %v3349 = vadd.f32 %v3347, %v3348
      %v3350 = vsel %vm502, %v3296, 0.0
      %v3351 = vadd.f32 %v3349, %v3350
      %v3352 = vsel %vm502, %v3297, 0.0
      %v3353 = vadd.f32 %v3351, %v3352
      %v3354 = vsel %vm502, %v3298, 0.0
      %v3355 = vadd.f32 %v3353, %v3354
      %v3356 = vsel %vm502, %v3299, 0.0
      %v3357 = vadd.f32 %v3355, %v3356
      %v3358 = vsel %vm502, %v3300, 0.0
      %v3359 = vadd.f32 %v3357, %v3358
      %v3360 = vsel %vm502, %v3301, 0.0
      %v3361 = vadd.f32 %v3359, %v3360
      %v3362 = vsel %vm502, %v3302, 0.0
      %v3363 = vadd.f32 %v3361, %v3362
      %v3364 = vsel %vm502, %v3303, 0.0
      %v3365 = vadd.f32 %v3363, %v3364
      %v3366 = vsel %vm502, %v3304, 0.0
      %v3367 = vadd.f32 %v3365, %v3366
      %v3368 = vrot.slane %v3367, 4
      %v3369 = vadd.f32 %v3367, %v3368
      %v3370 = vrot.slane %v3369, 2
      %v3371 = vadd.f32 %v3369, %v3370
      %v3372 = vrot.slane %v3371, 1
      %v3373 = vadd.f32 %v3371, %v3372
      %3374 = vst.msk [vmem:[%s262 + $0x1] sm:$0x1] %vm511, %v3373
      %v3375 = vpack.c.bf16 %v3172, %v3171
      %v3376 = vpack.c.bf16 %v3174, %v3173
      %v3377 = vpack.c.bf16 %v3176, %v3175
      %v3378 = vpack.c.bf16 %v3178, %v3177
      %v3379 = vpack.c.bf16 %v3180, %v3179
      %v3380 = vpack.c.bf16 %v3182, %v3181
      %v3381 = vpack.c.bf16 %v3184, %v3183
      %v3382 = vpack.c.bf16 %v3186, %v3185
      %v3383 = vpack.c.bf16 %v3188, %v3187
      %v3384 = vpack.c.bf16 %v3190, %v3189
      %v3385 = vpack.c.bf16 %v3192, %v3191
      %v3386 = vpack.c.bf16 %v3194, %v3193
      %v3387 = vpack.c.bf16 %v3196, %v3195
      %v3388 = vpack.c.bf16 %v3198, %v3197
      %v3389 = vpack.c.bf16 %v3200, %v3199
      %v3390 = vpack.c.bf16 %v3202, %v3201
      %v3407 = vunpack.c.l.b16 %v3375
      %v3408 = vunpack.c.h.b16 %v3375
      %v3409 = vunpack.c.l.b16 %v3376
      %v3410 = vunpack.c.h.b16 %v3376
      %v3411 = vunpack.c.l.b16 %v3377
      %v3412 = vunpack.c.h.b16 %v3377
      %v3413 = vunpack.c.l.b16 %v3378
      %v3414 = vunpack.c.h.b16 %v3378
      %v3415 = vunpack.c.l.b16 %v3379
      %v3416 = vunpack.c.h.b16 %v3379
      %v3417 = vunpack.c.l.b16 %v3380
      %v3418 = vunpack.c.h.b16 %v3380
      %v3419 = vunpack.c.l.b16 %v3381
      %v3420 = vunpack.c.h.b16 %v3381
      %v3421 = vunpack.c.l.b16 %v3382
      %v3422 = vunpack.c.h.b16 %v3382
      %v3423 = vunpack.c.l.b16 %v3383
      %v3424 = vunpack.c.h.b16 %v3383
      %v3425 = vunpack.c.l.b16 %v3384
      %v3426 = vunpack.c.h.b16 %v3384
      %v3427 = vunpack.c.l.b16 %v3385
      %v3428 = vunpack.c.h.b16 %v3385
      %v3429 = vunpack.c.l.b16 %v3386
      %v3430 = vunpack.c.h.b16 %v3386
      %v3431 = vunpack.c.l.b16 %v3387
      %v3432 = vunpack.c.h.b16 %v3387
      %v3433 = vunpack.c.l.b16 %v3388
      %v3434 = vunpack.c.h.b16 %v3388
      %v3435 = vunpack.c.l.b16 %v3389
      %v3436 = vunpack.c.h.b16 %v3389
      %v3437 = vunpack.c.l.b16 %v3390
      %v3438 = vunpack.c.h.b16 %v3390
      %v3439 = vpack.c.b16 %v3407, %v3407
      %v3440 = vpack.c.b16 %v3408, %v3408
      %v3441 = vpack.c.b16 %v3409, %v3409
      %v3442 = vpack.c.b16 %v3410, %v3410
      %v3443 = vpack.c.b16 %v3411, %v3411
      %v3444 = vpack.c.b16 %v3412, %v3412
      %v3445 = vpack.c.b16 %v3413, %v3413
      %v3446 = vpack.c.b16 %v3414, %v3414
      %v3447 = vpack.c.b16 %v3415, %v3415
      %v3448 = vpack.c.b16 %v3416, %v3416
      %v3449 = vpack.c.b16 %v3417, %v3417
      %v3450 = vpack.c.b16 %v3418, %v3418
      %v3451 = vpack.c.b16 %v3419, %v3419
      %v3452 = vpack.c.b16 %v3420, %v3420
      %v3453 = vpack.c.b16 %v3421, %v3421
      %v3454 = vpack.c.b16 %v3422, %v3422
      %v3455 = vpack.c.b16 %v3423, %v3423
      %v3456 = vpack.c.b16 %v3424, %v3424
      %v3457 = vpack.c.b16 %v3425, %v3425
      %v3458 = vpack.c.b16 %v3426, %v3426
      %v3459 = vpack.c.b16 %v3427, %v3427
      %v3460 = vpack.c.b16 %v3428, %v3428
      %v3461 = vpack.c.b16 %v3429, %v3429
      %v3462 = vpack.c.b16 %v3430, %v3430
      %v3463 = vpack.c.b16 %v3431, %v3431
      %v3464 = vpack.c.b16 %v3432, %v3432
      %v3465 = vpack.c.b16 %v3433, %v3433
      %v3466 = vpack.c.b16 %v3434, %v3434
      %v3467 = vpack.c.b16 %v3435, %v3435
      %v3468 = vpack.c.b16 %v3436, %v3436
      %v3469 = vpack.c.b16 %v3437, %v3437
      %v3470 = vpack.c.b16 %v3438, %v3438
      %vm3503 = vcmask 27648
      %3504 = vst.msk [vmem:[%s258] sm:$0xf] %vm3503, %v3439
      %3505 = vst.msk [vmem:[%s258 + $0x4] sm:$0xf] %vm3503, %v3440
      %3506 = vst.msk [vmem:[%s258 + $0x8] sm:$0xf] %vm3503, %v3441
      %3507 = vst.msk [vmem:[%s258 + $0xc] sm:$0xf] %vm3503, %v3442
      %3508 = vst.msk [vmem:[%s258 + $0x10] sm:$0xf] %vm3503, %v3443
      %3509 = vst.msk [vmem:[%s258 + $0x14] sm:$0xf] %vm3503, %v3444
      %3510 = vst.msk [vmem:[%s258 + $0x18] sm:$0xf] %vm3503, %v3445
      %3511 = vst.msk [vmem:[%s258 + $0x1c] sm:$0xf] %vm3503, %v3446
      %3512 = vst.msk [vmem:[%s258 + $0x20] sm:$0xf] %vm3503, %v3447
      %3513 = vst.msk [vmem:[%s258 + $0x24] sm:$0xf] %vm3503, %v3448
      %3514 = vst.msk [vmem:[%s258 + $0x28] sm:$0xf] %vm3503, %v3449
      %3515 = vst.msk [vmem:[%s258 + $0x2c] sm:$0xf] %vm3503, %v3450
      %3516 = vst.msk [vmem:[%s258 + $0x30] sm:$0xf] %vm3503, %v3451
      %3517 = vst.msk [vmem:[%s258 + $0x34] sm:$0xf] %vm3503, %v3452
      %3518 = vst.msk [vmem:[%s258 + $0x38] sm:$0xf] %vm3503, %v3453
      %3519 = vst.msk [vmem:[%s258 + $0x3c] sm:$0xf] %vm3503, %v3454
      %3520 = vst.msk [vmem:[%s258 + $0x40] sm:$0xf] %vm3503, %v3455
      %3521 = vst.msk [vmem:[%s258 + $0x44] sm:$0xf] %vm3503, %v3456
      %3522 = vst.msk [vmem:[%s258 + $0x48] sm:$0xf] %vm3503, %v3457
      %3523 = vst.msk [vmem:[%s258 + $0x4c] sm:$0xf] %vm3503, %v3458
      %3524 = vst.msk [vmem:[%s258 + $0x50] sm:$0xf] %vm3503, %v3459
      %3525 = vst.msk [vmem:[%s258 + $0x54] sm:$0xf] %vm3503, %v3460
      %3526 = vst.msk [vmem:[%s258 + $0x58] sm:$0xf] %vm3503, %v3461
      %3527 = vst.msk [vmem:[%s258 + $0x5c] sm:$0xf] %vm3503, %v3462
      %3528 = vst.msk [vmem:[%s258 + $0x60] sm:$0xf] %vm3503, %v3463
      %3529 = vst.msk [vmem:[%s258 + $0x64] sm:$0xf] %vm3503, %v3464
      %3530 = vst.msk [vmem:[%s258 + $0x68] sm:$0xf] %vm3503, %v3465
      %3531 = vst.msk [vmem:[%s258 + $0x6c] sm:$0xf] %vm3503, %v3466
      %3532 = vst.msk [vmem:[%s258 + $0x70] sm:$0xf] %vm3503, %v3467
      %3533 = vst.msk [vmem:[%s258 + $0x74] sm:$0xf] %vm3503, %v3468
      %3534 = vst.msk [vmem:[%s258 + $0x78] sm:$0xf] %vm3503, %v3469
      %3535 = vst.msk [vmem:[%s258 + $0x7c] sm:$0xf] %vm3503, %v3470
      %p3536 = scmp.lt.s32.totalorder %s18, 1
      %s3537 = scalar_select %p3536, %s18, 1
      %s3538 = smul.addr %s3537, 32
      %s3539 = smul.addr %s3538, 4
      %s3540 = scalar_lea.vmem %s5, %s3539
      %p3541 = scmp.lt.s32.totalorder %s18, 1
      %s3542 = scalar_select %p3541, %s18, 1
      %s3543 = smul.addr %s3542, 2
      %s3544 = scalar_lea.vmem %s6, %s3543
      // Predicated region
      $region41: #{residual_block.4} parent=39 // pred_check
        %p3545 = pneg %p146
      $region42: #{residual_block.4} parent=39 // pred_check_branch
        %3547 = sbr.rel (%p3545) target = $region44
      $region43: #{residual_block.4} parent=39 // pred_region
        _
      $region44: #{residual_block.4} parent=39 // pred_fallthru
        _
      // Predicated region
      $region45: #{residual_block.4} parent=39 // pred_check
        %p3548 = pneg %p172
      $region46: #{residual_block.4} parent=39 // pred_check_branch
        %3550 = sbr.rel (%p3548) target = $region48
      $region47: #{residual_block.4} parent=39 // pred_region
        _
      $region48: #{residual_block.4} parent=39 // pred_fallthru
        _
    $region40: #{residual_block.4} parent=5 // pred_fallthru
      _
    %p3551 = scmp.le.s32.totalorder 2, %s13
    // Predicated region
    $region49: #{residual_block.4} parent=5 // pred_check
      %p3552 = pneg %p3551
    $region50: #{residual_block.4} parent=5 // pred_check_branch
      %3554 = sbr.rel (%p3552) target = $region52
    $region51: #{residual_block.4} parent=5 // pred_region
      %s3555 = ssub.s32 %s13, 2
      // Predicated region
      $region53: #{residual_block.4} parent=51 // pred_check
        %p3556 = pneg %p152
      $region54: #{residual_block.4} parent=51 // pred_check_branch
        %3558 = sbr.rel (%p3556) target = $region56
      $region55: #{residual_block.4} parent=51 // pred_region
        %p3559 = scmp.lt.s32.totalorder %s19, 1
        %s3560 = scalar_select %p3559, %s19, 1
        %s3561 = smul.addr %s3560, 32
        %s3562 = smul.addr %s3561, 4
        %s3563 = scalar_lea.vmem %s5, %s3562
      $region56: #{residual_block.4} parent=51 // pred_fallthru
        _
      // Predicated region
      $region57: #{residual_block.4} parent=51 // pred_check
        %p3564 = pneg %p178
      $region58: #{residual_block.4} parent=51 // pred_check_branch
        %3566 = sbr.rel (%p3564) target = $region60
      $region59: #{residual_block.4} parent=51 // pred_region
        %p3567 = scmp.lt.s32.totalorder %s19, 1
        %s3568 = scalar_select %p3567, %s19, 1
        %s3569 = smul.addr %s3568, 2
        %s3570 = scalar_lea.vmem %s6, %s3569
      $region60: #{residual_block.4} parent=51 // pred_fallthru
        _
    $region52: #{residual_block.4} parent=5 // pred_fallthru
      _
  $region6: #{residual_block.4} parent=0 // loop_footer
    %s17 = sadd.s32 1, %s13
  $region7: #{residual_block.4} parent=0 // loop_footer_branch
    %12 = sbr.rel target = $region3
  $region8: #{residual_block.4} parent=0 // loop_exit
    _

</llo_original>
